<compile_context>
chip_gen: v7x
topology: tpu7x:2x2x1
jax: 0.10.0
libtpu: 0.0.40
codegen_flags: <defaults>
</compile_context>

<pallas_src>
import functools

import jax
import jax.numpy as jnp
from jax.experimental import pallas as pl
from jax.experimental.pallas import tpu as pltpu

_MIB = 1024 * 1024
_LANE = 128
# Fully unroll the dependent 20-matmul chain only for small iterates; for big
# layers a rolled fori_loop bounds live ranges at negligible overhead.
_UNROLL_ELEM_LIMIT = 512 * 512


def _round_up(x, m):
    return ((x + m - 1) // m) * m


def _vmem_limit_bytes(need_bytes):
    """Scoped-VMEM budget: 2x residency, clamped below the chip's physical VMEM."""
    try:
        cap = int(getattr(pltpu.get_tpu_info(), "vmem_capacity_bytes", 64 * _MIB))
    except Exception:
        cap = 64 * _MIB  # conservative fallback (v7x per-TC VMEM)
    return int(min(max(2 * int(need_bytes), 16 * _MIB), cap - 8 * _MIB))


def _bjorck_iterate(c, *, iters, beta, unroll, matmul_dtype, f32_tail_iters):
    """C <- ((1+beta)I - beta * C C^T) C, repeated `iters` times.

    C has shape (small, big): Gram is min(out,in)^2, Gram matmul is trans-B,
    the update is canonical k-major, and the axpy is folded into the small
    matrix A.  Optionally most iterations use bf16 MXU operands (f32
    accumulation) with an f32 tail of `f32_tail_iters`.
    """
    g = c.shape[0]
    rows = jax.lax.broadcasted_iota(jnp.int32, (g, g), 0)
    cols = jax.lax.broadcasted_iota(jnp.int32, (g, g), 1)
    # (1+beta) * I, built once (hoisted out of the loop).
    eye_scaled = jnp.where(rows == cols, jnp.float32(1.0 + beta), jnp.float32(0.0))
    trans_b = (((1,), (1,)), ((), ()))

    def step(v, op_dtype):
        vd = v.astype(op_dtype)
        gram = jax.lax.dot_general(vd, vd, dimension_numbers=trans_b,
                                   preferred_element_type=jnp.float32)
        a = (eye_scaled - beta * gram).astype(op_dtype)
        return jnp.dot(a, vd, preferred_element_type=jnp.float32)

    if jnp.dtype(matmul_dtype) == jnp.dtype(jnp.float32):
        n_fast, n_f32 = 0, iters
    else:
        n_f32 = min(int(f32_tail_iters), iters)
        n_fast = iters - n_f32

    if n_fast:
        c = jax.lax.fori_loop(0, n_fast, lambda _, v: step(v, matmul_dtype), c,
                              unroll=unroll)
    if n_f32:
        c = jax.lax.fori_loop(0, n_f32, lambda _, v: step(v, jnp.float32), c,
                              unroll=unroll)
    return c


def _bjorck_linear_fused_kernel(x_ref, c_ref, b_ref, out_ref, *, iters, beta,
                                inv_scaling, c_is_native, unroll,
                                matmul_dtype, f32_tail_iters):
    # c_ref: (small_p, big_p) zero-padded iterate; x_ref: (B_p, in_p);
    # b_ref: (1, out_p); out_ref: (B_p, out_p).
    c = c_ref[...].astype(jnp.float32) * inv_scaling
    c = _bjorck_iterate(c, iters=iters, beta=beta, unroll=unroll,
                        matmul_dtype=matmul_dtype, f32_tail_iters=f32_tail_iters)

    x = x_ref[...]
    if x.dtype == jnp.bfloat16:
        c_g = c.astype(jnp.bfloat16)        # bf16 MXU rate, f32 accumulation
    else:
        c_g = c
        x = x.astype(jnp.float32)
    if c_is_native:
        dn = (((1,), (1,)), ((), ()))       # c: (out_p, in_p) -> y = x @ c^T
    else:
        dn = (((1,), (0,)), ((), ()))       # c: (in_p, out_p) -> y = x @ c
    y = jax.lax.dot_general(x, c_g, dimension_numbers=dn,
                            preferred_element_type=jnp.float32)
    out_ref[...] = (y + b_ref[...].astype(jnp.float32)).astype(out_ref.dtype)


def _bjorck_ortho_kernel(c_ref, c_out_ref, *, iters, beta, inv_scaling, unroll,
                         matmul_dtype, f32_tail_iters):
    c = c_ref[...].astype(jnp.float32) * inv_scaling
    c = _bjorck_iterate(c, iters=iters, beta=beta, unroll=unroll,
                        matmul_dtype=matmul_dtype, f32_tail_iters=f32_tail_iters)
    c_out_ref[...] = c.astype(c_out_ref.dtype)


def _gemm_bias_kernel(x_ref, c_ref, b_ref, out_ref, *, c_is_native):
    x = x_ref[...]
    c = c_ref[...]
    if x.dtype == jnp.bfloat16:
        c = c.astype(jnp.bfloat16)
    else:
        x = x.astype(jnp.float32)
        c = c.astype(jnp.float32)
    dn = (((1,), (1,)), ((), ())) if c_is_native else (((1,), (0,)), ((), ()))
    y = jax.lax.dot_general(x, c, dimension_numbers=dn,
                            preferred_element_type=jnp.float32)
    out_ref[...] = (y + b_ref[...].astype(jnp.float32)).astype(out_ref.dtype)


def bjorck_linear(x, weight, bias=None, *, iters=20, beta=0.5,
                  bjorck_matmul_dtype=jnp.float32, f32_tail_iters=3,
                  split_gemm=None):
    """x: (B, in_f), weight: (out_f, in_f), bias: (out_f,) or None."""
    batch, in_f = x.shape
    out_f, in_f_w = weight.shape
    assert in_f == in_f_w, (in_f, in_f_w)
    if bias is None:
        bias = jnp.zeros((out_f,), dtype=jnp.float32)

    # scaling from the ORIGINAL (unpadded) shapes, as in the PyTorch module.
    scaling = float(out_f * in_f) ** 0.5
    inv_scaling = 1.0 / scaling

    in_p = _round_up(in_f, _LANE)
    out_p = _round_up(out_f, _LANE)

    # Carry the iterate with the SMALL dim leading (Gram-side selection).
    c_is_native = out_f <= in_f
    w_mat = weight if c_is_native else weight.T     # one-time, off critical path
    small_p, big_p = (out_p, in_p) if c_is_native else (in_p, out_p)
    c0 = jnp.pad(w_mat, ((0, small_p - w_mat.shape[0]),
                         (0, big_p - w_mat.shape[1])))

    sublane = 16 if x.dtype == jnp.bfloat16 else 8
    bias_pad = jnp.pad(bias, (0, out_p - out_f)).reshape(1, out_p)

    vmem = pltpu.MemorySpace.VMEM
    unroll = (small_p * big_p) <= _UNROLL_ELEM_LIMIT
    ortho_flops = int(iters) * 4 * small_p * small_p * big_p

    if split_gemm is None:
        # A second kernel / HBM round-trip of C only pays off once the
        # activations are large (pipelined DMA + both v7x TCs on the GEMM).
        split_gemm = batch >= 1024

    if not split_gemm:
        # -------- single VMEM-resident kernel: orthonormalize + GEMM --------
        b_p = _round_up(max(batch, 1), sublane)
        x_pad = jnp.pad(x, ((0, b_p - batch), (0, in_p - in_f)))

        kernel = functools.partial(
            _bjorck_linear_fused_kernel, iters=iters, beta=beta,
            inv_scaling=inv_scaling, c_is_native=c_is_native, unroll=unroll,
            matmul_dtype=bjorck_matmul_dtype, f32_tail_iters=f32_tail_iters)

        flops = ortho_flops + 2 * b_p * in_p * out_p
        bytes_accessed = (x_pad.size * x_pad.dtype.itemsize
                          + c0.size * c0.dtype.itemsize
                          + bias_pad.size * bias_pad.dtype.itemsize
                          + b_p * out_p * x.dtype.itemsize)
        # Residency: C input + f32 C + A@C temp, Gram + A, x (+f32 copy),
        # y (+f32 acc), bias.
        need = (4 * 3 * small_p * big_p + 4 * 2 * small_p * small_p
                + 8 * b_p * in_p + 8 * b_p * out_p + 4 * out_p)

        y_pad = pl.pallas_call(
            kernel,
            out_shape=jax.ShapeDtypeStruct((b_p, out_p), x.dtype),
            in_specs=[pl.BlockSpec(memory_space=vmem)] * 3,
            out_specs=pl.BlockSpec(memory_space=vmem),
            compiler_params=pltpu.CompilerParams(
                vmem_limit_bytes=_vmem_limit_bytes(need)),
            cost_estimate=pl.CostEstimate(flops=int(flops), transcendentals=0,
                                          bytes_accessed=int(bytes_accessed)),
        )(x_pad, c0, bias_pad)
        return y_pad[:batch, :out_f]

    # -------- split path: ortho kernel, then batch-tiled 'parallel' GEMM ----
    ortho_kernel = functools.partial(
        _bjorck_ortho_kernel, iters=iters, beta=beta, inv_scaling=inv_scaling,
        unroll=unroll, matmul_dtype=bjorck_matmul_dtype,
        f32_tail_iters=f32_tail_iters)
    need_o = 4 * 3 * small_p * big_p + 4 * 2 * small_p * small_p
    c_final = pl.pallas_call(
        ortho_kernel,
        out_shape=jax.ShapeDtypeStruct((small_p, big_p), jnp.float32),
        in_specs=[pl.BlockSpec(memory_space=vmem)],
        out_specs=pl.BlockSpec(memory_space=vmem),
        compiler_params=pltpu.CompilerParams(
            vmem_limit_bytes=_vmem_limit_bytes(need_o)),
        cost_estimate=pl.CostEstimate(flops=int(ortho_flops), transcendentals=0,
                                      bytes_accessed=int(8 * small_p * big_p)),
    )(c0)

    tb = min(256, _round_up(max(batch, 1), sublane))
    b_p = _round_up(max(batch, 1), tb)
    x_pad = jnp.pad(x, ((0, b_p - batch), (0, in_p - in_f)))

    gemm_kernel = functools.partial(_gemm_bias_kernel, c_is_native=c_is_native)
    need_g = (2 * tb * in_p * x.dtype.itemsize + 4 * small_p * big_p
              + 4 * out_p + 2 * (4 + x.dtype.itemsize) * tb * out_p)
    gemm_bytes = (x_pad.size * x_pad.dtype.itemsize + 4 * small_p * big_p
                  + b_p * out_p * x.dtype.itemsize + 4 * out_p)
    y_pad = pl.pallas_call(
        gemm_kernel,
        out_shape=jax.ShapeDtypeStruct((b_p, out_p), x.dtype),
        grid_spec=pltpu.PrefetchScalarGridSpec(
            num_scalar_prefetch=0,
            grid=(b_p // tb,),
            in_specs=[pl.BlockSpec((tb, in_p), lambda i: (i, 0)),
                      pl.BlockSpec((small_p, big_p), lambda i: (0, 0)),
                      pl.BlockSpec((1, out_p), lambda i: (0, 0))],
            out_specs=pl.BlockSpec((tb, out_p), lambda i: (i, 0))),
        compiler_params=pltpu.CompilerParams(
            dimension_semantics=("parallel",),
            vmem_limit_bytes=_vmem_limit_bytes(need_g)),
        cost_estimate=pl.CostEstimate(flops=int(2 * b_p * in_p * out_p),
                                      transcendentals=0,
                                      bytes_accessed=int(gemm_bytes)),
    )(x_pad, c_final, bias_pad)
    return y_pad[:batch, :out_f]


# ---------------- reference (pure JAX, mirrors the PyTorch code) ----------------
def _bjorck_ref(x, weight, bias, iters=20, beta=0.5):
    out_f, in_f = weight.shape
    scaling = jnp.sqrt(jnp.float32(out_f * in_f))
    w = weight.T.astype(jnp.float32) / scaling
    for _ in range(iters):
        w = (1.0 + beta) * w - beta * (w @ (w.T @ w))
    return x.astype(jnp.float32) @ w + bias.astype(jnp.float32)


if __name__ == "__main__":
    in_features, out_features, batch = 32, 16, 8
    key = jax.random.PRNGKey(0)
    k_w, k_b, k_x = jax.random.split(key, 3)

    # Deterministic params mimicking reset_parameters: orthogonal init with
    # gain = 1/sqrt(in_features), bias ~ U(-stdv, stdv).
    stdv = 1.0 / (in_features ** 0.5)
    weight = jax.nn.initializers.orthogonal(scale=stdv)(
        k_w, (out_features, in_features), jnp.float32)
    bias = jax.random.uniform(k_b, (out_features,), jnp.float32,
                              minval=-stdv, maxval=stdv)
    x = jax.random.normal(k_x, (batch, in_features), jnp.float32)
    y_ref = _bjorck_ref(x, weight, bias)

    # 1) Fused single-kernel path (default, f32 Bjorck chain) — tight tolerance.
    y = bjorck_linear(x, weight, bias)
    jax.block_until_ready(y)
    assert y.shape == (batch, out_features)
    assert jnp.allclose(y, y_ref, atol=1e-4, rtol=1e-4), (
        float(jnp.max(jnp.abs(y - y_ref))))

    # 2) Split path (ortho kernel + batch-tiled 'parallel' GEMM).
    batch2 = 64
    x2 = jax.random.normal(jax.random.fold_in(key, 1), (batch2, in_features),
                           jnp.float32)
    y2 = bjorck_linear(x2, weight, bias, split_gemm=True)
    jax.block_until_ready(y2)
    y2_ref = _bjorck_ref(x2, weight, bias)
    assert jnp.allclose(y2, y2_ref, atol=1e-4, rtol=1e-4), (
        float(jnp.max(jnp.abs(y2 - y2_ref))))

    # 3) Tall-weight case exercises the other Gram orientation (in < out).
    in3, out3 = 16, 48
    stdv3 = 1.0 / (in3 ** 0.5)
    w3 = jax.nn.initializers.orthogonal(scale=stdv3)(
        jax.random.fold_in(key, 2), (out3, in3), jnp.float32)
    b3 = jax.random.uniform(jax.random.fold_in(key, 3), (out3,), jnp.float32,
                            minval=-stdv3, maxval=stdv3)
    x3 = jax.random.normal(jax.random.fold_in(key, 4), (batch, in3), jnp.float32)
    y3 = bjorck_linear(x3, w3, b3)
    jax.block_until_ready(y3)
    y3_ref = _bjorck_ref(x3, w3, b3)
    assert jnp.allclose(y3, y3_ref, atol=1e-4, rtol=1e-4), (
        float(jnp.max(jnp.abs(y3 - y3_ref))))

    # 4) Opt-in bf16-operand Bjorck matmuls (f32 accumulation + f32 tail):
    #    validated at the looser tolerance bf16 operands imply.
    y4 = bjorck_linear(x, weight, bias, bjorck_matmul_dtype=jnp.bfloat16)
    jax.block_until_ready(y4)
    assert bool(jnp.all(jnp.isfinite(y4)))
    assert float(jnp.max(jnp.abs(y4 - y_ref))) < 0.25

    print("KERNEL_OK")
</pallas_src>

<mosaic_0001>
module attributes {stable_mosaic.version = 11 : i64} {
  func.func @_bjorck_linear_fused_kernel(%arg0: memref<8x128xf32, #tpu.memory_space<vmem>>, %arg1: memref<128x128xf32, #tpu.memory_space<vmem>>, %arg2: memref<1x128xf32, #tpu.memory_space<vmem>>, %arg3: memref<8x128xf32, #tpu.memory_space<vmem>>) attributes {dimension_semantics = [], scalar_prefetch = 0 : i64, scratch_operands = 0 : i64, tpu.core_type = #tpu.core_type<tc>} {
    %c0 = arith.constant 0 : index
    %c0_0 = arith.constant 0 : index
    %0 = vector.load %arg1[%c0, %c0_0] : memref<128x128xf32, #tpu.memory_space<vmem>>, vector<128x128xf32>
    %cst = arith.constant 0.0441941731 : f32
    %1 = vector.broadcast %cst : f32 to vector<128x128xf32>
    %2 = arith.mulf %0, %1 : vector<128x128xf32>
    %3 = tpu.iota {dimensions = array<i32: 0>} : vector<128x128xi32>
    %4 = tpu.iota {dimensions = array<i32: 1>} : vector<128x128xi32>
    %5 = arith.cmpi eq, %3, %4 : vector<128x128xi32>
    %cst_1 = arith.constant 1.500000e+00 : f32
    %cst_2 = arith.constant 0.000000e+00 : f32
    %6 = vector.broadcast %cst_1 : f32 to vector<128x128xf32>
    %7 = vector.broadcast %cst_2 : f32 to vector<128x128xf32>
    %8 = arith.select %5, %6, %7 : vector<128x128xi1>, vector<128x128xf32>
    %c0_i32 = arith.constant 0 : i32
    %cst_3 = arith.constant dense<0.000000e+00> : vector<128x128xf32>
    %9 = tpu.matmul %2, %2, %cst_3 {dimension_numbers = #tpu.dot_dimension_numbers<[1], [1], [0], [0], [0, 0, 1, 0], [], []>} : vector<128x128xf32>, vector<128x128xf32>, vector<128x128xf32> -> vector<128x128xf32>
    %cst_4 = arith.constant 5.000000e-01 : f32
    %10 = vector.broadcast %cst_4 : f32 to vector<128x128xf32>
    %11 = arith.mulf %10, %9 : vector<128x128xf32>
    %12 = arith.subf %8, %11 : vector<128x128xf32>
    %cst_5 = arith.constant dense<0.000000e+00> : vector<128x128xf32>
    %13 = tpu.matmul %12, %2, %cst_5 {dimension_numbers = #tpu.dot_dimension_numbers<[1], [0], [0], [1], [0, 0, 1, 1], [], []>} : vector<128x128xf32>, vector<128x128xf32>, vector<128x128xf32> -> vector<128x128xf32>
    %c1_i32 = arith.constant 1 : i32
    %cst_6 = arith.constant dense<0.000000e+00> : vector<128x128xf32>
    %14 = tpu.matmul %13, %13, %cst_6 {dimension_numbers = #tpu.dot_dimension_numbers<[1], [1], [0], [0], [0, 0, 1, 0], [], []>} : vector<128x128xf32>, vector<128x128xf32>, vector<128x128xf32> -> vector<128x128xf32>
    %cst_7 = arith.constant 5.000000e-01 : f32
    %15 = vector.broadcast %cst_7 : f32 to vector<128x128xf32>
    %16 = arith.mulf %15, %14 : vector<128x128xf32>
    %17 = arith.subf %8, %16 : vector<128x128xf32>
    %cst_8 = arith.constant dense<0.000000e+00> : vector<128x128xf32>
    %18 = tpu.matmul %17, %13, %cst_8 {dimension_numbers = #tpu.dot_dimension_numbers<[1], [0], [0], [1], [0, 0, 1, 1], [], []>} : vector<128x128xf32>, vector<128x128xf32>, vector<128x128xf32> -> vector<128x128xf32>
    %c2_i32 = arith.constant 2 : i32
    %cst_9 = arith.constant dense<0.000000e+00> : vector<128x128xf32>
    %19 = tpu.matmul %18, %18, %cst_9 {dimension_numbers = #tpu.dot_dimension_numbers<[1], [1], [0], [0], [0, 0, 1, 0], [], []>} : vector<128x128xf32>, vector<128x128xf32>, vector<128x128xf32> -> vector<128x128xf32>
    %cst_10 = arith.constant 5.000000e-01 : f32
    %20 = vector.broadcast %cst_10 : f32 to vector<128x128xf32>
    %21 = arith.mulf %20, %19 : vector<128x128xf32>
    %22 = arith.subf %8, %21 : vector<128x128xf32>
    %cst_11 = arith.constant dense<0.000000e+00> : vector<128x128xf32>
    %23 = tpu.matmul %22, %18, %cst_11 {dimension_numbers = #tpu.dot_dimension_numbers<[1], [0], [0], [1], [0, 0, 1, 1], [], []>} : vector<128x128xf32>, vector<128x128xf32>, vector<128x128xf32> -> vector<128x128xf32>
    %c3_i32 = arith.constant 3 : i32
    %cst_12 = arith.constant dense<0.000000e+00> : vector<128x128xf32>
    %24 = tpu.matmul %23, %23, %cst_12 {dimension_numbers = #tpu.dot_dimension_numbers<[1], [1], [0], [0], [0, 0, 1, 0], [], []>} : vector<128x128xf32>, vector<128x128xf32>, vector<128x128xf32> -> vector<128x128xf32>
    %cst_13 = arith.constant 5.000000e-01 : f32
    %25 = vector.broadcast %cst_13 : f32 to vector<128x128xf32>
    %26 = arith.mulf %25, %24 : vector<128x128xf32>
    %27 = arith.subf %8, %26 : vector<128x128xf32>
    %cst_14 = arith.constant dense<0.000000e+00> : vector<128x128xf32>
    %28 = tpu.matmul %27, %23, %cst_14 {dimension_numbers = #tpu.dot_dimension_numbers<[1], [0], [0], [1], [0, 0, 1, 1], [], []>} : vector<128x128xf32>, vector<128x128xf32>, vector<128x128xf32> -> vector<128x128xf32>
    %c4_i32 = arith.constant 4 : i32
    %cst_15 = arith.constant dense<0.000000e+00> : vector<128x128xf32>
    %29 = tpu.matmul %28, %28, %cst_15 {dimension_numbers = #tpu.dot_dimension_numbers<[1], [1], [0], [0], [0, 0, 1, 0], [], []>} : vector<128x128xf32>, vector<128x128xf32>, vector<128x128xf32> -> vector<128x128xf32>
    %cst_16 = arith.constant 5.000000e-01 : f32
    %30 = vector.broadcast %cst_16 : f32 to vector<128x128xf32>
    %31 = arith.mulf %30, %29 : vector<128x128xf32>
    %32 = arith.subf %8, %31 : vector<128x128xf32>
    %cst_17 = arith.constant dense<0.000000e+00> : vector<128x128xf32>
    %33 = tpu.matmul %32, %28, %cst_17 {dimension_numbers = #tpu.dot_dimension_numbers<[1], [0], [0], [1], [0, 0, 1, 1], [], []>} : vector<128x128xf32>, vector<128x128xf32>, vector<128x128xf32> -> vector<128x128xf32>
    %c5_i32 = arith.constant 5 : i32
    %cst_18 = arith.constant dense<0.000000e+00> : vector<128x128xf32>
    %34 = tpu.matmul %33, %33, %cst_18 {dimension_numbers = #tpu.dot_dimension_numbers<[1], [1], [0], [0], [0, 0, 1, 0], [], []>} : vector<128x128xf32>, vector<128x128xf32>, vector<128x128xf32> -> vector<128x128xf32>
    %cst_19 = arith.constant 5.000000e-01 : f32
    %35 = vector.broadcast %cst_19 : f32 to vector<128x128xf32>
    %36 = arith.mulf %35, %34 : vector<128x128xf32>
    %37 = arith.subf %8, %36 : vector<128x128xf32>
    %cst_20 = arith.constant dense<0.000000e+00> : vector<128x128xf32>
    %38 = tpu.matmul %37, %33, %cst_20 {dimension_numbers = #tpu.dot_dimension_numbers<[1], [0], [0], [1], [0, 0, 1, 1], [], []>} : vector<128x128xf32>, vector<128x128xf32>, vector<128x128xf32> -> vector<128x128xf32>
    %c6_i32 = arith.constant 6 : i32
    %cst_21 = arith.constant dense<0.000000e+00> : vector<128x128xf32>
    %39 = tpu.matmul %38, %38, %cst_21 {dimension_numbers = #tpu.dot_dimension_numbers<[1], [1], [0], [0], [0, 0, 1, 0], [], []>} : vector<128x128xf32>, vector<128x128xf32>, vector<128x128xf32> -> vector<128x128xf32>
    %cst_22 = arith.constant 5.000000e-01 : f32
    %40 = vector.broadcast %cst_22 : f32 to vector<128x128xf32>
    %41 = arith.mulf %40, %39 : vector<128x128xf32>
    %42 = arith.subf %8, %41 : vector<128x128xf32>
    %cst_23 = arith.constant dense<0.000000e+00> : vector<128x128xf32>
    %43 = tpu.matmul %42, %38, %cst_23 {dimension_numbers = #tpu.dot_dimension_numbers<[1], [0], [0], [1], [0, 0, 1, 1], [], []>} : vector<128x128xf32>, vector<128x128xf32>, vector<128x128xf32> -> vector<128x128xf32>
    %c7_i32 = arith.constant 7 : i32
    %cst_24 = arith.constant dense<0.000000e+00> : vector<128x128xf32>
    %44 = tpu.matmul %43, %43, %cst_24 {dimension_numbers = #tpu.dot_dimension_numbers<[1], [1], [0], [0], [0, 0, 1, 0], [], []>} : vector<128x128xf32>, vector<128x128xf32>, vector<128x128xf32> -> vector<128x128xf32>
    %cst_25 = arith.constant 5.000000e-01 : f32
    %45 = vector.broadcast %cst_25 : f32 to vector<128x128xf32>
    %46 = arith.mulf %45, %44 : vector<128x128xf32>
    %47 = arith.subf %8, %46 : vector<128x128xf32>
    %cst_26 = arith.constant dense<0.000000e+00> : vector<128x128xf32>
    %48 = tpu.matmul %47, %43, %cst_26 {dimension_numbers = #tpu.dot_dimension_numbers<[1], [0], [0], [1], [0, 0, 1, 1], [], []>} : vector<128x128xf32>, vector<128x128xf32>, vector<128x128xf32> -> vector<128x128xf32>
    %c8_i32 = arith.constant 8 : i32
    %cst_27 = arith.constant dense<0.000000e+00> : vector<128x128xf32>
    %49 = tpu.matmul %48, %48, %cst_27 {dimension_numbers = #tpu.dot_dimension_numbers<[1], [1], [0], [0], [0, 0, 1, 0], [], []>} : vector<128x128xf32>, vector<128x128xf32>, vector<128x128xf32> -> vector<128x128xf32>
    %cst_28 = arith.constant 5.000000e-01 : f32
    %50 = vector.broadcast %cst_28 : f32 to vector<128x128xf32>
    %51 = arith.mulf %50, %49 : vector<128x128xf32>
    %52 = arith.subf %8, %51 : vector<128x128xf32>
    %cst_29 = arith.constant dense<0.000000e+00> : vector<128x128xf32>
    %53 = tpu.matmul %52, %48, %cst_29 {dimension_numbers = #tpu.dot_dimension_numbers<[1], [0], [0], [1], [0, 0, 1, 1], [], []>} : vector<128x128xf32>, vector<128x128xf32>, vector<128x128xf32> -> vector<128x128xf32>
    %c9_i32 = arith.constant 9 : i32
    %cst_30 = arith.constant dense<0.000000e+00> : vector<128x128xf32>
    %54 = tpu.matmul %53, %53, %cst_30 {dimension_numbers = #tpu.dot_dimension_numbers<[1], [1], [0], [0], [0, 0, 1, 0], [], []>} : vector<128x128xf32>, vector<128x128xf32>, vector<128x128xf32> -> vector<128x128xf32>
    %cst_31 = arith.constant 5.000000e-01 : f32
    %55 = vector.broadcast %cst_31 : f32 to vector<128x128xf32>
    %56 = arith.mulf %55, %54 : vector<128x128xf32>
    %57 = arith.subf %8, %56 : vector<128x128xf32>
    %cst_32 = arith.constant dense<0.000000e+00> : vector<128x128xf32>
    %58 = tpu.matmul %57, %53, %cst_32 {dimension_numbers = #tpu.dot_dimension_numbers<[1], [0], [0], [1], [0, 0, 1, 1], [], []>} : vector<128x128xf32>, vector<128x128xf32>, vector<128x128xf32> -> vector<128x128xf32>
    %c10_i32 = arith.constant 10 : i32
    %cst_33 = arith.constant dense<0.000000e+00> : vector<128x128xf32>
    %59 = tpu.matmul %58, %58, %cst_33 {dimension_numbers = #tpu.dot_dimension_numbers<[1], [1], [0], [0], [0, 0, 1, 0], [], []>} : vector<128x128xf32>, vector<128x128xf32>, vector<128x128xf32> -> vector<128x128xf32>
    %cst_34 = arith.constant 5.000000e-01 : f32
    %60 = vector.broadcast %cst_34 : f32 to vector<128x128xf32>
    %61 = arith.mulf %60, %59 : vector<128x128xf32>
    %62 = arith.subf %8, %61 : vector<128x128xf32>
    %cst_35 = arith.constant dense<0.000000e+00> : vector<128x128xf32>
    %63 = tpu.matmul %62, %58, %cst_35 {dimension_numbers = #tpu.dot_dimension_numbers<[1], [0], [0], [1], [0, 0, 1, 1], [], []>} : vector<128x128xf32>, vector<128x128xf32>, vector<128x128xf32> -> vector<128x128xf32>
    %c11_i32 = arith.constant 11 : i32
    %cst_36 = arith.constant dense<0.000000e+00> : vector<128x128xf32>
    %64 = tpu.matmul %63, %63, %cst_36 {dimension_numbers = #tpu.dot_dimension_numbers<[1], [1], [0], [0], [0, 0, 1, 0], [], []>} : vector<128x128xf32>, vector<128x128xf32>, vector<128x128xf32> -> vector<128x128xf32>
    %cst_37 = arith.constant 5.000000e-01 : f32
    %65 = vector.broadcast %cst_37 : f32 to vector<128x128xf32>
    %66 = arith.mulf %65, %64 : vector<128x128xf32>
    %67 = arith.subf %8, %66 : vector<128x128xf32>
    %cst_38 = arith.constant dense<0.000000e+00> : vector<128x128xf32>
    %68 = tpu.matmul %67, %63, %cst_38 {dimension_numbers = #tpu.dot_dimension_numbers<[1], [0], [0], [1], [0, 0, 1, 1], [], []>} : vector<128x128xf32>, vector<128x128xf32>, vector<128x128xf32> -> vector<128x128xf32>
    %c12_i32 = arith.constant 12 : i32
    %cst_39 = arith.constant dense<0.000000e+00> : vector<128x128xf32>
    %69 = tpu.matmul %68, %68, %cst_39 {dimension_numbers = #tpu.dot_dimension_numbers<[1], [1], [0], [0], [0, 0, 1, 0], [], []>} : vector<128x128xf32>, vector<128x128xf32>, vector<128x128xf32> -> vector<128x128xf32>
    %cst_40 = arith.constant 5.000000e-01 : f32
    %70 = vector.broadcast %cst_40 : f32 to vector<128x128xf32>
    %71 = arith.mulf %70, %69 : vector<128x128xf32>
    %72 = arith.subf %8, %71 : vector<128x128xf32>
    %cst_41 = arith.constant dense<0.000000e+00> : vector<128x128xf32>
    %73 = tpu.matmul %72, %68, %cst_41 {dimension_numbers = #tpu.dot_dimension_numbers<[1], [0], [0], [1], [0, 0, 1, 1], [], []>} : vector<128x128xf32>, vector<128x128xf32>, vector<128x128xf32> -> vector<128x128xf32>
    %c13_i32 = arith.constant 13 : i32
    %cst_42 = arith.constant dense<0.000000e+00> : vector<128x128xf32>
    %74 = tpu.matmul %73, %73, %cst_42 {dimension_numbers = #tpu.dot_dimension_numbers<[1], [1], [0], [0], [0, 0, 1, 0], [], []>} : vector<128x128xf32>, vector<128x128xf32>, vector<128x128xf32> -> vector<128x128xf32>
    %cst_43 = arith.constant 5.000000e-01 : f32
    %75 = vector.broadcast %cst_43 : f32 to vector<128x128xf32>
    %76 = arith.mulf %75, %74 : vector<128x128xf32>
    %77 = arith.subf %8, %76 : vector<128x128xf32>
    %cst_44 = arith.constant dense<0.000000e+00> : vector<128x128xf32>
    %78 = tpu.matmul %77, %73, %cst_44 {dimension_numbers = #tpu.dot_dimension_numbers<[1], [0], [0], [1], [0, 0, 1, 1], [], []>} : vector<128x128xf32>, vector<128x128xf32>, vector<128x128xf32> -> vector<128x128xf32>
    %c14_i32 = arith.constant 14 : i32
    %cst_45 = arith.constant dense<0.000000e+00> : vector<128x128xf32>
    %79 = tpu.matmul %78, %78, %cst_45 {dimension_numbers = #tpu.dot_dimension_numbers<[1], [1], [0], [0], [0, 0, 1, 0], [], []>} : vector<128x128xf32>, vector<128x128xf32>, vector<128x128xf32> -> vector<128x128xf32>
    %cst_46 = arith.constant 5.000000e-01 : f32
    %80 = vector.broadcast %cst_46 : f32 to vector<128x128xf32>
    %81 = arith.mulf %80, %79 : vector<128x128xf32>
    %82 = arith.subf %8, %81 : vector<128x128xf32>
    %cst_47 = arith.constant dense<0.000000e+00> : vector<128x128xf32>
    %83 = tpu.matmul %82, %78, %cst_47 {dimension_numbers = #tpu.dot_dimension_numbers<[1], [0], [0], [1], [0, 0, 1, 1], [], []>} : vector<128x128xf32>, vector<128x128xf32>, vector<128x128xf32> -> vector<128x128xf32>
    %c15_i32 = arith.constant 15 : i32
    %cst_48 = arith.constant dense<0.000000e+00> : vector<128x128xf32>
    %84 = tpu.matmul %83, %83, %cst_48 {dimension_numbers = #tpu.dot_dimension_numbers<[1], [1], [0], [0], [0, 0, 1, 0], [], []>} : vector<128x128xf32>, vector<128x128xf32>, vector<128x128xf32> -> vector<128x128xf32>
    %cst_49 = arith.constant 5.000000e-01 : f32
    %85 = vector.broadcast %cst_49 : f32 to vector<128x128xf32>
    %86 = arith.mulf %85, %84 : vector<128x128xf32>
    %87 = arith.subf %8, %86 : vector<128x128xf32>
    %cst_50 = arith.constant dense<0.000000e+00> : vector<128x128xf32>
    %88 = tpu.matmul %87, %83, %cst_50 {dimension_numbers = #tpu.dot_dimension_numbers<[1], [0], [0], [1], [0, 0, 1, 1], [], []>} : vector<128x128xf32>, vector<128x128xf32>, vector<128x128xf32> -> vector<128x128xf32>
    %c16_i32 = arith.constant 16 : i32
    %cst_51 = arith.constant dense<0.000000e+00> : vector<128x128xf32>
    %89 = tpu.matmul %88, %88, %cst_51 {dimension_numbers = #tpu.dot_dimension_numbers<[1], [1], [0], [0], [0, 0, 1, 0], [], []>} : vector<128x128xf32>, vector<128x128xf32>, vector<128x128xf32> -> vector<128x128xf32>
    %cst_52 = arith.constant 5.000000e-01 : f32
    %90 = vector.broadcast %cst_52 : f32 to vector<128x128xf32>
    %91 = arith.mulf %90, %89 : vector<128x128xf32>
    %92 = arith.subf %8, %91 : vector<128x128xf32>
    %cst_53 = arith.constant dense<0.000000e+00> : vector<128x128xf32>
    %93 = tpu.matmul %92, %88, %cst_53 {dimension_numbers = #tpu.dot_dimension_numbers<[1], [0], [0], [1], [0, 0, 1, 1], [], []>} : vector<128x128xf32>, vector<128x128xf32>, vector<128x128xf32> -> vector<128x128xf32>
    %c17_i32 = arith.constant 17 : i32
    %cst_54 = arith.constant dense<0.000000e+00> : vector<128x128xf32>
    %94 = tpu.matmul %93, %93, %cst_54 {dimension_numbers = #tpu.dot_dimension_numbers<[1], [1], [0], [0], [0, 0, 1, 0], [], []>} : vector<128x128xf32>, vector<128x128xf32>, vector<128x128xf32> -> vector<128x128xf32>
    %cst_55 = arith.constant 5.000000e-01 : f32
    %95 = vector.broadcast %cst_55 : f32 to vector<128x128xf32>
    %96 = arith.mulf %95, %94 : vector<128x128xf32>
    %97 = arith.subf %8, %96 : vector<128x128xf32>
    %cst_56 = arith.constant dense<0.000000e+00> : vector<128x128xf32>
    %98 = tpu.matmul %97, %93, %cst_56 {dimension_numbers = #tpu.dot_dimension_numbers<[1], [0], [0], [1], [0, 0, 1, 1], [], []>} : vector<128x128xf32>, vector<128x128xf32>, vector<128x128xf32> -> vector<128x128xf32>
    %c18_i32 = arith.constant 18 : i32
    %cst_57 = arith.constant dense<0.000000e+00> : vector<128x128xf32>
    %99 = tpu.matmul %98, %98, %cst_57 {dimension_numbers = #tpu.dot_dimension_numbers<[1], [1], [0], [0], [0, 0, 1, 0], [], []>} : vector<128x128xf32>, vector<128x128xf32>, vector<128x128xf32> -> vector<128x128xf32>
    %cst_58 = arith.constant 5.000000e-01 : f32
    %100 = vector.broadcast %cst_58 : f32 to vector<128x128xf32>
    %101 = arith.mulf %100, %99 : vector<128x128xf32>
    %102 = arith.subf %8, %101 : vector<128x128xf32>
    %cst_59 = arith.constant dense<0.000000e+00> : vector<128x128xf32>
    %103 = tpu.matmul %102, %98, %cst_59 {dimension_numbers = #tpu.dot_dimension_numbers<[1], [0], [0], [1], [0, 0, 1, 1], [], []>} : vector<128x128xf32>, vector<128x128xf32>, vector<128x128xf32> -> vector<128x128xf32>
    %c19_i32 = arith.constant 19 : i32
    %cst_60 = arith.constant dense<0.000000e+00> : vector<128x128xf32>
    %104 = tpu.matmul %103, %103, %cst_60 {dimension_numbers = #tpu.dot_dimension_numbers<[1], [1], [0], [0], [0, 0, 1, 0], [], []>} : vector<128x128xf32>, vector<128x128xf32>, vector<128x128xf32> -> vector<128x128xf32>
    %cst_61 = arith.constant 5.000000e-01 : f32
    %105 = vector.broadcast %cst_61 : f32 to vector<128x128xf32>
    %106 = arith.mulf %105, %104 : vector<128x128xf32>
    %107 = arith.subf %8, %106 : vector<128x128xf32>
    %cst_62 = arith.constant dense<0.000000e+00> : vector<128x128xf32>
    %108 = tpu.matmul %107, %103, %cst_62 {dimension_numbers = #tpu.dot_dimension_numbers<[1], [0], [0], [1], [0, 0, 1, 1], [], []>} : vector<128x128xf32>, vector<128x128xf32>, vector<128x128xf32> -> vector<128x128xf32>
    %c0_63 = arith.constant 0 : index
    %c0_64 = arith.constant 0 : index
    %109 = vector.load %arg0[%c0_63, %c0_64] : memref<8x128xf32, #tpu.memory_space<vmem>>, vector<8x128xf32>
    %cst_65 = arith.constant dense<0.000000e+00> : vector<8x128xf32>
    %110 = tpu.matmul %109, %108, %cst_65 {dimension_numbers = #tpu.dot_dimension_numbers<[1], [1], [0], [0], [0, 0, 1, 0], [], []>} : vector<8x128xf32>, vector<128x128xf32>, vector<8x128xf32> -> vector<8x128xf32>
    %c0_66 = arith.constant 0 : index
    %c0_67 = arith.constant 0 : index
    %111 = vector.load %arg2[%c0_66, %c0_67] : memref<1x128xf32, #tpu.memory_space<vmem>>, vector<1x128xf32>
    %112 = vector.broadcast %111 : vector<1x128xf32> to vector<8x128xf32>
    %113 = arith.addf %110, %112 : vector<8x128xf32>
    %c0_68 = arith.constant 0 : index
    %c0_69 = arith.constant 0 : index
    %114 = vector.load %arg3[%c0_68, %c0_69] : memref<8x128xf32, #tpu.memory_space<vmem>>, vector<8x128xf32>
    tpu.vector_store %arg3[%c0_68, %c0_69], %113 {strides = array<i32>} : memref<8x128xf32, #tpu.memory_space<vmem>>, vector<8x128xf32>,
    return
  }
}

</mosaic_0001>

<llo_original>
// kernel: tpu_custom_call.1
$region0: #{tpu_custom_call.1}
  #allocation0 [shape = 'u32[]', space=smem, size = 0x4, offset = 0x4, fixed_abs, tag = 'smem constant byte address 0x4 - core index']
  #allocation1 [shape = 'u32[144,128]{1,0:T(1,128)}', space=vmem, size = 0x12000, scoped, tag = 'internal scratch']
  %s0 = inlined_call_operand.hbm [shape: f32[8,128], index: 0, kind: input, shape index: {}]
  %s1 = inlined_call_operand.hbm [shape: f32[128,128], index: 1, kind: input, shape index: {}]
  %s2 = inlined_call_operand.vmem [shape: f32[1,128], index: 2, kind: input, shape index: {}]
  %s3 = inlined_call_operand.hbm [shape: f32[8,128], index: 3, kind: output, shape index: {}]
  %s4 = sld [smem:[#allocation0]]
  $region30: #{tpu_custom_call.1} parent=0
    _
  %s6 = ssub.s32 1, %s4
  %s7 = scalar_select 0, %s6, %s4
  $region1: #{tpu_custom_call.1} parent=0
    #allocation2 [shape = 'u8[4096]{0}', space=vmem, size = 0x1000, scoped, tag = 'input window, operand 0, single buffered']
    #allocation3 [shape = 's32[1]{0}', space=sflag, size = 0x4, scoped, tag = 'scoped memory for tpu_custom_call.1']
    #allocation4 [shape = 's32[1]{0}', space=sflag, size = 0x4, scoped, tag = 'scoped memory for tpu_custom_call.1']
    #allocation5 [shape = 'u8[65536]{0}', space=vmem, size = 0x10000, scoped, tag = 'input window, operand 1, single buffered']
    #allocation6 [shape = 's32[1]{0}', space=sflag, size = 0x4, scoped, tag = 'scoped memory for tpu_custom_call.1']
    #allocation7 [shape = 'u8[4096]{0}', space=vmem, size = 0x1000, scoped, tag = 'output window, operand 0, single buffered']
    %8 = vsyncpa [#allocation3], 0
    %9 = vsyncpa [#allocation6], 0
    %10 = vsyncpa [#allocation4], 0
    // Predicated region
    $region2: #{tpu_custom_call.1} parent=1 // pred_check
      _
    $region3: #{tpu_custom_call.1} parent=1 // pred_check_branch
      %12 = sbr.rel (0) target = $region5
    $region4: #{tpu_custom_call.1} parent=1 // pred_region
      %s14 = ssub.s32 128, 128
      %15 = vsyncadd [#allocation3], %s14
      %s17 = sshll.u32 [#allocation2], 4
      %s18 = int_to_ptr.vmem [resolvable:$true] %s17
      %20 = dma.hbm_to_vmem [thread:$0]  %s0, 128, %s18, [#allocation3]
    $region5: #{tpu_custom_call.1} parent=1 // pred_fallthru
      _
    // Predicated region
    $region6: #{tpu_custom_call.1} parent=1 // pred_check
      _
    $region7: #{tpu_custom_call.1} parent=1 // pred_check_branch
      %22 = sbr.rel (0) target = $region9
    $region8: #{tpu_custom_call.1} parent=1 // pred_region
      %s24 = ssub.s32 2048, 2048
      %25 = vsyncadd [#allocation6], %s24
      %s26 = sshll.u32 [#allocation5], 4
      %s27 = int_to_ptr.vmem [resolvable:$true] %s26
      %32 = dma.hbm_to_vmem [thread:$0]  %s1, 2048, %s27, [#allocation6], 128, 128, 8
    $region9: #{tpu_custom_call.1} parent=1 // pred_fallthru
      _
    // Predicated region
    $region10: #{tpu_custom_call.1} parent=1 // pred_check
      _
    $region11: #{tpu_custom_call.1} parent=1 // pred_check_branch
      %34 = sbr.rel (0) target = $region13
    $region12: #{tpu_custom_call.1} parent=1 // pred_region
      _
    $region13: #{tpu_custom_call.1} parent=1 // pred_fallthru
      _
    // Predicated region
    $region14: #{tpu_custom_call.1} parent=1 // pred_check
      _
    $region15: #{tpu_custom_call.1} parent=1 // pred_check_branch
      %36 = sbr.rel (0) target = $region17
    $region16: #{tpu_custom_call.1} parent=1 // pred_region
      %37 = dma.done [#allocation3], 128
    $region17: #{tpu_custom_call.1} parent=1 // pred_fallthru
      _
    // Predicated region
    $region18: #{tpu_custom_call.1} parent=1 // pred_check
      _
    $region19: #{tpu_custom_call.1} parent=1 // pred_check_branch
      %39 = sbr.rel (0) target = $region21
    $region20: #{tpu_custom_call.1} parent=1 // pred_region
      %40 = dma.done [#allocation6], 2048
    $region21: #{tpu_custom_call.1} parent=1 // pred_fallthru
      _
    %v41 = vld [vmem:[#allocation5] sm:$0xff]
    %v42 = vld [vmem:[#allocation5 + $0x8] sm:$0xff]
    %v43 = vld [vmem:[#allocation5 + $0x10] sm:$0xff]
    %v44 = vld [vmem:[#allocation5 + $0x18] sm:$0xff]
    %v45 = vld [vmem:[#allocation5 + $0x20] sm:$0xff]
    %v46 = vld [vmem:[#allocation5 + $0x28] sm:$0xff]
    %v47 = vld [vmem:[#allocation5 + $0x30] sm:$0xff]
    %v48 = vld [vmem:[#allocation5 + $0x38] sm:$0xff]
    %v49 = vld [vmem:[#allocation5 + $0x40] sm:$0xff]
    %v50 = vld [vmem:[#allocation5 + $0x48] sm:$0xff]
    %v51 = vld [vmem:[#allocation5 + $0x50] sm:$0xff]
    %v52 = vld [vmem:[#allocation5 + $0x58] sm:$0xff]
    %v53 = vld [vmem:[#allocation5 + $0x60] sm:$0xff]
    %v54 = vld [vmem:[#allocation5 + $0x68] sm:$0xff]
    %v55 = vld [vmem:[#allocation5 + $0x70] sm:$0xff]
    %v56 = vld [vmem:[#allocation5 + $0x78] sm:$0xff]
    %v57 = vmul.f32 %v41, 0.044194173
    %v58 = vmul.f32 %v42, 0.044194173
    %v59 = vmul.f32 %v43, 0.044194173
    %v60 = vmul.f32 %v44, 0.044194173
    %v61 = vmul.f32 %v45, 0.044194173
    %v62 = vmul.f32 %v46, 0.044194173
    %v63 = vmul.f32 %v47, 0.044194173
    %v64 = vmul.f32 %v48, 0.044194173
    %v65 = vmul.f32 %v49, 0.044194173
    %v66 = vmul.f32 %v50, 0.044194173
    %v67 = vmul.f32 %v51, 0.044194173
    %v68 = vmul.f32 %v52, 0.044194173
    %v69 = vmul.f32 %v53, 0.044194173
    %v70 = vmul.f32 %v54, 0.044194173
    %v71 = vmul.f32 %v55, 0.044194173
    %v72 = vmul.f32 %v56, 0.044194173
    %v73 = vlaneseq
    %v74 = vshrl.u32 %v73, 7
    %v75 = vadd.s32 %v74, 8
    %v76 = vadd.s32 %v74, 16
    %v77 = vadd.s32 %v74, 24
    %v78 = vadd.s32 %v74, 32
    %v79 = vadd.s32 %v74, 40
    %v80 = vadd.s32 %v74, 48
    %v81 = vadd.s32 %v74, 56
    %v82 = vadd.s32 %v74, 64
    %v83 = vadd.s32 %v74, 72
    %v84 = vadd.s32 %v74, 80
    %v85 = vadd.s32 %v74, 88
    %v86 = vadd.s32 %v74, 96
    %v87 = vadd.s32 %v74, 104
    %v88 = vadd.s32 %v74, 112
    %v89 = vadd.s32 %v74, 120
    %v90 = vlaneseq
    %v91 = vand.u32 %v90, 127
    %vm92 = vcmp.eq.s32.totalorder %v74, %v91
    %vm93 = vcmp.eq.s32.totalorder %v75, %v91
    %vm94 = vcmp.eq.s32.totalorder %v76, %v91
    %vm95 = vcmp.eq.s32.totalorder %v77, %v91
    %vm96 = vcmp.eq.s32.totalorder %v78, %v91
    %vm97 = vcmp.eq.s32.totalorder %v79, %v91
    %vm98 = vcmp.eq.s32.totalorder %v80, %v91
    %vm99 = vcmp.eq.s32.totalorder %v81, %v91
    %vm100 = vcmp.eq.s32.totalorder %v82, %v91
    %vm101 = vcmp.eq.s32.totalorder %v83, %v91
    %vm102 = vcmp.eq.s32.totalorder %v84, %v91
    %vm103 = vcmp.eq.s32.totalorder %v85, %v91
    %vm104 = vcmp.eq.s32.totalorder %v86, %v91
    %vm105 = vcmp.eq.s32.totalorder %v87, %v91
    %vm106 = vcmp.eq.s32.totalorder %v88, %v91
    %vm107 = vcmp.eq.s32.totalorder %v89, %v91
    %v108 = vsel %vm92, 1.5, 0.0
    %v109 = vsel %vm93, 1.5, 0.0
    %v110 = vsel %vm94, 1.5, 0.0
    %v111 = vsel %vm95, 1.5, 0.0
    %v112 = vsel %vm96, 1.5, 0.0
    %v113 = vsel %vm97, 1.5, 0.0
    %v114 = vsel %vm98, 1.5, 0.0
    %v115 = vsel %vm99, 1.5, 0.0
    %v116 = vsel %vm100, 1.5, 0.0
    %v117 = vsel %vm101, 1.5, 0.0
    %v118 = vsel %vm102, 1.5, 0.0
    %v119 = vsel %vm103, 1.5, 0.0
    %v120 = vsel %vm104, 1.5, 0.0
    %v121 = vsel %vm105, 1.5, 0.0
    %v122 = vsel %vm106, 1.5, 0.0
    %v123 = vsel %vm107, 1.5, 0.0
    %124 = vmatprep.subr.mxu0 0.0
    %125 = vmatpush1.xpose.msra.mxu0 %v57
    %126 = vmatprep.subr.mxu0 0.0
    %127 = vmatpush1.xpose.msra.mxu0 %v58
    %128 = vmatprep.subr.mxu0 0.0
    %129 = vmatpush1.xpose.msra.mxu0 %v59
    %130 = vmatprep.subr.mxu0 0.0
    %131 = vmatpush1.xpose.msra.mxu0 %v60
    %132 = vmatprep.subr.mxu0 0.0
    %133 = vmatpush1.xpose.msra.mxu0 %v61
    %134 = vmatprep.subr.mxu0 0.0
    %135 = vmatpush1.xpose.msra.mxu0 %v62
    %136 = vmatprep.subr.mxu0 0.0
    %137 = vmatpush1.xpose.msra.mxu0 %v63
    %138 = vmatprep.subr.mxu0 0.0
    %139 = vmatpush1.xpose.msra.mxu0 %v64
    %140 = vmatprep.subr.mxu0 0.0
    %141 = vmatpush1.xpose.msra.mxu0 %v65
    %142 = vmatprep.subr.mxu0 0.0
    %143 = vmatpush1.xpose.msra.mxu0 %v66
    %144 = vmatprep.subr.mxu0 0.0
    %145 = vmatpush1.xpose.msra.mxu0 %v67
    %146 = vmatprep.subr.mxu0 0.0
    %147 = vmatpush1.xpose.msra.mxu0 %v68
    %148 = vmatprep.subr.mxu0 0.0
    %149 = vmatpush1.xpose.msra.mxu0 %v69
    %150 = vmatprep.subr.mxu0 0.0
    %151 = vmatpush1.xpose.msra.mxu0 %v70
    %152 = vmatprep.subr.mxu0 0.0
    %153 = vmatpush1.xpose.msra.mxu0 %v71
    %154 = vmatprep.subr.mxu0 0.0
    %155 = vmatpush1.xpose.msra.mxu0 %v72
    %156 = vmatprep.subr.mxu0 0.0
    %157 = vmatpush1.xpose.msra.mxu0 0.0
    %158 = vmatprep.subr.mxu0 0.0
    %159 = vmatpush1.xpose.msra.mxu0 0.0
    %160 = vmatprep.subr.mxu0 0.0
    %161 = vmatpush1.xpose.msra.mxu0 0.0
    %162 = vmatprep.subr.mxu0 0.0
    %163 = vmatpush1.xpose.msra.mxu0 0.0
    %164 = vmatprep.subr.mxu0 0.0
    %165 = vmatpush1.xpose.msra.mxu0 0.0
    %166 = vmatprep.subr.mxu0 0.0
    %167 = vmatpush1.xpose.msra.mxu0 0.0
    %168 = vmatprep.subr.mxu0 0.0
    %169 = vmatpush1.xpose.msra.mxu0 0.0
    %170 = vmatprep.subr.mxu0 0.0
    %171 = vmatpush1.xpose.msra.mxu0 0.0
    %172 = vmatprep.subr.mxu0 0.0
    %173 = vmatpush1.xpose.msra.mxu0 0.0
    %174 = vmatprep.subr.mxu0 0.0
    %175 = vmatpush1.xpose.msra.mxu0 0.0
    %176 = vmatprep.subr.mxu0 0.0
    %177 = vmatpush1.xpose.msra.mxu0 0.0
    %178 = vmatprep.subr.mxu0 0.0
    %179 = vmatpush1.xpose.msra.mxu0 0.0
    %180 = vmatprep.subr.mxu0 0.0
    %181 = vmatpush1.xpose.msra.mxu0 0.0
    %182 = vmatprep.subr.mxu0 0.0
    %183 = vmatpush1.xpose.msra.mxu0 0.0
    %184 = vmatprep.subr.mxu0 0.0
    %185 = vmatpush1.xpose.msra.mxu0 0.0
    %186 = vmatprep.subr.mxu0 0.0
    %187 = vmatpush1.xpose.msra.mxu0 0.0
    %188 = vmatprep.mubr.f32.mxu0 0.0
    %189 = vmatmul.mubr.f32.gmra.mrb[0].mxu0 %v57
    %v190 = vpop.f32.mrb[0].mxu0
    %v191 = vadd.f32 0.0, %v190
    %v192 = vpop.f32.mrb[0].mxu0
    %193 = vmatprep.mubr.f32.mxu0 0.0
    %194 = vmatmul.mubr.f32.gmra.mrb[0].mxu0 %v58
    %v195 = vpop.f32.mrb[0].mxu0
    %v196 = vadd.f32 0.0, %v195
    %v197 = vpop.f32.mrb[0].mxu0
    %198 = vmatprep.mubr.f32.mxu0 0.0
    %199 = vmatmul.mubr.f32.gmra.mrb[0].mxu0 %v59
    %v200 = vpop.f32.mrb[0].mxu0
    %v201 = vadd.f32 0.0, %v200
    %v202 = vpop.f32.mrb[0].mxu0
    %203 = vmatprep.mubr.f32.mxu0 0.0
    %204 = vmatmul.mubr.f32.gmra.mrb[0].mxu0 %v60
    %v205 = vpop.f32.mrb[0].mxu0
    %v206 = vadd.f32 0.0, %v205
    %v207 = vpop.f32.mrb[0].mxu0
    %208 = vmatprep.mubr.f32.mxu0 0.0
    %209 = vmatmul.mubr.f32.gmra.mrb[0].mxu0 %v61
    %v210 = vpop.f32.mrb[0].mxu0
    %v211 = vadd.f32 0.0, %v210
    %v212 = vpop.f32.mrb[0].mxu0
    %213 = vmatprep.mubr.f32.mxu0 0.0
    %214 = vmatmul.mubr.f32.gmra.mrb[0].mxu0 %v62
    %v215 = vpop.f32.mrb[0].mxu0
    %v216 = vadd.f32 0.0, %v215
    %v217 = vpop.f32.mrb[0].mxu0
    %218 = vmatprep.mubr.f32.mxu0 0.0
    %219 = vmatmul.mubr.f32.gmra.mrb[0].mxu0 %v63
    %v220 = vpop.f32.mrb[0].mxu0
    %v221 = vadd.f32 0.0, %v220
    %v222 = vpop.f32.mrb[0].mxu0
    %223 = vmatprep.mubr.f32.mxu0 0.0
    %224 = vmatmul.mubr.f32.gmra.mrb[0].mxu0 %v64
    %v225 = vpop.f32.mrb[0].mxu0
    %v226 = vadd.f32 0.0, %v225
    %v227 = vpop.f32.mrb[0].mxu0
    %228 = vmatprep.mubr.f32.mxu0 0.0
    %229 = vmatmul.mubr.f32.gmra.mrb[0].mxu0 %v65
    %v230 = vpop.f32.mrb[0].mxu0
    %v231 = vadd.f32 0.0, %v230
    %v232 = vpop.f32.mrb[0].mxu0
    %233 = vmatprep.mubr.f32.mxu0 0.0
    %234 = vmatmul.mubr.f32.gmra.mrb[0].mxu0 %v66
    %v235 = vpop.f32.mrb[0].mxu0
    %v236 = vadd.f32 0.0, %v235
    %v237 = vpop.f32.mrb[0].mxu0
    %238 = vmatprep.mubr.f32.mxu0 0.0
    %239 = vmatmul.mubr.f32.gmra.mrb[0].mxu0 %v67
    %v240 = vpop.f32.mrb[0].mxu0
    %v241 = vadd.f32 0.0, %v240
    %v242 = vpop.f32.mrb[0].mxu0
    %243 = vmatprep.mubr.f32.mxu0 0.0
    %244 = vmatmul.mubr.f32.gmra.mrb[0].mxu0 %v68
    %v245 = vpop.f32.mrb[0].mxu0
    %v246 = vadd.f32 0.0, %v245
    %v247 = vpop.f32.mrb[0].mxu0
    %248 = vmatprep.mubr.f32.mxu0 0.0
    %249 = vmatmul.mubr.f32.gmra.mrb[0].mxu0 %v69
    %v250 = vpop.f32.mrb[0].mxu0
    %v251 = vadd.f32 0.0, %v250
    %v252 = vpop.f32.mrb[0].mxu0
    %253 = vmatprep.mubr.f32.mxu0 0.0
    %254 = vmatmul.mubr.f32.gmra.mrb[0].mxu0 %v70
    %v255 = vpop.f32.mrb[0].mxu0
    %v256 = vadd.f32 0.0, %v255
    %v257 = vpop.f32.mrb[0].mxu0
    %258 = vmatprep.mubr.f32.mxu0 0.0
    %259 = vmatmul.mubr.f32.gmra.mrb[0].mxu0 %v71
    %v260 = vpop.f32.mrb[0].mxu0
    %v261 = vadd.f32 0.0, %v260
    %v262 = vpop.f32.mrb[0].mxu0
    %263 = vmatprep.mubr.f32.mxu0 0.0
    %264 = vmatmul.mubr.f32.gmra.mrb[0].mxu0 %v72
    %v265 = vpop.f32.mrb[0].mxu0
    %v266 = vadd.f32 0.0, %v265
    %v267 = vpop.f32.mrb[0].mxu0
    %268 = vdwg.mxu0
    %v269 = vmul.f32 %v191, 0.5
    %v270 = vmul.f32 %v196, 0.5
    %v271 = vmul.f32 %v201, 0.5
    %v272 = vmul.f32 %v206, 0.5
    %v273 = vmul.f32 %v211, 0.5
    %v274 = vmul.f32 %v216, 0.5
    %v275 = vmul.f32 %v221, 0.5
    %v276 = vmul.f32 %v226, 0.5
    %v277 = vmul.f32 %v231, 0.5
    %v278 = vmul.f32 %v236, 0.5
    %v279 = vmul.f32 %v241, 0.5
    %v280 = vmul.f32 %v246, 0.5
    %v281 = vmul.f32 %v251, 0.5
    %v282 = vmul.f32 %v256, 0.5
    %v283 = vmul.f32 %v261, 0.5
    %v284 = vmul.f32 %v266, 0.5
    %v285 = vsub.f32 %v108, %v269
    %v286 = vsub.f32 %v109, %v270
    %v287 = vsub.f32 %v110, %v271
    %v288 = vsub.f32 %v111, %v272
    %v289 = vsub.f32 %v112, %v273
    %v290 = vsub.f32 %v113, %v274
    %v291 = vsub.f32 %v114, %v275
    %v292 = vsub.f32 %v115, %v276
    %v293 = vsub.f32 %v116, %v277
    %v294 = vsub.f32 %v117, %v278
    %v295 = vsub.f32 %v118, %v279
    %v296 = vsub.f32 %v119, %v280
    %v297 = vsub.f32 %v120, %v281
    %v298 = vsub.f32 %v121, %v282
    %v299 = vsub.f32 %v122, %v283
    %v300 = vsub.f32 %v123, %v284
    %301 = vmatprep.subr.mxu0 0.0
    %302 = vmatpush1.msra.mxu0 %v57
    %303 = vmatprep.subr.mxu0 0.0
    %304 = vmatpush1.msra.mxu0 %v58
    %305 = vmatprep.subr.mxu0 0.0
    %306 = vmatpush1.msra.mxu0 %v59
    %307 = vmatprep.subr.mxu0 0.0
    %308 = vmatpush1.msra.mxu0 %v60
    %309 = vmatprep.subr.mxu0 0.0
    %310 = vmatpush1.msra.mxu0 %v61
    %311 = vmatprep.subr.mxu0 0.0
    %312 = vmatpush1.msra.mxu0 %v62
    %313 = vmatprep.subr.mxu0 0.0
    %314 = vmatpush1.msra.mxu0 %v63
    %315 = vmatprep.subr.mxu0 0.0
    %316 = vmatpush1.msra.mxu0 %v64
    %317 = vmatprep.subr.mxu0 0.0
    %318 = vmatpush1.msra.mxu0 %v65
    %319 = vmatprep.subr.mxu0 0.0
    %320 = vmatpush1.msra.mxu0 %v66
    %321 = vmatprep.subr.mxu0 0.0
    %322 = vmatpush1.msra.mxu0 %v67
    %323 = vmatprep.subr.mxu0 0.0
    %324 = vmatpush1.msra.mxu0 %v68
    %325 = vmatprep.subr.mxu0 0.0
    %326 = vmatpush1.msra.mxu0 %v69
    %327 = vmatprep.subr.mxu0 0.0
    %328 = vmatpush1.msra.mxu0 %v70
    %329 = vmatprep.subr.mxu0 0.0
    %330 = vmatpush1.msra.mxu0 %v71
    %331 = vmatprep.subr.mxu0 0.0
    %332 = vmatpush1.msra.mxu0 %v72
    %333 = vmatprep.subr.mxu0 0.0
    %334 = vmatpush1.msra.mxu0 0.0
    %335 = vmatprep.subr.mxu0 0.0
    %336 = vmatpush1.msra.mxu0 0.0
    %337 = vmatprep.subr.mxu0 0.0
    %338 = vmatpush1.msra.mxu0 0.0
    %339 = vmatprep.subr.mxu0 0.0
    %340 = vmatpush1.msra.mxu0 0.0
    %341 = vmatprep.subr.mxu0 0.0
    %342 = vmatpush1.msra.mxu0 0.0
    %343 = vmatprep.subr.mxu0 0.0
    %344 = vmatpush1.msra.mxu0 0.0
    %345 = vmatprep.subr.mxu0 0.0
    %346 = vmatpush1.msra.mxu0 0.0
    %347 = vmatprep.subr.mxu0 0.0
    %348 = vmatpush1.msra.mxu0 0.0
    %349 = vmatprep.subr.mxu0 0.0
    %350 = vmatpush1.msra.mxu0 0.0
    %351 = vmatprep.subr.mxu0 0.0
    %352 = vmatpush1.msra.mxu0 0.0
    %353 = vmatprep.subr.mxu0 0.0
    %354 = vmatpush1.msra.mxu0 0.0
    %355 = vmatprep.subr.mxu0 0.0
    %356 = vmatpush1.msra.mxu0 0.0
    %357 = vmatprep.subr.mxu0 0.0
    %358 = vmatpush1.msra.mxu0 0.0
    %359 = vmatprep.subr.mxu0 0.0
    %360 = vmatpush1.msra.mxu0 0.0
    %361 = vmatprep.subr.mxu0 0.0
    %362 = vmatpush1.msra.mxu0 0.0
    %363 = vmatprep.subr.mxu0 0.0
    %364 = vmatpush1.msra.mxu0 0.0
    %365 = vmatprep.mubr.f32.mxu0 0.0
    %366 = vmatmul.mubr.f32.gmra.mrb[0].mxu0 %v285
    %v367 = vpop.f32.mrb[0].mxu0
    %v368 = vadd.f32 0.0, %v367
    %v369 = vpop.f32.mrb[0].mxu0
    %370 = vmatprep.mubr.f32.mxu0 0.0
    %371 = vmatmul.mubr.f32.gmra.mrb[0].mxu0 %v286
    %v372 = vpop.f32.mrb[0].mxu0
    %v373 = vadd.f32 0.0, %v372
    %v374 = vpop.f32.mrb[0].mxu0
    %375 = vmatprep.mubr.f32.mxu0 0.0
    %376 = vmatmul.mubr.f32.gmra.mrb[0].mxu0 %v287
    %v377 = vpop.f32.mrb[0].mxu0
    %v378 = vadd.f32 0.0, %v377
    %v379 = vpop.f32.mrb[0].mxu0
    %380 = vmatprep.mubr.f32.mxu0 0.0
    %381 = vmatmul.mubr.f32.gmra.mrb[0].mxu0 %v288
    %v382 = vpop.f32.mrb[0].mxu0
    %v383 = vadd.f32 0.0, %v382
    %v384 = vpop.f32.mrb[0].mxu0
    %385 = vmatprep.mubr.f32.mxu0 0.0
    %386 = vmatmul.mubr.f32.gmra.mrb[0].mxu0 %v289
    %v387 = vpop.f32.mrb[0].mxu0
    %v388 = vadd.f32 0.0, %v387
    %v389 = vpop.f32.mrb[0].mxu0
    %390 = vmatprep.mubr.f32.mxu0 0.0
    %391 = vmatmul.mubr.f32.gmra.mrb[0].mxu0 %v290
    %v392 = vpop.f32.mrb[0].mxu0
    %v393 = vadd.f32 0.0, %v392
    %v394 = vpop.f32.mrb[0].mxu0
    %395 = vmatprep.mubr.f32.mxu0 0.0
    %396 = vmatmul.mubr.f32.gmra.mrb[0].mxu0 %v291
    %v397 = vpop.f32.mrb[0].mxu0
    %v398 = vadd.f32 0.0, %v397
    %v399 = vpop.f32.mrb[0].mxu0
    %400 = vmatprep.mubr.f32.mxu0 0.0
    %401 = vmatmul.mubr.f32.gmra.mrb[0].mxu0 %v292
    %v402 = vpop.f32.mrb[0].mxu0
    %v403 = vadd.f32 0.0, %v402
    %v404 = vpop.f32.mrb[0].mxu0
    %405 = vmatprep.mubr.f32.mxu0 0.0
    %406 = vmatmul.mubr.f32.gmra.mrb[0].mxu0 %v293
    %v407 = vpop.f32.mrb[0].mxu0
    %v408 = vadd.f32 0.0, %v407
    %v409 = vpop.f32.mrb[0].mxu0
    %410 = vmatprep.mubr.f32.mxu0 0.0
    %411 = vmatmul.mubr.f32.gmra.mrb[0].mxu0 %v294
    %v412 = vpop.f32.mrb[0].mxu0
    %v413 = vadd.f32 0.0, %v412
    %v414 = vpop.f32.mrb[0].mxu0
    %415 = vmatprep.mubr.f32.mxu0 0.0
    %416 = vmatmul.mubr.f32.gmra.mrb[0].mxu0 %v295
    %v417 = vpop.f32.mrb[0].mxu0
    %v418 = vadd.f32 0.0, %v417
    %v419 = vpop.f32.mrb[0].mxu0
    %420 = vmatprep.mubr.f32.mxu0 0.0
    %421 = vmatmul.mubr.f32.gmra.mrb[0].mxu0 %v296
    %v422 = vpop.f32.mrb[0].mxu0
    %v423 = vadd.f32 0.0, %v422
    %v424 = vpop.f32.mrb[0].mxu0
    %425 = vmatprep.mubr.f32.mxu0 0.0
    %426 = vmatmul.mubr.f32.gmra.mrb[0].mxu0 %v297
    %v427 = vpop.f32.mrb[0].mxu0
    %v428 = vadd.f32 0.0, %v427
    %v429 = vpop.f32.mrb[0].mxu0
    %430 = vmatprep.mubr.f32.mxu0 0.0
    %431 = vmatmul.mubr.f32.gmra.mrb[0].mxu0 %v298
    %v432 = vpop.f32.mrb[0].mxu0
    %v433 = vadd.f32 0.0, %v432
    %v434 = vpop.f32.mrb[0].mxu0
    %435 = vmatprep.mubr.f32.mxu0 0.0
    %436 = vmatmul.mubr.f32.gmra.mrb[0].mxu0 %v299
    %v437 = vpop.f32.mrb[0].mxu0
    %v438 = vadd.f32 0.0, %v437
    %v439 = vpop.f32.mrb[0].mxu0
    %440 = vmatprep.mubr.f32.mxu0 0.0
    %441 = vmatmul.mubr.f32.gmra.mrb[0].mxu0 %v300
    %v442 = vpop.f32.mrb[0].mxu0
    %v443 = vadd.f32 0.0, %v442
    %v444 = vpop.f32.mrb[0].mxu0
    %445 = vdwg.mxu0
    %446 = vmatprep.subr.mxu0 0.0
    %447 = vmatpush1.xpose.msra.mxu0 %v368
    %448 = vmatprep.subr.mxu0 0.0
    %449 = vmatpush1.xpose.msra.mxu0 %v373
    %450 = vmatprep.subr.mxu0 0.0
    %451 = vmatpush1.xpose.msra.mxu0 %v378
    %452 = vmatprep.subr.mxu0 0.0
    %453 = vmatpush1.xpose.msra.mxu0 %v383
    %454 = vmatprep.subr.mxu0 0.0
    %455 = vmatpush1.xpose.msra.mxu0 %v388
    %456 = vmatprep.subr.mxu0 0.0
    %457 = vmatpush1.xpose.msra.mxu0 %v393
    %458 = vmatprep.subr.mxu0 0.0
    %459 = vmatpush1.xpose.msra.mxu0 %v398
    %460 = vmatprep.subr.mxu0 0.0
    %461 = vmatpush1.xpose.msra.mxu0 %v403
    %462 = vmatprep.subr.mxu0 0.0
    %463 = vmatpush1.xpose.msra.mxu0 %v408
    %464 = vmatprep.subr.mxu0 0.0
    %465 = vmatpush1.xpose.msra.mxu0 %v413
    %466 = vmatprep.subr.mxu0 0.0
    %467 = vmatpush1.xpose.msra.mxu0 %v418
    %468 = vmatprep.subr.mxu0 0.0
    %469 = vmatpush1.xpose.msra.mxu0 %v423
    %470 = vmatprep.subr.mxu0 0.0
    %471 = vmatpush1.xpose.msra.mxu0 %v428
    %472 = vmatprep.subr.mxu0 0.0
    %473 = vmatpush1.xpose.msra.mxu0 %v433
    %474 = vmatprep.subr.mxu0 0.0
    %475 = vmatpush1.xpose.msra.mxu0 %v438
    %476 = vmatprep.subr.mxu0 0.0
    %477 = vmatpush1.xpose.msra.mxu0 %v443
    %478 = vmatprep.subr.mxu0 0.0
    %479 = vmatpush1.xpose.msra.mxu0 0.0
    %480 = vmatprep.subr.mxu0 0.0
    %481 = vmatpush1.xpose.msra.mxu0 0.0
    %482 = vmatprep.subr.mxu0 0.0
    %483 = vmatpush1.xpose.msra.mxu0 0.0
    %484 = vmatprep.subr.mxu0 0.0
    %485 = vmatpush1.xpose.msra.mxu0 0.0
    %486 = vmatprep.subr.mxu0 0.0
    %487 = vmatpush1.xpose.msra.mxu0 0.0
    %488 = vmatprep.subr.mxu0 0.0
    %489 = vmatpush1.xpose.msra.mxu0 0.0
    %490 = vmatprep.subr.mxu0 0.0
    %491 = vmatpush1.xpose.msra.mxu0 0.0
    %492 = vmatprep.subr.mxu0 0.0
    %493 = vmatpush1.xpose.msra.mxu0 0.0
    %494 = vmatprep.subr.mxu0 0.0
    %495 = vmatpush1.xpose.msra.mxu0 0.0
    %496 = vmatprep.subr.mxu0 0.0
    %497 = vmatpush1.xpose.msra.mxu0 0.0
    %498 = vmatprep.subr.mxu0 0.0
    %499 = vmatpush1.xpose.msra.mxu0 0.0
    %500 = vmatprep.subr.mxu0 0.0
    %501 = vmatpush1.xpose.msra.mxu0 0.0
    %502 = vmatprep.subr.mxu0 0.0
    %503 = vmatpush1.xpose.msra.mxu0 0.0
    %504 = vmatprep.subr.mxu0 0.0
    %505 = vmatpush1.xpose.msra.mxu0 0.0
    %506 = vmatprep.subr.mxu0 0.0
    %507 = vmatpush1.xpose.msra.mxu0 0.0
    %508 = vmatprep.subr.mxu0 0.0
    %509 = vmatpush1.xpose.msra.mxu0 0.0
    %510 = vmatprep.mubr.f32.mxu0 0.0
    %511 = vmatmul.mubr.f32.gmra.mrb[0].mxu0 %v368
    %v512 = vpop.f32.mrb[0].mxu0
    %v513 = vadd.f32 0.0, %v512
    %v514 = vpop.f32.mrb[0].mxu0
    %515 = vmatprep.mubr.f32.mxu0 0.0
    %516 = vmatmul.mubr.f32.gmra.mrb[0].mxu0 %v373
    %v517 = vpop.f32.mrb[0].mxu0
    %v518 = vadd.f32 0.0, %v517
    %v519 = vpop.f32.mrb[0].mxu0
    %520 = vmatprep.mubr.f32.mxu0 0.0
    %521 = vmatmul.mubr.f32.gmra.mrb[0].mxu0 %v378
    %v522 = vpop.f32.mrb[0].mxu0
    %v523 = vadd.f32 0.0, %v522
    %v524 = vpop.f32.mrb[0].mxu0
    %525 = vmatprep.mubr.f32.mxu0 0.0
    %526 = vmatmul.mubr.f32.gmra.mrb[0].mxu0 %v383
    %v527 = vpop.f32.mrb[0].mxu0
    %v528 = vadd.f32 0.0, %v527
    %v529 = vpop.f32.mrb[0].mxu0
    %530 = vmatprep.mubr.f32.mxu0 0.0
    %531 = vmatmul.mubr.f32.gmra.mrb[0].mxu0 %v388
    %v532 = vpop.f32.mrb[0].mxu0
    %v533 = vadd.f32 0.0, %v532
    %v534 = vpop.f32.mrb[0].mxu0
    %535 = vmatprep.mubr.f32.mxu0 0.0
    %536 = vmatmul.mubr.f32.gmra.mrb[0].mxu0 %v393
    %v537 = vpop.f32.mrb[0].mxu0
    %v538 = vadd.f32 0.0, %v537
    %v539 = vpop.f32.mrb[0].mxu0
    %540 = vmatprep.mubr.f32.mxu0 0.0
    %541 = vmatmul.mubr.f32.gmra.mrb[0].mxu0 %v398
    %v542 = vpop.f32.mrb[0].mxu0
    %v543 = vadd.f32 0.0, %v542
    %v544 = vpop.f32.mrb[0].mxu0
    %545 = vmatprep.mubr.f32.mxu0 0.0
    %546 = vmatmul.mubr.f32.gmra.mrb[0].mxu0 %v403
    %v547 = vpop.f32.mrb[0].mxu0
    %v548 = vadd.f32 0.0, %v547
    %v549 = vpop.f32.mrb[0].mxu0
    %550 = vmatprep.mubr.f32.mxu0 0.0
    %551 = vmatmul.mubr.f32.gmra.mrb[0].mxu0 %v408
    %v552 = vpop.f32.mrb[0].mxu0
    %v553 = vadd.f32 0.0, %v552
    %v554 = vpop.f32.mrb[0].mxu0
    %555 = vmatprep.mubr.f32.mxu0 0.0
    %556 = vmatmul.mubr.f32.gmra.mrb[0].mxu0 %v413
    %v557 = vpop.f32.mrb[0].mxu0
    %v558 = vadd.f32 0.0, %v557
    %v559 = vpop.f32.mrb[0].mxu0
    %560 = vmatprep.mubr.f32.mxu0 0.0
    %561 = vmatmul.mubr.f32.gmra.mrb[0].mxu0 %v418
    %v562 = vpop.f32.mrb[0].mxu0
    %v563 = vadd.f32 0.0, %v562
    %v564 = vpop.f32.mrb[0].mxu0
    %565 = vmatprep.mubr.f32.mxu0 0.0
    %566 = vmatmul.mubr.f32.gmra.mrb[0].mxu0 %v423
    %v567 = vpop.f32.mrb[0].mxu0
    %v568 = vadd.f32 0.0, %v567
    %v569 = vpop.f32.mrb[0].mxu0
    %570 = vmatprep.mubr.f32.mxu0 0.0
    %571 = vmatmul.mubr.f32.gmra.mrb[0].mxu0 %v428
    %v572 = vpop.f32.mrb[0].mxu0
    %v573 = vadd.f32 0.0, %v572
    %v574 = vpop.f32.mrb[0].mxu0
    %575 = vmatprep.mubr.f32.mxu0 0.0
    %576 = vmatmul.mubr.f32.gmra.mrb[0].mxu0 %v433
    %v577 = vpop.f32.mrb[0].mxu0
    %v578 = vadd.f32 0.0, %v577
    %v579 = vpop.f32.mrb[0].mxu0
    %580 = vmatprep.mubr.f32.mxu0 0.0
    %581 = vmatmul.mubr.f32.gmra.mrb[0].mxu0 %v438
    %v582 = vpop.f32.mrb[0].mxu0
    %v583 = vadd.f32 0.0, %v582
    %v584 = vpop.f32.mrb[0].mxu0
    %585 = vmatprep.mubr.f32.mxu0 0.0
    %586 = vmatmul.mubr.f32.gmra.mrb[0].mxu0 %v443
    %v587 = vpop.f32.mrb[0].mxu0
    %v588 = vadd.f32 0.0, %v587
    %v589 = vpop.f32.mrb[0].mxu0
    %590 = vdwg.mxu0
    %v591 = vmul.f32 %v513, 0.5
    %v592 = vmul.f32 %v518, 0.5
    %v593 = vmul.f32 %v523, 0.5
    %v594 = vmul.f32 %v528, 0.5
    %v595 = vmul.f32 %v533, 0.5
    %v596 = vmul.f32 %v538, 0.5
    %v597 = vmul.f32 %v543, 0.5
    %v598 = vmul.f32 %v548, 0.5
    %v599 = vmul.f32 %v553, 0.5
    %v600 = vmul.f32 %v558, 0.5
    %v601 = vmul.f32 %v563, 0.5
    %v602 = vmul.f32 %v568, 0.5
    %v603 = vmul.f32 %v573, 0.5
    %v604 = vmul.f32 %v578, 0.5
    %v605 = vmul.f32 %v583, 0.5
    %v606 = vmul.f32 %v588, 0.5
    %v607 = vsub.f32 %v108, %v591
    %v608 = vsub.f32 %v109, %v592
    %v609 = vsub.f32 %v110, %v593
    %v610 = vsub.f32 %v111, %v594
    %v611 = vsub.f32 %v112, %v595
    %v612 = vsub.f32 %v113, %v596
    %v613 = vsub.f32 %v114, %v597
    %v614 = vsub.f32 %v115, %v598
    %v615 = vsub.f32 %v116, %v599
    %v616 = vsub.f32 %v117, %v600
    %v617 = vsub.f32 %v118, %v601
    %v618 = vsub.f32 %v119, %v602
    %v619 = vsub.f32 %v120, %v603
    %v620 = vsub.f32 %v121, %v604
    %v621 = vsub.f32 %v122, %v605
    %v622 = vsub.f32 %v123, %v606
    %623 = vmatprep.subr.mxu0 0.0
    %624 = vmatpush1.msra.mxu0 %v368
    %625 = vmatprep.subr.mxu0 0.0
    %626 = vmatpush1.msra.mxu0 %v373
    %627 = vmatprep.subr.mxu0 0.0
    %628 = vmatpush1.msra.mxu0 %v378
    %629 = vmatprep.subr.mxu0 0.0
    %630 = vmatpush1.msra.mxu0 %v383
    %631 = vmatprep.subr.mxu0 0.0
    %632 = vmatpush1.msra.mxu0 %v388
    %633 = vmatprep.subr.mxu0 0.0
    %634 = vmatpush1.msra.mxu0 %v393
    %635 = vmatprep.subr.mxu0 0.0
    %636 = vmatpush1.msra.mxu0 %v398
    %637 = vmatprep.subr.mxu0 0.0
    %638 = vmatpush1.msra.mxu0 %v403
    %639 = vmatprep.subr.mxu0 0.0
    %640 = vmatpush1.msra.mxu0 %v408
    %641 = vmatprep.subr.mxu0 0.0
    %642 = vmatpush1.msra.mxu0 %v413
    %643 = vmatprep.subr.mxu0 0.0
    %644 = vmatpush1.msra.mxu0 %v418
    %645 = vmatprep.subr.mxu0 0.0
    %646 = vmatpush1.msra.mxu0 %v423
    %647 = vmatprep.subr.mxu0 0.0
    %648 = vmatpush1.msra.mxu0 %v428
    %649 = vmatprep.subr.mxu0 0.0
    %650 = vmatpush1.msra.mxu0 %v433
    %651 = vmatprep.subr.mxu0 0.0
    %652 = vmatpush1.msra.mxu0 %v438
    %653 = vmatprep.subr.mxu0 0.0
    %654 = vmatpush1.msra.mxu0 %v443
    %655 = vmatprep.subr.mxu0 0.0
    %656 = vmatpush1.msra.mxu0 0.0
    %657 = vmatprep.subr.mxu0 0.0
    %658 = vmatpush1.msra.mxu0 0.0
    %659 = vmatprep.subr.mxu0 0.0
    %660 = vmatpush1.msra.mxu0 0.0
    %661 = vmatprep.subr.mxu0 0.0
    %662 = vmatpush1.msra.mxu0 0.0
    %663 = vmatprep.subr.mxu0 0.0
    %664 = vmatpush1.msra.mxu0 0.0
    %665 = vmatprep.subr.mxu0 0.0
    %666 = vmatpush1.msra.mxu0 0.0
    %667 = vmatprep.subr.mxu0 0.0
    %668 = vmatpush1.msra.mxu0 0.0
    %669 = vmatprep.subr.mxu0 0.0
    %670 = vmatpush1.msra.mxu0 0.0
    %671 = vmatprep.subr.mxu0 0.0
    %672 = vmatpush1.msra.mxu0 0.0
    %673 = vmatprep.subr.mxu0 0.0
    %674 = vmatpush1.msra.mxu0 0.0
    %675 = vmatprep.subr.mxu0 0.0
    %676 = vmatpush1.msra.mxu0 0.0
    %677 = vmatprep.subr.mxu0 0.0
    %678 = vmatpush1.msra.mxu0 0.0
    %679 = vmatprep.subr.mxu0 0.0
    %680 = vmatpush1.msra.mxu0 0.0
    %681 = vmatprep.subr.mxu0 0.0
    %682 = vmatpush1.msra.mxu0 0.0
    %683 = vmatprep.subr.mxu0 0.0
    %684 = vmatpush1.msra.mxu0 0.0
    %685 = vmatprep.subr.mxu0 0.0
    %686 = vmatpush1.msra.mxu0 0.0
    %687 = vmatprep.mubr.f32.mxu0 0.0
    %688 = vmatmul.mubr.f32.gmra.mrb[0].mxu0 %v607
    %v689 = vpop.f32.mrb[0].mxu0
    %v690 = vadd.f32 0.0, %v689
    %v691 = vpop.f32.mrb[0].mxu0
    %692 = vmatprep.mubr.f32.mxu0 0.0
    %693 = vmatmul.mubr.f32.gmra.mrb[0].mxu0 %v608
    %v694 = vpop.f32.mrb[0].mxu0
    %v695 = vadd.f32 0.0, %v694
    %v696 = vpop.f32.mrb[0].mxu0
    %697 = vmatprep.mubr.f32.mxu0 0.0
    %698 = vmatmul.mubr.f32.gmra.mrb[0].mxu0 %v609
    %v699 = vpop.f32.mrb[0].mxu0
    %v700 = vadd.f32 0.0, %v699
    %v701 = vpop.f32.mrb[0].mxu0
    %702 = vmatprep.mubr.f32.mxu0 0.0
    %703 = vmatmul.mubr.f32.gmra.mrb[0].mxu0 %v610
    %v704 = vpop.f32.mrb[0].mxu0
    %v705 = vadd.f32 0.0, %v704
    %v706 = vpop.f32.mrb[0].mxu0
    %707 = vmatprep.mubr.f32.mxu0 0.0
    %708 = vmatmul.mubr.f32.gmra.mrb[0].mxu0 %v611
    %v709 = vpop.f32.mrb[0].mxu0
    %v710 = vadd.f32 0.0, %v709
    %v711 = vpop.f32.mrb[0].mxu0
    %712 = vmatprep.mubr.f32.mxu0 0.0
    %713 = vmatmul.mubr.f32.gmra.mrb[0].mxu0 %v612
    %v714 = vpop.f32.mrb[0].mxu0
    %v715 = vadd.f32 0.0, %v714
    %v716 = vpop.f32.mrb[0].mxu0
    %717 = vmatprep.mubr.f32.mxu0 0.0
    %718 = vmatmul.mubr.f32.gmra.mrb[0].mxu0 %v613
    %v719 = vpop.f32.mrb[0].mxu0
    %v720 = vadd.f32 0.0, %v719
    %v721 = vpop.f32.mrb[0].mxu0
    %722 = vmatprep.mubr.f32.mxu0 0.0
    %723 = vmatmul.mubr.f32.gmra.mrb[0].mxu0 %v614
    %v724 = vpop.f32.mrb[0].mxu0
    %v725 = vadd.f32 0.0, %v724
    %v726 = vpop.f32.mrb[0].mxu0
    %727 = vmatprep.mubr.f32.mxu0 0.0
    %728 = vmatmul.mubr.f32.gmra.mrb[0].mxu0 %v615
    %v729 = vpop.f32.mrb[0].mxu0
    %v730 = vadd.f32 0.0, %v729
    %v731 = vpop.f32.mrb[0].mxu0
    %732 = vmatprep.mubr.f32.mxu0 0.0
    %733 = vmatmul.mubr.f32.gmra.mrb[0].mxu0 %v616
    %v734 = vpop.f32.mrb[0].mxu0
    %v735 = vadd.f32 0.0, %v734
    %v736 = vpop.f32.mrb[0].mxu0
    %737 = vmatprep.mubr.f32.mxu0 0.0
    %738 = vmatmul.mubr.f32.gmra.mrb[0].mxu0 %v617
    %v739 = vpop.f32.mrb[0].mxu0
    %v740 = vadd.f32 0.0, %v739
    %v741 = vpop.f32.mrb[0].mxu0
    %742 = vmatprep.mubr.f32.mxu0 0.0
    %743 = vmatmul.mubr.f32.gmra.mrb[0].mxu0 %v618
    %v744 = vpop.f32.mrb[0].mxu0
    %v745 = vadd.f32 0.0, %v744
    %v746 = vpop.f32.mrb[0].mxu0
    %747 = vmatprep.mubr.f32.mxu0 0.0
    %748 = vmatmul.mubr.f32.gmra.mrb[0].mxu0 %v619
    %v749 = vpop.f32.mrb[0].mxu0
    %v750 = vadd.f32 0.0, %v749
    %v751 = vpop.f32.mrb[0].mxu0
    %752 = vmatprep.mubr.f32.mxu0 0.0
    %753 = vmatmul.mubr.f32.gmra.mrb[0].mxu0 %v620
    %v754 = vpop.f32.mrb[0].mxu0
    %v755 = vadd.f32 0.0, %v754
    %v756 = vpop.f32.mrb[0].mxu0
    %757 = vmatprep.mubr.f32.mxu0 0.0
    %758 = vmatmul.mubr.f32.gmra.mrb[0].mxu0 %v621
    %v759 = vpop.f32.mrb[0].mxu0
    %v760 = vadd.f32 0.0, %v759
    %v761 = vpop.f32.mrb[0].mxu0
    %762 = vmatprep.mubr.f32.mxu0 0.0
    %763 = vmatmul.mubr.f32.gmra.mrb[0].mxu0 %v622
    %v764 = vpop.f32.mrb[0].mxu0
    %v765 = vadd.f32 0.0, %v764
    %v766 = vpop.f32.mrb[0].mxu0
    %767 = vdwg.mxu0
    %768 = vmatprep.subr.mxu0 0.0
    %769 = vmatpush1.xpose.msra.mxu0 %v690
    %770 = vmatprep.subr.mxu0 0.0
    %771 = vmatpush1.xpose.msra.mxu0 %v695
    %772 = vmatprep.subr.mxu0 0.0
    %773 = vmatpush1.xpose.msra.mxu0 %v700
    %774 = vmatprep.subr.mxu0 0.0
    %775 = vmatpush1.xpose.msra.mxu0 %v705
    %776 = vmatprep.subr.mxu0 0.0
    %777 = vmatpush1.xpose.msra.mxu0 %v710
    %778 = vmatprep.subr.mxu0 0.0
    %779 = vmatpush1.xpose.msra.mxu0 %v715
    %780 = vmatprep.subr.mxu0 0.0
    %781 = vmatpush1.xpose.msra.mxu0 %v720
    %782 = vmatprep.subr.mxu0 0.0
    %783 = vmatpush1.xpose.msra.mxu0 %v725
    %784 = vmatprep.subr.mxu0 0.0
    %785 = vmatpush1.xpose.msra.mxu0 %v730
    %786 = vmatprep.subr.mxu0 0.0
    %787 = vmatpush1.xpose.msra.mxu0 %v735
    %788 = vmatprep.subr.mxu0 0.0
    %789 = vmatpush1.xpose.msra.mxu0 %v740
    %790 = vmatprep.subr.mxu0 0.0
    %791 = vmatpush1.xpose.msra.mxu0 %v745
    %792 = vmatprep.subr.mxu0 0.0
    %793 = vmatpush1.xpose.msra.mxu0 %v750
    %794 = vmatprep.subr.mxu0 0.0
    %795 = vmatpush1.xpose.msra.mxu0 %v755
    %796 = vmatprep.subr.mxu0 0.0
    %797 = vmatpush1.xpose.msra.mxu0 %v760
    %798 = vmatprep.subr.mxu0 0.0
    %799 = vmatpush1.xpose.msra.mxu0 %v765
    %800 = vmatprep.subr.mxu0 0.0
    %801 = vmatpush1.xpose.msra.mxu0 0.0
    %802 = vmatprep.subr.mxu0 0.0
    %803 = vmatpush1.xpose.msra.mxu0 0.0
    %804 = vmatprep.subr.mxu0 0.0
    %805 = vmatpush1.xpose.msra.mxu0 0.0
    %806 = vmatprep.subr.mxu0 0.0
    %807 = vmatpush1.xpose.msra.mxu0 0.0
    %808 = vmatprep.subr.mxu0 0.0
    %809 = vmatpush1.xpose.msra.mxu0 0.0
    %810 = vmatprep.subr.mxu0 0.0
    %811 = vmatpush1.xpose.msra.mxu0 0.0
    %812 = vmatprep.subr.mxu0 0.0
    %813 = vmatpush1.xpose.msra.mxu0 0.0
    %814 = vmatprep.subr.mxu0 0.0
    %815 = vmatpush1.xpose.msra.mxu0 0.0
    %816 = vmatprep.subr.mxu0 0.0
    %817 = vmatpush1.xpose.msra.mxu0 0.0
    %818 = vmatprep.subr.mxu0 0.0
    %819 = vmatpush1.xpose.msra.mxu0 0.0
    %820 = vmatprep.subr.mxu0 0.0
    %821 = vmatpush1.xpose.msra.mxu0 0.0
    %822 = vmatprep.subr.mxu0 0.0
    %823 = vmatpush1.xpose.msra.mxu0 0.0
    %824 = vmatprep.subr.mxu0 0.0
    %825 = vmatpush1.xpose.msra.mxu0 0.0
    %826 = vmatprep.subr.mxu0 0.0
    %827 = vmatpush1.xpose.msra.mxu0 0.0
    %828 = vmatprep.subr.mxu0 0.0
    %829 = vmatpush1.xpose.msra.mxu0 0.0
    %830 = vmatprep.subr.mxu0 0.0
    %831 = vmatpush1.xpose.msra.mxu0 0.0
    %832 = vmatprep.mubr.f32.mxu0 0.0
    %833 = vmatmul.mubr.f32.gmra.mrb[0].mxu0 %v690
    %v834 = vpop.f32.mrb[0].mxu0
    %v835 = vadd.f32 0.0, %v834
    %v836 = vpop.f32.mrb[0].mxu0
    %837 = vmatprep.mubr.f32.mxu0 0.0
    %838 = vmatmul.mubr.f32.gmra.mrb[0].mxu0 %v695
    %v839 = vpop.f32.mrb[0].mxu0
    %v840 = vadd.f32 0.0, %v839
    %v841 = vpop.f32.mrb[0].mxu0
    %842 = vmatprep.mubr.f32.mxu0 0.0
    %843 = vmatmul.mubr.f32.gmra.mrb[0].mxu0 %v700
    %v844 = vpop.f32.mrb[0].mxu0
    %v845 = vadd.f32 0.0, %v844
    %v846 = vpop.f32.mrb[0].mxu0
    %847 = vmatprep.mubr.f32.mxu0 0.0
    %848 = vmatmul.mubr.f32.gmra.mrb[0].mxu0 %v705
    %v849 = vpop.f32.mrb[0].mxu0
    %v850 = vadd.f32 0.0, %v849
    %v851 = vpop.f32.mrb[0].mxu0
    %852 = vmatprep.mubr.f32.mxu0 0.0
    %853 = vmatmul.mubr.f32.gmra.mrb[0].mxu0 %v710
    %v854 = vpop.f32.mrb[0].mxu0
    %v855 = vadd.f32 0.0, %v854
    %v856 = vpop.f32.mrb[0].mxu0
    %857 = vmatprep.mubr.f32.mxu0 0.0
    %858 = vmatmul.mubr.f32.gmra.mrb[0].mxu0 %v715
    %v859 = vpop.f32.mrb[0].mxu0
    %v860 = vadd.f32 0.0, %v859
    %v861 = vpop.f32.mrb[0].mxu0
    %862 = vmatprep.mubr.f32.mxu0 0.0
    %863 = vmatmul.mubr.f32.gmra.mrb[0].mxu0 %v720
    %v864 = vpop.f32.mrb[0].mxu0
    %v865 = vadd.f32 0.0, %v864
    %v866 = vpop.f32.mrb[0].mxu0
    %867 = vmatprep.mubr.f32.mxu0 0.0
    %868 = vmatmul.mubr.f32.gmra.mrb[0].mxu0 %v725
    %v869 = vpop.f32.mrb[0].mxu0
    %v870 = vadd.f32 0.0, %v869
    %v871 = vpop.f32.mrb[0].mxu0
    %872 = vmatprep.mubr.f32.mxu0 0.0
    %873 = vmatmul.mubr.f32.gmra.mrb[0].mxu0 %v730
    %v874 = vpop.f32.mrb[0].mxu0
    %v875 = vadd.f32 0.0, %v874
    %v876 = vpop.f32.mrb[0].mxu0
    %877 = vmatprep.mubr.f32.mxu0 0.0
    %878 = vmatmul.mubr.f32.gmra.mrb[0].mxu0 %v735
    %v879 = vpop.f32.mrb[0].mxu0
    %v880 = vadd.f32 0.0, %v879
    %v881 = vpop.f32.mrb[0].mxu0
    %882 = vmatprep.mubr.f32.mxu0 0.0
    %883 = vmatmul.mubr.f32.gmra.mrb[0].mxu0 %v740
    %v884 = vpop.f32.mrb[0].mxu0
    %v885 = vadd.f32 0.0, %v884
    %v886 = vpop.f32.mrb[0].mxu0
    %887 = vmatprep.mubr.f32.mxu0 0.0
    %888 = vmatmul.mubr.f32.gmra.mrb[0].mxu0 %v745
    %v889 = vpop.f32.mrb[0].mxu0
    %v890 = vadd.f32 0.0, %v889
    %v891 = vpop.f32.mrb[0].mxu0
    %892 = vmatprep.mubr.f32.mxu0 0.0
    %893 = vmatmul.mubr.f32.gmra.mrb[0].mxu0 %v750
    %v894 = vpop.f32.mrb[0].mxu0
    %v895 = vadd.f32 0.0, %v894
    %v896 = vpop.f32.mrb[0].mxu0
    %897 = vmatprep.mubr.f32.mxu0 0.0
    %898 = vmatmul.mubr.f32.gmra.mrb[0].mxu0 %v755
    %v899 = vpop.f32.mrb[0].mxu0
    %v900 = vadd.f32 0.0, %v899
    %v901 = vpop.f32.mrb[0].mxu0
    %902 = vmatprep.mubr.f32.mxu0 0.0
    %903 = vmatmul.mubr.f32.gmra.mrb[0].mxu0 %v760
    %v904 = vpop.f32.mrb[0].mxu0
    %v905 = vadd.f32 0.0, %v904
    %v906 = vpop.f32.mrb[0].mxu0
    %907 = vmatprep.mubr.f32.mxu0 0.0
    %908 = vmatmul.mubr.f32.gmra.mrb[0].mxu0 %v765
    %v909 = vpop.f32.mrb[0].mxu0
    %v910 = vadd.f32 0.0, %v909
    %v911 = vpop.f32.mrb[0].mxu0
    %912 = vdwg.mxu0
    %v913 = vmul.f32 %v835, 0.5
    %v914 = vmul.f32 %v840, 0.5
    %v915 = vmul.f32 %v845, 0.5
    %v916 = vmul.f32 %v850, 0.5
    %v917 = vmul.f32 %v855, 0.5
    %v918 = vmul.f32 %v860, 0.5
    %v919 = vmul.f32 %v865, 0.5
    %v920 = vmul.f32 %v870, 0.5
    %v921 = vmul.f32 %v875, 0.5
    %v922 = vmul.f32 %v880, 0.5
    %v923 = vmul.f32 %v885, 0.5
    %v924 = vmul.f32 %v890, 0.5
    %v925 = vmul.f32 %v895, 0.5
    %v926 = vmul.f32 %v900, 0.5
    %v927 = vmul.f32 %v905, 0.5
    %v928 = vmul.f32 %v910, 0.5
    %v929 = vsub.f32 %v108, %v913
    %v930 = vsub.f32 %v109, %v914
    %v931 = vsub.f32 %v110, %v915
    %v932 = vsub.f32 %v111, %v916
    %v933 = vsub.f32 %v112, %v917
    %v934 = vsub.f32 %v113, %v918
    %v935 = vsub.f32 %v114, %v919
    %v936 = vsub.f32 %v115, %v920
    %v937 = vsub.f32 %v116, %v921
    %v938 = vsub.f32 %v117, %v922
    %v939 = vsub.f32 %v118, %v923
    %v940 = vsub.f32 %v119, %v924
    %v941 = vsub.f32 %v120, %v925
    %v942 = vsub.f32 %v121, %v926
    %v943 = vsub.f32 %v122, %v927
    %v944 = vsub.f32 %v123, %v928
    %945 = vmatprep.subr.mxu0 0.0
    %946 = vmatpush1.msra.mxu0 %v690
    %947 = vmatprep.subr.mxu0 0.0
    %948 = vmatpush1.msra.mxu0 %v695
    %949 = vmatprep.subr.mxu0 0.0
    %950 = vmatpush1.msra.mxu0 %v700
    %951 = vmatprep.subr.mxu0 0.0
    %952 = vmatpush1.msra.mxu0 %v705
    %953 = vmatprep.subr.mxu0 0.0
    %954 = vmatpush1.msra.mxu0 %v710
    %955 = vmatprep.subr.mxu0 0.0
    %956 = vmatpush1.msra.mxu0 %v715
    %957 = vmatprep.subr.mxu0 0.0
    %958 = vmatpush1.msra.mxu0 %v720
    %959 = vmatprep.subr.mxu0 0.0
    %960 = vmatpush1.msra.mxu0 %v725
    %961 = vmatprep.subr.mxu0 0.0
    %962 = vmatpush1.msra.mxu0 %v730
    %963 = vmatprep.subr.mxu0 0.0
    %964 = vmatpush1.msra.mxu0 %v735
    %965 = vmatprep.subr.mxu0 0.0
    %966 = vmatpush1.msra.mxu0 %v740
    %967 = vmatprep.subr.mxu0 0.0
    %968 = vmatpush1.msra.mxu0 %v745
    %969 = vmatprep.subr.mxu0 0.0
    %970 = vmatpush1.msra.mxu0 %v750
    %971 = vmatprep.subr.mxu0 0.0
    %972 = vmatpush1.msra.mxu0 %v755
    %973 = vmatprep.subr.mxu0 0.0
    %974 = vmatpush1.msra.mxu0 %v760
    %975 = vmatprep.subr.mxu0 0.0
    %976 = vmatpush1.msra.mxu0 %v765
    %977 = vmatprep.subr.mxu0 0.0
    %978 = vmatpush1.msra.mxu0 0.0
    %979 = vmatprep.subr.mxu0 0.0
    %980 = vmatpush1.msra.mxu0 0.0
    %981 = vmatprep.subr.mxu0 0.0
    %982 = vmatpush1.msra.mxu0 0.0
    %983 = vmatprep.subr.mxu0 0.0
    %984 = vmatpush1.msra.mxu0 0.0
    %985 = vmatprep.subr.mxu0 0.0
    %986 = vmatpush1.msra.mxu0 0.0
    %987 = vmatprep.subr.mxu0 0.0
    %988 = vmatpush1.msra.mxu0 0.0
    %989 = vmatprep.subr.mxu0 0.0
    %990 = vmatpush1.msra.mxu0 0.0
    %991 = vmatprep.subr.mxu0 0.0
    %992 = vmatpush1.msra.mxu0 0.0
    %993 = vmatprep.subr.mxu0 0.0
    %994 = vmatpush1.msra.mxu0 0.0
    %995 = vmatprep.subr.mxu0 0.0
    %996 = vmatpush1.msra.mxu0 0.0
    %997 = vmatprep.subr.mxu0 0.0
    %998 = vmatpush1.msra.mxu0 0.0
    %999 = vmatprep.subr.mxu0 0.0
    %1000 = vmatpush1.msra.mxu0 0.0
    %1001 = vmatprep.subr.mxu0 0.0
    %1002 = vmatpush1.msra.mxu0 0.0
    %1003 = vmatprep.subr.mxu0 0.0
    %1004 = vmatpush1.msra.mxu0 0.0
    %1005 = vmatprep.subr.mxu0 0.0
    %1006 = vmatpush1.msra.mxu0 0.0
    %1007 = vmatprep.subr.mxu0 0.0
    %1008 = vmatpush1.msra.mxu0 0.0
    %1009 = vmatprep.mubr.f32.mxu0 0.0
    %1010 = vmatmul.mubr.f32.gmra.mrb[0].mxu0 %v929
    %v1011 = vpop.f32.mrb[0].mxu0
    %v1012 = vadd.f32 0.0, %v1011
    %v1013 = vpop.f32.mrb[0].mxu0
    %1014 = vmatprep.mubr.f32.mxu0 0.0
    %1015 = vmatmul.mubr.f32.gmra.mrb[0].mxu0 %v930
    %v1016 = vpop.f32.mrb[0].mxu0
    %v1017 = vadd.f32 0.0, %v1016
    %v1018 = vpop.f32.mrb[0].mxu0
    %1019 = vmatprep.mubr.f32.mxu0 0.0
    %1020 = vmatmul.mubr.f32.gmra.mrb[0].mxu0 %v931
    %v1021 = vpop.f32.mrb[0].mxu0
    %v1022 = vadd.f32 0.0, %v1021
    %v1023 = vpop.f32.mrb[0].mxu0
    %1024 = vmatprep.mubr.f32.mxu0 0.0
    %1025 = vmatmul.mubr.f32.gmra.mrb[0].mxu0 %v932
    %v1026 = vpop.f32.mrb[0].mxu0
    %v1027 = vadd.f32 0.0, %v1026
    %v1028 = vpop.f32.mrb[0].mxu0
    %1029 = vmatprep.mubr.f32.mxu0 0.0
    %1030 = vmatmul.mubr.f32.gmra.mrb[0].mxu0 %v933
    %v1031 = vpop.f32.mrb[0].mxu0
    %v1032 = vadd.f32 0.0, %v1031
    %v1033 = vpop.f32.mrb[0].mxu0
    %1034 = vmatprep.mubr.f32.mxu0 0.0
    %1035 = vmatmul.mubr.f32.gmra.mrb[0].mxu0 %v934
    %v1036 = vpop.f32.mrb[0].mxu0
    %v1037 = vadd.f32 0.0, %v1036
    %v1038 = vpop.f32.mrb[0].mxu0
    %1039 = vmatprep.mubr.f32.mxu0 0.0
    %1040 = vmatmul.mubr.f32.gmra.mrb[0].mxu0 %v935
    %v1041 = vpop.f32.mrb[0].mxu0
    %v1042 = vadd.f32 0.0, %v1041
    %v1043 = vpop.f32.mrb[0].mxu0
    %1044 = vmatprep.mubr.f32.mxu0 0.0
    %1045 = vmatmul.mubr.f32.gmra.mrb[0].mxu0 %v936
    %v1046 = vpop.f32.mrb[0].mxu0
    %v1047 = vadd.f32 0.0, %v1046
    %v1048 = vpop.f32.mrb[0].mxu0
    %1049 = vmatprep.mubr.f32.mxu0 0.0
    %1050 = vmatmul.mubr.f32.gmra.mrb[0].mxu0 %v937
    %v1051 = vpop.f32.mrb[0].mxu0
    %v1052 = vadd.f32 0.0, %v1051
    %v1053 = vpop.f32.mrb[0].mxu0
    %1054 = vmatprep.mubr.f32.mxu0 0.0
    %1055 = vmatmul.mubr.f32.gmra.mrb[0].mxu0 %v938
    %v1056 = vpop.f32.mrb[0].mxu0
    %v1057 = vadd.f32 0.0, %v1056
    %v1058 = vpop.f32.mrb[0].mxu0
    %1059 = vmatprep.mubr.f32.mxu0 0.0
    %1060 = vmatmul.mubr.f32.gmra.mrb[0].mxu0 %v939
    %v1061 = vpop.f32.mrb[0].mxu0
    %v1062 = vadd.f32 0.0, %v1061
    %v1063 = vpop.f32.mrb[0].mxu0
    %1064 = vmatprep.mubr.f32.mxu0 0.0
    %1065 = vmatmul.mubr.f32.gmra.mrb[0].mxu0 %v940
    %v1066 = vpop.f32.mrb[0].mxu0
    %v1067 = vadd.f32 0.0, %v1066
    %v1068 = vpop.f32.mrb[0].mxu0
    %1069 = vmatprep.mubr.f32.mxu0 0.0
    %1070 = vmatmul.mubr.f32.gmra.mrb[0].mxu0 %v941
    %v1071 = vpop.f32.mrb[0].mxu0
    %v1072 = vadd.f32 0.0, %v1071
    %v1073 = vpop.f32.mrb[0].mxu0
    %1074 = vmatprep.mubr.f32.mxu0 0.0
    %1075 = vmatmul.mubr.f32.gmra.mrb[0].mxu0 %v942
    %v1076 = vpop.f32.mrb[0].mxu0
    %v1077 = vadd.f32 0.0, %v1076
    %v1078 = vpop.f32.mrb[0].mxu0
    %1079 = vmatprep.mubr.f32.mxu0 0.0
    %1080 = vmatmul.mubr.f32.gmra.mrb[0].mxu0 %v943
    %v1081 = vpop.f32.mrb[0].mxu0
    %v1082 = vadd.f32 0.0, %v1081
    %v1083 = vpop.f32.mrb[0].mxu0
    %1084 = vmatprep.mubr.f32.mxu0 0.0
    %1085 = vmatmul.mubr.f32.gmra.mrb[0].mxu0 %v944
    %v1086 = vpop.f32.mrb[0].mxu0
    %v1087 = vadd.f32 0.0, %v1086
    %v1088 = vpop.f32.mrb[0].mxu0
    %1089 = vdwg.mxu0
    %1090 = vmatprep.subr.mxu0 0.0
    %1091 = vmatpush1.xpose.msra.mxu0 %v1012
    %1092 = vmatprep.subr.mxu0 0.0
    %1093 = vmatpush1.xpose.msra.mxu0 %v1017
    %1094 = vmatprep.subr.mxu0 0.0
    %1095 = vmatpush1.xpose.msra.mxu0 %v1022
    %1096 = vmatprep.subr.mxu0 0.0
    %1097 = vmatpush1.xpose.msra.mxu0 %v1027
    %1098 = vmatprep.subr.mxu0 0.0
    %1099 = vmatpush1.xpose.msra.mxu0 %v1032
    %1100 = vmatprep.subr.mxu0 0.0
    %1101 = vmatpush1.xpose.msra.mxu0 %v1037
    %1102 = vmatprep.subr.mxu0 0.0
    %1103 = vmatpush1.xpose.msra.mxu0 %v1042
    %1104 = vmatprep.subr.mxu0 0.0
    %1105 = vmatpush1.xpose.msra.mxu0 %v1047
    %1106 = vmatprep.subr.mxu0 0.0
    %1107 = vmatpush1.xpose.msra.mxu0 %v1052
    %1108 = vmatprep.subr.mxu0 0.0
    %1109 = vmatpush1.xpose.msra.mxu0 %v1057
    %1110 = vmatprep.subr.mxu0 0.0
    %1111 = vmatpush1.xpose.msra.mxu0 %v1062
    %1112 = vmatprep.subr.mxu0 0.0
    %1113 = vmatpush1.xpose.msra.mxu0 %v1067
    %1114 = vmatprep.subr.mxu0 0.0
    %1115 = vmatpush1.xpose.msra.mxu0 %v1072
    %1116 = vmatprep.subr.mxu0 0.0
    %1117 = vmatpush1.xpose.msra.mxu0 %v1077
    %1118 = vmatprep.subr.mxu0 0.0
    %1119 = vmatpush1.xpose.msra.mxu0 %v1082
    %1120 = vmatprep.subr.mxu0 0.0
    %1121 = vmatpush1.xpose.msra.mxu0 %v1087
    %1122 = vmatprep.subr.mxu0 0.0
    %1123 = vmatpush1.xpose.msra.mxu0 0.0
    %1124 = vmatprep.subr.mxu0 0.0
    %1125 = vmatpush1.xpose.msra.mxu0 0.0
    %1126 = vmatprep.subr.mxu0 0.0
    %1127 = vmatpush1.xpose.msra.mxu0 0.0
    %1128 = vmatprep.subr.mxu0 0.0
    %1129 = vmatpush1.xpose.msra.mxu0 0.0
    %1130 = vmatprep.subr.mxu0 0.0
    %1131 = vmatpush1.xpose.msra.mxu0 0.0
    %1132 = vmatprep.subr.mxu0 0.0
    %1133 = vmatpush1.xpose.msra.mxu0 0.0
    %1134 = vmatprep.subr.mxu0 0.0
    %1135 = vmatpush1.xpose.msra.mxu0 0.0
    %1136 = vmatprep.subr.mxu0 0.0
    %1137 = vmatpush1.xpose.msra.mxu0 0.0
    %1138 = vmatprep.subr.mxu0 0.0
    %1139 = vmatpush1.xpose.msra.mxu0 0.0
    %1140 = vmatprep.subr.mxu0 0.0
    %1141 = vmatpush1.xpose.msra.mxu0 0.0
    %1142 = vmatprep.subr.mxu0 0.0
    %1143 = vmatpush1.xpose.msra.mxu0 0.0
    %1144 = vmatprep.subr.mxu0 0.0
    %1145 = vmatpush1.xpose.msra.mxu0 0.0
    %1146 = vmatprep.subr.mxu0 0.0
    %1147 = vmatpush1.xpose.msra.mxu0 0.0
    %1148 = vmatprep.subr.mxu0 0.0
    %1149 = vmatpush1.xpose.msra.mxu0 0.0
    %1150 = vmatprep.subr.mxu0 0.0
    %1151 = vmatpush1.xpose.msra.mxu0 0.0
    %1152 = vmatprep.subr.mxu0 0.0
    %1153 = vmatpush1.xpose.msra.mxu0 0.0
    %1154 = vmatprep.mubr.f32.mxu0 0.0
    %1155 = vmatmul.mubr.f32.gmra.mrb[0].mxu0 %v1012
    %v1156 = vpop.f32.mrb[0].mxu0
    %v1157 = vadd.f32 0.0, %v1156
    %v1158 = vpop.f32.mrb[0].mxu0
    %1159 = vmatprep.mubr.f32.mxu0 0.0
    %1160 = vmatmul.mubr.f32.gmra.mrb[0].mxu0 %v1017
    %v1161 = vpop.f32.mrb[0].mxu0
    %v1162 = vadd.f32 0.0, %v1161
    %v1163 = vpop.f32.mrb[0].mxu0
    %1164 = vmatprep.mubr.f32.mxu0 0.0
    %1165 = vmatmul.mubr.f32.gmra.mrb[0].mxu0 %v1022
    %v1166 = vpop.f32.mrb[0].mxu0
    %v1167 = vadd.f32 0.0, %v1166
    %v1168 = vpop.f32.mrb[0].mxu0
    %1169 = vmatprep.mubr.f32.mxu0 0.0
    %1170 = vmatmul.mubr.f32.gmra.mrb[0].mxu0 %v1027
    %v1171 = vpop.f32.mrb[0].mxu0
    %v1172 = vadd.f32 0.0, %v1171
    %v1173 = vpop.f32.mrb[0].mxu0
    %1174 = vmatprep.mubr.f32.mxu0 0.0
    %1175 = vmatmul.mubr.f32.gmra.mrb[0].mxu0 %v1032
    %v1176 = vpop.f32.mrb[0].mxu0
    %v1177 = vadd.f32 0.0, %v1176
    %v1178 = vpop.f32.mrb[0].mxu0
    %1179 = vmatprep.mubr.f32.mxu0 0.0
    %1180 = vmatmul.mubr.f32.gmra.mrb[0].mxu0 %v1037
    %v1181 = vpop.f32.mrb[0].mxu0
    %v1182 = vadd.f32 0.0, %v1181
    %v1183 = vpop.f32.mrb[0].mxu0
    %1184 = vmatprep.mubr.f32.mxu0 0.0
    %1185 = vmatmul.mubr.f32.gmra.mrb[0].mxu0 %v1042
    %v1186 = vpop.f32.mrb[0].mxu0
    %v1187 = vadd.f32 0.0, %v1186
    %v1188 = vpop.f32.mrb[0].mxu0
    %1189 = vmatprep.mubr.f32.mxu0 0.0
    %1190 = vmatmul.mubr.f32.gmra.mrb[0].mxu0 %v1047
    %v1191 = vpop.f32.mrb[0].mxu0
    %v1192 = vadd.f32 0.0, %v1191
    %v1193 = vpop.f32.mrb[0].mxu0
    %1194 = vmatprep.mubr.f32.mxu0 0.0
    %1195 = vmatmul.mubr.f32.gmra.mrb[0].mxu0 %v1052
    %v1196 = vpop.f32.mrb[0].mxu0
    %v1197 = vadd.f32 0.0, %v1196
    %v1198 = vpop.f32.mrb[0].mxu0
    %1199 = vmatprep.mubr.f32.mxu0 0.0
    %1200 = vmatmul.mubr.f32.gmra.mrb[0].mxu0 %v1057
    %v1201 = vpop.f32.mrb[0].mxu0
    %v1202 = vadd.f32 0.0, %v1201
    %v1203 = vpop.f32.mrb[0].mxu0
    %1204 = vmatprep.mubr.f32.mxu0 0.0
    %1205 = vmatmul.mubr.f32.gmra.mrb[0].mxu0 %v1062
    %v1206 = vpop.f32.mrb[0].mxu0
    %v1207 = vadd.f32 0.0, %v1206
    %v1208 = vpop.f32.mrb[0].mxu0
    %1209 = vmatprep.mubr.f32.mxu0 0.0
    %1210 = vmatmul.mubr.f32.gmra.mrb[0].mxu0 %v1067
    %v1211 = vpop.f32.mrb[0].mxu0
    %v1212 = vadd.f32 0.0, %v1211
    %v1213 = vpop.f32.mrb[0].mxu0
    %1214 = vmatprep.mubr.f32.mxu0 0.0
    %1215 = vmatmul.mubr.f32.gmra.mrb[0].mxu0 %v1072
    %v1216 = vpop.f32.mrb[0].mxu0
    %v1217 = vadd.f32 0.0, %v1216
    %v1218 = vpop.f32.mrb[0].mxu0
    %1219 = vmatprep.mubr.f32.mxu0 0.0
    %1220 = vmatmul.mubr.f32.gmra.mrb[0].mxu0 %v1077
    %v1221 = vpop.f32.mrb[0].mxu0
    %v1222 = vadd.f32 0.0, %v1221
    %v1223 = vpop.f32.mrb[0].mxu0
    %1224 = vmatprep.mubr.f32.mxu0 0.0
    %1225 = vmatmul.mubr.f32.gmra.mrb[0].mxu0 %v1082
    %v1226 = vpop.f32.mrb[0].mxu0
    %v1227 = vadd.f32 0.0, %v1226
    %v1228 = vpop.f32.mrb[0].mxu0
    %1229 = vmatprep.mubr.f32.mxu0 0.0
    %1230 = vmatmul.mubr.f32.gmra.mrb[0].mxu0 %v1087
    %v1231 = vpop.f32.mrb[0].mxu0
    %v1232 = vadd.f32 0.0, %v1231
    %v1233 = vpop.f32.mrb[0].mxu0
    %1234 = vdwg.mxu0
    %v1235 = vmul.f32 %v1157, 0.5
    %v1236 = vmul.f32 %v1162, 0.5
    %v1237 = vmul.f32 %v1167, 0.5
    %v1238 = vmul.f32 %v1172, 0.5
    %v1239 = vmul.f32 %v1177, 0.5
    %v1240 = vmul.f32 %v1182, 0.5
    %v1241 = vmul.f32 %v1187, 0.5
    %v1242 = vmul.f32 %v1192, 0.5
    %v1243 = vmul.f32 %v1197, 0.5
    %v1244 = vmul.f32 %v1202, 0.5
    %v1245 = vmul.f32 %v1207, 0.5
    %v1246 = vmul.f32 %v1212, 0.5
    %v1247 = vmul.f32 %v1217, 0.5
    %v1248 = vmul.f32 %v1222, 0.5
    %v1249 = vmul.f32 %v1227, 0.5
    %v1250 = vmul.f32 %v1232, 0.5
    %v1251 = vsub.f32 %v108, %v1235
    %v1252 = vsub.f32 %v109, %v1236
    %v1253 = vsub.f32 %v110, %v1237
    %v1254 = vsub.f32 %v111, %v1238
    %v1255 = vsub.f32 %v112, %v1239
    %v1256 = vsub.f32 %v113, %v1240
    %v1257 = vsub.f32 %v114, %v1241
    %v1258 = vsub.f32 %v115, %v1242
    %v1259 = vsub.f32 %v116, %v1243
    %v1260 = vsub.f32 %v117, %v1244
    %v1261 = vsub.f32 %v118, %v1245
    %v1262 = vsub.f32 %v119, %v1246
    %v1263 = vsub.f32 %v120, %v1247
    %v1264 = vsub.f32 %v121, %v1248
    %v1265 = vsub.f32 %v122, %v1249
    %v1266 = vsub.f32 %v123, %v1250
    %1267 = vmatprep.subr.mxu0 0.0
    %1268 = vmatpush1.msra.mxu0 %v1012
    %1269 = vmatprep.subr.mxu0 0.0
    %1270 = vmatpush1.msra.mxu0 %v1017
    %1271 = vmatprep.subr.mxu0 0.0
    %1272 = vmatpush1.msra.mxu0 %v1022
    %1273 = vmatprep.subr.mxu0 0.0
    %1274 = vmatpush1.msra.mxu0 %v1027
    %1275 = vmatprep.subr.mxu0 0.0
    %1276 = vmatpush1.msra.mxu0 %v1032
    %1277 = vmatprep.subr.mxu0 0.0
    %1278 = vmatpush1.msra.mxu0 %v1037
    %1279 = vmatprep.subr.mxu0 0.0
    %1280 = vmatpush1.msra.mxu0 %v1042
    %1281 = vmatprep.subr.mxu0 0.0
    %1282 = vmatpush1.msra.mxu0 %v1047
    %1283 = vmatprep.subr.mxu0 0.0
    %1284 = vmatpush1.msra.mxu0 %v1052
    %1285 = vmatprep.subr.mxu0 0.0
    %1286 = vmatpush1.msra.mxu0 %v1057
    %1287 = vmatprep.subr.mxu0 0.0
    %1288 = vmatpush1.msra.mxu0 %v1062
    %1289 = vmatprep.subr.mxu0 0.0
    %1290 = vmatpush1.msra.mxu0 %v1067
    %1291 = vmatprep.subr.mxu0 0.0
    %1292 = vmatpush1.msra.mxu0 %v1072
    %1293 = vmatprep.subr.mxu0 0.0
    %1294 = vmatpush1.msra.mxu0 %v1077
    %1295 = vmatprep.subr.mxu0 0.0
    %1296 = vmatpush1.msra.mxu0 %v1082
    %1297 = vmatprep.subr.mxu0 0.0
    %1298 = vmatpush1.msra.mxu0 %v1087
    %1299 = vmatprep.subr.mxu0 0.0
    %1300 = vmatpush1.msra.mxu0 0.0
    %1301 = vmatprep.subr.mxu0 0.0
    %1302 = vmatpush1.msra.mxu0 0.0
    %1303 = vmatprep.subr.mxu0 0.0
    %1304 = vmatpush1.msra.mxu0 0.0
    %1305 = vmatprep.subr.mxu0 0.0
    %1306 = vmatpush1.msra.mxu0 0.0
    %1307 = vmatprep.subr.mxu0 0.0
    %1308 = vmatpush1.msra.mxu0 0.0
    %1309 = vmatprep.subr.mxu0 0.0
    %1310 = vmatpush1.msra.mxu0 0.0
    %1311 = vmatprep.subr.mxu0 0.0
    %1312 = vmatpush1.msra.mxu0 0.0
    %1313 = vmatprep.subr.mxu0 0.0
    %1314 = vmatpush1.msra.mxu0 0.0
    %1315 = vmatprep.subr.mxu0 0.0
    %1316 = vmatpush1.msra.mxu0 0.0
    %1317 = vmatprep.subr.mxu0 0.0
    %1318 = vmatpush1.msra.mxu0 0.0
    %1319 = vmatprep.subr.mxu0 0.0
    %1320 = vmatpush1.msra.mxu0 0.0
    %1321 = vmatprep.subr.mxu0 0.0
    %1322 = vmatpush1.msra.mxu0 0.0
    %1323 = vmatprep.subr.mxu0 0.0
    %1324 = vmatpush1.msra.mxu0 0.0
    %1325 = vmatprep.subr.mxu0 0.0
    %1326 = vmatpush1.msra.mxu0 0.0
    %1327 = vmatprep.subr.mxu0 0.0
    %1328 = vmatpush1.msra.mxu0 0.0
    %1329 = vmatprep.subr.mxu0 0.0
    %1330 = vmatpush1.msra.mxu0 0.0
    %1331 = vmatprep.mubr.f32.mxu0 0.0
    %1332 = vmatmul.mubr.f32.gmra.mrb[0].mxu0 %v1251
    %v1333 = vpop.f32.mrb[0].mxu0
    %v1334 = vadd.f32 0.0, %v1333
    %v1335 = vpop.f32.mrb[0].mxu0
    %1336 = vmatprep.mubr.f32.mxu0 0.0
    %1337 = vmatmul.mubr.f32.gmra.mrb[0].mxu0 %v1252
    %v1338 = vpop.f32.mrb[0].mxu0
    %v1339 = vadd.f32 0.0, %v1338
    %v1340 = vpop.f32.mrb[0].mxu0
    %1341 = vmatprep.mubr.f32.mxu0 0.0
    %1342 = vmatmul.mubr.f32.gmra.mrb[0].mxu0 %v1253
    %v1343 = vpop.f32.mrb[0].mxu0
    %v1344 = vadd.f32 0.0, %v1343
    %v1345 = vpop.f32.mrb[0].mxu0
    %1346 = vmatprep.mubr.f32.mxu0 0.0
    %1347 = vmatmul.mubr.f32.gmra.mrb[0].mxu0 %v1254
    %v1348 = vpop.f32.mrb[0].mxu0
    %v1349 = vadd.f32 0.0, %v1348
    %v1350 = vpop.f32.mrb[0].mxu0
    %1351 = vmatprep.mubr.f32.mxu0 0.0
    %1352 = vmatmul.mubr.f32.gmra.mrb[0].mxu0 %v1255
    %v1353 = vpop.f32.mrb[0].mxu0
    %v1354 = vadd.f32 0.0, %v1353
    %v1355 = vpop.f32.mrb[0].mxu0
    %1356 = vmatprep.mubr.f32.mxu0 0.0
    %1357 = vmatmul.mubr.f32.gmra.mrb[0].mxu0 %v1256
    %v1358 = vpop.f32.mrb[0].mxu0
    %v1359 = vadd.f32 0.0, %v1358
    %v1360 = vpop.f32.mrb[0].mxu0
    %1361 = vmatprep.mubr.f32.mxu0 0.0
    %1362 = vmatmul.mubr.f32.gmra.mrb[0].mxu0 %v1257
    %v1363 = vpop.f32.mrb[0].mxu0
    %v1364 = vadd.f32 0.0, %v1363
    %v1365 = vpop.f32.mrb[0].mxu0
    %1366 = vmatprep.mubr.f32.mxu0 0.0
    %1367 = vmatmul.mubr.f32.gmra.mrb[0].mxu0 %v1258
    %v1368 = vpop.f32.mrb[0].mxu0
    %v1369 = vadd.f32 0.0, %v1368
    %v1370 = vpop.f32.mrb[0].mxu0
    %1371 = vmatprep.mubr.f32.mxu0 0.0
    %1372 = vmatmul.mubr.f32.gmra.mrb[0].mxu0 %v1259
    %v1373 = vpop.f32.mrb[0].mxu0
    %v1374 = vadd.f32 0.0, %v1373
    %v1375 = vpop.f32.mrb[0].mxu0
    %1376 = vmatprep.mubr.f32.mxu0 0.0
    %1377 = vmatmul.mubr.f32.gmra.mrb[0].mxu0 %v1260
    %v1378 = vpop.f32.mrb[0].mxu0
    %v1379 = vadd.f32 0.0, %v1378
    %v1380 = vpop.f32.mrb[0].mxu0
    %1381 = vmatprep.mubr.f32.mxu0 0.0
    %1382 = vmatmul.mubr.f32.gmra.mrb[0].mxu0 %v1261
    %v1383 = vpop.f32.mrb[0].mxu0
    %v1384 = vadd.f32 0.0, %v1383
    %v1385 = vpop.f32.mrb[0].mxu0
    %1386 = vmatprep.mubr.f32.mxu0 0.0
    %1387 = vmatmul.mubr.f32.gmra.mrb[0].mxu0 %v1262
    %v1388 = vpop.f32.mrb[0].mxu0
    %v1389 = vadd.f32 0.0, %v1388
    %v1390 = vpop.f32.mrb[0].mxu0
    %1391 = vmatprep.mubr.f32.mxu0 0.0
    %1392 = vmatmul.mubr.f32.gmra.mrb[0].mxu0 %v1263
    %v1393 = vpop.f32.mrb[0].mxu0
    %v1394 = vadd.f32 0.0, %v1393
    %v1395 = vpop.f32.mrb[0].mxu0
    %1396 = vmatprep.mubr.f32.mxu0 0.0
    %1397 = vmatmul.mubr.f32.gmra.mrb[0].mxu0 %v1264
    %v1398 = vpop.f32.mrb[0].mxu0
    %v1399 = vadd.f32 0.0, %v1398
    %v1400 = vpop.f32.mrb[0].mxu0
    %1401 = vmatprep.mubr.f32.mxu0 0.0
    %1402 = vmatmul.mubr.f32.gmra.mrb[0].mxu0 %v1265
    %v1403 = vpop.f32.mrb[0].mxu0
    %v1404 = vadd.f32 0.0, %v1403
    %v1405 = vpop.f32.mrb[0].mxu0
    %1406 = vmatprep.mubr.f32.mxu0 0.0
    %1407 = vmatmul.mubr.f32.gmra.mrb[0].mxu0 %v1266
    %v1408 = vpop.f32.mrb[0].mxu0
    %v1409 = vadd.f32 0.0, %v1408
    %v1410 = vpop.f32.mrb[0].mxu0
    %1411 = vdwg.mxu0
    %1412 = vmatprep.subr.mxu0 0.0
    %1413 = vmatpush1.xpose.msra.mxu0 %v1334
    %1414 = vmatprep.subr.mxu0 0.0
    %1415 = vmatpush1.xpose.msra.mxu0 %v1339
    %1416 = vmatprep.subr.mxu0 0.0
    %1417 = vmatpush1.xpose.msra.mxu0 %v1344
    %1418 = vmatprep.subr.mxu0 0.0
    %1419 = vmatpush1.xpose.msra.mxu0 %v1349
    %1420 = vmatprep.subr.mxu0 0.0
    %1421 = vmatpush1.xpose.msra.mxu0 %v1354
    %1422 = vmatprep.subr.mxu0 0.0
    %1423 = vmatpush1.xpose.msra.mxu0 %v1359
    %1424 = vmatprep.subr.mxu0 0.0
    %1425 = vmatpush1.xpose.msra.mxu0 %v1364
    %1426 = vmatprep.subr.mxu0 0.0
    %1427 = vmatpush1.xpose.msra.mxu0 %v1369
    %1428 = vmatprep.subr.mxu0 0.0
    %1429 = vmatpush1.xpose.msra.mxu0 %v1374
    %1430 = vmatprep.subr.mxu0 0.0
    %1431 = vmatpush1.xpose.msra.mxu0 %v1379
    %1432 = vmatprep.subr.mxu0 0.0
    %1433 = vmatpush1.xpose.msra.mxu0 %v1384
    %1434 = vmatprep.subr.mxu0 0.0
    %1435 = vmatpush1.xpose.msra.mxu0 %v1389
    %1436 = vmatprep.subr.mxu0 0.0
    %1437 = vmatpush1.xpose.msra.mxu0 %v1394
    %1438 = vmatprep.subr.mxu0 0.0
    %1439 = vmatpush1.xpose.msra.mxu0 %v1399
    %1440 = vmatprep.subr.mxu0 0.0
    %1441 = vmatpush1.xpose.msra.mxu0 %v1404
    %1442 = vmatprep.subr.mxu0 0.0
    %1443 = vmatpush1.xpose.msra.mxu0 %v1409
    %1444 = vmatprep.subr.mxu0 0.0
    %1445 = vmatpush1.xpose.msra.mxu0 0.0
    %1446 = vmatprep.subr.mxu0 0.0
    %1447 = vmatpush1.xpose.msra.mxu0 0.0
    %1448 = vmatprep.subr.mxu0 0.0
    %1449 = vmatpush1.xpose.msra.mxu0 0.0
    %1450 = vmatprep.subr.mxu0 0.0
    %1451 = vmatpush1.xpose.msra.mxu0 0.0
    %1452 = vmatprep.subr.mxu0 0.0
    %1453 = vmatpush1.xpose.msra.mxu0 0.0
    %1454 = vmatprep.subr.mxu0 0.0
    %1455 = vmatpush1.xpose.msra.mxu0 0.0
    %1456 = vmatprep.subr.mxu0 0.0
    %1457 = vmatpush1.xpose.msra.mxu0 0.0
    %1458 = vmatprep.subr.mxu0 0.0
    %1459 = vmatpush1.xpose.msra.mxu0 0.0
    %1460 = vmatprep.subr.mxu0 0.0
    %1461 = vmatpush1.xpose.msra.mxu0 0.0
    %1462 = vmatprep.subr.mxu0 0.0
    %1463 = vmatpush1.xpose.msra.mxu0 0.0
    %1464 = vmatprep.subr.mxu0 0.0
    %1465 = vmatpush1.xpose.msra.mxu0 0.0
    %1466 = vmatprep.subr.mxu0 0.0
    %1467 = vmatpush1.xpose.msra.mxu0 0.0
    %1468 = vmatprep.subr.mxu0 0.0
    %1469 = vmatpush1.xpose.msra.mxu0 0.0
    %1470 = vmatprep.subr.mxu0 0.0
    %1471 = vmatpush1.xpose.msra.mxu0 0.0
    %1472 = vmatprep.subr.mxu0 0.0
    %1473 = vmatpush1.xpose.msra.mxu0 0.0
    %1474 = vmatprep.subr.mxu0 0.0
    %1475 = vmatpush1.xpose.msra.mxu0 0.0
    %1476 = vmatprep.mubr.f32.mxu0 0.0
    %1477 = vmatmul.mubr.f32.gmra.mrb[0].mxu0 %v1334
    %v1478 = vpop.f32.mrb[0].mxu0
    %v1479 = vadd.f32 0.0, %v1478
    %v1480 = vpop.f32.mrb[0].mxu0
    %1481 = vmatprep.mubr.f32.mxu0 0.0
    %1482 = vmatmul.mubr.f32.gmra.mrb[0].mxu0 %v1339
    %v1483 = vpop.f32.mrb[0].mxu0
    %v1484 = vadd.f32 0.0, %v1483
    %v1485 = vpop.f32.mrb[0].mxu0
    %1486 = vmatprep.mubr.f32.mxu0 0.0
    %1487 = vmatmul.mubr.f32.gmra.mrb[0].mxu0 %v1344
    %v1488 = vpop.f32.mrb[0].mxu0
    %v1489 = vadd.f32 0.0, %v1488
    %v1490 = vpop.f32.mrb[0].mxu0
    %1491 = vmatprep.mubr.f32.mxu0 0.0
    %1492 = vmatmul.mubr.f32.gmra.mrb[0].mxu0 %v1349
    %v1493 = vpop.f32.mrb[0].mxu0
    %v1494 = vadd.f32 0.0, %v1493
    %v1495 = vpop.f32.mrb[0].mxu0
    %1496 = vmatprep.mubr.f32.mxu0 0.0
    %1497 = vmatmul.mubr.f32.gmra.mrb[0].mxu0 %v1354
    %v1498 = vpop.f32.mrb[0].mxu0
    %v1499 = vadd.f32 0.0, %v1498
    %v1500 = vpop.f32.mrb[0].mxu0
    %1501 = vmatprep.mubr.f32.mxu0 0.0
    %1502 = vmatmul.mubr.f32.gmra.mrb[0].mxu0 %v1359
    %v1503 = vpop.f32.mrb[0].mxu0
    %v1504 = vadd.f32 0.0, %v1503
    %v1505 = vpop.f32.mrb[0].mxu0
    %1506 = vmatprep.mubr.f32.mxu0 0.0
    %1507 = vmatmul.mubr.f32.gmra.mrb[0].mxu0 %v1364
    %v1508 = vpop.f32.mrb[0].mxu0
    %v1509 = vadd.f32 0.0, %v1508
    %v1510 = vpop.f32.mrb[0].mxu0
    %1511 = vmatprep.mubr.f32.mxu0 0.0
    %1512 = vmatmul.mubr.f32.gmra.mrb[0].mxu0 %v1369
    %v1513 = vpop.f32.mrb[0].mxu0
    %v1514 = vadd.f32 0.0, %v1513
    %v1515 = vpop.f32.mrb[0].mxu0
    %1516 = vmatprep.mubr.f32.mxu0 0.0
    %1517 = vmatmul.mubr.f32.gmra.mrb[0].mxu0 %v1374
    %v1518 = vpop.f32.mrb[0].mxu0
    %v1519 = vadd.f32 0.0, %v1518
    %v1520 = vpop.f32.mrb[0].mxu0
    %1521 = vmatprep.mubr.f32.mxu0 0.0
    %1522 = vmatmul.mubr.f32.gmra.mrb[0].mxu0 %v1379
    %v1523 = vpop.f32.mrb[0].mxu0
    %v1524 = vadd.f32 0.0, %v1523
    %v1525 = vpop.f32.mrb[0].mxu0
    %1526 = vmatprep.mubr.f32.mxu0 0.0
    %1527 = vmatmul.mubr.f32.gmra.mrb[0].mxu0 %v1384
    %v1528 = vpop.f32.mrb[0].mxu0
    %v1529 = vadd.f32 0.0, %v1528
    %v1530 = vpop.f32.mrb[0].mxu0
    %1531 = vmatprep.mubr.f32.mxu0 0.0
    %1532 = vmatmul.mubr.f32.gmra.mrb[0].mxu0 %v1389
    %v1533 = vpop.f32.mrb[0].mxu0
    %v1534 = vadd.f32 0.0, %v1533
    %v1535 = vpop.f32.mrb[0].mxu0
    %1536 = vmatprep.mubr.f32.mxu0 0.0
    %1537 = vmatmul.mubr.f32.gmra.mrb[0].mxu0 %v1394
    %v1538 = vpop.f32.mrb[0].mxu0
    %v1539 = vadd.f32 0.0, %v1538
    %v1540 = vpop.f32.mrb[0].mxu0
    %1541 = vmatprep.mubr.f32.mxu0 0.0
    %1542 = vmatmul.mubr.f32.gmra.mrb[0].mxu0 %v1399
    %v1543 = vpop.f32.mrb[0].mxu0
    %v1544 = vadd.f32 0.0, %v1543
    %v1545 = vpop.f32.mrb[0].mxu0
    %1546 = vmatprep.mubr.f32.mxu0 0.0
    %1547 = vmatmul.mubr.f32.gmra.mrb[0].mxu0 %v1404
    %v1548 = vpop.f32.mrb[0].mxu0
    %v1549 = vadd.f32 0.0, %v1548
    %v1550 = vpop.f32.mrb[0].mxu0
    %1551 = vmatprep.mubr.f32.mxu0 0.0
    %1552 = vmatmul.mubr.f32.gmra.mrb[0].mxu0 %v1409
    %v1553 = vpop.f32.mrb[0].mxu0
    %v1554 = vadd.f32 0.0, %v1553
    %v1555 = vpop.f32.mrb[0].mxu0
    %1556 = vdwg.mxu0
    %v1557 = vmul.f32 %v1479, 0.5
    %v1558 = vmul.f32 %v1484, 0.5
    %v1559 = vmul.f32 %v1489, 0.5
    %v1560 = vmul.f32 %v1494, 0.5
    %v1561 = vmul.f32 %v1499, 0.5
    %v1562 = vmul.f32 %v1504, 0.5
    %v1563 = vmul.f32 %v1509, 0.5
    %v1564 = vmul.f32 %v1514, 0.5
    %v1565 = vmul.f32 %v1519, 0.5
    %v1566 = vmul.f32 %v1524, 0.5
    %v1567 = vmul.f32 %v1529, 0.5
    %v1568 = vmul.f32 %v1534, 0.5
    %v1569 = vmul.f32 %v1539, 0.5
    %v1570 = vmul.f32 %v1544, 0.5
    %v1571 = vmul.f32 %v1549, 0.5
    %v1572 = vmul.f32 %v1554, 0.5
    %v1573 = vsub.f32 %v108, %v1557
    %v1574 = vsub.f32 %v109, %v1558
    %v1575 = vsub.f32 %v110, %v1559
    %v1576 = vsub.f32 %v111, %v1560
    %v1577 = vsub.f32 %v112, %v1561
    %v1578 = vsub.f32 %v113, %v1562
    %v1579 = vsub.f32 %v114, %v1563
    %v1580 = vsub.f32 %v115, %v1564
    %v1581 = vsub.f32 %v116, %v1565
    %v1582 = vsub.f32 %v117, %v1566
    %v1583 = vsub.f32 %v118, %v1567
    %v1584 = vsub.f32 %v119, %v1568
    %v1585 = vsub.f32 %v120, %v1569
    %v1586 = vsub.f32 %v121, %v1570
    %v1587 = vsub.f32 %v122, %v1571
    %v1588 = vsub.f32 %v123, %v1572
    %1589 = vmatprep.subr.mxu0 0.0
    %1590 = vmatpush1.msra.mxu0 %v1334
    %1591 = vmatprep.subr.mxu0 0.0
    %1592 = vmatpush1.msra.mxu0 %v1339
    %1593 = vmatprep.subr.mxu0 0.0
    %1594 = vmatpush1.msra.mxu0 %v1344
    %1595 = vmatprep.subr.mxu0 0.0
    %1596 = vmatpush1.msra.mxu0 %v1349
    %1597 = vmatprep.subr.mxu0 0.0
    %1598 = vmatpush1.msra.mxu0 %v1354
    %1599 = vmatprep.subr.mxu0 0.0
    %1600 = vmatpush1.msra.mxu0 %v1359
    %1601 = vmatprep.subr.mxu0 0.0
    %1602 = vmatpush1.msra.mxu0 %v1364
    %1603 = vmatprep.subr.mxu0 0.0
    %1604 = vmatpush1.msra.mxu0 %v1369
    %1605 = vmatprep.subr.mxu0 0.0
    %1606 = vmatpush1.msra.mxu0 %v1374
    %1607 = vmatprep.subr.mxu0 0.0
    %1608 = vmatpush1.msra.mxu0 %v1379
    %1609 = vmatprep.subr.mxu0 0.0
    %1610 = vmatpush1.msra.mxu0 %v1384
    %1611 = vmatprep.subr.mxu0 0.0
    %1612 = vmatpush1.msra.mxu0 %v1389
    %1613 = vmatprep.subr.mxu0 0.0
    %1614 = vmatpush1.msra.mxu0 %v1394
    %1615 = vmatprep.subr.mxu0 0.0
    %1616 = vmatpush1.msra.mxu0 %v1399
    %1617 = vmatprep.subr.mxu0 0.0
    %1618 = vmatpush1.msra.mxu0 %v1404
    %1619 = vmatprep.subr.mxu0 0.0
    %1620 = vmatpush1.msra.mxu0 %v1409
    %1621 = vmatprep.subr.mxu0 0.0
    %1622 = vmatpush1.msra.mxu0 0.0
    %1623 = vmatprep.subr.mxu0 0.0
    %1624 = vmatpush1.msra.mxu0 0.0
    %1625 = vmatprep.subr.mxu0 0.0
    %1626 = vmatpush1.msra.mxu0 0.0
    %1627 = vmatprep.subr.mxu0 0.0
    %1628 = vmatpush1.msra.mxu0 0.0
    %1629 = vmatprep.subr.mxu0 0.0
    %1630 = vmatpush1.msra.mxu0 0.0
    %1631 = vmatprep.subr.mxu0 0.0
    %1632 = vmatpush1.msra.mxu0 0.0
    %1633 = vmatprep.subr.mxu0 0.0
    %1634 = vmatpush1.msra.mxu0 0.0
    %1635 = vmatprep.subr.mxu0 0.0
    %1636 = vmatpush1.msra.mxu0 0.0
    %1637 = vmatprep.subr.mxu0 0.0
    %1638 = vmatpush1.msra.mxu0 0.0
    %1639 = vmatprep.subr.mxu0 0.0
    %1640 = vmatpush1.msra.mxu0 0.0
    %1641 = vmatprep.subr.mxu0 0.0
    %1642 = vmatpush1.msra.mxu0 0.0
    %1643 = vmatprep.subr.mxu0 0.0
    %1644 = vmatpush1.msra.mxu0 0.0
    %1645 = vmatprep.subr.mxu0 0.0
    %1646 = vmatpush1.msra.mxu0 0.0
    %1647 = vmatprep.subr.mxu0 0.0
    %1648 = vmatpush1.msra.mxu0 0.0
    %1649 = vmatprep.subr.mxu0 0.0
    %1650 = vmatpush1.msra.mxu0 0.0
    %1651 = vmatprep.subr.mxu0 0.0
    %1652 = vmatpush1.msra.mxu0 0.0
    %1653 = vmatprep.mubr.f32.mxu0 0.0
    %1654 = vmatmul.mubr.f32.gmra.mrb[0].mxu0 %v1573
    %v1655 = vpop.f32.mrb[0].mxu0
    %v1656 = vadd.f32 0.0, %v1655
    %v1657 = vpop.f32.mrb[0].mxu0
    %1658 = vmatprep.mubr.f32.mxu0 0.0
    %1659 = vmatmul.mubr.f32.gmra.mrb[0].mxu0 %v1574
    %v1660 = vpop.f32.mrb[0].mxu0
    %v1661 = vadd.f32 0.0, %v1660
    %v1662 = vpop.f32.mrb[0].mxu0
    %1663 = vmatprep.mubr.f32.mxu0 0.0
    %1664 = vmatmul.mubr.f32.gmra.mrb[0].mxu0 %v1575
    %v1665 = vpop.f32.mrb[0].mxu0
    %v1666 = vadd.f32 0.0, %v1665
    %v1667 = vpop.f32.mrb[0].mxu0
    %1668 = vmatprep.mubr.f32.mxu0 0.0
    %1669 = vmatmul.mubr.f32.gmra.mrb[0].mxu0 %v1576
    %v1670 = vpop.f32.mrb[0].mxu0
    %v1671 = vadd.f32 0.0, %v1670
    %v1672 = vpop.f32.mrb[0].mxu0
    %1673 = vmatprep.mubr.f32.mxu0 0.0
    %1674 = vmatmul.mubr.f32.gmra.mrb[0].mxu0 %v1577
    %v1675 = vpop.f32.mrb[0].mxu0
    %v1676 = vadd.f32 0.0, %v1675
    %v1677 = vpop.f32.mrb[0].mxu0
    %1678 = vmatprep.mubr.f32.mxu0 0.0
    %1679 = vmatmul.mubr.f32.gmra.mrb[0].mxu0 %v1578
    %v1680 = vpop.f32.mrb[0].mxu0
    %v1681 = vadd.f32 0.0, %v1680
    %v1682 = vpop.f32.mrb[0].mxu0
    %1683 = vmatprep.mubr.f32.mxu0 0.0
    %1684 = vmatmul.mubr.f32.gmra.mrb[0].mxu0 %v1579
    %v1685 = vpop.f32.mrb[0].mxu0
    %v1686 = vadd.f32 0.0, %v1685
    %v1687 = vpop.f32.mrb[0].mxu0
    %1688 = vmatprep.mubr.f32.mxu0 0.0
    %1689 = vmatmul.mubr.f32.gmra.mrb[0].mxu0 %v1580
    %v1690 = vpop.f32.mrb[0].mxu0
    %v1691 = vadd.f32 0.0, %v1690
    %v1692 = vpop.f32.mrb[0].mxu0
    %1693 = vmatprep.mubr.f32.mxu0 0.0
    %1694 = vmatmul.mubr.f32.gmra.mrb[0].mxu0 %v1581
    %v1695 = vpop.f32.mrb[0].mxu0
    %v1696 = vadd.f32 0.0, %v1695
    %v1697 = vpop.f32.mrb[0].mxu0
    %1698 = vmatprep.mubr.f32.mxu0 0.0
    %1699 = vmatmul.mubr.f32.gmra.mrb[0].mxu0 %v1582
    %v1700 = vpop.f32.mrb[0].mxu0
    %v1701 = vadd.f32 0.0, %v1700
    %v1702 = vpop.f32.mrb[0].mxu0
    %1703 = vmatprep.mubr.f32.mxu0 0.0
    %1704 = vmatmul.mubr.f32.gmra.mrb[0].mxu0 %v1583
    %v1705 = vpop.f32.mrb[0].mxu0
    %v1706 = vadd.f32 0.0, %v1705
    %v1707 = vpop.f32.mrb[0].mxu0
    %1708 = vmatprep.mubr.f32.mxu0 0.0
    %1709 = vmatmul.mubr.f32.gmra.mrb[0].mxu0 %v1584
    %v1710 = vpop.f32.mrb[0].mxu0
    %v1711 = vadd.f32 0.0, %v1710
    %v1712 = vpop.f32.mrb[0].mxu0
    %1713 = vmatprep.mubr.f32.mxu0 0.0
    %1714 = vmatmul.mubr.f32.gmra.mrb[0].mxu0 %v1585
    %v1715 = vpop.f32.mrb[0].mxu0
    %v1716 = vadd.f32 0.0, %v1715
    %v1717 = vpop.f32.mrb[0].mxu0
    %1718 = vmatprep.mubr.f32.mxu0 0.0
    %1719 = vmatmul.mubr.f32.gmra.mrb[0].mxu0 %v1586
    %v1720 = vpop.f32.mrb[0].mxu0
    %v1721 = vadd.f32 0.0, %v1720
    %v1722 = vpop.f32.mrb[0].mxu0
    %1723 = vmatprep.mubr.f32.mxu0 0.0
    %1724 = vmatmul.mubr.f32.gmra.mrb[0].mxu0 %v1587
    %v1725 = vpop.f32.mrb[0].mxu0
    %v1726 = vadd.f32 0.0, %v1725
    %v1727 = vpop.f32.mrb[0].mxu0
    %1728 = vmatprep.mubr.f32.mxu0 0.0
    %1729 = vmatmul.mubr.f32.gmra.mrb[0].mxu0 %v1588
    %v1730 = vpop.f32.mrb[0].mxu0
    %v1731 = vadd.f32 0.0, %v1730
    %v1732 = vpop.f32.mrb[0].mxu0
    %1733 = vdwg.mxu0
    %1734 = vmatprep.subr.mxu0 0.0
    %1735 = vmatpush1.xpose.msra.mxu0 %v1656
    %1736 = vmatprep.subr.mxu0 0.0
    %1737 = vmatpush1.xpose.msra.mxu0 %v1661
    %1738 = vmatprep.subr.mxu0 0.0
    %1739 = vmatpush1.xpose.msra.mxu0 %v1666
    %1740 = vmatprep.subr.mxu0 0.0
    %1741 = vmatpush1.xpose.msra.mxu0 %v1671
    %1742 = vmatprep.subr.mxu0 0.0
    %1743 = vmatpush1.xpose.msra.mxu0 %v1676
    %1744 = vmatprep.subr.mxu0 0.0
    %1745 = vmatpush1.xpose.msra.mxu0 %v1681
    %1746 = vmatprep.subr.mxu0 0.0
    %1747 = vmatpush1.xpose.msra.mxu0 %v1686
    %1748 = vmatprep.subr.mxu0 0.0
    %1749 = vmatpush1.xpose.msra.mxu0 %v1691
    %1750 = vmatprep.subr.mxu0 0.0
    %1751 = vmatpush1.xpose.msra.mxu0 %v1696
    %1752 = vmatprep.subr.mxu0 0.0
    %1753 = vmatpush1.xpose.msra.mxu0 %v1701
    %1754 = vmatprep.subr.mxu0 0.0
    %1755 = vmatpush1.xpose.msra.mxu0 %v1706
    %1756 = vmatprep.subr.mxu0 0.0
    %1757 = vmatpush1.xpose.msra.mxu0 %v1711
    %1758 = vmatprep.subr.mxu0 0.0
    %1759 = vmatpush1.xpose.msra.mxu0 %v1716
    %1760 = vmatprep.subr.mxu0 0.0
    %1761 = vmatpush1.xpose.msra.mxu0 %v1721
    %1762 = vmatprep.subr.mxu0 0.0
    %1763 = vmatpush1.xpose.msra.mxu0 %v1726
    %1764 = vmatprep.subr.mxu0 0.0
    %1765 = vmatpush1.xpose.msra.mxu0 %v1731
    %1766 = vmatprep.subr.mxu0 0.0
    %1767 = vmatpush1.xpose.msra.mxu0 0.0
    %1768 = vmatprep.subr.mxu0 0.0
    %1769 = vmatpush1.xpose.msra.mxu0 0.0
    %1770 = vmatprep.subr.mxu0 0.0
    %1771 = vmatpush1.xpose.msra.mxu0 0.0
    %1772 = vmatprep.subr.mxu0 0.0
    %1773 = vmatpush1.xpose.msra.mxu0 0.0
    %1774 = vmatprep.subr.mxu0 0.0
    %1775 = vmatpush1.xpose.msra.mxu0 0.0
    %1776 = vmatprep.subr.mxu0 0.0
    %1777 = vmatpush1.xpose.msra.mxu0 0.0
    %1778 = vmatprep.subr.mxu0 0.0
    %1779 = vmatpush1.xpose.msra.mxu0 0.0
    %1780 = vmatprep.subr.mxu0 0.0
    %1781 = vmatpush1.xpose.msra.mxu0 0.0
    %1782 = vmatprep.subr.mxu0 0.0
    %1783 = vmatpush1.xpose.msra.mxu0 0.0
    %1784 = vmatprep.subr.mxu0 0.0
    %1785 = vmatpush1.xpose.msra.mxu0 0.0
    %1786 = vmatprep.subr.mxu0 0.0
    %1787 = vmatpush1.xpose.msra.mxu0 0.0
    %1788 = vmatprep.subr.mxu0 0.0
    %1789 = vmatpush1.xpose.msra.mxu0 0.0
    %1790 = vmatprep.subr.mxu0 0.0
    %1791 = vmatpush1.xpose.msra.mxu0 0.0
    %1792 = vmatprep.subr.mxu0 0.0
    %1793 = vmatpush1.xpose.msra.mxu0 0.0
    %1794 = vmatprep.subr.mxu0 0.0
    %1795 = vmatpush1.xpose.msra.mxu0 0.0
    %1796 = vmatprep.subr.mxu0 0.0
    %1797 = vmatpush1.xpose.msra.mxu0 0.0
    %1798 = vmatprep.mubr.f32.mxu0 0.0
    %1799 = vmatmul.mubr.f32.gmra.mrb[0].mxu0 %v1656
    %v1800 = vpop.f32.mrb[0].mxu0
    %v1801 = vadd.f32 0.0, %v1800
    %v1802 = vpop.f32.mrb[0].mxu0
    %1803 = vmatprep.mubr.f32.mxu0 0.0
    %1804 = vmatmul.mubr.f32.gmra.mrb[0].mxu0 %v1661
    %v1805 = vpop.f32.mrb[0].mxu0
    %v1806 = vadd.f32 0.0, %v1805
    %v1807 = vpop.f32.mrb[0].mxu0
    %1808 = vmatprep.mubr.f32.mxu0 0.0
    %1809 = vmatmul.mubr.f32.gmra.mrb[0].mxu0 %v1666
    %v1810 = vpop.f32.mrb[0].mxu0
    %v1811 = vadd.f32 0.0, %v1810
    %v1812 = vpop.f32.mrb[0].mxu0
    %1813 = vmatprep.mubr.f32.mxu0 0.0
    %1814 = vmatmul.mubr.f32.gmra.mrb[0].mxu0 %v1671
    %v1815 = vpop.f32.mrb[0].mxu0
    %v1816 = vadd.f32 0.0, %v1815
    %v1817 = vpop.f32.mrb[0].mxu0
    %1818 = vmatprep.mubr.f32.mxu0 0.0
    %1819 = vmatmul.mubr.f32.gmra.mrb[0].mxu0 %v1676
    %v1820 = vpop.f32.mrb[0].mxu0
    %v1821 = vadd.f32 0.0, %v1820
    %v1822 = vpop.f32.mrb[0].mxu0
    %1823 = vmatprep.mubr.f32.mxu0 0.0
    %1824 = vmatmul.mubr.f32.gmra.mrb[0].mxu0 %v1681
    %v1825 = vpop.f32.mrb[0].mxu0
    %v1826 = vadd.f32 0.0, %v1825
    %v1827 = vpop.f32.mrb[0].mxu0
    %1828 = vmatprep.mubr.f32.mxu0 0.0
    %1829 = vmatmul.mubr.f32.gmra.mrb[0].mxu0 %v1686
    %v1830 = vpop.f32.mrb[0].mxu0
    %v1831 = vadd.f32 0.0, %v1830
    %v1832 = vpop.f32.mrb[0].mxu0
    %1833 = vmatprep.mubr.f32.mxu0 0.0
    %1834 = vmatmul.mubr.f32.gmra.mrb[0].mxu0 %v1691
    %v1835 = vpop.f32.mrb[0].mxu0
    %v1836 = vadd.f32 0.0, %v1835
    %v1837 = vpop.f32.mrb[0].mxu0
    %1838 = vmatprep.mubr.f32.mxu0 0.0
    %1839 = vmatmul.mubr.f32.gmra.mrb[0].mxu0 %v1696
    %v1840 = vpop.f32.mrb[0].mxu0
    %v1841 = vadd.f32 0.0, %v1840
    %v1842 = vpop.f32.mrb[0].mxu0
    %1843 = vmatprep.mubr.f32.mxu0 0.0
    %1844 = vmatmul.mubr.f32.gmra.mrb[0].mxu0 %v1701
    %v1845 = vpop.f32.mrb[0].mxu0
    %v1846 = vadd.f32 0.0, %v1845
    %v1847 = vpop.f32.mrb[0].mxu0
    %1848 = vmatprep.mubr.f32.mxu0 0.0
    %1849 = vmatmul.mubr.f32.gmra.mrb[0].mxu0 %v1706
    %v1850 = vpop.f32.mrb[0].mxu0
    %v1851 = vadd.f32 0.0, %v1850
    %v1852 = vpop.f32.mrb[0].mxu0
    %1853 = vmatprep.mubr.f32.mxu0 0.0
    %1854 = vmatmul.mubr.f32.gmra.mrb[0].mxu0 %v1711
    %v1855 = vpop.f32.mrb[0].mxu0
    %v1856 = vadd.f32 0.0, %v1855
    %v1857 = vpop.f32.mrb[0].mxu0
    %1858 = vmatprep.mubr.f32.mxu0 0.0
    %1859 = vmatmul.mubr.f32.gmra.mrb[0].mxu0 %v1716
    %v1860 = vpop.f32.mrb[0].mxu0
    %v1861 = vadd.f32 0.0, %v1860
    %v1862 = vpop.f32.mrb[0].mxu0
    %1863 = vmatprep.mubr.f32.mxu0 0.0
    %1864 = vmatmul.mubr.f32.gmra.mrb[0].mxu0 %v1721
    %v1865 = vpop.f32.mrb[0].mxu0
    %v1866 = vadd.f32 0.0, %v1865
    %v1867 = vpop.f32.mrb[0].mxu0
    %1868 = vmatprep.mubr.f32.mxu0 0.0
    %1869 = vmatmul.mubr.f32.gmra.mrb[0].mxu0 %v1726
    %v1870 = vpop.f32.mrb[0].mxu0
    %v1871 = vadd.f32 0.0, %v1870
    %v1872 = vpop.f32.mrb[0].mxu0
    %1873 = vmatprep.mubr.f32.mxu0 0.0
    %1874 = vmatmul.mubr.f32.gmra.mrb[0].mxu0 %v1731
    %v1875 = vpop.f32.mrb[0].mxu0
    %v1876 = vadd.f32 0.0, %v1875
    %v1877 = vpop.f32.mrb[0].mxu0
    %1878 = vdwg.mxu0
    %v1879 = vmul.f32 %v1801, 0.5
    %v1880 = vmul.f32 %v1806, 0.5
    %v1881 = vmul.f32 %v1811, 0.5
    %v1882 = vmul.f32 %v1816, 0.5
    %v1883 = vmul.f32 %v1821, 0.5
    %v1884 = vmul.f32 %v1826, 0.5
    %v1885 = vmul.f32 %v1831, 0.5
    %v1886 = vmul.f32 %v1836, 0.5
    %v1887 = vmul.f32 %v1841, 0.5
    %v1888 = vmul.f32 %v1846, 0.5
    %v1889 = vmul.f32 %v1851, 0.5
    %v1890 = vmul.f32 %v1856, 0.5
    %v1891 = vmul.f32 %v1861, 0.5
    %v1892 = vmul.f32 %v1866, 0.5
    %v1893 = vmul.f32 %v1871, 0.5
    %v1894 = vmul.f32 %v1876, 0.5
    %v1895 = vsub.f32 %v108, %v1879
    %v1896 = vsub.f32 %v109, %v1880
    %v1897 = vsub.f32 %v110, %v1881
    %v1898 = vsub.f32 %v111, %v1882
    %v1899 = vsub.f32 %v112, %v1883
    %v1900 = vsub.f32 %v113, %v1884
    %v1901 = vsub.f32 %v114, %v1885
    %v1902 = vsub.f32 %v115, %v1886
    %v1903 = vsub.f32 %v116, %v1887
    %v1904 = vsub.f32 %v117, %v1888
    %v1905 = vsub.f32 %v118, %v1889
    %v1906 = vsub.f32 %v119, %v1890
    %v1907 = vsub.f32 %v120, %v1891
    %v1908 = vsub.f32 %v121, %v1892
    %v1909 = vsub.f32 %v122, %v1893
    %v1910 = vsub.f32 %v123, %v1894
    %1911 = vmatprep.subr.mxu0 0.0
    %1912 = vmatpush1.msra.mxu0 %v1656
    %1913 = vmatprep.subr.mxu0 0.0
    %1914 = vmatpush1.msra.mxu0 %v1661
    %1915 = vmatprep.subr.mxu0 0.0
    %1916 = vmatpush1.msra.mxu0 %v1666
    %1917 = vmatprep.subr.mxu0 0.0
    %1918 = vmatpush1.msra.mxu0 %v1671
    %1919 = vmatprep.subr.mxu0 0.0
    %1920 = vmatpush1.msra.mxu0 %v1676
    %1921 = vmatprep.subr.mxu0 0.0
    %1922 = vmatpush1.msra.mxu0 %v1681
    %1923 = vmatprep.subr.mxu0 0.0
    %1924 = vmatpush1.msra.mxu0 %v1686
    %1925 = vmatprep.subr.mxu0 0.0
    %1926 = vmatpush1.msra.mxu0 %v1691
    %1927 = vmatprep.subr.mxu0 0.0
    %1928 = vmatpush1.msra.mxu0 %v1696
    %1929 = vmatprep.subr.mxu0 0.0
    %1930 = vmatpush1.msra.mxu0 %v1701
    %1931 = vmatprep.subr.mxu0 0.0
    %1932 = vmatpush1.msra.mxu0 %v1706
    %1933 = vmatprep.subr.mxu0 0.0
    %1934 = vmatpush1.msra.mxu0 %v1711
    %1935 = vmatprep.subr.mxu0 0.0
    %1936 = vmatpush1.msra.mxu0 %v1716
    %1937 = vmatprep.subr.mxu0 0.0
    %1938 = vmatpush1.msra.mxu0 %v1721
    %1939 = vmatprep.subr.mxu0 0.0
    %1940 = vmatpush1.msra.mxu0 %v1726
    %1941 = vmatprep.subr.mxu0 0.0
    %1942 = vmatpush1.msra.mxu0 %v1731
    %1943 = vmatprep.subr.mxu0 0.0
    %1944 = vmatpush1.msra.mxu0 0.0
    %1945 = vmatprep.subr.mxu0 0.0
    %1946 = vmatpush1.msra.mxu0 0.0
    %1947 = vmatprep.subr.mxu0 0.0
    %1948 = vmatpush1.msra.mxu0 0.0
    %1949 = vmatprep.subr.mxu0 0.0
    %1950 = vmatpush1.msra.mxu0 0.0
    %1951 = vmatprep.subr.mxu0 0.0
    %1952 = vmatpush1.msra.mxu0 0.0
    %1953 = vmatprep.subr.mxu0 0.0
    %1954 = vmatpush1.msra.mxu0 0.0
    %1955 = vmatprep.subr.mxu0 0.0
    %1956 = vmatpush1.msra.mxu0 0.0
    %1957 = vmatprep.subr.mxu0 0.0
    %1958 = vmatpush1.msra.mxu0 0.0
    %1959 = vmatprep.subr.mxu0 0.0
    %1960 = vmatpush1.msra.mxu0 0.0
    %1961 = vmatprep.subr.mxu0 0.0
    %1962 = vmatpush1.msra.mxu0 0.0
    %1963 = vmatprep.subr.mxu0 0.0
    %1964 = vmatpush1.msra.mxu0 0.0
    %1965 = vmatprep.subr.mxu0 0.0
    %1966 = vmatpush1.msra.mxu0 0.0
    %1967 = vmatprep.subr.mxu0 0.0
    %1968 = vmatpush1.msra.mxu0 0.0
    %1969 = vmatprep.subr.mxu0 0.0
    %1970 = vmatpush1.msra.mxu0 0.0
    %1971 = vmatprep.subr.mxu0 0.0
    %1972 = vmatpush1.msra.mxu0 0.0
    %1973 = vmatprep.subr.mxu0 0.0
    %1974 = vmatpush1.msra.mxu0 0.0
    %1975 = vmatprep.mubr.f32.mxu0 0.0
    %1976 = vmatmul.mubr.f32.gmra.mrb[0].mxu0 %v1895
    %v1977 = vpop.f32.mrb[0].mxu0
    %v1978 = vadd.f32 0.0, %v1977
    %v1979 = vpop.f32.mrb[0].mxu0
    %1980 = vmatprep.mubr.f32.mxu0 0.0
    %1981 = vmatmul.mubr.f32.gmra.mrb[0].mxu0 %v1896
    %v1982 = vpop.f32.mrb[0].mxu0
    %v1983 = vadd.f32 0.0, %v1982
    %v1984 = vpop.f32.mrb[0].mxu0
    %1985 = vmatprep.mubr.f32.mxu0 0.0
    %1986 = vmatmul.mubr.f32.gmra.mrb[0].mxu0 %v1897
    %v1987 = vpop.f32.mrb[0].mxu0
    %v1988 = vadd.f32 0.0, %v1987
    %v1989 = vpop.f32.mrb[0].mxu0
    %1990 = vmatprep.mubr.f32.mxu0 0.0
    %1991 = vmatmul.mubr.f32.gmra.mrb[0].mxu0 %v1898
    %v1992 = vpop.f32.mrb[0].mxu0
    %v1993 = vadd.f32 0.0, %v1992
    %v1994 = vpop.f32.mrb[0].mxu0
    %1995 = vmatprep.mubr.f32.mxu0 0.0
    %1996 = vmatmul.mubr.f32.gmra.mrb[0].mxu0 %v1899
    %v1997 = vpop.f32.mrb[0].mxu0
    %v1998 = vadd.f32 0.0, %v1997
    %v1999 = vpop.f32.mrb[0].mxu0
    %2000 = vmatprep.mubr.f32.mxu0 0.0
    %2001 = vmatmul.mubr.f32.gmra.mrb[0].mxu0 %v1900
    %v2002 = vpop.f32.mrb[0].mxu0
    %v2003 = vadd.f32 0.0, %v2002
    %v2004 = vpop.f32.mrb[0].mxu0
    %2005 = vmatprep.mubr.f32.mxu0 0.0
    %2006 = vmatmul.mubr.f32.gmra.mrb[0].mxu0 %v1901
    %v2007 = vpop.f32.mrb[0].mxu0
    %v2008 = vadd.f32 0.0, %v2007
    %v2009 = vpop.f32.mrb[0].mxu0
    %2010 = vmatprep.mubr.f32.mxu0 0.0
    %2011 = vmatmul.mubr.f32.gmra.mrb[0].mxu0 %v1902
    %v2012 = vpop.f32.mrb[0].mxu0
    %v2013 = vadd.f32 0.0, %v2012
    %v2014 = vpop.f32.mrb[0].mxu0
    %2015 = vmatprep.mubr.f32.mxu0 0.0
    %2016 = vmatmul.mubr.f32.gmra.mrb[0].mxu0 %v1903
    %v2017 = vpop.f32.mrb[0].mxu0
    %v2018 = vadd.f32 0.0, %v2017
    %v2019 = vpop.f32.mrb[0].mxu0
    %2020 = vmatprep.mubr.f32.mxu0 0.0
    %2021 = vmatmul.mubr.f32.gmra.mrb[0].mxu0 %v1904
    %v2022 = vpop.f32.mrb[0].mxu0
    %v2023 = vadd.f32 0.0, %v2022
    %v2024 = vpop.f32.mrb[0].mxu0
    %2025 = vmatprep.mubr.f32.mxu0 0.0
    %2026 = vmatmul.mubr.f32.gmra.mrb[0].mxu0 %v1905
    %v2027 = vpop.f32.mrb[0].mxu0
    %v2028 = vadd.f32 0.0, %v2027
    %v2029 = vpop.f32.mrb[0].mxu0
    %2030 = vmatprep.mubr.f32.mxu0 0.0
    %2031 = vmatmul.mubr.f32.gmra.mrb[0].mxu0 %v1906
    %v2032 = vpop.f32.mrb[0].mxu0
    %v2033 = vadd.f32 0.0, %v2032
    %v2034 = vpop.f32.mrb[0].mxu0
    %2035 = vmatprep.mubr.f32.mxu0 0.0
    %2036 = vmatmul.mubr.f32.gmra.mrb[0].mxu0 %v1907
    %v2037 = vpop.f32.mrb[0].mxu0
    %v2038 = vadd.f32 0.0, %v2037
    %v2039 = vpop.f32.mrb[0].mxu0
    %2040 = vmatprep.mubr.f32.mxu0 0.0
    %2041 = vmatmul.mubr.f32.gmra.mrb[0].mxu0 %v1908
    %v2042 = vpop.f32.mrb[0].mxu0
    %v2043 = vadd.f32 0.0, %v2042
    %v2044 = vpop.f32.mrb[0].mxu0
    %2045 = vmatprep.mubr.f32.mxu0 0.0
    %2046 = vmatmul.mubr.f32.gmra.mrb[0].mxu0 %v1909
    %v2047 = vpop.f32.mrb[0].mxu0
    %v2048 = vadd.f32 0.0, %v2047
    %v2049 = vpop.f32.mrb[0].mxu0
    %2050 = vmatprep.mubr.f32.mxu0 0.0
    %2051 = vmatmul.mubr.f32.gmra.mrb[0].mxu0 %v1910
    %v2052 = vpop.f32.mrb[0].mxu0
    %v2053 = vadd.f32 0.0, %v2052
    %v2054 = vpop.f32.mrb[0].mxu0
    %2055 = vdwg.mxu0
    %2056 = vmatprep.subr.mxu0 0.0
    %2057 = vmatpush1.xpose.msra.mxu0 %v1978
    %2058 = vmatprep.subr.mxu0 0.0
    %2059 = vmatpush1.xpose.msra.mxu0 %v1983
    %2060 = vmatprep.subr.mxu0 0.0
    %2061 = vmatpush1.xpose.msra.mxu0 %v1988
    %2062 = vmatprep.subr.mxu0 0.0
    %2063 = vmatpush1.xpose.msra.mxu0 %v1993
    %2064 = vmatprep.subr.mxu0 0.0
    %2065 = vmatpush1.xpose.msra.mxu0 %v1998
    %2066 = vmatprep.subr.mxu0 0.0
    %2067 = vmatpush1.xpose.msra.mxu0 %v2003
    %2068 = vmatprep.subr.mxu0 0.0
    %2069 = vmatpush1.xpose.msra.mxu0 %v2008
    %2070 = vmatprep.subr.mxu0 0.0
    %2071 = vmatpush1.xpose.msra.mxu0 %v2013
    %2072 = vmatprep.subr.mxu0 0.0
    %2073 = vmatpush1.xpose.msra.mxu0 %v2018
    %2074 = vmatprep.subr.mxu0 0.0
    %2075 = vmatpush1.xpose.msra.mxu0 %v2023
    %2076 = vmatprep.subr.mxu0 0.0
    %2077 = vmatpush1.xpose.msra.mxu0 %v2028
    %2078 = vmatprep.subr.mxu0 0.0
    %2079 = vmatpush1.xpose.msra.mxu0 %v2033
    %2080 = vmatprep.subr.mxu0 0.0
    %2081 = vmatpush1.xpose.msra.mxu0 %v2038
    %2082 = vmatprep.subr.mxu0 0.0
    %2083 = vmatpush1.xpose.msra.mxu0 %v2043
    %2084 = vmatprep.subr.mxu0 0.0
    %2085 = vmatpush1.xpose.msra.mxu0 %v2048
    %2086 = vmatprep.subr.mxu0 0.0
    %2087 = vmatpush1.xpose.msra.mxu0 %v2053
    %2088 = vmatprep.subr.mxu0 0.0
    %2089 = vmatpush1.xpose.msra.mxu0 0.0
    %2090 = vmatprep.subr.mxu0 0.0
    %2091 = vmatpush1.xpose.msra.mxu0 0.0
    %2092 = vmatprep.subr.mxu0 0.0
    %2093 = vmatpush1.xpose.msra.mxu0 0.0
    %2094 = vmatprep.subr.mxu0 0.0
    %2095 = vmatpush1.xpose.msra.mxu0 0.0
    %2096 = vmatprep.subr.mxu0 0.0
    %2097 = vmatpush1.xpose.msra.mxu0 0.0
    %2098 = vmatprep.subr.mxu0 0.0
    %2099 = vmatpush1.xpose.msra.mxu0 0.0
    %2100 = vmatprep.subr.mxu0 0.0
    %2101 = vmatpush1.xpose.msra.mxu0 0.0
    %2102 = vmatprep.subr.mxu0 0.0
    %2103 = vmatpush1.xpose.msra.mxu0 0.0
    %2104 = vmatprep.subr.mxu0 0.0
    %2105 = vmatpush1.xpose.msra.mxu0 0.0
    %2106 = vmatprep.subr.mxu0 0.0
    %2107 = vmatpush1.xpose.msra.mxu0 0.0
    %2108 = vmatprep.subr.mxu0 0.0
    %2109 = vmatpush1.xpose.msra.mxu0 0.0
    %2110 = vmatprep.subr.mxu0 0.0
    %2111 = vmatpush1.xpose.msra.mxu0 0.0
    %2112 = vmatprep.subr.mxu0 0.0
    %2113 = vmatpush1.xpose.msra.mxu0 0.0
    %2114 = vmatprep.subr.mxu0 0.0
    %2115 = vmatpush1.xpose.msra.mxu0 0.0
    %2116 = vmatprep.subr.mxu0 0.0
    %2117 = vmatpush1.xpose.msra.mxu0 0.0
    %2118 = vmatprep.subr.mxu0 0.0
    %2119 = vmatpush1.xpose.msra.mxu0 0.0
    %2120 = vmatprep.mubr.f32.mxu0 0.0
    %2121 = vmatmul.mubr.f32.gmra.mrb[0].mxu0 %v1978
    %v2122 = vpop.f32.mrb[0].mxu0
    %v2123 = vadd.f32 0.0, %v2122
    %v2124 = vpop.f32.mrb[0].mxu0
    %2125 = vmatprep.mubr.f32.mxu0 0.0
    %2126 = vmatmul.mubr.f32.gmra.mrb[0].mxu0 %v1983
    %v2127 = vpop.f32.mrb[0].mxu0
    %v2128 = vadd.f32 0.0, %v2127
    %v2129 = vpop.f32.mrb[0].mxu0
    %2130 = vmatprep.mubr.f32.mxu0 0.0
    %2131 = vmatmul.mubr.f32.gmra.mrb[0].mxu0 %v1988
    %v2132 = vpop.f32.mrb[0].mxu0
    %v2133 = vadd.f32 0.0, %v2132
    %v2134 = vpop.f32.mrb[0].mxu0
    %2135 = vmatprep.mubr.f32.mxu0 0.0
    %2136 = vmatmul.mubr.f32.gmra.mrb[0].mxu0 %v1993
    %v2137 = vpop.f32.mrb[0].mxu0
    %v2138 = vadd.f32 0.0, %v2137
    %v2139 = vpop.f32.mrb[0].mxu0
    %2140 = vmatprep.mubr.f32.mxu0 0.0
    %2141 = vmatmul.mubr.f32.gmra.mrb[0].mxu0 %v1998
    %v2142 = vpop.f32.mrb[0].mxu0
    %v2143 = vadd.f32 0.0, %v2142
    %v2144 = vpop.f32.mrb[0].mxu0
    %2145 = vmatprep.mubr.f32.mxu0 0.0
    %2146 = vmatmul.mubr.f32.gmra.mrb[0].mxu0 %v2003
    %v2147 = vpop.f32.mrb[0].mxu0
    %v2148 = vadd.f32 0.0, %v2147
    %v2149 = vpop.f32.mrb[0].mxu0
    %2150 = vmatprep.mubr.f32.mxu0 0.0
    %2151 = vmatmul.mubr.f32.gmra.mrb[0].mxu0 %v2008
    %v2152 = vpop.f32.mrb[0].mxu0
    %v2153 = vadd.f32 0.0, %v2152
    %v2154 = vpop.f32.mrb[0].mxu0
    %2155 = vmatprep.mubr.f32.mxu0 0.0
    %2156 = vmatmul.mubr.f32.gmra.mrb[0].mxu0 %v2013
    %v2157 = vpop.f32.mrb[0].mxu0
    %v2158 = vadd.f32 0.0, %v2157
    %v2159 = vpop.f32.mrb[0].mxu0
    %2160 = vmatprep.mubr.f32.mxu0 0.0
    %2161 = vmatmul.mubr.f32.gmra.mrb[0].mxu0 %v2018
    %v2162 = vpop.f32.mrb[0].mxu0
    %v2163 = vadd.f32 0.0, %v2162
    %v2164 = vpop.f32.mrb[0].mxu0
    %2165 = vmatprep.mubr.f32.mxu0 0.0
    %2166 = vmatmul.mubr.f32.gmra.mrb[0].mxu0 %v2023
    %v2167 = vpop.f32.mrb[0].mxu0
    %v2168 = vadd.f32 0.0, %v2167
    %v2169 = vpop.f32.mrb[0].mxu0
    %2170 = vmatprep.mubr.f32.mxu0 0.0
    %2171 = vmatmul.mubr.f32.gmra.mrb[0].mxu0 %v2028
    %v2172 = vpop.f32.mrb[0].mxu0
    %v2173 = vadd.f32 0.0, %v2172
    %v2174 = vpop.f32.mrb[0].mxu0
    %2175 = vmatprep.mubr.f32.mxu0 0.0
    %2176 = vmatmul.mubr.f32.gmra.mrb[0].mxu0 %v2033
    %v2177 = vpop.f32.mrb[0].mxu0
    %v2178 = vadd.f32 0.0, %v2177
    %v2179 = vpop.f32.mrb[0].mxu0
    %2180 = vmatprep.mubr.f32.mxu0 0.0
    %2181 = vmatmul.mubr.f32.gmra.mrb[0].mxu0 %v2038
    %v2182 = vpop.f32.mrb[0].mxu0
    %v2183 = vadd.f32 0.0, %v2182
    %v2184 = vpop.f32.mrb[0].mxu0
    %2185 = vmatprep.mubr.f32.mxu0 0.0
    %2186 = vmatmul.mubr.f32.gmra.mrb[0].mxu0 %v2043
    %v2187 = vpop.f32.mrb[0].mxu0
    %v2188 = vadd.f32 0.0, %v2187
    %v2189 = vpop.f32.mrb[0].mxu0
    %2190 = vmatprep.mubr.f32.mxu0 0.0
    %2191 = vmatmul.mubr.f32.gmra.mrb[0].mxu0 %v2048
    %v2192 = vpop.f32.mrb[0].mxu0
    %v2193 = vadd.f32 0.0, %v2192
    %v2194 = vpop.f32.mrb[0].mxu0
    %2195 = vmatprep.mubr.f32.mxu0 0.0
    %2196 = vmatmul.mubr.f32.gmra.mrb[0].mxu0 %v2053
    %v2197 = vpop.f32.mrb[0].mxu0
    %v2198 = vadd.f32 0.0, %v2197
    %v2199 = vpop.f32.mrb[0].mxu0
    %2200 = vdwg.mxu0
    %v2201 = vmul.f32 %v2123, 0.5
    %v2202 = vmul.f32 %v2128, 0.5
    %v2203 = vmul.f32 %v2133, 0.5
    %v2204 = vmul.f32 %v2138, 0.5
    %v2205 = vmul.f32 %v2143, 0.5
    %v2206 = vmul.f32 %v2148, 0.5
    %v2207 = vmul.f32 %v2153, 0.5
    %v2208 = vmul.f32 %v2158, 0.5
    %v2209 = vmul.f32 %v2163, 0.5
    %v2210 = vmul.f32 %v2168, 0.5
    %v2211 = vmul.f32 %v2173, 0.5
    %v2212 = vmul.f32 %v2178, 0.5
    %v2213 = vmul.f32 %v2183, 0.5
    %v2214 = vmul.f32 %v2188, 0.5
    %v2215 = vmul.f32 %v2193, 0.5
    %v2216 = vmul.f32 %v2198, 0.5
    %v2217 = vsub.f32 %v108, %v2201
    %v2218 = vsub.f32 %v109, %v2202
    %v2219 = vsub.f32 %v110, %v2203
    %v2220 = vsub.f32 %v111, %v2204
    %v2221 = vsub.f32 %v112, %v2205
    %v2222 = vsub.f32 %v113, %v2206
    %v2223 = vsub.f32 %v114, %v2207
    %v2224 = vsub.f32 %v115, %v2208
    %v2225 = vsub.f32 %v116, %v2209
    %v2226 = vsub.f32 %v117, %v2210
    %v2227 = vsub.f32 %v118, %v2211
    %v2228 = vsub.f32 %v119, %v2212
    %v2229 = vsub.f32 %v120, %v2213
    %v2230 = vsub.f32 %v121, %v2214
    %v2231 = vsub.f32 %v122, %v2215
    %v2232 = vsub.f32 %v123, %v2216
    %2233 = vmatprep.subr.mxu0 0.0
    %2234 = vmatpush1.msra.mxu0 %v1978
    %2235 = vmatprep.subr.mxu0 0.0
    %2236 = vmatpush1.msra.mxu0 %v1983
    %2237 = vmatprep.subr.mxu0 0.0
    %2238 = vmatpush1.msra.mxu0 %v1988
    %2239 = vmatprep.subr.mxu0 0.0
    %2240 = vmatpush1.msra.mxu0 %v1993
    %2241 = vmatprep.subr.mxu0 0.0
    %2242 = vmatpush1.msra.mxu0 %v1998
    %2243 = vmatprep.subr.mxu0 0.0
    %2244 = vmatpush1.msra.mxu0 %v2003
    %2245 = vmatprep.subr.mxu0 0.0
    %2246 = vmatpush1.msra.mxu0 %v2008
    %2247 = vmatprep.subr.mxu0 0.0
    %2248 = vmatpush1.msra.mxu0 %v2013
    %2249 = vmatprep.subr.mxu0 0.0
    %2250 = vmatpush1.msra.mxu0 %v2018
    %2251 = vmatprep.subr.mxu0 0.0
    %2252 = vmatpush1.msra.mxu0 %v2023
    %2253 = vmatprep.subr.mxu0 0.0
    %2254 = vmatpush1.msra.mxu0 %v2028
    %2255 = vmatprep.subr.mxu0 0.0
    %2256 = vmatpush1.msra.mxu0 %v2033
    %2257 = vmatprep.subr.mxu0 0.0
    %2258 = vmatpush1.msra.mxu0 %v2038
    %2259 = vmatprep.subr.mxu0 0.0
    %2260 = vmatpush1.msra.mxu0 %v2043
    %2261 = vmatprep.subr.mxu0 0.0
    %2262 = vmatpush1.msra.mxu0 %v2048
    %2263 = vmatprep.subr.mxu0 0.0
    %2264 = vmatpush1.msra.mxu0 %v2053
    %2265 = vmatprep.subr.mxu0 0.0
    %2266 = vmatpush1.msra.mxu0 0.0
    %2267 = vmatprep.subr.mxu0 0.0
    %2268 = vmatpush1.msra.mxu0 0.0
    %2269 = vmatprep.subr.mxu0 0.0
    %2270 = vmatpush1.msra.mxu0 0.0
    %2271 = vmatprep.subr.mxu0 0.0
    %2272 = vmatpush1.msra.mxu0 0.0
    %2273 = vmatprep.subr.mxu0 0.0
    %2274 = vmatpush1.msra.mxu0 0.0
    %2275 = vmatprep.subr.mxu0 0.0
    %2276 = vmatpush1.msra.mxu0 0.0
    %2277 = vmatprep.subr.mxu0 0.0
    %2278 = vmatpush1.msra.mxu0 0.0
    %2279 = vmatprep.subr.mxu0 0.0
    %2280 = vmatpush1.msra.mxu0 0.0
    %2281 = vmatprep.subr.mxu0 0.0
    %2282 = vmatpush1.msra.mxu0 0.0
    %2283 = vmatprep.subr.mxu0 0.0
    %2284 = vmatpush1.msra.mxu0 0.0
    %2285 = vmatprep.subr.mxu0 0.0
    %2286 = vmatpush1.msra.mxu0 0.0
    %2287 = vmatprep.subr.mxu0 0.0
    %2288 = vmatpush1.msra.mxu0 0.0
    %2289 = vmatprep.subr.mxu0 0.0
    %2290 = vmatpush1.msra.mxu0 0.0
    %2291 = vmatprep.subr.mxu0 0.0
    %2292 = vmatpush1.msra.mxu0 0.0
    %2293 = vmatprep.subr.mxu0 0.0
    %2294 = vmatpush1.msra.mxu0 0.0
    %2295 = vmatprep.subr.mxu0 0.0
    %2296 = vmatpush1.msra.mxu0 0.0
    %2297 = vmatprep.mubr.f32.mxu0 0.0
    %2298 = vmatmul.mubr.f32.gmra.mrb[0].mxu0 %v2217
    %v2299 = vpop.f32.mrb[0].mxu0
    %v2300 = vadd.f32 0.0, %v2299
    %v2301 = vpop.f32.mrb[0].mxu0
    %2302 = vmatprep.mubr.f32.mxu0 0.0
    %2303 = vmatmul.mubr.f32.gmra.mrb[0].mxu0 %v2218
    %v2304 = vpop.f32.mrb[0].mxu0
    %v2305 = vadd.f32 0.0, %v2304
    %v2306 = vpop.f32.mrb[0].mxu0
    %2307 = vmatprep.mubr.f32.mxu0 0.0
    %2308 = vmatmul.mubr.f32.gmra.mrb[0].mxu0 %v2219
    %v2309 = vpop.f32.mrb[0].mxu0
    %v2310 = vadd.f32 0.0, %v2309
    %v2311 = vpop.f32.mrb[0].mxu0
    %2312 = vmatprep.mubr.f32.mxu0 0.0
    %2313 = vmatmul.mubr.f32.gmra.mrb[0].mxu0 %v2220
    %v2314 = vpop.f32.mrb[0].mxu0
    %v2315 = vadd.f32 0.0, %v2314
    %v2316 = vpop.f32.mrb[0].mxu0
    %2317 = vmatprep.mubr.f32.mxu0 0.0
    %2318 = vmatmul.mubr.f32.gmra.mrb[0].mxu0 %v2221
    %v2319 = vpop.f32.mrb[0].mxu0
    %v2320 = vadd.f32 0.0, %v2319
    %v2321 = vpop.f32.mrb[0].mxu0
    %2322 = vmatprep.mubr.f32.mxu0 0.0
    %2323 = vmatmul.mubr.f32.gmra.mrb[0].mxu0 %v2222
    %v2324 = vpop.f32.mrb[0].mxu0
    %v2325 = vadd.f32 0.0, %v2324
    %v2326 = vpop.f32.mrb[0].mxu0
    %2327 = vmatprep.mubr.f32.mxu0 0.0
    %2328 = vmatmul.mubr.f32.gmra.mrb[0].mxu0 %v2223
    %v2329 = vpop.f32.mrb[0].mxu0
    %v2330 = vadd.f32 0.0, %v2329
    %v2331 = vpop.f32.mrb[0].mxu0
    %2332 = vmatprep.mubr.f32.mxu0 0.0
    %2333 = vmatmul.mubr.f32.gmra.mrb[0].mxu0 %v2224
    %v2334 = vpop.f32.mrb[0].mxu0
    %v2335 = vadd.f32 0.0, %v2334
    %v2336 = vpop.f32.mrb[0].mxu0
    %2337 = vmatprep.mubr.f32.mxu0 0.0
    %2338 = vmatmul.mubr.f32.gmra.mrb[0].mxu0 %v2225
    %v2339 = vpop.f32.mrb[0].mxu0
    %v2340 = vadd.f32 0.0, %v2339
    %v2341 = vpop.f32.mrb[0].mxu0
    %2342 = vmatprep.mubr.f32.mxu0 0.0
    %2343 = vmatmul.mubr.f32.gmra.mrb[0].mxu0 %v2226
    %v2344 = vpop.f32.mrb[0].mxu0
    %v2345 = vadd.f32 0.0, %v2344
    %v2346 = vpop.f32.mrb[0].mxu0
    %2347 = vmatprep.mubr.f32.mxu0 0.0
    %2348 = vmatmul.mubr.f32.gmra.mrb[0].mxu0 %v2227
    %v2349 = vpop.f32.mrb[0].mxu0
    %v2350 = vadd.f32 0.0, %v2349
    %v2351 = vpop.f32.mrb[0].mxu0
    %2352 = vmatprep.mubr.f32.mxu0 0.0
    %2353 = vmatmul.mubr.f32.gmra.mrb[0].mxu0 %v2228
    %v2354 = vpop.f32.mrb[0].mxu0
    %v2355 = vadd.f32 0.0, %v2354
    %v2356 = vpop.f32.mrb[0].mxu0
    %2357 = vmatprep.mubr.f32.mxu0 0.0
    %2358 = vmatmul.mubr.f32.gmra.mrb[0].mxu0 %v2229
    %v2359 = vpop.f32.mrb[0].mxu0
    %v2360 = vadd.f32 0.0, %v2359
    %v2361 = vpop.f32.mrb[0].mxu0
    %2362 = vmatprep.mubr.f32.mxu0 0.0
    %2363 = vmatmul.mubr.f32.gmra.mrb[0].mxu0 %v2230
    %v2364 = vpop.f32.mrb[0].mxu0
    %v2365 = vadd.f32 0.0, %v2364
    %v2366 = vpop.f32.mrb[0].mxu0
    %2367 = vmatprep.mubr.f32.mxu0 0.0
    %2368 = vmatmul.mubr.f32.gmra.mrb[0].mxu0 %v2231
    %v2369 = vpop.f32.mrb[0].mxu0
    %v2370 = vadd.f32 0.0, %v2369
    %v2371 = vpop.f32.mrb[0].mxu0
    %2372 = vmatprep.mubr.f32.mxu0 0.0
    %2373 = vmatmul.mubr.f32.gmra.mrb[0].mxu0 %v2232
    %v2374 = vpop.f32.mrb[0].mxu0
    %v2375 = vadd.f32 0.0, %v2374
    %v2376 = vpop.f32.mrb[0].mxu0
    %2377 = vdwg.mxu0
    %2378 = vmatprep.subr.mxu0 0.0
    %2379 = vmatpush1.xpose.msra.mxu0 %v2300
    %2380 = vmatprep.subr.mxu0 0.0
    %2381 = vmatpush1.xpose.msra.mxu0 %v2305
    %2382 = vmatprep.subr.mxu0 0.0
    %2383 = vmatpush1.xpose.msra.mxu0 %v2310
    %2384 = vmatprep.subr.mxu0 0.0
    %2385 = vmatpush1.xpose.msra.mxu0 %v2315
    %2386 = vmatprep.subr.mxu0 0.0
    %2387 = vmatpush1.xpose.msra.mxu0 %v2320
    %2388 = vmatprep.subr.mxu0 0.0
    %2389 = vmatpush1.xpose.msra.mxu0 %v2325
    %2390 = vmatprep.subr.mxu0 0.0
    %2391 = vmatpush1.xpose.msra.mxu0 %v2330
    %2392 = vmatprep.subr.mxu0 0.0
    %2393 = vmatpush1.xpose.msra.mxu0 %v2335
    %2394 = vmatprep.subr.mxu0 0.0
    %2395 = vmatpush1.xpose.msra.mxu0 %v2340
    %2396 = vmatprep.subr.mxu0 0.0
    %2397 = vmatpush1.xpose.msra.mxu0 %v2345
    %2398 = vmatprep.subr.mxu0 0.0
    %2399 = vmatpush1.xpose.msra.mxu0 %v2350
    %2400 = vmatprep.subr.mxu0 0.0
    %2401 = vmatpush1.xpose.msra.mxu0 %v2355
    %2402 = vmatprep.subr.mxu0 0.0
    %2403 = vmatpush1.xpose.msra.mxu0 %v2360
    %2404 = vmatprep.subr.mxu0 0.0
    %2405 = vmatpush1.xpose.msra.mxu0 %v2365
    %2406 = vmatprep.subr.mxu0 0.0
    %2407 = vmatpush1.xpose.msra.mxu0 %v2370
    %2408 = vmatprep.subr.mxu0 0.0
    %2409 = vmatpush1.xpose.msra.mxu0 %v2375
    %2410 = vmatprep.subr.mxu0 0.0
    %2411 = vmatpush1.xpose.msra.mxu0 0.0
    %2412 = vmatprep.subr.mxu0 0.0
    %2413 = vmatpush1.xpose.msra.mxu0 0.0
    %2414 = vmatprep.subr.mxu0 0.0
    %2415 = vmatpush1.xpose.msra.mxu0 0.0
    %2416 = vmatprep.subr.mxu0 0.0
    %2417 = vmatpush1.xpose.msra.mxu0 0.0
    %2418 = vmatprep.subr.mxu0 0.0
    %2419 = vmatpush1.xpose.msra.mxu0 0.0
    %2420 = vmatprep.subr.mxu0 0.0
    %2421 = vmatpush1.xpose.msra.mxu0 0.0
    %2422 = vmatprep.subr.mxu0 0.0
    %2423 = vmatpush1.xpose.msra.mxu0 0.0
    %2424 = vmatprep.subr.mxu0 0.0
    %2425 = vmatpush1.xpose.msra.mxu0 0.0
    %2426 = vmatprep.subr.mxu0 0.0
    %2427 = vmatpush1.xpose.msra.mxu0 0.0
    %2428 = vmatprep.subr.mxu0 0.0
    %2429 = vmatpush1.xpose.msra.mxu0 0.0
    %2430 = vmatprep.subr.mxu0 0.0
    %2431 = vmatpush1.xpose.msra.mxu0 0.0
    %2432 = vmatprep.subr.mxu0 0.0
    %2433 = vmatpush1.xpose.msra.mxu0 0.0
    %2434 = vmatprep.subr.mxu0 0.0
    %2435 = vmatpush1.xpose.msra.mxu0 0.0
    %2436 = vmatprep.subr.mxu0 0.0
    %2437 = vmatpush1.xpose.msra.mxu0 0.0
    %2438 = vmatprep.subr.mxu0 0.0
    %2439 = vmatpush1.xpose.msra.mxu0 0.0
    %2440 = vmatprep.subr.mxu0 0.0
    %2441 = vmatpush1.xpose.msra.mxu0 0.0
    %2442 = vmatprep.mubr.f32.mxu0 0.0
    %2443 = vmatmul.mubr.f32.gmra.mrb[0].mxu0 %v2300
    %v2444 = vpop.f32.mrb[0].mxu0
    %v2445 = vadd.f32 0.0, %v2444
    %v2446 = vpop.f32.mrb[0].mxu0
    %2447 = vmatprep.mubr.f32.mxu0 0.0
    %2448 = vmatmul.mubr.f32.gmra.mrb[0].mxu0 %v2305
    %v2449 = vpop.f32.mrb[0].mxu0
    %v2450 = vadd.f32 0.0, %v2449
    %v2451 = vpop.f32.mrb[0].mxu0
    %2452 = vmatprep.mubr.f32.mxu0 0.0
    %2453 = vmatmul.mubr.f32.gmra.mrb[0].mxu0 %v2310
    %v2454 = vpop.f32.mrb[0].mxu0
    %v2455 = vadd.f32 0.0, %v2454
    %v2456 = vpop.f32.mrb[0].mxu0
    %2457 = vmatprep.mubr.f32.mxu0 0.0
    %2458 = vmatmul.mubr.f32.gmra.mrb[0].mxu0 %v2315
    %v2459 = vpop.f32.mrb[0].mxu0
    %v2460 = vadd.f32 0.0, %v2459
    %v2461 = vpop.f32.mrb[0].mxu0
    %2462 = vmatprep.mubr.f32.mxu0 0.0
    %2463 = vmatmul.mubr.f32.gmra.mrb[0].mxu0 %v2320
    %v2464 = vpop.f32.mrb[0].mxu0
    %v2465 = vadd.f32 0.0, %v2464
    %v2466 = vpop.f32.mrb[0].mxu0
    %2467 = vmatprep.mubr.f32.mxu0 0.0
    %2468 = vmatmul.mubr.f32.gmra.mrb[0].mxu0 %v2325
    %v2469 = vpop.f32.mrb[0].mxu0
    %v2470 = vadd.f32 0.0, %v2469
    %v2471 = vpop.f32.mrb[0].mxu0
    %2472 = vmatprep.mubr.f32.mxu0 0.0
    %2473 = vmatmul.mubr.f32.gmra.mrb[0].mxu0 %v2330
    %v2474 = vpop.f32.mrb[0].mxu0
    %v2475 = vadd.f32 0.0, %v2474
    %v2476 = vpop.f32.mrb[0].mxu0
    %2477 = vmatprep.mubr.f32.mxu0 0.0
    %2478 = vmatmul.mubr.f32.gmra.mrb[0].mxu0 %v2335
    %v2479 = vpop.f32.mrb[0].mxu0
    %v2480 = vadd.f32 0.0, %v2479
    %v2481 = vpop.f32.mrb[0].mxu0
    %2482 = vmatprep.mubr.f32.mxu0 0.0
    %2483 = vmatmul.mubr.f32.gmra.mrb[0].mxu0 %v2340
    %v2484 = vpop.f32.mrb[0].mxu0
    %v2485 = vadd.f32 0.0, %v2484
    %v2486 = vpop.f32.mrb[0].mxu0
    %2487 = vmatprep.mubr.f32.mxu0 0.0
    %2488 = vmatmul.mubr.f32.gmra.mrb[0].mxu0 %v2345
    %v2489 = vpop.f32.mrb[0].mxu0
    %v2490 = vadd.f32 0.0, %v2489
    %v2491 = vpop.f32.mrb[0].mxu0
    %2492 = vmatprep.mubr.f32.mxu0 0.0
    %2493 = vmatmul.mubr.f32.gmra.mrb[0].mxu0 %v2350
    %v2494 = vpop.f32.mrb[0].mxu0
    %v2495 = vadd.f32 0.0, %v2494
    %v2496 = vpop.f32.mrb[0].mxu0
    %2497 = vmatprep.mubr.f32.mxu0 0.0
    %2498 = vmatmul.mubr.f32.gmra.mrb[0].mxu0 %v2355
    %v2499 = vpop.f32.mrb[0].mxu0
    %v2500 = vadd.f32 0.0, %v2499
    %v2501 = vpop.f32.mrb[0].mxu0
    %2502 = vmatprep.mubr.f32.mxu0 0.0
    %2503 = vmatmul.mubr.f32.gmra.mrb[0].mxu0 %v2360
    %v2504 = vpop.f32.mrb[0].mxu0
    %v2505 = vadd.f32 0.0, %v2504
    %v2506 = vpop.f32.mrb[0].mxu0
    %2507 = vmatprep.mubr.f32.mxu0 0.0
    %2508 = vmatmul.mubr.f32.gmra.mrb[0].mxu0 %v2365
    %v2509 = vpop.f32.mrb[0].mxu0
    %v2510 = vadd.f32 0.0, %v2509
    %v2511 = vpop.f32.mrb[0].mxu0
    %2512 = vmatprep.mubr.f32.mxu0 0.0
    %2513 = vmatmul.mubr.f32.gmra.mrb[0].mxu0 %v2370
    %v2514 = vpop.f32.mrb[0].mxu0
    %v2515 = vadd.f32 0.0, %v2514
    %v2516 = vpop.f32.mrb[0].mxu0
    %2517 = vmatprep.mubr.f32.mxu0 0.0
    %2518 = vmatmul.mubr.f32.gmra.mrb[0].mxu0 %v2375
    %v2519 = vpop.f32.mrb[0].mxu0
    %v2520 = vadd.f32 0.0, %v2519
    %v2521 = vpop.f32.mrb[0].mxu0
    %2522 = vdwg.mxu0
    %v2523 = vmul.f32 %v2445, 0.5
    %v2524 = vmul.f32 %v2450, 0.5
    %v2525 = vmul.f32 %v2455, 0.5
    %v2526 = vmul.f32 %v2460, 0.5
    %v2527 = vmul.f32 %v2465, 0.5
    %v2528 = vmul.f32 %v2470, 0.5
    %v2529 = vmul.f32 %v2475, 0.5
    %v2530 = vmul.f32 %v2480, 0.5
    %v2531 = vmul.f32 %v2485, 0.5
    %v2532 = vmul.f32 %v2490, 0.5
    %v2533 = vmul.f32 %v2495, 0.5
    %v2534 = vmul.f32 %v2500, 0.5
    %v2535 = vmul.f32 %v2505, 0.5
    %v2536 = vmul.f32 %v2510, 0.5
    %v2537 = vmul.f32 %v2515, 0.5
    %v2538 = vmul.f32 %v2520, 0.5
    %v2539 = vsub.f32 %v108, %v2523
    %v2540 = vsub.f32 %v109, %v2524
    %v2541 = vsub.f32 %v110, %v2525
    %v2542 = vsub.f32 %v111, %v2526
    %v2543 = vsub.f32 %v112, %v2527
    %v2544 = vsub.f32 %v113, %v2528
    %v2545 = vsub.f32 %v114, %v2529
    %v2546 = vsub.f32 %v115, %v2530
    %v2547 = vsub.f32 %v116, %v2531
    %v2548 = vsub.f32 %v117, %v2532
    %v2549 = vsub.f32 %v118, %v2533
    %v2550 = vsub.f32 %v119, %v2534
    %v2551 = vsub.f32 %v120, %v2535
    %v2552 = vsub.f32 %v121, %v2536
    %v2553 = vsub.f32 %v122, %v2537
    %v2554 = vsub.f32 %v123, %v2538
    %2555 = vmatprep.subr.mxu0 0.0
    %2556 = vmatpush1.msra.mxu0 %v2300
    %2557 = vmatprep.subr.mxu0 0.0
    %2558 = vmatpush1.msra.mxu0 %v2305
    %2559 = vmatprep.subr.mxu0 0.0
    %2560 = vmatpush1.msra.mxu0 %v2310
    %2561 = vmatprep.subr.mxu0 0.0
    %2562 = vmatpush1.msra.mxu0 %v2315
    %2563 = vmatprep.subr.mxu0 0.0
    %2564 = vmatpush1.msra.mxu0 %v2320
    %2565 = vmatprep.subr.mxu0 0.0
    %2566 = vmatpush1.msra.mxu0 %v2325
    %2567 = vmatprep.subr.mxu0 0.0
    %2568 = vmatpush1.msra.mxu0 %v2330
    %2569 = vmatprep.subr.mxu0 0.0
    %2570 = vmatpush1.msra.mxu0 %v2335
    %2571 = vmatprep.subr.mxu0 0.0
    %2572 = vmatpush1.msra.mxu0 %v2340
    %2573 = vmatprep.subr.mxu0 0.0
    %2574 = vmatpush1.msra.mxu0 %v2345
    %2575 = vmatprep.subr.mxu0 0.0
    %2576 = vmatpush1.msra.mxu0 %v2350
    %2577 = vmatprep.subr.mxu0 0.0
    %2578 = vmatpush1.msra.mxu0 %v2355
    %2579 = vmatprep.subr.mxu0 0.0
    %2580 = vmatpush1.msra.mxu0 %v2360
    %2581 = vmatprep.subr.mxu0 0.0
    %2582 = vmatpush1.msra.mxu0 %v2365
    %2583 = vmatprep.subr.mxu0 0.0
    %2584 = vmatpush1.msra.mxu0 %v2370
    %2585 = vmatprep.subr.mxu0 0.0
    %2586 = vmatpush1.msra.mxu0 %v2375
    %2587 = vmatprep.subr.mxu0 0.0
    %2588 = vmatpush1.msra.mxu0 0.0
    %2589 = vmatprep.subr.mxu0 0.0
    %2590 = vmatpush1.msra.mxu0 0.0
    %2591 = vmatprep.subr.mxu0 0.0
    %2592 = vmatpush1.msra.mxu0 0.0
    %2593 = vmatprep.subr.mxu0 0.0
    %2594 = vmatpush1.msra.mxu0 0.0
    %2595 = vmatprep.subr.mxu0 0.0
    %2596 = vmatpush1.msra.mxu0 0.0
    %2597 = vmatprep.subr.mxu0 0.0
    %2598 = vmatpush1.msra.mxu0 0.0
    %2599 = vmatprep.subr.mxu0 0.0
    %2600 = vmatpush1.msra.mxu0 0.0
    %2601 = vmatprep.subr.mxu0 0.0
    %2602 = vmatpush1.msra.mxu0 0.0
    %2603 = vmatprep.subr.mxu0 0.0
    %2604 = vmatpush1.msra.mxu0 0.0
    %2605 = vmatprep.subr.mxu0 0.0
    %2606 = vmatpush1.msra.mxu0 0.0
    %2607 = vmatprep.subr.mxu0 0.0
    %2608 = vmatpush1.msra.mxu0 0.0
    %2609 = vmatprep.subr.mxu0 0.0
    %2610 = vmatpush1.msra.mxu0 0.0
    %2611 = vmatprep.subr.mxu0 0.0
    %2612 = vmatpush1.msra.mxu0 0.0
    %2613 = vmatprep.subr.mxu0 0.0
    %2614 = vmatpush1.msra.mxu0 0.0
    %2615 = vmatprep.subr.mxu0 0.0
    %2616 = vmatpush1.msra.mxu0 0.0
    %2617 = vmatprep.subr.mxu0 0.0
    %2618 = vmatpush1.msra.mxu0 0.0
    %2619 = vmatprep.mubr.f32.mxu0 0.0
    %2620 = vmatmul.mubr.f32.gmra.mrb[0].mxu0 %v2539
    %v2621 = vpop.f32.mrb[0].mxu0
    %v2622 = vadd.f32 0.0, %v2621
    %v2623 = vpop.f32.mrb[0].mxu0
    %2624 = vmatprep.mubr.f32.mxu0 0.0
    %2625 = vmatmul.mubr.f32.gmra.mrb[0].mxu0 %v2540
    %v2626 = vpop.f32.mrb[0].mxu0
    %v2627 = vadd.f32 0.0, %v2626
    %v2628 = vpop.f32.mrb[0].mxu0
    %2629 = vmatprep.mubr.f32.mxu0 0.0
    %2630 = vmatmul.mubr.f32.gmra.mrb[0].mxu0 %v2541
    %v2631 = vpop.f32.mrb[0].mxu0
    %v2632 = vadd.f32 0.0, %v2631
    %v2633 = vpop.f32.mrb[0].mxu0
    %2634 = vmatprep.mubr.f32.mxu0 0.0
    %2635 = vmatmul.mubr.f32.gmra.mrb[0].mxu0 %v2542
    %v2636 = vpop.f32.mrb[0].mxu0
    %v2637 = vadd.f32 0.0, %v2636
    %v2638 = vpop.f32.mrb[0].mxu0
    %2639 = vmatprep.mubr.f32.mxu0 0.0
    %2640 = vmatmul.mubr.f32.gmra.mrb[0].mxu0 %v2543
    %v2641 = vpop.f32.mrb[0].mxu0
    %v2642 = vadd.f32 0.0, %v2641
    %v2643 = vpop.f32.mrb[0].mxu0
    %2644 = vmatprep.mubr.f32.mxu0 0.0
    %2645 = vmatmul.mubr.f32.gmra.mrb[0].mxu0 %v2544
    %v2646 = vpop.f32.mrb[0].mxu0
    %v2647 = vadd.f32 0.0, %v2646
    %v2648 = vpop.f32.mrb[0].mxu0
    %2649 = vmatprep.mubr.f32.mxu0 0.0
    %2650 = vmatmul.mubr.f32.gmra.mrb[0].mxu0 %v2545
    %v2651 = vpop.f32.mrb[0].mxu0
    %v2652 = vadd.f32 0.0, %v2651
    %v2653 = vpop.f32.mrb[0].mxu0
    %2654 = vmatprep.mubr.f32.mxu0 0.0
    %2655 = vmatmul.mubr.f32.gmra.mrb[0].mxu0 %v2546
    %v2656 = vpop.f32.mrb[0].mxu0
    %v2657 = vadd.f32 0.0, %v2656
    %v2658 = vpop.f32.mrb[0].mxu0
    %2659 = vmatprep.mubr.f32.mxu0 0.0
    %2660 = vmatmul.mubr.f32.gmra.mrb[0].mxu0 %v2547
    %v2661 = vpop.f32.mrb[0].mxu0
    %v2662 = vadd.f32 0.0, %v2661
    %v2663 = vpop.f32.mrb[0].mxu0
    %2664 = vmatprep.mubr.f32.mxu0 0.0
    %2665 = vmatmul.mubr.f32.gmra.mrb[0].mxu0 %v2548
    %v2666 = vpop.f32.mrb[0].mxu0
    %v2667 = vadd.f32 0.0, %v2666
    %v2668 = vpop.f32.mrb[0].mxu0
    %2669 = vmatprep.mubr.f32.mxu0 0.0
    %2670 = vmatmul.mubr.f32.gmra.mrb[0].mxu0 %v2549
    %v2671 = vpop.f32.mrb[0].mxu0
    %v2672 = vadd.f32 0.0, %v2671
    %v2673 = vpop.f32.mrb[0].mxu0
    %2674 = vmatprep.mubr.f32.mxu0 0.0
    %2675 = vmatmul.mubr.f32.gmra.mrb[0].mxu0 %v2550
    %v2676 = vpop.f32.mrb[0].mxu0
    %v2677 = vadd.f32 0.0, %v2676
    %v2678 = vpop.f32.mrb[0].mxu0
    %2679 = vmatprep.mubr.f32.mxu0 0.0
    %2680 = vmatmul.mubr.f32.gmra.mrb[0].mxu0 %v2551
    %v2681 = vpop.f32.mrb[0].mxu0
    %v2682 = vadd.f32 0.0, %v2681
    %v2683 = vpop.f32.mrb[0].mxu0
    %2684 = vmatprep.mubr.f32.mxu0 0.0
    %2685 = vmatmul.mubr.f32.gmra.mrb[0].mxu0 %v2552
    %v2686 = vpop.f32.mrb[0].mxu0
    %v2687 = vadd.f32 0.0, %v2686
    %v2688 = vpop.f32.mrb[0].mxu0
    %2689 = vmatprep.mubr.f32.mxu0 0.0
    %2690 = vmatmul.mubr.f32.gmra.mrb[0].mxu0 %v2553
    %v2691 = vpop.f32.mrb[0].mxu0
    %v2692 = vadd.f32 0.0, %v2691
    %v2693 = vpop.f32.mrb[0].mxu0
    %2694 = vmatprep.mubr.f32.mxu0 0.0
    %2695 = vmatmul.mubr.f32.gmra.mrb[0].mxu0 %v2554
    %v2696 = vpop.f32.mrb[0].mxu0
    %v2697 = vadd.f32 0.0, %v2696
    %v2698 = vpop.f32.mrb[0].mxu0
    %2699 = vdwg.mxu0
    %2700 = vmatprep.subr.mxu0 0.0
    %2701 = vmatpush1.xpose.msra.mxu0 %v2622
    %2702 = vmatprep.subr.mxu0 0.0
    %2703 = vmatpush1.xpose.msra.mxu0 %v2627
    %2704 = vmatprep.subr.mxu0 0.0
    %2705 = vmatpush1.xpose.msra.mxu0 %v2632
    %2706 = vmatprep.subr.mxu0 0.0
    %2707 = vmatpush1.xpose.msra.mxu0 %v2637
    %2708 = vmatprep.subr.mxu0 0.0
    %2709 = vmatpush1.xpose.msra.mxu0 %v2642
    %2710 = vmatprep.subr.mxu0 0.0
    %2711 = vmatpush1.xpose.msra.mxu0 %v2647
    %2712 = vmatprep.subr.mxu0 0.0
    %2713 = vmatpush1.xpose.msra.mxu0 %v2652
    %2714 = vmatprep.subr.mxu0 0.0
    %2715 = vmatpush1.xpose.msra.mxu0 %v2657
    %2716 = vmatprep.subr.mxu0 0.0
    %2717 = vmatpush1.xpose.msra.mxu0 %v2662
    %2718 = vmatprep.subr.mxu0 0.0
    %2719 = vmatpush1.xpose.msra.mxu0 %v2667
    %2720 = vmatprep.subr.mxu0 0.0
    %2721 = vmatpush1.xpose.msra.mxu0 %v2672
    %2722 = vmatprep.subr.mxu0 0.0
    %2723 = vmatpush1.xpose.msra.mxu0 %v2677
    %2724 = vmatprep.subr.mxu0 0.0
    %2725 = vmatpush1.xpose.msra.mxu0 %v2682
    %2726 = vmatprep.subr.mxu0 0.0
    %2727 = vmatpush1.xpose.msra.mxu0 %v2687
    %2728 = vmatprep.subr.mxu0 0.0
    %2729 = vmatpush1.xpose.msra.mxu0 %v2692
    %2730 = vmatprep.subr.mxu0 0.0
    %2731 = vmatpush1.xpose.msra.mxu0 %v2697
    %2732 = vmatprep.subr.mxu0 0.0
    %2733 = vmatpush1.xpose.msra.mxu0 0.0
    %2734 = vmatprep.subr.mxu0 0.0
    %2735 = vmatpush1.xpose.msra.mxu0 0.0
    %2736 = vmatprep.subr.mxu0 0.0
    %2737 = vmatpush1.xpose.msra.mxu0 0.0
    %2738 = vmatprep.subr.mxu0 0.0
    %2739 = vmatpush1.xpose.msra.mxu0 0.0
    %2740 = vmatprep.subr.mxu0 0.0
    %2741 = vmatpush1.xpose.msra.mxu0 0.0
    %2742 = vmatprep.subr.mxu0 0.0
    %2743 = vmatpush1.xpose.msra.mxu0 0.0
    %2744 = vmatprep.subr.mxu0 0.0
    %2745 = vmatpush1.xpose.msra.mxu0 0.0
    %2746 = vmatprep.subr.mxu0 0.0
    %2747 = vmatpush1.xpose.msra.mxu0 0.0
    %2748 = vmatprep.subr.mxu0 0.0
    %2749 = vmatpush1.xpose.msra.mxu0 0.0
    %2750 = vmatprep.subr.mxu0 0.0
    %2751 = vmatpush1.xpose.msra.mxu0 0.0
    %2752 = vmatprep.subr.mxu0 0.0
    %2753 = vmatpush1.xpose.msra.mxu0 0.0
    %2754 = vmatprep.subr.mxu0 0.0
    %2755 = vmatpush1.xpose.msra.mxu0 0.0
    %2756 = vmatprep.subr.mxu0 0.0
    %2757 = vmatpush1.xpose.msra.mxu0 0.0
    %2758 = vmatprep.subr.mxu0 0.0
    %2759 = vmatpush1.xpose.msra.mxu0 0.0
    %2760 = vmatprep.subr.mxu0 0.0
    %2761 = vmatpush1.xpose.msra.mxu0 0.0
    %2762 = vmatprep.subr.mxu0 0.0
    %2763 = vmatpush1.xpose.msra.mxu0 0.0
    %2764 = vmatprep.mubr.f32.mxu0 0.0
    %2765 = vmatmul.mubr.f32.gmra.mrb[0].mxu0 %v2622
    %v2766 = vpop.f32.mrb[0].mxu0
    %v2767 = vadd.f32 0.0, %v2766
    %v2768 = vpop.f32.mrb[0].mxu0
    %2769 = vmatprep.mubr.f32.mxu0 0.0
    %2770 = vmatmul.mubr.f32.gmra.mrb[0].mxu0 %v2627
    %v2771 = vpop.f32.mrb[0].mxu0
    %v2772 = vadd.f32 0.0, %v2771
    %v2773 = vpop.f32.mrb[0].mxu0
    %2774 = vmatprep.mubr.f32.mxu0 0.0
    %2775 = vmatmul.mubr.f32.gmra.mrb[0].mxu0 %v2632
    %v2776 = vpop.f32.mrb[0].mxu0
    %v2777 = vadd.f32 0.0, %v2776
    %v2778 = vpop.f32.mrb[0].mxu0
    %2779 = vmatprep.mubr.f32.mxu0 0.0
    %2780 = vmatmul.mubr.f32.gmra.mrb[0].mxu0 %v2637
    %v2781 = vpop.f32.mrb[0].mxu0
    %v2782 = vadd.f32 0.0, %v2781
    %v2783 = vpop.f32.mrb[0].mxu0
    %2784 = vmatprep.mubr.f32.mxu0 0.0
    %2785 = vmatmul.mubr.f32.gmra.mrb[0].mxu0 %v2642
    %v2786 = vpop.f32.mrb[0].mxu0
    %v2787 = vadd.f32 0.0, %v2786
    %v2788 = vpop.f32.mrb[0].mxu0
    %2789 = vmatprep.mubr.f32.mxu0 0.0
    %2790 = vmatmul.mubr.f32.gmra.mrb[0].mxu0 %v2647
    %v2791 = vpop.f32.mrb[0].mxu0
    %v2792 = vadd.f32 0.0, %v2791
    %v2793 = vpop.f32.mrb[0].mxu0
    %2794 = vmatprep.mubr.f32.mxu0 0.0
    %2795 = vmatmul.mubr.f32.gmra.mrb[0].mxu0 %v2652
    %v2796 = vpop.f32.mrb[0].mxu0
    %v2797 = vadd.f32 0.0, %v2796
    %v2798 = vpop.f32.mrb[0].mxu0
    %2799 = vmatprep.mubr.f32.mxu0 0.0
    %2800 = vmatmul.mubr.f32.gmra.mrb[0].mxu0 %v2657
    %v2801 = vpop.f32.mrb[0].mxu0
    %v2802 = vadd.f32 0.0, %v2801
    %v2803 = vpop.f32.mrb[0].mxu0
    %2804 = vmatprep.mubr.f32.mxu0 0.0
    %2805 = vmatmul.mubr.f32.gmra.mrb[0].mxu0 %v2662
    %v2806 = vpop.f32.mrb[0].mxu0
    %v2807 = vadd.f32 0.0, %v2806
    %v2808 = vpop.f32.mrb[0].mxu0
    %2809 = vmatprep.mubr.f32.mxu0 0.0
    %2810 = vmatmul.mubr.f32.gmra.mrb[0].mxu0 %v2667
    %v2811 = vpop.f32.mrb[0].mxu0
    %v2812 = vadd.f32 0.0, %v2811
    %v2813 = vpop.f32.mrb[0].mxu0
    %2814 = vmatprep.mubr.f32.mxu0 0.0
    %2815 = vmatmul.mubr.f32.gmra.mrb[0].mxu0 %v2672
    %v2816 = vpop.f32.mrb[0].mxu0
    %v2817 = vadd.f32 0.0, %v2816
    %v2818 = vpop.f32.mrb[0].mxu0
    %2819 = vmatprep.mubr.f32.mxu0 0.0
    %2820 = vmatmul.mubr.f32.gmra.mrb[0].mxu0 %v2677
    %v2821 = vpop.f32.mrb[0].mxu0
    %v2822 = vadd.f32 0.0, %v2821
    %v2823 = vpop.f32.mrb[0].mxu0
    %2824 = vmatprep.mubr.f32.mxu0 0.0
    %2825 = vmatmul.mubr.f32.gmra.mrb[0].mxu0 %v2682
    %v2826 = vpop.f32.mrb[0].mxu0
    %v2827 = vadd.f32 0.0, %v2826
    %v2828 = vpop.f32.mrb[0].mxu0
    %2829 = vmatprep.mubr.f32.mxu0 0.0
    %2830 = vmatmul.mubr.f32.gmra.mrb[0].mxu0 %v2687
    %v2831 = vpop.f32.mrb[0].mxu0
    %v2832 = vadd.f32 0.0, %v2831
    %v2833 = vpop.f32.mrb[0].mxu0
    %2834 = vmatprep.mubr.f32.mxu0 0.0
    %2835 = vmatmul.mubr.f32.gmra.mrb[0].mxu0 %v2692
    %v2836 = vpop.f32.mrb[0].mxu0
    %v2837 = vadd.f32 0.0, %v2836
    %v2838 = vpop.f32.mrb[0].mxu0
    %2839 = vmatprep.mubr.f32.mxu0 0.0
    %2840 = vmatmul.mubr.f32.gmra.mrb[0].mxu0 %v2697
    %v2841 = vpop.f32.mrb[0].mxu0
    %v2842 = vadd.f32 0.0, %v2841
    %v2843 = vpop.f32.mrb[0].mxu0
    %2844 = vdwg.mxu0
    %v2845 = vmul.f32 %v2767, 0.5
    %v2846 = vmul.f32 %v2772, 0.5
    %v2847 = vmul.f32 %v2777, 0.5
    %v2848 = vmul.f32 %v2782, 0.5
    %v2849 = vmul.f32 %v2787, 0.5
    %v2850 = vmul.f32 %v2792, 0.5
    %v2851 = vmul.f32 %v2797, 0.5
    %v2852 = vmul.f32 %v2802, 0.5
    %v2853 = vmul.f32 %v2807, 0.5
    %v2854 = vmul.f32 %v2812, 0.5
    %v2855 = vmul.f32 %v2817, 0.5
    %v2856 = vmul.f32 %v2822, 0.5
    %v2857 = vmul.f32 %v2827, 0.5
    %v2858 = vmul.f32 %v2832, 0.5
    %v2859 = vmul.f32 %v2837, 0.5
    %v2860 = vmul.f32 %v2842, 0.5
    %v2861 = vsub.f32 %v108, %v2845
    %v2862 = vsub.f32 %v109, %v2846
    %v2863 = vsub.f32 %v110, %v2847
    %v2864 = vsub.f32 %v111, %v2848
    %v2865 = vsub.f32 %v112, %v2849
    %v2866 = vsub.f32 %v113, %v2850
    %v2867 = vsub.f32 %v114, %v2851
    %v2868 = vsub.f32 %v115, %v2852
    %v2869 = vsub.f32 %v116, %v2853
    %v2870 = vsub.f32 %v117, %v2854
    %v2871 = vsub.f32 %v118, %v2855
    %v2872 = vsub.f32 %v119, %v2856
    %v2873 = vsub.f32 %v120, %v2857
    %v2874 = vsub.f32 %v121, %v2858
    %v2875 = vsub.f32 %v122, %v2859
    %v2876 = vsub.f32 %v123, %v2860
    %2877 = vmatprep.subr.mxu0 0.0
    %2878 = vmatpush1.msra.mxu0 %v2622
    %2879 = vmatprep.subr.mxu0 0.0
    %2880 = vmatpush1.msra.mxu0 %v2627
    %2881 = vmatprep.subr.mxu0 0.0
    %2882 = vmatpush1.msra.mxu0 %v2632
    %2883 = vmatprep.subr.mxu0 0.0
    %2884 = vmatpush1.msra.mxu0 %v2637
    %2885 = vmatprep.subr.mxu0 0.0
    %2886 = vmatpush1.msra.mxu0 %v2642
    %2887 = vmatprep.subr.mxu0 0.0
    %2888 = vmatpush1.msra.mxu0 %v2647
    %2889 = vmatprep.subr.mxu0 0.0
    %2890 = vmatpush1.msra.mxu0 %v2652
    %2891 = vmatprep.subr.mxu0 0.0
    %2892 = vmatpush1.msra.mxu0 %v2657
    %2893 = vmatprep.subr.mxu0 0.0
    %2894 = vmatpush1.msra.mxu0 %v2662
    %2895 = vmatprep.subr.mxu0 0.0
    %2896 = vmatpush1.msra.mxu0 %v2667
    %2897 = vmatprep.subr.mxu0 0.0
    %2898 = vmatpush1.msra.mxu0 %v2672
    %2899 = vmatprep.subr.mxu0 0.0
    %2900 = vmatpush1.msra.mxu0 %v2677
    %2901 = vmatprep.subr.mxu0 0.0
    %2902 = vmatpush1.msra.mxu0 %v2682
    %2903 = vmatprep.subr.mxu0 0.0
    %2904 = vmatpush1.msra.mxu0 %v2687
    %2905 = vmatprep.subr.mxu0 0.0
    %2906 = vmatpush1.msra.mxu0 %v2692
    %2907 = vmatprep.subr.mxu0 0.0
    %2908 = vmatpush1.msra.mxu0 %v2697
    %2909 = vmatprep.subr.mxu0 0.0
    %2910 = vmatpush1.msra.mxu0 0.0
    %2911 = vmatprep.subr.mxu0 0.0
    %2912 = vmatpush1.msra.mxu0 0.0
    %2913 = vmatprep.subr.mxu0 0.0
    %2914 = vmatpush1.msra.mxu0 0.0
    %2915 = vmatprep.subr.mxu0 0.0
    %2916 = vmatpush1.msra.mxu0 0.0
    %2917 = vmatprep.subr.mxu0 0.0
    %2918 = vmatpush1.msra.mxu0 0.0
    %2919 = vmatprep.subr.mxu0 0.0
    %2920 = vmatpush1.msra.mxu0 0.0
    %2921 = vmatprep.subr.mxu0 0.0
    %2922 = vmatpush1.msra.mxu0 0.0
    %2923 = vmatprep.subr.mxu0 0.0
    %2924 = vmatpush1.msra.mxu0 0.0
    %2925 = vmatprep.subr.mxu0 0.0
    %2926 = vmatpush1.msra.mxu0 0.0
    %2927 = vmatprep.subr.mxu0 0.0
    %2928 = vmatpush1.msra.mxu0 0.0
    %2929 = vmatprep.subr.mxu0 0.0
    %2930 = vmatpush1.msra.mxu0 0.0
    %2931 = vmatprep.subr.mxu0 0.0
    %2932 = vmatpush1.msra.mxu0 0.0
    %2933 = vmatprep.subr.mxu0 0.0
    %2934 = vmatpush1.msra.mxu0 0.0
    %2935 = vmatprep.subr.mxu0 0.0
    %2936 = vmatpush1.msra.mxu0 0.0
    %2937 = vmatprep.subr.mxu0 0.0
    %2938 = vmatpush1.msra.mxu0 0.0
    %2939 = vmatprep.subr.mxu0 0.0
    %2940 = vmatpush1.msra.mxu0 0.0
    %2941 = vmatprep.mubr.f32.mxu0 0.0
    %2942 = vmatmul.mubr.f32.gmra.mrb[0].mxu0 %v2861
    %v2943 = vpop.f32.mrb[0].mxu0
    %v2944 = vadd.f32 0.0, %v2943
    %v2945 = vpop.f32.mrb[0].mxu0
    %2946 = vmatprep.mubr.f32.mxu0 0.0
    %2947 = vmatmul.mubr.f32.gmra.mrb[0].mxu0 %v2862
    %v2948 = vpop.f32.mrb[0].mxu0
    %v2949 = vadd.f32 0.0, %v2948
    %v2950 = vpop.f32.mrb[0].mxu0
    %2951 = vmatprep.mubr.f32.mxu0 0.0
    %2952 = vmatmul.mubr.f32.gmra.mrb[0].mxu0 %v2863
    %v2953 = vpop.f32.mrb[0].mxu0
    %v2954 = vadd.f32 0.0, %v2953
    %v2955 = vpop.f32.mrb[0].mxu0
    %2956 = vmatprep.mubr.f32.mxu0 0.0
    %2957 = vmatmul.mubr.f32.gmra.mrb[0].mxu0 %v2864
    %v2958 = vpop.f32.mrb[0].mxu0
    %v2959 = vadd.f32 0.0, %v2958
    %v2960 = vpop.f32.mrb[0].mxu0
    %2961 = vmatprep.mubr.f32.mxu0 0.0
    %2962 = vmatmul.mubr.f32.gmra.mrb[0].mxu0 %v2865
    %v2963 = vpop.f32.mrb[0].mxu0
    %v2964 = vadd.f32 0.0, %v2963
    %v2965 = vpop.f32.mrb[0].mxu0
    %2966 = vmatprep.mubr.f32.mxu0 0.0
    %2967 = vmatmul.mubr.f32.gmra.mrb[0].mxu0 %v2866
    %v2968 = vpop.f32.mrb[0].mxu0
    %v2969 = vadd.f32 0.0, %v2968
    %v2970 = vpop.f32.mrb[0].mxu0
    %2971 = vmatprep.mubr.f32.mxu0 0.0
    %2972 = vmatmul.mubr.f32.gmra.mrb[0].mxu0 %v2867
    %v2973 = vpop.f32.mrb[0].mxu0
    %v2974 = vadd.f32 0.0, %v2973
    %v2975 = vpop.f32.mrb[0].mxu0
    %2976 = vmatprep.mubr.f32.mxu0 0.0
    %2977 = vmatmul.mubr.f32.gmra.mrb[0].mxu0 %v2868
    %v2978 = vpop.f32.mrb[0].mxu0
    %v2979 = vadd.f32 0.0, %v2978
    %v2980 = vpop.f32.mrb[0].mxu0
    %2981 = vmatprep.mubr.f32.mxu0 0.0
    %2982 = vmatmul.mubr.f32.gmra.mrb[0].mxu0 %v2869
    %v2983 = vpop.f32.mrb[0].mxu0
    %v2984 = vadd.f32 0.0, %v2983
    %v2985 = vpop.f32.mrb[0].mxu0
    %2986 = vmatprep.mubr.f32.mxu0 0.0
    %2987 = vmatmul.mubr.f32.gmra.mrb[0].mxu0 %v2870
    %v2988 = vpop.f32.mrb[0].mxu0
    %v2989 = vadd.f32 0.0, %v2988
    %v2990 = vpop.f32.mrb[0].mxu0
    %2991 = vmatprep.mubr.f32.mxu0 0.0
    %2992 = vmatmul.mubr.f32.gmra.mrb[0].mxu0 %v2871
    %v2993 = vpop.f32.mrb[0].mxu0
    %v2994 = vadd.f32 0.0, %v2993
    %v2995 = vpop.f32.mrb[0].mxu0
    %2996 = vmatprep.mubr.f32.mxu0 0.0
    %2997 = vmatmul.mubr.f32.gmra.mrb[0].mxu0 %v2872
    %v2998 = vpop.f32.mrb[0].mxu0
    %v2999 = vadd.f32 0.0, %v2998
    %v3000 = vpop.f32.mrb[0].mxu0
    %3001 = vmatprep.mubr.f32.mxu0 0.0
    %3002 = vmatmul.mubr.f32.gmra.mrb[0].mxu0 %v2873
    %v3003 = vpop.f32.mrb[0].mxu0
    %v3004 = vadd.f32 0.0, %v3003
    %v3005 = vpop.f32.mrb[0].mxu0
    %3006 = vmatprep.mubr.f32.mxu0 0.0
    %3007 = vmatmul.mubr.f32.gmra.mrb[0].mxu0 %v2874
    %v3008 = vpop.f32.mrb[0].mxu0
    %v3009 = vadd.f32 0.0, %v3008
    %v3010 = vpop.f32.mrb[0].mxu0
    %3011 = vmatprep.mubr.f32.mxu0 0.0
    %3012 = vmatmul.mubr.f32.gmra.mrb[0].mxu0 %v2875
    %v3013 = vpop.f32.mrb[0].mxu0
    %v3014 = vadd.f32 0.0, %v3013
    %v3015 = vpop.f32.mrb[0].mxu0
    %3016 = vmatprep.mubr.f32.mxu0 0.0
    %3017 = vmatmul.mubr.f32.gmra.mrb[0].mxu0 %v2876
    %v3018 = vpop.f32.mrb[0].mxu0
    %v3019 = vadd.f32 0.0, %v3018
    %v3020 = vpop.f32.mrb[0].mxu0
    %3021 = vdwg.mxu0
    %3022 = vmatprep.subr.mxu0 0.0
    %3023 = vmatpush1.xpose.msra.mxu0 %v2944
    %3024 = vmatprep.subr.mxu0 0.0
    %3025 = vmatpush1.xpose.msra.mxu0 %v2949
    %3026 = vmatprep.subr.mxu0 0.0
    %3027 = vmatpush1.xpose.msra.mxu0 %v2954
    %3028 = vmatprep.subr.mxu0 0.0
    %3029 = vmatpush1.xpose.msra.mxu0 %v2959
    %3030 = vmatprep.subr.mxu0 0.0
    %3031 = vmatpush1.xpose.msra.mxu0 %v2964
    %3032 = vmatprep.subr.mxu0 0.0
    %3033 = vmatpush1.xpose.msra.mxu0 %v2969
    %3034 = vmatprep.subr.mxu0 0.0
    %3035 = vmatpush1.xpose.msra.mxu0 %v2974
    %3036 = vmatprep.subr.mxu0 0.0
    %3037 = vmatpush1.xpose.msra.mxu0 %v2979
    %3038 = vmatprep.subr.mxu0 0.0
    %3039 = vmatpush1.xpose.msra.mxu0 %v2984
    %3040 = vmatprep.subr.mxu0 0.0
    %3041 = vmatpush1.xpose.msra.mxu0 %v2989
    %3042 = vmatprep.subr.mxu0 0.0
    %3043 = vmatpush1.xpose.msra.mxu0 %v2994
    %3044 = vmatprep.subr.mxu0 0.0
    %3045 = vmatpush1.xpose.msra.mxu0 %v2999
    %3046 = vmatprep.subr.mxu0 0.0
    %3047 = vmatpush1.xpose.msra.mxu0 %v3004
    %3048 = vmatprep.subr.mxu0 0.0
    %3049 = vmatpush1.xpose.msra.mxu0 %v3009
    %3050 = vmatprep.subr.mxu0 0.0
    %3051 = vmatpush1.xpose.msra.mxu0 %v3014
    %3052 = vmatprep.subr.mxu0 0.0
    %3053 = vmatpush1.xpose.msra.mxu0 %v3019
    %3054 = vmatprep.subr.mxu0 0.0
    %3055 = vmatpush1.xpose.msra.mxu0 0.0
    %3056 = vmatprep.subr.mxu0 0.0
    %3057 = vmatpush1.xpose.msra.mxu0 0.0
    %3058 = vmatprep.subr.mxu0 0.0
    %3059 = vmatpush1.xpose.msra.mxu0 0.0
    %3060 = vmatprep.subr.mxu0 0.0
    %3061 = vmatpush1.xpose.msra.mxu0 0.0
    %3062 = vmatprep.subr.mxu0 0.0
    %3063 = vmatpush1.xpose.msra.mxu0 0.0
    %3064 = vmatprep.subr.mxu0 0.0
    %3065 = vmatpush1.xpose.msra.mxu0 0.0
    %3066 = vmatprep.subr.mxu0 0.0
    %3067 = vmatpush1.xpose.msra.mxu0 0.0
    %3068 = vmatprep.subr.mxu0 0.0
    %3069 = vmatpush1.xpose.msra.mxu0 0.0
    %3070 = vmatprep.subr.mxu0 0.0
    %3071 = vmatpush1.xpose.msra.mxu0 0.0
    %3072 = vmatprep.subr.mxu0 0.0
    %3073 = vmatpush1.xpose.msra.mxu0 0.0
    %3074 = vmatprep.subr.mxu0 0.0
    %3075 = vmatpush1.xpose.msra.mxu0 0.0
    %3076 = vmatprep.subr.mxu0 0.0
    %3077 = vmatpush1.xpose.msra.mxu0 0.0
    %3078 = vmatprep.subr.mxu0 0.0
    %3079 = vmatpush1.xpose.msra.mxu0 0.0
    %3080 = vmatprep.subr.mxu0 0.0
    %3081 = vmatpush1.xpose.msra.mxu0 0.0
    %3082 = vmatprep.subr.mxu0 0.0
    %3083 = vmatpush1.xpose.msra.mxu0 0.0
    %3084 = vmatprep.subr.mxu0 0.0
    %3085 = vmatpush1.xpose.msra.mxu0 0.0
    %3086 = vmatprep.mubr.f32.mxu0 0.0
    %3087 = vmatmul.mubr.f32.gmra.mrb[0].mxu0 %v2944
    %v3088 = vpop.f32.mrb[0].mxu0
    %v3089 = vadd.f32 0.0, %v3088
    %v3090 = vpop.f32.mrb[0].mxu0
    %3091 = vmatprep.mubr.f32.mxu0 0.0
    %3092 = vmatmul.mubr.f32.gmra.mrb[0].mxu0 %v2949
    %v3093 = vpop.f32.mrb[0].mxu0
    %v3094 = vadd.f32 0.0, %v3093
    %v3095 = vpop.f32.mrb[0].mxu0
    %3096 = vmatprep.mubr.f32.mxu0 0.0
    %3097 = vmatmul.mubr.f32.gmra.mrb[0].mxu0 %v2954
    %v3098 = vpop.f32.mrb[0].mxu0
    %v3099 = vadd.f32 0.0, %v3098
    %v3100 = vpop.f32.mrb[0].mxu0
    %3101 = vmatprep.mubr.f32.mxu0 0.0
    %3102 = vmatmul.mubr.f32.gmra.mrb[0].mxu0 %v2959
    %v3103 = vpop.f32.mrb[0].mxu0
    %v3104 = vadd.f32 0.0, %v3103
    %v3105 = vpop.f32.mrb[0].mxu0
    %3106 = vmatprep.mubr.f32.mxu0 0.0
    %3107 = vmatmul.mubr.f32.gmra.mrb[0].mxu0 %v2964
    %v3108 = vpop.f32.mrb[0].mxu0
    %v3109 = vadd.f32 0.0, %v3108
    %v3110 = vpop.f32.mrb[0].mxu0
    %3111 = vmatprep.mubr.f32.mxu0 0.0
    %3112 = vmatmul.mubr.f32.gmra.mrb[0].mxu0 %v2969
    %v3113 = vpop.f32.mrb[0].mxu0
    %v3114 = vadd.f32 0.0, %v3113
    %v3115 = vpop.f32.mrb[0].mxu0
    %3116 = vmatprep.mubr.f32.mxu0 0.0
    %3117 = vmatmul.mubr.f32.gmra.mrb[0].mxu0 %v2974
    %v3118 = vpop.f32.mrb[0].mxu0
    %v3119 = vadd.f32 0.0, %v3118
    %v3120 = vpop.f32.mrb[0].mxu0
    %3121 = vmatprep.mubr.f32.mxu0 0.0
    %3122 = vmatmul.mubr.f32.gmra.mrb[0].mxu0 %v2979
    %v3123 = vpop.f32.mrb[0].mxu0
    %v3124 = vadd.f32 0.0, %v3123
    %v3125 = vpop.f32.mrb[0].mxu0
    %3126 = vmatprep.mubr.f32.mxu0 0.0
    %3127 = vmatmul.mubr.f32.gmra.mrb[0].mxu0 %v2984
    %v3128 = vpop.f32.mrb[0].mxu0
    %v3129 = vadd.f32 0.0, %v3128
    %v3130 = vpop.f32.mrb[0].mxu0
    %3131 = vmatprep.mubr.f32.mxu0 0.0
    %3132 = vmatmul.mubr.f32.gmra.mrb[0].mxu0 %v2989
    %v3133 = vpop.f32.mrb[0].mxu0
    %v3134 = vadd.f32 0.0, %v3133
    %v3135 = vpop.f32.mrb[0].mxu0
    %3136 = vmatprep.mubr.f32.mxu0 0.0
    %3137 = vmatmul.mubr.f32.gmra.mrb[0].mxu0 %v2994
    %v3138 = vpop.f32.mrb[0].mxu0
    %v3139 = vadd.f32 0.0, %v3138
    %v3140 = vpop.f32.mrb[0].mxu0
    %3141 = vmatprep.mubr.f32.mxu0 0.0
    %3142 = vmatmul.mubr.f32.gmra.mrb[0].mxu0 %v2999
    %v3143 = vpop.f32.mrb[0].mxu0
    %v3144 = vadd.f32 0.0, %v3143
    %v3145 = vpop.f32.mrb[0].mxu0
    %3146 = vmatprep.mubr.f32.mxu0 0.0
    %3147 = vmatmul.mubr.f32.gmra.mrb[0].mxu0 %v3004
    %v3148 = vpop.f32.mrb[0].mxu0
    %v3149 = vadd.f32 0.0, %v3148
    %v3150 = vpop.f32.mrb[0].mxu0
    %3151 = vmatprep.mubr.f32.mxu0 0.0
    %3152 = vmatmul.mubr.f32.gmra.mrb[0].mxu0 %v3009
    %v3153 = vpop.f32.mrb[0].mxu0
    %v3154 = vadd.f32 0.0, %v3153
    %v3155 = vpop.f32.mrb[0].mxu0
    %3156 = vmatprep.mubr.f32.mxu0 0.0
    %3157 = vmatmul.mubr.f32.gmra.mrb[0].mxu0 %v3014
    %v3158 = vpop.f32.mrb[0].mxu0
    %v3159 = vadd.f32 0.0, %v3158
    %v3160 = vpop.f32.mrb[0].mxu0
    %3161 = vmatprep.mubr.f32.mxu0 0.0
    %3162 = vmatmul.mubr.f32.gmra.mrb[0].mxu0 %v3019
    %v3163 = vpop.f32.mrb[0].mxu0
    %v3164 = vadd.f32 0.0, %v3163
    %v3165 = vpop.f32.mrb[0].mxu0
    %3166 = vdwg.mxu0
    %v3167 = vmul.f32 %v3089, 0.5
    %v3168 = vmul.f32 %v3094, 0.5
    %v3169 = vmul.f32 %v3099, 0.5
    %v3170 = vmul.f32 %v3104, 0.5
    %v3171 = vmul.f32 %v3109, 0.5
    %v3172 = vmul.f32 %v3114, 0.5
    %v3173 = vmul.f32 %v3119, 0.5
    %v3174 = vmul.f32 %v3124, 0.5
    %v3175 = vmul.f32 %v3129, 0.5
    %v3176 = vmul.f32 %v3134, 0.5
    %v3177 = vmul.f32 %v3139, 0.5
    %v3178 = vmul.f32 %v3144, 0.5
    %v3179 = vmul.f32 %v3149, 0.5
    %v3180 = vmul.f32 %v3154, 0.5
    %v3181 = vmul.f32 %v3159, 0.5
    %v3182 = vmul.f32 %v3164, 0.5
    %v3183 = vsub.f32 %v108, %v3167
    %v3184 = vsub.f32 %v109, %v3168
    %v3185 = vsub.f32 %v110, %v3169
    %v3186 = vsub.f32 %v111, %v3170
    %v3187 = vsub.f32 %v112, %v3171
    %v3188 = vsub.f32 %v113, %v3172
    %v3189 = vsub.f32 %v114, %v3173
    %v3190 = vsub.f32 %v115, %v3174
    %v3191 = vsub.f32 %v116, %v3175
    %v3192 = vsub.f32 %v117, %v3176
    %v3193 = vsub.f32 %v118, %v3177
    %v3194 = vsub.f32 %v119, %v3178
    %v3195 = vsub.f32 %v120, %v3179
    %v3196 = vsub.f32 %v121, %v3180
    %v3197 = vsub.f32 %v122, %v3181
    %v3198 = vsub.f32 %v123, %v3182
    %3199 = vmatprep.subr.mxu0 0.0
    %3200 = vmatpush1.msra.mxu0 %v2944
    %3201 = vmatprep.subr.mxu0 0.0
    %3202 = vmatpush1.msra.mxu0 %v2949
    %3203 = vmatprep.subr.mxu0 0.0
    %3204 = vmatpush1.msra.mxu0 %v2954
    %3205 = vmatprep.subr.mxu0 0.0
    %3206 = vmatpush1.msra.mxu0 %v2959
    %3207 = vmatprep.subr.mxu0 0.0
    %3208 = vmatpush1.msra.mxu0 %v2964
    %3209 = vmatprep.subr.mxu0 0.0
    %3210 = vmatpush1.msra.mxu0 %v2969
    %3211 = vmatprep.subr.mxu0 0.0
    %3212 = vmatpush1.msra.mxu0 %v2974
    %3213 = vmatprep.subr.mxu0 0.0
    %3214 = vmatpush1.msra.mxu0 %v2979
    %3215 = vmatprep.subr.mxu0 0.0
    %3216 = vmatpush1.msra.mxu0 %v2984
    %3217 = vmatprep.subr.mxu0 0.0
    %3218 = vmatpush1.msra.mxu0 %v2989
    %3219 = vmatprep.subr.mxu0 0.0
    %3220 = vmatpush1.msra.mxu0 %v2994
    %3221 = vmatprep.subr.mxu0 0.0
    %3222 = vmatpush1.msra.mxu0 %v2999
    %3223 = vmatprep.subr.mxu0 0.0
    %3224 = vmatpush1.msra.mxu0 %v3004
    %3225 = vmatprep.subr.mxu0 0.0
    %3226 = vmatpush1.msra.mxu0 %v3009
    %3227 = vmatprep.subr.mxu0 0.0
    %3228 = vmatpush1.msra.mxu0 %v3014
    %3229 = vmatprep.subr.mxu0 0.0
    %3230 = vmatpush1.msra.mxu0 %v3019
    %3231 = vmatprep.subr.mxu0 0.0
    %3232 = vmatpush1.msra.mxu0 0.0
    %3233 = vmatprep.subr.mxu0 0.0
    %3234 = vmatpush1.msra.mxu0 0.0
    %3235 = vmatprep.subr.mxu0 0.0
    %3236 = vmatpush1.msra.mxu0 0.0
    %3237 = vmatprep.subr.mxu0 0.0
    %3238 = vmatpush1.msra.mxu0 0.0
    %3239 = vmatprep.subr.mxu0 0.0
    %3240 = vmatpush1.msra.mxu0 0.0
    %3241 = vmatprep.subr.mxu0 0.0
    %3242 = vmatpush1.msra.mxu0 0.0
    %3243 = vmatprep.subr.mxu0 0.0
    %3244 = vmatpush1.msra.mxu0 0.0
    %3245 = vmatprep.subr.mxu0 0.0
    %3246 = vmatpush1.msra.mxu0 0.0
    %3247 = vmatprep.subr.mxu0 0.0
    %3248 = vmatpush1.msra.mxu0 0.0
    %3249 = vmatprep.subr.mxu0 0.0
    %3250 = vmatpush1.msra.mxu0 0.0
    %3251 = vmatprep.subr.mxu0 0.0
    %3252 = vmatpush1.msra.mxu0 0.0
    %3253 = vmatprep.subr.mxu0 0.0
    %3254 = vmatpush1.msra.mxu0 0.0
    %3255 = vmatprep.subr.mxu0 0.0
    %3256 = vmatpush1.msra.mxu0 0.0
    %3257 = vmatprep.subr.mxu0 0.0
    %3258 = vmatpush1.msra.mxu0 0.0
    %3259 = vmatprep.subr.mxu0 0.0
    %3260 = vmatpush1.msra.mxu0 0.0
    %3261 = vmatprep.subr.mxu0 0.0
    %3262 = vmatpush1.msra.mxu0 0.0
    %3263 = vmatprep.mubr.f32.mxu0 0.0
    %3264 = vmatmul.mubr.f32.gmra.mrb[0].mxu0 %v3183
    %v3265 = vpop.f32.mrb[0].mxu0
    %v3266 = vadd.f32 0.0, %v3265
    %v3267 = vpop.f32.mrb[0].mxu0
    %3268 = vmatprep.mubr.f32.mxu0 0.0
    %3269 = vmatmul.mubr.f32.gmra.mrb[0].mxu0 %v3184
    %v3270 = vpop.f32.mrb[0].mxu0
    %v3271 = vadd.f32 0.0, %v3270
    %v3272 = vpop.f32.mrb[0].mxu0
    %3273 = vmatprep.mubr.f32.mxu0 0.0
    %3274 = vmatmul.mubr.f32.gmra.mrb[0].mxu0 %v3185
    %v3275 = vpop.f32.mrb[0].mxu0
    %v3276 = vadd.f32 0.0, %v3275
    %v3277 = vpop.f32.mrb[0].mxu0
    %3278 = vmatprep.mubr.f32.mxu0 0.0
    %3279 = vmatmul.mubr.f32.gmra.mrb[0].mxu0 %v3186
    %v3280 = vpop.f32.mrb[0].mxu0
    %v3281 = vadd.f32 0.0, %v3280
    %v3282 = vpop.f32.mrb[0].mxu0
    %3283 = vmatprep.mubr.f32.mxu0 0.0
    %3284 = vmatmul.mubr.f32.gmra.mrb[0].mxu0 %v3187
    %v3285 = vpop.f32.mrb[0].mxu0
    %v3286 = vadd.f32 0.0, %v3285
    %v3287 = vpop.f32.mrb[0].mxu0
    %3288 = vmatprep.mubr.f32.mxu0 0.0
    %3289 = vmatmul.mubr.f32.gmra.mrb[0].mxu0 %v3188
    %v3290 = vpop.f32.mrb[0].mxu0
    %v3291 = vadd.f32 0.0, %v3290
    %v3292 = vpop.f32.mrb[0].mxu0
    %3293 = vmatprep.mubr.f32.mxu0 0.0
    %3294 = vmatmul.mubr.f32.gmra.mrb[0].mxu0 %v3189
    %v3295 = vpop.f32.mrb[0].mxu0
    %v3296 = vadd.f32 0.0, %v3295
    %v3297 = vpop.f32.mrb[0].mxu0
    %3298 = vmatprep.mubr.f32.mxu0 0.0
    %3299 = vmatmul.mubr.f32.gmra.mrb[0].mxu0 %v3190
    %v3300 = vpop.f32.mrb[0].mxu0
    %v3301 = vadd.f32 0.0, %v3300
    %v3302 = vpop.f32.mrb[0].mxu0
    %3303 = vmatprep.mubr.f32.mxu0 0.0
    %3304 = vmatmul.mubr.f32.gmra.mrb[0].mxu0 %v3191
    %v3305 = vpop.f32.mrb[0].mxu0
    %v3306 = vadd.f32 0.0, %v3305
    %v3307 = vpop.f32.mrb[0].mxu0
    %3308 = vmatprep.mubr.f32.mxu0 0.0
    %3309 = vmatmul.mubr.f32.gmra.mrb[0].mxu0 %v3192
    %v3310 = vpop.f32.mrb[0].mxu0
    %v3311 = vadd.f32 0.0, %v3310
    %v3312 = vpop.f32.mrb[0].mxu0
    %3313 = vmatprep.mubr.f32.mxu0 0.0
    %3314 = vmatmul.mubr.f32.gmra.mrb[0].mxu0 %v3193
    %v3315 = vpop.f32.mrb[0].mxu0
    %v3316 = vadd.f32 0.0, %v3315
    %v3317 = vpop.f32.mrb[0].mxu0
    %3318 = vmatprep.mubr.f32.mxu0 0.0
    %3319 = vmatmul.mubr.f32.gmra.mrb[0].mxu0 %v3194
    %v3320 = vpop.f32.mrb[0].mxu0
    %v3321 = vadd.f32 0.0, %v3320
    %v3322 = vpop.f32.mrb[0].mxu0
    %3323 = vmatprep.mubr.f32.mxu0 0.0
    %3324 = vmatmul.mubr.f32.gmra.mrb[0].mxu0 %v3195
    %v3325 = vpop.f32.mrb[0].mxu0
    %v3326 = vadd.f32 0.0, %v3325
    %v3327 = vpop.f32.mrb[0].mxu0
    %3328 = vmatprep.mubr.f32.mxu0 0.0
    %3329 = vmatmul.mubr.f32.gmra.mrb[0].mxu0 %v3196
    %v3330 = vpop.f32.mrb[0].mxu0
    %v3331 = vadd.f32 0.0, %v3330
    %v3332 = vpop.f32.mrb[0].mxu0
    %3333 = vmatprep.mubr.f32.mxu0 0.0
    %3334 = vmatmul.mubr.f32.gmra.mrb[0].mxu0 %v3197
    %v3335 = vpop.f32.mrb[0].mxu0
    %v3336 = vadd.f32 0.0, %v3335
    %v3337 = vpop.f32.mrb[0].mxu0
    %3338 = vmatprep.mubr.f32.mxu0 0.0
    %3339 = vmatmul.mubr.f32.gmra.mrb[0].mxu0 %v3198
    %v3340 = vpop.f32.mrb[0].mxu0
    %v3341 = vadd.f32 0.0, %v3340
    %v3342 = vpop.f32.mrb[0].mxu0
    %3343 = vdwg.mxu0
    %3344 = vmatprep.subr.mxu0 0.0
    %3345 = vmatpush1.xpose.msra.mxu0 %v3266
    %3346 = vmatprep.subr.mxu0 0.0
    %3347 = vmatpush1.xpose.msra.mxu0 %v3271
    %3348 = vmatprep.subr.mxu0 0.0
    %3349 = vmatpush1.xpose.msra.mxu0 %v3276
    %3350 = vmatprep.subr.mxu0 0.0
    %3351 = vmatpush1.xpose.msra.mxu0 %v3281
    %3352 = vmatprep.subr.mxu0 0.0
    %3353 = vmatpush1.xpose.msra.mxu0 %v3286
    %3354 = vmatprep.subr.mxu0 0.0
    %3355 = vmatpush1.xpose.msra.mxu0 %v3291
    %3356 = vmatprep.subr.mxu0 0.0
    %3357 = vmatpush1.xpose.msra.mxu0 %v3296
    %3358 = vmatprep.subr.mxu0 0.0
    %3359 = vmatpush1.xpose.msra.mxu0 %v3301
    %3360 = vmatprep.subr.mxu0 0.0
    %3361 = vmatpush1.xpose.msra.mxu0 %v3306
    %3362 = vmatprep.subr.mxu0 0.0
    %3363 = vmatpush1.xpose.msra.mxu0 %v3311
    %3364 = vmatprep.subr.mxu0 0.0
    %3365 = vmatpush1.xpose.msra.mxu0 %v3316
    %3366 = vmatprep.subr.mxu0 0.0
    %3367 = vmatpush1.xpose.msra.mxu0 %v3321
    %3368 = vmatprep.subr.mxu0 0.0
    %3369 = vmatpush1.xpose.msra.mxu0 %v3326
    %3370 = vmatprep.subr.mxu0 0.0
    %3371 = vmatpush1.xpose.msra.mxu0 %v3331
    %3372 = vmatprep.subr.mxu0 0.0
    %3373 = vmatpush1.xpose.msra.mxu0 %v3336
    %3374 = vmatprep.subr.mxu0 0.0
    %3375 = vmatpush1.xpose.msra.mxu0 %v3341
    %3376 = vmatprep.subr.mxu0 0.0
    %3377 = vmatpush1.xpose.msra.mxu0 0.0
    %3378 = vmatprep.subr.mxu0 0.0
    %3379 = vmatpush1.xpose.msra.mxu0 0.0
    %3380 = vmatprep.subr.mxu0 0.0
    %3381 = vmatpush1.xpose.msra.mxu0 0.0
    %3382 = vmatprep.subr.mxu0 0.0
    %3383 = vmatpush1.xpose.msra.mxu0 0.0
    %3384 = vmatprep.subr.mxu0 0.0
    %3385 = vmatpush1.xpose.msra.mxu0 0.0
    %3386 = vmatprep.subr.mxu0 0.0
    %3387 = vmatpush1.xpose.msra.mxu0 0.0
    %3388 = vmatprep.subr.mxu0 0.0
    %3389 = vmatpush1.xpose.msra.mxu0 0.0
    %3390 = vmatprep.subr.mxu0 0.0
    %3391 = vmatpush1.xpose.msra.mxu0 0.0
    %3392 = vmatprep.subr.mxu0 0.0
    %3393 = vmatpush1.xpose.msra.mxu0 0.0
    %3394 = vmatprep.subr.mxu0 0.0
    %3395 = vmatpush1.xpose.msra.mxu0 0.0
    %3396 = vmatprep.subr.mxu0 0.0
    %3397 = vmatpush1.xpose.msra.mxu0 0.0
    %3398 = vmatprep.subr.mxu0 0.0
    %3399 = vmatpush1.xpose.msra.mxu0 0.0
    %3400 = vmatprep.subr.mxu0 0.0
    %3401 = vmatpush1.xpose.msra.mxu0 0.0
    %3402 = vmatprep.subr.mxu0 0.0
    %3403 = vmatpush1.xpose.msra.mxu0 0.0
    %3404 = vmatprep.subr.mxu0 0.0
    %3405 = vmatpush1.xpose.msra.mxu0 0.0
    %3406 = vmatprep.subr.mxu0 0.0
    %3407 = vmatpush1.xpose.msra.mxu0 0.0
    %3408 = vmatprep.mubr.f32.mxu0 0.0
    %3409 = vmatmul.mubr.f32.gmra.mrb[0].mxu0 %v3266
    %v3410 = vpop.f32.mrb[0].mxu0
    %v3411 = vadd.f32 0.0, %v3410
    %v3412 = vpop.f32.mrb[0].mxu0
    %3413 = vmatprep.mubr.f32.mxu0 0.0
    %3414 = vmatmul.mubr.f32.gmra.mrb[0].mxu0 %v3271
    %v3415 = vpop.f32.mrb[0].mxu0
    %v3416 = vadd.f32 0.0, %v3415
    %v3417 = vpop.f32.mrb[0].mxu0
    %3418 = vmatprep.mubr.f32.mxu0 0.0
    %3419 = vmatmul.mubr.f32.gmra.mrb[0].mxu0 %v3276
    %v3420 = vpop.f32.mrb[0].mxu0
    %v3421 = vadd.f32 0.0, %v3420
    %v3422 = vpop.f32.mrb[0].mxu0
    %3423 = vmatprep.mubr.f32.mxu0 0.0
    %3424 = vmatmul.mubr.f32.gmra.mrb[0].mxu0 %v3281
    %v3425 = vpop.f32.mrb[0].mxu0
    %v3426 = vadd.f32 0.0, %v3425
    %v3427 = vpop.f32.mrb[0].mxu0
    %3428 = vmatprep.mubr.f32.mxu0 0.0
    %3429 = vmatmul.mubr.f32.gmra.mrb[0].mxu0 %v3286
    %v3430 = vpop.f32.mrb[0].mxu0
    %v3431 = vadd.f32 0.0, %v3430
    %v3432 = vpop.f32.mrb[0].mxu0
    %3433 = vmatprep.mubr.f32.mxu0 0.0
    %3434 = vmatmul.mubr.f32.gmra.mrb[0].mxu0 %v3291
    %v3435 = vpop.f32.mrb[0].mxu0
    %v3436 = vadd.f32 0.0, %v3435
    %v3437 = vpop.f32.mrb[0].mxu0
    %3438 = vmatprep.mubr.f32.mxu0 0.0
    %3439 = vmatmul.mubr.f32.gmra.mrb[0].mxu0 %v3296
    %v3440 = vpop.f32.mrb[0].mxu0
    %v3441 = vadd.f32 0.0, %v3440
    %v3442 = vpop.f32.mrb[0].mxu0
    %3443 = vmatprep.mubr.f32.mxu0 0.0
    %3444 = vmatmul.mubr.f32.gmra.mrb[0].mxu0 %v3301
    %v3445 = vpop.f32.mrb[0].mxu0
    %v3446 = vadd.f32 0.0, %v3445
    %v3447 = vpop.f32.mrb[0].mxu0
    %3448 = vmatprep.mubr.f32.mxu0 0.0
    %3449 = vmatmul.mubr.f32.gmra.mrb[0].mxu0 %v3306
    %v3450 = vpop.f32.mrb[0].mxu0
    %v3451 = vadd.f32 0.0, %v3450
    %v3452 = vpop.f32.mrb[0].mxu0
    %3453 = vmatprep.mubr.f32.mxu0 0.0
    %3454 = vmatmul.mubr.f32.gmra.mrb[0].mxu0 %v3311
    %v3455 = vpop.f32.mrb[0].mxu0
    %v3456 = vadd.f32 0.0, %v3455
    %v3457 = vpop.f32.mrb[0].mxu0
    %3458 = vmatprep.mubr.f32.mxu0 0.0
    %3459 = vmatmul.mubr.f32.gmra.mrb[0].mxu0 %v3316
    %v3460 = vpop.f32.mrb[0].mxu0
    %v3461 = vadd.f32 0.0, %v3460
    %v3462 = vpop.f32.mrb[0].mxu0
    %3463 = vmatprep.mubr.f32.mxu0 0.0
    %3464 = vmatmul.mubr.f32.gmra.mrb[0].mxu0 %v3321
    %v3465 = vpop.f32.mrb[0].mxu0
    %v3466 = vadd.f32 0.0, %v3465
    %v3467 = vpop.f32.mrb[0].mxu0
    %3468 = vmatprep.mubr.f32.mxu0 0.0
    %3469 = vmatmul.mubr.f32.gmra.mrb[0].mxu0 %v3326
    %v3470 = vpop.f32.mrb[0].mxu0
    %v3471 = vadd.f32 0.0, %v3470
    %v3472 = vpop.f32.mrb[0].mxu0
    %3473 = vmatprep.mubr.f32.mxu0 0.0
    %3474 = vmatmul.mubr.f32.gmra.mrb[0].mxu0 %v3331
    %v3475 = vpop.f32.mrb[0].mxu0
    %v3476 = vadd.f32 0.0, %v3475
    %v3477 = vpop.f32.mrb[0].mxu0
    %3478 = vmatprep.mubr.f32.mxu0 0.0
    %3479 = vmatmul.mubr.f32.gmra.mrb[0].mxu0 %v3336
    %v3480 = vpop.f32.mrb[0].mxu0
    %v3481 = vadd.f32 0.0, %v3480
    %v3482 = vpop.f32.mrb[0].mxu0
    %3483 = vmatprep.mubr.f32.mxu0 0.0
    %3484 = vmatmul.mubr.f32.gmra.mrb[0].mxu0 %v3341
    %v3485 = vpop.f32.mrb[0].mxu0
    %v3486 = vadd.f32 0.0, %v3485
    %v3487 = vpop.f32.mrb[0].mxu0
    %3488 = vdwg.mxu0
    %v3489 = vmul.f32 %v3411, 0.5
    %v3490 = vmul.f32 %v3416, 0.5
    %v3491 = vmul.f32 %v3421, 0.5
    %v3492 = vmul.f32 %v3426, 0.5
    %v3493 = vmul.f32 %v3431, 0.5
    %v3494 = vmul.f32 %v3436, 0.5
    %v3495 = vmul.f32 %v3441, 0.5
    %v3496 = vmul.f32 %v3446, 0.5
    %v3497 = vmul.f32 %v3451, 0.5
    %v3498 = vmul.f32 %v3456, 0.5
    %v3499 = vmul.f32 %v3461, 0.5
    %v3500 = vmul.f32 %v3466, 0.5
    %v3501 = vmul.f32 %v3471, 0.5
    %v3502 = vmul.f32 %v3476, 0.5
    %v3503 = vmul.f32 %v3481, 0.5
    %v3504 = vmul.f32 %v3486, 0.5
    %v3505 = vsub.f32 %v108, %v3489
    %v3506 = vsub.f32 %v109, %v3490
    %v3507 = vsub.f32 %v110, %v3491
    %v3508 = vsub.f32 %v111, %v3492
    %v3509 = vsub.f32 %v112, %v3493
    %v3510 = vsub.f32 %v113, %v3494
    %v3511 = vsub.f32 %v114, %v3495
    %v3512 = vsub.f32 %v115, %v3496
    %v3513 = vsub.f32 %v116, %v3497
    %v3514 = vsub.f32 %v117, %v3498
    %v3515 = vsub.f32 %v118, %v3499
    %v3516 = vsub.f32 %v119, %v3500
    %v3517 = vsub.f32 %v120, %v3501
    %v3518 = vsub.f32 %v121, %v3502
    %v3519 = vsub.f32 %v122, %v3503
    %v3520 = vsub.f32 %v123, %v3504
    %3521 = vmatprep.subr.mxu0 0.0
    %3522 = vmatpush1.msra.mxu0 %v3266
    %3523 = vmatprep.subr.mxu0 0.0
    %3524 = vmatpush1.msra.mxu0 %v3271
    %3525 = vmatprep.subr.mxu0 0.0
    %3526 = vmatpush1.msra.mxu0 %v3276
    %3527 = vmatprep.subr.mxu0 0.0
    %3528 = vmatpush1.msra.mxu0 %v3281
    %3529 = vmatprep.subr.mxu0 0.0
    %3530 = vmatpush1.msra.mxu0 %v3286
    %3531 = vmatprep.subr.mxu0 0.0
    %3532 = vmatpush1.msra.mxu0 %v3291
    %3533 = vmatprep.subr.mxu0 0.0
    %3534 = vmatpush1.msra.mxu0 %v3296
    %3535 = vmatprep.subr.mxu0 0.0
    %3536 = vmatpush1.msra.mxu0 %v3301
    %3537 = vmatprep.subr.mxu0 0.0
    %3538 = vmatpush1.msra.mxu0 %v3306
    %3539 = vmatprep.subr.mxu0 0.0
    %3540 = vmatpush1.msra.mxu0 %v3311
    %3541 = vmatprep.subr.mxu0 0.0
    %3542 = vmatpush1.msra.mxu0 %v3316
    %3543 = vmatprep.subr.mxu0 0.0
    %3544 = vmatpush1.msra.mxu0 %v3321
    %3545 = vmatprep.subr.mxu0 0.0
    %3546 = vmatpush1.msra.mxu0 %v3326
    %3547 = vmatprep.subr.mxu0 0.0
    %3548 = vmatpush1.msra.mxu0 %v3331
    %3549 = vmatprep.subr.mxu0 0.0
    %3550 = vmatpush1.msra.mxu0 %v3336
    %3551 = vmatprep.subr.mxu0 0.0
    %3552 = vmatpush1.msra.mxu0 %v3341
    %3553 = vmatprep.subr.mxu0 0.0
    %3554 = vmatpush1.msra.mxu0 0.0
    %3555 = vmatprep.subr.mxu0 0.0
    %3556 = vmatpush1.msra.mxu0 0.0
    %3557 = vmatprep.subr.mxu0 0.0
    %3558 = vmatpush1.msra.mxu0 0.0
    %3559 = vmatprep.subr.mxu0 0.0
    %3560 = vmatpush1.msra.mxu0 0.0
    %3561 = vmatprep.subr.mxu0 0.0
    %3562 = vmatpush1.msra.mxu0 0.0
    %3563 = vmatprep.subr.mxu0 0.0
    %3564 = vmatpush1.msra.mxu0 0.0
    %3565 = vmatprep.subr.mxu0 0.0
    %3566 = vmatpush1.msra.mxu0 0.0
    %3567 = vmatprep.subr.mxu0 0.0
    %3568 = vmatpush1.msra.mxu0 0.0
    %3569 = vmatprep.subr.mxu0 0.0
    %3570 = vmatpush1.msra.mxu0 0.0
    %3571 = vmatprep.subr.mxu0 0.0
    %3572 = vmatpush1.msra.mxu0 0.0
    %3573 = vmatprep.subr.mxu0 0.0
    %3574 = vmatpush1.msra.mxu0 0.0
    %3575 = vmatprep.subr.mxu0 0.0
    %3576 = vmatpush1.msra.mxu0 0.0
    %3577 = vmatprep.subr.mxu0 0.0
    %3578 = vmatpush1.msra.mxu0 0.0
    %3579 = vmatprep.subr.mxu0 0.0
    %3580 = vmatpush1.msra.mxu0 0.0
    %3581 = vmatprep.subr.mxu0 0.0
    %3582 = vmatpush1.msra.mxu0 0.0
    %3583 = vmatprep.subr.mxu0 0.0
    %3584 = vmatpush1.msra.mxu0 0.0
    %3585 = vmatprep.mubr.f32.mxu0 0.0
    %3586 = vmatmul.mubr.f32.gmra.mrb[0].mxu0 %v3505
    %v3587 = vpop.f32.mrb[0].mxu0
    %v3588 = vadd.f32 0.0, %v3587
    %v3589 = vpop.f32.mrb[0].mxu0
    %3590 = vmatprep.mubr.f32.mxu0 0.0
    %3591 = vmatmul.mubr.f32.gmra.mrb[0].mxu0 %v3506
    %v3592 = vpop.f32.mrb[0].mxu0
    %v3593 = vadd.f32 0.0, %v3592
    %v3594 = vpop.f32.mrb[0].mxu0
    %3595 = vmatprep.mubr.f32.mxu0 0.0
    %3596 = vmatmul.mubr.f32.gmra.mrb[0].mxu0 %v3507
    %v3597 = vpop.f32.mrb[0].mxu0
    %v3598 = vadd.f32 0.0, %v3597
    %v3599 = vpop.f32.mrb[0].mxu0
    %3600 = vmatprep.mubr.f32.mxu0 0.0
    %3601 = vmatmul.mubr.f32.gmra.mrb[0].mxu0 %v3508
    %v3602 = vpop.f32.mrb[0].mxu0
    %v3603 = vadd.f32 0.0, %v3602
    %v3604 = vpop.f32.mrb[0].mxu0
    %3605 = vmatprep.mubr.f32.mxu0 0.0
    %3606 = vmatmul.mubr.f32.gmra.mrb[0].mxu0 %v3509
    %v3607 = vpop.f32.mrb[0].mxu0
    %v3608 = vadd.f32 0.0, %v3607
    %v3609 = vpop.f32.mrb[0].mxu0
    %3610 = vmatprep.mubr.f32.mxu0 0.0
    %3611 = vmatmul.mubr.f32.gmra.mrb[0].mxu0 %v3510
    %v3612 = vpop.f32.mrb[0].mxu0
    %v3613 = vadd.f32 0.0, %v3612
    %v3614 = vpop.f32.mrb[0].mxu0
    %3615 = vmatprep.mubr.f32.mxu0 0.0
    %3616 = vmatmul.mubr.f32.gmra.mrb[0].mxu0 %v3511
    %v3617 = vpop.f32.mrb[0].mxu0
    %v3618 = vadd.f32 0.0, %v3617
    %v3619 = vpop.f32.mrb[0].mxu0
    %3620 = vmatprep.mubr.f32.mxu0 0.0
    %3621 = vmatmul.mubr.f32.gmra.mrb[0].mxu0 %v3512
    %v3622 = vpop.f32.mrb[0].mxu0
    %v3623 = vadd.f32 0.0, %v3622
    %v3624 = vpop.f32.mrb[0].mxu0
    %3625 = vmatprep.mubr.f32.mxu0 0.0
    %3626 = vmatmul.mubr.f32.gmra.mrb[0].mxu0 %v3513
    %v3627 = vpop.f32.mrb[0].mxu0
    %v3628 = vadd.f32 0.0, %v3627
    %v3629 = vpop.f32.mrb[0].mxu0
    %3630 = vmatprep.mubr.f32.mxu0 0.0
    %3631 = vmatmul.mubr.f32.gmra.mrb[0].mxu0 %v3514
    %v3632 = vpop.f32.mrb[0].mxu0
    %v3633 = vadd.f32 0.0, %v3632
    %v3634 = vpop.f32.mrb[0].mxu0
    %3635 = vmatprep.mubr.f32.mxu0 0.0
    %3636 = vmatmul.mubr.f32.gmra.mrb[0].mxu0 %v3515
    %v3637 = vpop.f32.mrb[0].mxu0
    %v3638 = vadd.f32 0.0, %v3637
    %v3639 = vpop.f32.mrb[0].mxu0
    %3640 = vmatprep.mubr.f32.mxu0 0.0
    %3641 = vmatmul.mubr.f32.gmra.mrb[0].mxu0 %v3516
    %v3642 = vpop.f32.mrb[0].mxu0
    %v3643 = vadd.f32 0.0, %v3642
    %v3644 = vpop.f32.mrb[0].mxu0
    %3645 = vmatprep.mubr.f32.mxu0 0.0
    %3646 = vmatmul.mubr.f32.gmra.mrb[0].mxu0 %v3517
    %v3647 = vpop.f32.mrb[0].mxu0
    %v3648 = vadd.f32 0.0, %v3647
    %v3649 = vpop.f32.mrb[0].mxu0
    %3650 = vmatprep.mubr.f32.mxu0 0.0
    %3651 = vmatmul.mubr.f32.gmra.mrb[0].mxu0 %v3518
    %v3652 = vpop.f32.mrb[0].mxu0
    %v3653 = vadd.f32 0.0, %v3652
    %v3654 = vpop.f32.mrb[0].mxu0
    %3655 = vmatprep.mubr.f32.mxu0 0.0
    %3656 = vmatmul.mubr.f32.gmra.mrb[0].mxu0 %v3519
    %v3657 = vpop.f32.mrb[0].mxu0
    %v3658 = vadd.f32 0.0, %v3657
    %v3659 = vpop.f32.mrb[0].mxu0
    %3660 = vmatprep.mubr.f32.mxu0 0.0
    %3661 = vmatmul.mubr.f32.gmra.mrb[0].mxu0 %v3520
    %v3662 = vpop.f32.mrb[0].mxu0
    %v3663 = vadd.f32 0.0, %v3662
    %v3664 = vpop.f32.mrb[0].mxu0
    %3665 = vdwg.mxu0
    %3666 = vmatprep.subr.mxu0 0.0
    %3667 = vmatpush1.xpose.msra.mxu0 %v3588
    %3668 = vmatprep.subr.mxu0 0.0
    %3669 = vmatpush1.xpose.msra.mxu0 %v3593
    %3670 = vmatprep.subr.mxu0 0.0
    %3671 = vmatpush1.xpose.msra.mxu0 %v3598
    %3672 = vmatprep.subr.mxu0 0.0
    %3673 = vmatpush1.xpose.msra.mxu0 %v3603
    %3674 = vmatprep.subr.mxu0 0.0
    %3675 = vmatpush1.xpose.msra.mxu0 %v3608
    %3676 = vmatprep.subr.mxu0 0.0
    %3677 = vmatpush1.xpose.msra.mxu0 %v3613
    %3678 = vmatprep.subr.mxu0 0.0
    %3679 = vmatpush1.xpose.msra.mxu0 %v3618
    %3680 = vmatprep.subr.mxu0 0.0
    %3681 = vmatpush1.xpose.msra.mxu0 %v3623
    %3682 = vmatprep.subr.mxu0 0.0
    %3683 = vmatpush1.xpose.msra.mxu0 %v3628
    %3684 = vmatprep.subr.mxu0 0.0
    %3685 = vmatpush1.xpose.msra.mxu0 %v3633
    %3686 = vmatprep.subr.mxu0 0.0
    %3687 = vmatpush1.xpose.msra.mxu0 %v3638
    %3688 = vmatprep.subr.mxu0 0.0
    %3689 = vmatpush1.xpose.msra.mxu0 %v3643
    %3690 = vmatprep.subr.mxu0 0.0
    %3691 = vmatpush1.xpose.msra.mxu0 %v3648
    %3692 = vmatprep.subr.mxu0 0.0
    %3693 = vmatpush1.xpose.msra.mxu0 %v3653
    %3694 = vmatprep.subr.mxu0 0.0
    %3695 = vmatpush1.xpose.msra.mxu0 %v3658
    %3696 = vmatprep.subr.mxu0 0.0
    %3697 = vmatpush1.xpose.msra.mxu0 %v3663
    %3698 = vmatprep.subr.mxu0 0.0
    %3699 = vmatpush1.xpose.msra.mxu0 0.0
    %3700 = vmatprep.subr.mxu0 0.0
    %3701 = vmatpush1.xpose.msra.mxu0 0.0
    %3702 = vmatprep.subr.mxu0 0.0
    %3703 = vmatpush1.xpose.msra.mxu0 0.0
    %3704 = vmatprep.subr.mxu0 0.0
    %3705 = vmatpush1.xpose.msra.mxu0 0.0
    %3706 = vmatprep.subr.mxu0 0.0
    %3707 = vmatpush1.xpose.msra.mxu0 0.0
    %3708 = vmatprep.subr.mxu0 0.0
    %3709 = vmatpush1.xpose.msra.mxu0 0.0
    %3710 = vmatprep.subr.mxu0 0.0
    %3711 = vmatpush1.xpose.msra.mxu0 0.0
    %3712 = vmatprep.subr.mxu0 0.0
    %3713 = vmatpush1.xpose.msra.mxu0 0.0
    %3714 = vmatprep.subr.mxu0 0.0
    %3715 = vmatpush1.xpose.msra.mxu0 0.0
    %3716 = vmatprep.subr.mxu0 0.0
    %3717 = vmatpush1.xpose.msra.mxu0 0.0
    %3718 = vmatprep.subr.mxu0 0.0
    %3719 = vmatpush1.xpose.msra.mxu0 0.0
    %3720 = vmatprep.subr.mxu0 0.0
    %3721 = vmatpush1.xpose.msra.mxu0 0.0
    %3722 = vmatprep.subr.mxu0 0.0
    %3723 = vmatpush1.xpose.msra.mxu0 0.0
    %3724 = vmatprep.subr.mxu0 0.0
    %3725 = vmatpush1.xpose.msra.mxu0 0.0
    %3726 = vmatprep.subr.mxu0 0.0
    %3727 = vmatpush1.xpose.msra.mxu0 0.0
    %3728 = vmatprep.subr.mxu0 0.0
    %3729 = vmatpush1.xpose.msra.mxu0 0.0
    %3730 = vmatprep.mubr.f32.mxu0 0.0
    %3731 = vmatmul.mubr.f32.gmra.mrb[0].mxu0 %v3588
    %v3732 = vpop.f32.mrb[0].mxu0
    %v3733 = vadd.f32 0.0, %v3732
    %v3734 = vpop.f32.mrb[0].mxu0
    %3735 = vmatprep.mubr.f32.mxu0 0.0
    %3736 = vmatmul.mubr.f32.gmra.mrb[0].mxu0 %v3593
    %v3737 = vpop.f32.mrb[0].mxu0
    %v3738 = vadd.f32 0.0, %v3737
    %v3739 = vpop.f32.mrb[0].mxu0
    %3740 = vmatprep.mubr.f32.mxu0 0.0
    %3741 = vmatmul.mubr.f32.gmra.mrb[0].mxu0 %v3598
    %v3742 = vpop.f32.mrb[0].mxu0
    %v3743 = vadd.f32 0.0, %v3742
    %v3744 = vpop.f32.mrb[0].mxu0
    %3745 = vmatprep.mubr.f32.mxu0 0.0
    %3746 = vmatmul.mubr.f32.gmra.mrb[0].mxu0 %v3603
    %v3747 = vpop.f32.mrb[0].mxu0
    %v3748 = vadd.f32 0.0, %v3747
    %v3749 = vpop.f32.mrb[0].mxu0
    %3750 = vmatprep.mubr.f32.mxu0 0.0
    %3751 = vmatmul.mubr.f32.gmra.mrb[0].mxu0 %v3608
    %v3752 = vpop.f32.mrb[0].mxu0
    %v3753 = vadd.f32 0.0, %v3752
    %v3754 = vpop.f32.mrb[0].mxu0
    %3755 = vmatprep.mubr.f32.mxu0 0.0
    %3756 = vmatmul.mubr.f32.gmra.mrb[0].mxu0 %v3613
    %v3757 = vpop.f32.mrb[0].mxu0
    %v3758 = vadd.f32 0.0, %v3757
    %v3759 = vpop.f32.mrb[0].mxu0
    %3760 = vmatprep.mubr.f32.mxu0 0.0
    %3761 = vmatmul.mubr.f32.gmra.mrb[0].mxu0 %v3618
    %v3762 = vpop.f32.mrb[0].mxu0
    %v3763 = vadd.f32 0.0, %v3762
    %v3764 = vpop.f32.mrb[0].mxu0
    %3765 = vmatprep.mubr.f32.mxu0 0.0
    %3766 = vmatmul.mubr.f32.gmra.mrb[0].mxu0 %v3623
    %v3767 = vpop.f32.mrb[0].mxu0
    %v3768 = vadd.f32 0.0, %v3767
    %v3769 = vpop.f32.mrb[0].mxu0
    %3770 = vmatprep.mubr.f32.mxu0 0.0
    %3771 = vmatmul.mubr.f32.gmra.mrb[0].mxu0 %v3628
    %v3772 = vpop.f32.mrb[0].mxu0
    %v3773 = vadd.f32 0.0, %v3772
    %v3774 = vpop.f32.mrb[0].mxu0
    %3775 = vmatprep.mubr.f32.mxu0 0.0
    %3776 = vmatmul.mubr.f32.gmra.mrb[0].mxu0 %v3633
    %v3777 = vpop.f32.mrb[0].mxu0
    %v3778 = vadd.f32 0.0, %v3777
    %v3779 = vpop.f32.mrb[0].mxu0
    %3780 = vmatprep.mubr.f32.mxu0 0.0
    %3781 = vmatmul.mubr.f32.gmra.mrb[0].mxu0 %v3638
    %v3782 = vpop.f32.mrb[0].mxu0
    %v3783 = vadd.f32 0.0, %v3782
    %v3784 = vpop.f32.mrb[0].mxu0
    %3785 = vmatprep.mubr.f32.mxu0 0.0
    %3786 = vmatmul.mubr.f32.gmra.mrb[0].mxu0 %v3643
    %v3787 = vpop.f32.mrb[0].mxu0
    %v3788 = vadd.f32 0.0, %v3787
    %v3789 = vpop.f32.mrb[0].mxu0
    %3790 = vmatprep.mubr.f32.mxu0 0.0
    %3791 = vmatmul.mubr.f32.gmra.mrb[0].mxu0 %v3648
    %v3792 = vpop.f32.mrb[0].mxu0
    %v3793 = vadd.f32 0.0, %v3792
    %v3794 = vpop.f32.mrb[0].mxu0
    %3795 = vmatprep.mubr.f32.mxu0 0.0
    %3796 = vmatmul.mubr.f32.gmra.mrb[0].mxu0 %v3653
    %v3797 = vpop.f32.mrb[0].mxu0
    %v3798 = vadd.f32 0.0, %v3797
    %v3799 = vpop.f32.mrb[0].mxu0
    %3800 = vmatprep.mubr.f32.mxu0 0.0
    %3801 = vmatmul.mubr.f32.gmra.mrb[0].mxu0 %v3658
    %v3802 = vpop.f32.mrb[0].mxu0
    %v3803 = vadd.f32 0.0, %v3802
    %v3804 = vpop.f32.mrb[0].mxu0
    %3805 = vmatprep.mubr.f32.mxu0 0.0
    %3806 = vmatmul.mubr.f32.gmra.mrb[0].mxu0 %v3663
    %v3807 = vpop.f32.mrb[0].mxu0
    %v3808 = vadd.f32 0.0, %v3807
    %v3809 = vpop.f32.mrb[0].mxu0
    %3810 = vdwg.mxu0
    %v3811 = vmul.f32 %v3733, 0.5
    %v3812 = vmul.f32 %v3738, 0.5
    %v3813 = vmul.f32 %v3743, 0.5
    %v3814 = vmul.f32 %v3748, 0.5
    %v3815 = vmul.f32 %v3753, 0.5
    %v3816 = vmul.f32 %v3758, 0.5
    %v3817 = vmul.f32 %v3763, 0.5
    %v3818 = vmul.f32 %v3768, 0.5
    %v3819 = vmul.f32 %v3773, 0.5
    %v3820 = vmul.f32 %v3778, 0.5
    %v3821 = vmul.f32 %v3783, 0.5
    %v3822 = vmul.f32 %v3788, 0.5
    %v3823 = vmul.f32 %v3793, 0.5
    %v3824 = vmul.f32 %v3798, 0.5
    %v3825 = vmul.f32 %v3803, 0.5
    %v3826 = vmul.f32 %v3808, 0.5
    %v3827 = vsub.f32 %v108, %v3811
    %v3828 = vsub.f32 %v109, %v3812
    %v3829 = vsub.f32 %v110, %v3813
    %v3830 = vsub.f32 %v111, %v3814
    %v3831 = vsub.f32 %v112, %v3815
    %v3832 = vsub.f32 %v113, %v3816
    %v3833 = vsub.f32 %v114, %v3817
    %v3834 = vsub.f32 %v115, %v3818
    %v3835 = vsub.f32 %v116, %v3819
    %v3836 = vsub.f32 %v117, %v3820
    %v3837 = vsub.f32 %v118, %v3821
    %v3838 = vsub.f32 %v119, %v3822
    %v3839 = vsub.f32 %v120, %v3823
    %v3840 = vsub.f32 %v121, %v3824
    %v3841 = vsub.f32 %v122, %v3825
    %v3842 = vsub.f32 %v123, %v3826
    %3843 = vmatprep.subr.mxu0 0.0
    %3844 = vmatpush1.msra.mxu0 %v3588
    %3845 = vmatprep.subr.mxu0 0.0
    %3846 = vmatpush1.msra.mxu0 %v3593
    %3847 = vmatprep.subr.mxu0 0.0
    %3848 = vmatpush1.msra.mxu0 %v3598
    %3849 = vmatprep.subr.mxu0 0.0
    %3850 = vmatpush1.msra.mxu0 %v3603
    %3851 = vmatprep.subr.mxu0 0.0
    %3852 = vmatpush1.msra.mxu0 %v3608
    %3853 = vmatprep.subr.mxu0 0.0
    %3854 = vmatpush1.msra.mxu0 %v3613
    %3855 = vmatprep.subr.mxu0 0.0
    %3856 = vmatpush1.msra.mxu0 %v3618
    %3857 = vmatprep.subr.mxu0 0.0
    %3858 = vmatpush1.msra.mxu0 %v3623
    %3859 = vmatprep.subr.mxu0 0.0
    %3860 = vmatpush1.msra.mxu0 %v3628
    %3861 = vmatprep.subr.mxu0 0.0
    %3862 = vmatpush1.msra.mxu0 %v3633
    %3863 = vmatprep.subr.mxu0 0.0
    %3864 = vmatpush1.msra.mxu0 %v3638
    %3865 = vmatprep.subr.mxu0 0.0
    %3866 = vmatpush1.msra.mxu0 %v3643
    %3867 = vmatprep.subr.mxu0 0.0
    %3868 = vmatpush1.msra.mxu0 %v3648
    %3869 = vmatprep.subr.mxu0 0.0
    %3870 = vmatpush1.msra.mxu0 %v3653
    %3871 = vmatprep.subr.mxu0 0.0
    %3872 = vmatpush1.msra.mxu0 %v3658
    %3873 = vmatprep.subr.mxu0 0.0
    %3874 = vmatpush1.msra.mxu0 %v3663
    %3875 = vmatprep.subr.mxu0 0.0
    %3876 = vmatpush1.msra.mxu0 0.0
    %3877 = vmatprep.subr.mxu0 0.0
    %3878 = vmatpush1.msra.mxu0 0.0
    %3879 = vmatprep.subr.mxu0 0.0
    %3880 = vmatpush1.msra.mxu0 0.0
    %3881 = vmatprep.subr.mxu0 0.0
    %3882 = vmatpush1.msra.mxu0 0.0
    %3883 = vmatprep.subr.mxu0 0.0
    %3884 = vmatpush1.msra.mxu0 0.0
    %3885 = vmatprep.subr.mxu0 0.0
    %3886 = vmatpush1.msra.mxu0 0.0
    %3887 = vmatprep.subr.mxu0 0.0
    %3888 = vmatpush1.msra.mxu0 0.0
    %3889 = vmatprep.subr.mxu0 0.0
    %3890 = vmatpush1.msra.mxu0 0.0
    %3891 = vmatprep.subr.mxu0 0.0
    %3892 = vmatpush1.msra.mxu0 0.0
    %3893 = vmatprep.subr.mxu0 0.0
    %3894 = vmatpush1.msra.mxu0 0.0
    %3895 = vmatprep.subr.mxu0 0.0
    %3896 = vmatpush1.msra.mxu0 0.0
    %3897 = vmatprep.subr.mxu0 0.0
    %3898 = vmatpush1.msra.mxu0 0.0
    %3899 = vmatprep.subr.mxu0 0.0
    %3900 = vmatpush1.msra.mxu0 0.0
    %3901 = vmatprep.subr.mxu0 0.0
    %3902 = vmatpush1.msra.mxu0 0.0
    %3903 = vmatprep.subr.mxu0 0.0
    %3904 = vmatpush1.msra.mxu0 0.0
    %3905 = vmatprep.subr.mxu0 0.0
    %3906 = vmatpush1.msra.mxu0 0.0
    %3907 = vmatprep.mubr.f32.mxu0 0.0
    %3908 = vmatmul.mubr.f32.gmra.mrb[0].mxu0 %v3827
    %v3909 = vpop.f32.mrb[0].mxu0
    %v3910 = vadd.f32 0.0, %v3909
    %v3911 = vpop.f32.mrb[0].mxu0
    %3912 = vmatprep.mubr.f32.mxu0 0.0
    %3913 = vmatmul.mubr.f32.gmra.mrb[0].mxu0 %v3828
    %v3914 = vpop.f32.mrb[0].mxu0
    %v3915 = vadd.f32 0.0, %v3914
    %v3916 = vpop.f32.mrb[0].mxu0
    %3917 = vmatprep.mubr.f32.mxu0 0.0
    %3918 = vmatmul.mubr.f32.gmra.mrb[0].mxu0 %v3829
    %v3919 = vpop.f32.mrb[0].mxu0
    %v3920 = vadd.f32 0.0, %v3919
    %v3921 = vpop.f32.mrb[0].mxu0
    %3922 = vmatprep.mubr.f32.mxu0 0.0
    %3923 = vmatmul.mubr.f32.gmra.mrb[0].mxu0 %v3830
    %v3924 = vpop.f32.mrb[0].mxu0
    %v3925 = vadd.f32 0.0, %v3924
    %v3926 = vpop.f32.mrb[0].mxu0
    %3927 = vmatprep.mubr.f32.mxu0 0.0
    %3928 = vmatmul.mubr.f32.gmra.mrb[0].mxu0 %v3831
    %v3929 = vpop.f32.mrb[0].mxu0
    %v3930 = vadd.f32 0.0, %v3929
    %v3931 = vpop.f32.mrb[0].mxu0
    %3932 = vmatprep.mubr.f32.mxu0 0.0
    %3933 = vmatmul.mubr.f32.gmra.mrb[0].mxu0 %v3832
    %v3934 = vpop.f32.mrb[0].mxu0
    %v3935 = vadd.f32 0.0, %v3934
    %v3936 = vpop.f32.mrb[0].mxu0
    %3937 = vmatprep.mubr.f32.mxu0 0.0
    %3938 = vmatmul.mubr.f32.gmra.mrb[0].mxu0 %v3833
    %v3939 = vpop.f32.mrb[0].mxu0
    %v3940 = vadd.f32 0.0, %v3939
    %v3941 = vpop.f32.mrb[0].mxu0
    %3942 = vmatprep.mubr.f32.mxu0 0.0
    %3943 = vmatmul.mubr.f32.gmra.mrb[0].mxu0 %v3834
    %v3944 = vpop.f32.mrb[0].mxu0
    %v3945 = vadd.f32 0.0, %v3944
    %v3946 = vpop.f32.mrb[0].mxu0
    %3947 = vmatprep.mubr.f32.mxu0 0.0
    %3948 = vmatmul.mubr.f32.gmra.mrb[0].mxu0 %v3835
    %v3949 = vpop.f32.mrb[0].mxu0
    %v3950 = vadd.f32 0.0, %v3949
    %v3951 = vpop.f32.mrb[0].mxu0
    %3952 = vmatprep.mubr.f32.mxu0 0.0
    %3953 = vmatmul.mubr.f32.gmra.mrb[0].mxu0 %v3836
    %v3954 = vpop.f32.mrb[0].mxu0
    %v3955 = vadd.f32 0.0, %v3954
    %v3956 = vpop.f32.mrb[0].mxu0
    %3957 = vmatprep.mubr.f32.mxu0 0.0
    %3958 = vmatmul.mubr.f32.gmra.mrb[0].mxu0 %v3837
    %v3959 = vpop.f32.mrb[0].mxu0
    %v3960 = vadd.f32 0.0, %v3959
    %v3961 = vpop.f32.mrb[0].mxu0
    %3962 = vmatprep.mubr.f32.mxu0 0.0
    %3963 = vmatmul.mubr.f32.gmra.mrb[0].mxu0 %v3838
    %v3964 = vpop.f32.mrb[0].mxu0
    %v3965 = vadd.f32 0.0, %v3964
    %v3966 = vpop.f32.mrb[0].mxu0
    %3967 = vmatprep.mubr.f32.mxu0 0.0
    %3968 = vmatmul.mubr.f32.gmra.mrb[0].mxu0 %v3839
    %v3969 = vpop.f32.mrb[0].mxu0
    %v3970 = vadd.f32 0.0, %v3969
    %v3971 = vpop.f32.mrb[0].mxu0
    %3972 = vmatprep.mubr.f32.mxu0 0.0
    %3973 = vmatmul.mubr.f32.gmra.mrb[0].mxu0 %v3840
    %v3974 = vpop.f32.mrb[0].mxu0
    %v3975 = vadd.f32 0.0, %v3974
    %v3976 = vpop.f32.mrb[0].mxu0
    %3977 = vmatprep.mubr.f32.mxu0 0.0
    %3978 = vmatmul.mubr.f32.gmra.mrb[0].mxu0 %v3841
    %v3979 = vpop.f32.mrb[0].mxu0
    %v3980 = vadd.f32 0.0, %v3979
    %v3981 = vpop.f32.mrb[0].mxu0
    %3982 = vmatprep.mubr.f32.mxu0 0.0
    %3983 = vmatmul.mubr.f32.gmra.mrb[0].mxu0 %v3842
    %v3984 = vpop.f32.mrb[0].mxu0
    %v3985 = vadd.f32 0.0, %v3984
    %v3986 = vpop.f32.mrb[0].mxu0
    %3987 = vdwg.mxu0
    %3988 = vmatprep.subr.mxu0 0.0
    %3989 = vmatpush1.xpose.msra.mxu0 %v3910
    %3990 = vmatprep.subr.mxu0 0.0
    %3991 = vmatpush1.xpose.msra.mxu0 %v3915
    %3992 = vmatprep.subr.mxu0 0.0
    %3993 = vmatpush1.xpose.msra.mxu0 %v3920
    %3994 = vmatprep.subr.mxu0 0.0
    %3995 = vmatpush1.xpose.msra.mxu0 %v3925
    %3996 = vmatprep.subr.mxu0 0.0
    %3997 = vmatpush1.xpose.msra.mxu0 %v3930
    %3998 = vmatprep.subr.mxu0 0.0
    %3999 = vmatpush1.xpose.msra.mxu0 %v3935
    %4000 = vmatprep.subr.mxu0 0.0
    %4001 = vmatpush1.xpose.msra.mxu0 %v3940
    %4002 = vmatprep.subr.mxu0 0.0
    %4003 = vmatpush1.xpose.msra.mxu0 %v3945
    %4004 = vmatprep.subr.mxu0 0.0
    %4005 = vmatpush1.xpose.msra.mxu0 %v3950
    %4006 = vmatprep.subr.mxu0 0.0
    %4007 = vmatpush1.xpose.msra.mxu0 %v3955
    %4008 = vmatprep.subr.mxu0 0.0
    %4009 = vmatpush1.xpose.msra.mxu0 %v3960
    %4010 = vmatprep.subr.mxu0 0.0
    %4011 = vmatpush1.xpose.msra.mxu0 %v3965
    %4012 = vmatprep.subr.mxu0 0.0
    %4013 = vmatpush1.xpose.msra.mxu0 %v3970
    %4014 = vmatprep.subr.mxu0 0.0
    %4015 = vmatpush1.xpose.msra.mxu0 %v3975
    %4016 = vmatprep.subr.mxu0 0.0
    %4017 = vmatpush1.xpose.msra.mxu0 %v3980
    %4018 = vmatprep.subr.mxu0 0.0
    %4019 = vmatpush1.xpose.msra.mxu0 %v3985
    %4020 = vmatprep.subr.mxu0 0.0
    %4021 = vmatpush1.xpose.msra.mxu0 0.0
    %4022 = vmatprep.subr.mxu0 0.0
    %4023 = vmatpush1.xpose.msra.mxu0 0.0
    %4024 = vmatprep.subr.mxu0 0.0
    %4025 = vmatpush1.xpose.msra.mxu0 0.0
    %4026 = vmatprep.subr.mxu0 0.0
    %4027 = vmatpush1.xpose.msra.mxu0 0.0
    %4028 = vmatprep.subr.mxu0 0.0
    %4029 = vmatpush1.xpose.msra.mxu0 0.0
    %4030 = vmatprep.subr.mxu0 0.0
    %4031 = vmatpush1.xpose.msra.mxu0 0.0
    %4032 = vmatprep.subr.mxu0 0.0
    %4033 = vmatpush1.xpose.msra.mxu0 0.0
    %4034 = vmatprep.subr.mxu0 0.0
    %4035 = vmatpush1.xpose.msra.mxu0 0.0
    %4036 = vmatprep.subr.mxu0 0.0
    %4037 = vmatpush1.xpose.msra.mxu0 0.0
    %4038 = vmatprep.subr.mxu0 0.0
    %4039 = vmatpush1.xpose.msra.mxu0 0.0
    %4040 = vmatprep.subr.mxu0 0.0
    %4041 = vmatpush1.xpose.msra.mxu0 0.0
    %4042 = vmatprep.subr.mxu0 0.0
    %4043 = vmatpush1.xpose.msra.mxu0 0.0
    %4044 = vmatprep.subr.mxu0 0.0
    %4045 = vmatpush1.xpose.msra.mxu0 0.0
    %4046 = vmatprep.subr.mxu0 0.0
    %4047 = vmatpush1.xpose.msra.mxu0 0.0
    %4048 = vmatprep.subr.mxu0 0.0
    %4049 = vmatpush1.xpose.msra.mxu0 0.0
    %4050 = vmatprep.subr.mxu0 0.0
    %4051 = vmatpush1.xpose.msra.mxu0 0.0
    %4052 = vmatprep.mubr.f32.mxu0 0.0
    %4053 = vmatmul.mubr.f32.gmra.mrb[0].mxu0 %v3910
    %v4054 = vpop.f32.mrb[0].mxu0
    %v4055 = vadd.f32 0.0, %v4054
    %v4056 = vpop.f32.mrb[0].mxu0
    %4057 = vmatprep.mubr.f32.mxu0 0.0
    %4058 = vmatmul.mubr.f32.gmra.mrb[0].mxu0 %v3915
    %v4059 = vpop.f32.mrb[0].mxu0
    %v4060 = vadd.f32 0.0, %v4059
    %v4061 = vpop.f32.mrb[0].mxu0
    %4062 = vmatprep.mubr.f32.mxu0 0.0
    %4063 = vmatmul.mubr.f32.gmra.mrb[0].mxu0 %v3920
    %v4064 = vpop.f32.mrb[0].mxu0
    %v4065 = vadd.f32 0.0, %v4064
    %v4066 = vpop.f32.mrb[0].mxu0
    %4067 = vmatprep.mubr.f32.mxu0 0.0
    %4068 = vmatmul.mubr.f32.gmra.mrb[0].mxu0 %v3925
    %v4069 = vpop.f32.mrb[0].mxu0
    %v4070 = vadd.f32 0.0, %v4069
    %v4071 = vpop.f32.mrb[0].mxu0
    %4072 = vmatprep.mubr.f32.mxu0 0.0
    %4073 = vmatmul.mubr.f32.gmra.mrb[0].mxu0 %v3930
    %v4074 = vpop.f32.mrb[0].mxu0
    %v4075 = vadd.f32 0.0, %v4074
    %v4076 = vpop.f32.mrb[0].mxu0
    %4077 = vmatprep.mubr.f32.mxu0 0.0
    %4078 = vmatmul.mubr.f32.gmra.mrb[0].mxu0 %v3935
    %v4079 = vpop.f32.mrb[0].mxu0
    %v4080 = vadd.f32 0.0, %v4079
    %v4081 = vpop.f32.mrb[0].mxu0
    %4082 = vmatprep.mubr.f32.mxu0 0.0
    %4083 = vmatmul.mubr.f32.gmra.mrb[0].mxu0 %v3940
    %v4084 = vpop.f32.mrb[0].mxu0
    %v4085 = vadd.f32 0.0, %v4084
    %v4086 = vpop.f32.mrb[0].mxu0
    %4087 = vmatprep.mubr.f32.mxu0 0.0
    %4088 = vmatmul.mubr.f32.gmra.mrb[0].mxu0 %v3945
    %v4089 = vpop.f32.mrb[0].mxu0
    %v4090 = vadd.f32 0.0, %v4089
    %v4091 = vpop.f32.mrb[0].mxu0
    %4092 = vmatprep.mubr.f32.mxu0 0.0
    %4093 = vmatmul.mubr.f32.gmra.mrb[0].mxu0 %v3950
    %v4094 = vpop.f32.mrb[0].mxu0
    %v4095 = vadd.f32 0.0, %v4094
    %v4096 = vpop.f32.mrb[0].mxu0
    %4097 = vmatprep.mubr.f32.mxu0 0.0
    %4098 = vmatmul.mubr.f32.gmra.mrb[0].mxu0 %v3955
    %v4099 = vpop.f32.mrb[0].mxu0
    %v4100 = vadd.f32 0.0, %v4099
    %v4101 = vpop.f32.mrb[0].mxu0
    %4102 = vmatprep.mubr.f32.mxu0 0.0
    %4103 = vmatmul.mubr.f32.gmra.mrb[0].mxu0 %v3960
    %v4104 = vpop.f32.mrb[0].mxu0
    %v4105 = vadd.f32 0.0, %v4104
    %v4106 = vpop.f32.mrb[0].mxu0
    %4107 = vmatprep.mubr.f32.mxu0 0.0
    %4108 = vmatmul.mubr.f32.gmra.mrb[0].mxu0 %v3965
    %v4109 = vpop.f32.mrb[0].mxu0
    %v4110 = vadd.f32 0.0, %v4109
    %v4111 = vpop.f32.mrb[0].mxu0
    %4112 = vmatprep.mubr.f32.mxu0 0.0
    %4113 = vmatmul.mubr.f32.gmra.mrb[0].mxu0 %v3970
    %v4114 = vpop.f32.mrb[0].mxu0
    %v4115 = vadd.f32 0.0, %v4114
    %v4116 = vpop.f32.mrb[0].mxu0
    %4117 = vmatprep.mubr.f32.mxu0 0.0
    %4118 = vmatmul.mubr.f32.gmra.mrb[0].mxu0 %v3975
    %v4119 = vpop.f32.mrb[0].mxu0
    %v4120 = vadd.f32 0.0, %v4119
    %v4121 = vpop.f32.mrb[0].mxu0
    %4122 = vmatprep.mubr.f32.mxu0 0.0
    %4123 = vmatmul.mubr.f32.gmra.mrb[0].mxu0 %v3980
    %v4124 = vpop.f32.mrb[0].mxu0
    %v4125 = vadd.f32 0.0, %v4124
    %v4126 = vpop.f32.mrb[0].mxu0
    %4127 = vmatprep.mubr.f32.mxu0 0.0
    %4128 = vmatmul.mubr.f32.gmra.mrb[0].mxu0 %v3985
    %v4129 = vpop.f32.mrb[0].mxu0
    %v4130 = vadd.f32 0.0, %v4129
    %v4131 = vpop.f32.mrb[0].mxu0
    %4132 = vdwg.mxu0
    %v4133 = vmul.f32 %v4055, 0.5
    %v4134 = vmul.f32 %v4060, 0.5
    %v4135 = vmul.f32 %v4065, 0.5
    %v4136 = vmul.f32 %v4070, 0.5
    %v4137 = vmul.f32 %v4075, 0.5
    %v4138 = vmul.f32 %v4080, 0.5
    %v4139 = vmul.f32 %v4085, 0.5
    %v4140 = vmul.f32 %v4090, 0.5
    %v4141 = vmul.f32 %v4095, 0.5
    %v4142 = vmul.f32 %v4100, 0.5
    %v4143 = vmul.f32 %v4105, 0.5
    %v4144 = vmul.f32 %v4110, 0.5
    %v4145 = vmul.f32 %v4115, 0.5
    %v4146 = vmul.f32 %v4120, 0.5
    %v4147 = vmul.f32 %v4125, 0.5
    %v4148 = vmul.f32 %v4130, 0.5
    %v4149 = vsub.f32 %v108, %v4133
    %v4150 = vsub.f32 %v109, %v4134
    %v4151 = vsub.f32 %v110, %v4135
    %v4152 = vsub.f32 %v111, %v4136
    %v4153 = vsub.f32 %v112, %v4137
    %v4154 = vsub.f32 %v113, %v4138
    %v4155 = vsub.f32 %v114, %v4139
    %v4156 = vsub.f32 %v115, %v4140
    %v4157 = vsub.f32 %v116, %v4141
    %v4158 = vsub.f32 %v117, %v4142
    %v4159 = vsub.f32 %v118, %v4143
    %v4160 = vsub.f32 %v119, %v4144
    %v4161 = vsub.f32 %v120, %v4145
    %v4162 = vsub.f32 %v121, %v4146
    %v4163 = vsub.f32 %v122, %v4147
    %v4164 = vsub.f32 %v123, %v4148
    %4165 = vmatprep.subr.mxu0 0.0
    %4166 = vmatpush1.msra.mxu0 %v3910
    %4167 = vmatprep.subr.mxu0 0.0
    %4168 = vmatpush1.msra.mxu0 %v3915
    %4169 = vmatprep.subr.mxu0 0.0
    %4170 = vmatpush1.msra.mxu0 %v3920
    %4171 = vmatprep.subr.mxu0 0.0
    %4172 = vmatpush1.msra.mxu0 %v3925
    %4173 = vmatprep.subr.mxu0 0.0
    %4174 = vmatpush1.msra.mxu0 %v3930
    %4175 = vmatprep.subr.mxu0 0.0
    %4176 = vmatpush1.msra.mxu0 %v3935
    %4177 = vmatprep.subr.mxu0 0.0
    %4178 = vmatpush1.msra.mxu0 %v3940
    %4179 = vmatprep.subr.mxu0 0.0
    %4180 = vmatpush1.msra.mxu0 %v3945
    %4181 = vmatprep.subr.mxu0 0.0
    %4182 = vmatpush1.msra.mxu0 %v3950
    %4183 = vmatprep.subr.mxu0 0.0
    %4184 = vmatpush1.msra.mxu0 %v3955
    %4185 = vmatprep.subr.mxu0 0.0
    %4186 = vmatpush1.msra.mxu0 %v3960
    %4187 = vmatprep.subr.mxu0 0.0
    %4188 = vmatpush1.msra.mxu0 %v3965
    %4189 = vmatprep.subr.mxu0 0.0
    %4190 = vmatpush1.msra.mxu0 %v3970
    %4191 = vmatprep.subr.mxu0 0.0
    %4192 = vmatpush1.msra.mxu0 %v3975
    %4193 = vmatprep.subr.mxu0 0.0
    %4194 = vmatpush1.msra.mxu0 %v3980
    %4195 = vmatprep.subr.mxu0 0.0
    %4196 = vmatpush1.msra.mxu0 %v3985
    %4197 = vmatprep.subr.mxu0 0.0
    %4198 = vmatpush1.msra.mxu0 0.0
    %4199 = vmatprep.subr.mxu0 0.0
    %4200 = vmatpush1.msra.mxu0 0.0
    %4201 = vmatprep.subr.mxu0 0.0
    %4202 = vmatpush1.msra.mxu0 0.0
    %4203 = vmatprep.subr.mxu0 0.0
    %4204 = vmatpush1.msra.mxu0 0.0
    %4205 = vmatprep.subr.mxu0 0.0
    %4206 = vmatpush1.msra.mxu0 0.0
    %4207 = vmatprep.subr.mxu0 0.0
    %4208 = vmatpush1.msra.mxu0 0.0
    %4209 = vmatprep.subr.mxu0 0.0
    %4210 = vmatpush1.msra.mxu0 0.0
    %4211 = vmatprep.subr.mxu0 0.0
    %4212 = vmatpush1.msra.mxu0 0.0
    %4213 = vmatprep.subr.mxu0 0.0
    %4214 = vmatpush1.msra.mxu0 0.0
    %4215 = vmatprep.subr.mxu0 0.0
    %4216 = vmatpush1.msra.mxu0 0.0
    %4217 = vmatprep.subr.mxu0 0.0
    %4218 = vmatpush1.msra.mxu0 0.0
    %4219 = vmatprep.subr.mxu0 0.0
    %4220 = vmatpush1.msra.mxu0 0.0
    %4221 = vmatprep.subr.mxu0 0.0
    %4222 = vmatpush1.msra.mxu0 0.0
    %4223 = vmatprep.subr.mxu0 0.0
    %4224 = vmatpush1.msra.mxu0 0.0
    %4225 = vmatprep.subr.mxu0 0.0
    %4226 = vmatpush1.msra.mxu0 0.0
    %4227 = vmatprep.subr.mxu0 0.0
    %4228 = vmatpush1.msra.mxu0 0.0
    %4229 = vmatprep.mubr.f32.mxu0 0.0
    %4230 = vmatmul.mubr.f32.gmra.mrb[0].mxu0 %v4149
    %v4231 = vpop.f32.mrb[0].mxu0
    %v4232 = vadd.f32 0.0, %v4231
    %v4233 = vpop.f32.mrb[0].mxu0
    %4234 = vmatprep.mubr.f32.mxu0 0.0
    %4235 = vmatmul.mubr.f32.gmra.mrb[0].mxu0 %v4150
    %v4236 = vpop.f32.mrb[0].mxu0
    %v4237 = vadd.f32 0.0, %v4236
    %v4238 = vpop.f32.mrb[0].mxu0
    %4239 = vmatprep.mubr.f32.mxu0 0.0
    %4240 = vmatmul.mubr.f32.gmra.mrb[0].mxu0 %v4151
    %v4241 = vpop.f32.mrb[0].mxu0
    %v4242 = vadd.f32 0.0, %v4241
    %v4243 = vpop.f32.mrb[0].mxu0
    %4244 = vmatprep.mubr.f32.mxu0 0.0
    %4245 = vmatmul.mubr.f32.gmra.mrb[0].mxu0 %v4152
    %v4246 = vpop.f32.mrb[0].mxu0
    %v4247 = vadd.f32 0.0, %v4246
    %v4248 = vpop.f32.mrb[0].mxu0
    %4249 = vmatprep.mubr.f32.mxu0 0.0
    %4250 = vmatmul.mubr.f32.gmra.mrb[0].mxu0 %v4153
    %v4251 = vpop.f32.mrb[0].mxu0
    %v4252 = vadd.f32 0.0, %v4251
    %v4253 = vpop.f32.mrb[0].mxu0
    %4254 = vmatprep.mubr.f32.mxu0 0.0
    %4255 = vmatmul.mubr.f32.gmra.mrb[0].mxu0 %v4154
    %v4256 = vpop.f32.mrb[0].mxu0
    %v4257 = vadd.f32 0.0, %v4256
    %v4258 = vpop.f32.mrb[0].mxu0
    %4259 = vmatprep.mubr.f32.mxu0 0.0
    %4260 = vmatmul.mubr.f32.gmra.mrb[0].mxu0 %v4155
    %v4261 = vpop.f32.mrb[0].mxu0
    %v4262 = vadd.f32 0.0, %v4261
    %v4263 = vpop.f32.mrb[0].mxu0
    %4264 = vmatprep.mubr.f32.mxu0 0.0
    %4265 = vmatmul.mubr.f32.gmra.mrb[0].mxu0 %v4156
    %v4266 = vpop.f32.mrb[0].mxu0
    %v4267 = vadd.f32 0.0, %v4266
    %v4268 = vpop.f32.mrb[0].mxu0
    %4269 = vmatprep.mubr.f32.mxu0 0.0
    %4270 = vmatmul.mubr.f32.gmra.mrb[0].mxu0 %v4157
    %v4271 = vpop.f32.mrb[0].mxu0
    %v4272 = vadd.f32 0.0, %v4271
    %v4273 = vpop.f32.mrb[0].mxu0
    %4274 = vmatprep.mubr.f32.mxu0 0.0
    %4275 = vmatmul.mubr.f32.gmra.mrb[0].mxu0 %v4158
    %v4276 = vpop.f32.mrb[0].mxu0
    %v4277 = vadd.f32 0.0, %v4276
    %v4278 = vpop.f32.mrb[0].mxu0
    %4279 = vmatprep.mubr.f32.mxu0 0.0
    %4280 = vmatmul.mubr.f32.gmra.mrb[0].mxu0 %v4159
    %v4281 = vpop.f32.mrb[0].mxu0
    %v4282 = vadd.f32 0.0, %v4281
    %v4283 = vpop.f32.mrb[0].mxu0
    %4284 = vmatprep.mubr.f32.mxu0 0.0
    %4285 = vmatmul.mubr.f32.gmra.mrb[0].mxu0 %v4160
    %v4286 = vpop.f32.mrb[0].mxu0
    %v4287 = vadd.f32 0.0, %v4286
    %v4288 = vpop.f32.mrb[0].mxu0
    %4289 = vmatprep.mubr.f32.mxu0 0.0
    %4290 = vmatmul.mubr.f32.gmra.mrb[0].mxu0 %v4161
    %v4291 = vpop.f32.mrb[0].mxu0
    %v4292 = vadd.f32 0.0, %v4291
    %v4293 = vpop.f32.mrb[0].mxu0
    %4294 = vmatprep.mubr.f32.mxu0 0.0
    %4295 = vmatmul.mubr.f32.gmra.mrb[0].mxu0 %v4162
    %v4296 = vpop.f32.mrb[0].mxu0
    %v4297 = vadd.f32 0.0, %v4296
    %v4298 = vpop.f32.mrb[0].mxu0
    %4299 = vmatprep.mubr.f32.mxu0 0.0
    %4300 = vmatmul.mubr.f32.gmra.mrb[0].mxu0 %v4163
    %v4301 = vpop.f32.mrb[0].mxu0
    %v4302 = vadd.f32 0.0, %v4301
    %v4303 = vpop.f32.mrb[0].mxu0
    %4304 = vmatprep.mubr.f32.mxu0 0.0
    %4305 = vmatmul.mubr.f32.gmra.mrb[0].mxu0 %v4164
    %v4306 = vpop.f32.mrb[0].mxu0
    %v4307 = vadd.f32 0.0, %v4306
    %v4308 = vpop.f32.mrb[0].mxu0
    %4309 = vdwg.mxu0
    %4310 = vmatprep.subr.mxu0 0.0
    %4311 = vmatpush1.xpose.msra.mxu0 %v4232
    %4312 = vmatprep.subr.mxu0 0.0
    %4313 = vmatpush1.xpose.msra.mxu0 %v4237
    %4314 = vmatprep.subr.mxu0 0.0
    %4315 = vmatpush1.xpose.msra.mxu0 %v4242
    %4316 = vmatprep.subr.mxu0 0.0
    %4317 = vmatpush1.xpose.msra.mxu0 %v4247
    %4318 = vmatprep.subr.mxu0 0.0
    %4319 = vmatpush1.xpose.msra.mxu0 %v4252
    %4320 = vmatprep.subr.mxu0 0.0
    %4321 = vmatpush1.xpose.msra.mxu0 %v4257
    %4322 = vmatprep.subr.mxu0 0.0
    %4323 = vmatpush1.xpose.msra.mxu0 %v4262
    %4324 = vmatprep.subr.mxu0 0.0
    %4325 = vmatpush1.xpose.msra.mxu0 %v4267
    %4326 = vmatprep.subr.mxu0 0.0
    %4327 = vmatpush1.xpose.msra.mxu0 %v4272
    %4328 = vmatprep.subr.mxu0 0.0
    %4329 = vmatpush1.xpose.msra.mxu0 %v4277
    %4330 = vmatprep.subr.mxu0 0.0
    %4331 = vmatpush1.xpose.msra.mxu0 %v4282
    %4332 = vmatprep.subr.mxu0 0.0
    %4333 = vmatpush1.xpose.msra.mxu0 %v4287
    %4334 = vmatprep.subr.mxu0 0.0
    %4335 = vmatpush1.xpose.msra.mxu0 %v4292
    %4336 = vmatprep.subr.mxu0 0.0
    %4337 = vmatpush1.xpose.msra.mxu0 %v4297
    %4338 = vmatprep.subr.mxu0 0.0
    %4339 = vmatpush1.xpose.msra.mxu0 %v4302
    %4340 = vmatprep.subr.mxu0 0.0
    %4341 = vmatpush1.xpose.msra.mxu0 %v4307
    %4342 = vmatprep.subr.mxu0 0.0
    %4343 = vmatpush1.xpose.msra.mxu0 0.0
    %4344 = vmatprep.subr.mxu0 0.0
    %4345 = vmatpush1.xpose.msra.mxu0 0.0
    %4346 = vmatprep.subr.mxu0 0.0
    %4347 = vmatpush1.xpose.msra.mxu0 0.0
    %4348 = vmatprep.subr.mxu0 0.0
    %4349 = vmatpush1.xpose.msra.mxu0 0.0
    %4350 = vmatprep.subr.mxu0 0.0
    %4351 = vmatpush1.xpose.msra.mxu0 0.0
    %4352 = vmatprep.subr.mxu0 0.0
    %4353 = vmatpush1.xpose.msra.mxu0 0.0
    %4354 = vmatprep.subr.mxu0 0.0
    %4355 = vmatpush1.xpose.msra.mxu0 0.0
    %4356 = vmatprep.subr.mxu0 0.0
    %4357 = vmatpush1.xpose.msra.mxu0 0.0
    %4358 = vmatprep.subr.mxu0 0.0
    %4359 = vmatpush1.xpose.msra.mxu0 0.0
    %4360 = vmatprep.subr.mxu0 0.0
    %4361 = vmatpush1.xpose.msra.mxu0 0.0
    %4362 = vmatprep.subr.mxu0 0.0
    %4363 = vmatpush1.xpose.msra.mxu0 0.0
    %4364 = vmatprep.subr.mxu0 0.0
    %4365 = vmatpush1.xpose.msra.mxu0 0.0
    %4366 = vmatprep.subr.mxu0 0.0
    %4367 = vmatpush1.xpose.msra.mxu0 0.0
    %4368 = vmatprep.subr.mxu0 0.0
    %4369 = vmatpush1.xpose.msra.mxu0 0.0
    %4370 = vmatprep.subr.mxu0 0.0
    %4371 = vmatpush1.xpose.msra.mxu0 0.0
    %4372 = vmatprep.subr.mxu0 0.0
    %4373 = vmatpush1.xpose.msra.mxu0 0.0
    %4374 = vmatprep.mubr.f32.mxu0 0.0
    %4375 = vmatmul.mubr.f32.gmra.mrb[0].mxu0 %v4232
    %v4376 = vpop.f32.mrb[0].mxu0
    %v4377 = vadd.f32 0.0, %v4376
    %v4378 = vpop.f32.mrb[0].mxu0
    %4379 = vmatprep.mubr.f32.mxu0 0.0
    %4380 = vmatmul.mubr.f32.gmra.mrb[0].mxu0 %v4237
    %v4381 = vpop.f32.mrb[0].mxu0
    %v4382 = vadd.f32 0.0, %v4381
    %v4383 = vpop.f32.mrb[0].mxu0
    %4384 = vmatprep.mubr.f32.mxu0 0.0
    %4385 = vmatmul.mubr.f32.gmra.mrb[0].mxu0 %v4242
    %v4386 = vpop.f32.mrb[0].mxu0
    %v4387 = vadd.f32 0.0, %v4386
    %v4388 = vpop.f32.mrb[0].mxu0
    %4389 = vmatprep.mubr.f32.mxu0 0.0
    %4390 = vmatmul.mubr.f32.gmra.mrb[0].mxu0 %v4247
    %v4391 = vpop.f32.mrb[0].mxu0
    %v4392 = vadd.f32 0.0, %v4391
    %v4393 = vpop.f32.mrb[0].mxu0
    %4394 = vmatprep.mubr.f32.mxu0 0.0
    %4395 = vmatmul.mubr.f32.gmra.mrb[0].mxu0 %v4252
    %v4396 = vpop.f32.mrb[0].mxu0
    %v4397 = vadd.f32 0.0, %v4396
    %v4398 = vpop.f32.mrb[0].mxu0
    %4399 = vmatprep.mubr.f32.mxu0 0.0
    %4400 = vmatmul.mubr.f32.gmra.mrb[0].mxu0 %v4257
    %v4401 = vpop.f32.mrb[0].mxu0
    %v4402 = vadd.f32 0.0, %v4401
    %v4403 = vpop.f32.mrb[0].mxu0
    %4404 = vmatprep.mubr.f32.mxu0 0.0
    %4405 = vmatmul.mubr.f32.gmra.mrb[0].mxu0 %v4262
    %v4406 = vpop.f32.mrb[0].mxu0
    %v4407 = vadd.f32 0.0, %v4406
    %v4408 = vpop.f32.mrb[0].mxu0
    %4409 = vmatprep.mubr.f32.mxu0 0.0
    %4410 = vmatmul.mubr.f32.gmra.mrb[0].mxu0 %v4267
    %v4411 = vpop.f32.mrb[0].mxu0
    %v4412 = vadd.f32 0.0, %v4411
    %v4413 = vpop.f32.mrb[0].mxu0
    %4414 = vmatprep.mubr.f32.mxu0 0.0
    %4415 = vmatmul.mubr.f32.gmra.mrb[0].mxu0 %v4272
    %v4416 = vpop.f32.mrb[0].mxu0
    %v4417 = vadd.f32 0.0, %v4416
    %v4418 = vpop.f32.mrb[0].mxu0
    %4419 = vmatprep.mubr.f32.mxu0 0.0
    %4420 = vmatmul.mubr.f32.gmra.mrb[0].mxu0 %v4277
    %v4421 = vpop.f32.mrb[0].mxu0
    %v4422 = vadd.f32 0.0, %v4421
    %v4423 = vpop.f32.mrb[0].mxu0
    %4424 = vmatprep.mubr.f32.mxu0 0.0
    %4425 = vmatmul.mubr.f32.gmra.mrb[0].mxu0 %v4282
    %v4426 = vpop.f32.mrb[0].mxu0
    %v4427 = vadd.f32 0.0, %v4426
    %v4428 = vpop.f32.mrb[0].mxu0
    %4429 = vmatprep.mubr.f32.mxu0 0.0
    %4430 = vmatmul.mubr.f32.gmra.mrb[0].mxu0 %v4287
    %v4431 = vpop.f32.mrb[0].mxu0
    %v4432 = vadd.f32 0.0, %v4431
    %v4433 = vpop.f32.mrb[0].mxu0
    %4434 = vmatprep.mubr.f32.mxu0 0.0
    %4435 = vmatmul.mubr.f32.gmra.mrb[0].mxu0 %v4292
    %v4436 = vpop.f32.mrb[0].mxu0
    %v4437 = vadd.f32 0.0, %v4436
    %v4438 = vpop.f32.mrb[0].mxu0
    %4439 = vmatprep.mubr.f32.mxu0 0.0
    %4440 = vmatmul.mubr.f32.gmra.mrb[0].mxu0 %v4297
    %v4441 = vpop.f32.mrb[0].mxu0
    %v4442 = vadd.f32 0.0, %v4441
    %v4443 = vpop.f32.mrb[0].mxu0
    %4444 = vmatprep.mubr.f32.mxu0 0.0
    %4445 = vmatmul.mubr.f32.gmra.mrb[0].mxu0 %v4302
    %v4446 = vpop.f32.mrb[0].mxu0
    %v4447 = vadd.f32 0.0, %v4446
    %v4448 = vpop.f32.mrb[0].mxu0
    %4449 = vmatprep.mubr.f32.mxu0 0.0
    %4450 = vmatmul.mubr.f32.gmra.mrb[0].mxu0 %v4307
    %v4451 = vpop.f32.mrb[0].mxu0
    %v4452 = vadd.f32 0.0, %v4451
    %v4453 = vpop.f32.mrb[0].mxu0
    %4454 = vdwg.mxu0
    %v4455 = vmul.f32 %v4377, 0.5
    %v4456 = vmul.f32 %v4382, 0.5
    %v4457 = vmul.f32 %v4387, 0.5
    %v4458 = vmul.f32 %v4392, 0.5
    %v4459 = vmul.f32 %v4397, 0.5
    %v4460 = vmul.f32 %v4402, 0.5
    %v4461 = vmul.f32 %v4407, 0.5
    %v4462 = vmul.f32 %v4412, 0.5
    %v4463 = vmul.f32 %v4417, 0.5
    %v4464 = vmul.f32 %v4422, 0.5
    %v4465 = vmul.f32 %v4427, 0.5
    %v4466 = vmul.f32 %v4432, 0.5
    %v4467 = vmul.f32 %v4437, 0.5
    %v4468 = vmul.f32 %v4442, 0.5
    %v4469 = vmul.f32 %v4447, 0.5
    %v4470 = vmul.f32 %v4452, 0.5
    %v4471 = vsub.f32 %v108, %v4455
    %v4472 = vsub.f32 %v109, %v4456
    %v4473 = vsub.f32 %v110, %v4457
    %v4474 = vsub.f32 %v111, %v4458
    %v4475 = vsub.f32 %v112, %v4459
    %v4476 = vsub.f32 %v113, %v4460
    %v4477 = vsub.f32 %v114, %v4461
    %v4478 = vsub.f32 %v115, %v4462
    %v4479 = vsub.f32 %v116, %v4463
    %v4480 = vsub.f32 %v117, %v4464
    %v4481 = vsub.f32 %v118, %v4465
    %v4482 = vsub.f32 %v119, %v4466
    %v4483 = vsub.f32 %v120, %v4467
    %v4484 = vsub.f32 %v121, %v4468
    %v4485 = vsub.f32 %v122, %v4469
    %v4486 = vsub.f32 %v123, %v4470
    %4487 = vmatprep.subr.mxu0 0.0
    %4488 = vmatpush1.msra.mxu0 %v4232
    %4489 = vmatprep.subr.mxu0 0.0
    %4490 = vmatpush1.msra.mxu0 %v4237
    %4491 = vmatprep.subr.mxu0 0.0
    %4492 = vmatpush1.msra.mxu0 %v4242
    %4493 = vmatprep.subr.mxu0 0.0
    %4494 = vmatpush1.msra.mxu0 %v4247
    %4495 = vmatprep.subr.mxu0 0.0
    %4496 = vmatpush1.msra.mxu0 %v4252
    %4497 = vmatprep.subr.mxu0 0.0
    %4498 = vmatpush1.msra.mxu0 %v4257
    %4499 = vmatprep.subr.mxu0 0.0
    %4500 = vmatpush1.msra.mxu0 %v4262
    %4501 = vmatprep.subr.mxu0 0.0
    %4502 = vmatpush1.msra.mxu0 %v4267
    %4503 = vmatprep.subr.mxu0 0.0
    %4504 = vmatpush1.msra.mxu0 %v4272
    %4505 = vmatprep.subr.mxu0 0.0
    %4506 = vmatpush1.msra.mxu0 %v4277
    %4507 = vmatprep.subr.mxu0 0.0
    %4508 = vmatpush1.msra.mxu0 %v4282
    %4509 = vmatprep.subr.mxu0 0.0
    %4510 = vmatpush1.msra.mxu0 %v4287
    %4511 = vmatprep.subr.mxu0 0.0
    %4512 = vmatpush1.msra.mxu0 %v4292
    %4513 = vmatprep.subr.mxu0 0.0
    %4514 = vmatpush1.msra.mxu0 %v4297
    %4515 = vmatprep.subr.mxu0 0.0
    %4516 = vmatpush1.msra.mxu0 %v4302
    %4517 = vmatprep.subr.mxu0 0.0
    %4518 = vmatpush1.msra.mxu0 %v4307
    %4519 = vmatprep.subr.mxu0 0.0
    %4520 = vmatpush1.msra.mxu0 0.0
    %4521 = vmatprep.subr.mxu0 0.0
    %4522 = vmatpush1.msra.mxu0 0.0
    %4523 = vmatprep.subr.mxu0 0.0
    %4524 = vmatpush1.msra.mxu0 0.0
    %4525 = vmatprep.subr.mxu0 0.0
    %4526 = vmatpush1.msra.mxu0 0.0
    %4527 = vmatprep.subr.mxu0 0.0
    %4528 = vmatpush1.msra.mxu0 0.0
    %4529 = vmatprep.subr.mxu0 0.0
    %4530 = vmatpush1.msra.mxu0 0.0
    %4531 = vmatprep.subr.mxu0 0.0
    %4532 = vmatpush1.msra.mxu0 0.0
    %4533 = vmatprep.subr.mxu0 0.0
    %4534 = vmatpush1.msra.mxu0 0.0
    %4535 = vmatprep.subr.mxu0 0.0
    %4536 = vmatpush1.msra.mxu0 0.0
    %4537 = vmatprep.subr.mxu0 0.0
    %4538 = vmatpush1.msra.mxu0 0.0
    %4539 = vmatprep.subr.mxu0 0.0
    %4540 = vmatpush1.msra.mxu0 0.0
    %4541 = vmatprep.subr.mxu0 0.0
    %4542 = vmatpush1.msra.mxu0 0.0
    %4543 = vmatprep.subr.mxu0 0.0
    %4544 = vmatpush1.msra.mxu0 0.0
    %4545 = vmatprep.subr.mxu0 0.0
    %4546 = vmatpush1.msra.mxu0 0.0
    %4547 = vmatprep.subr.mxu0 0.0
    %4548 = vmatpush1.msra.mxu0 0.0
    %4549 = vmatprep.subr.mxu0 0.0
    %4550 = vmatpush1.msra.mxu0 0.0
    %4551 = vmatprep.mubr.f32.mxu0 0.0
    %4552 = vmatmul.mubr.f32.gmra.mrb[0].mxu0 %v4471
    %v4553 = vpop.f32.mrb[0].mxu0
    %v4554 = vadd.f32 0.0, %v4553
    %v4555 = vpop.f32.mrb[0].mxu0
    %4556 = vmatprep.mubr.f32.mxu0 0.0
    %4557 = vmatmul.mubr.f32.gmra.mrb[0].mxu0 %v4472
    %v4558 = vpop.f32.mrb[0].mxu0
    %v4559 = vadd.f32 0.0, %v4558
    %v4560 = vpop.f32.mrb[0].mxu0
    %4561 = vmatprep.mubr.f32.mxu0 0.0
    %4562 = vmatmul.mubr.f32.gmra.mrb[0].mxu0 %v4473
    %v4563 = vpop.f32.mrb[0].mxu0
    %v4564 = vadd.f32 0.0, %v4563
    %v4565 = vpop.f32.mrb[0].mxu0
    %4566 = vmatprep.mubr.f32.mxu0 0.0
    %4567 = vmatmul.mubr.f32.gmra.mrb[0].mxu0 %v4474
    %v4568 = vpop.f32.mrb[0].mxu0
    %v4569 = vadd.f32 0.0, %v4568
    %v4570 = vpop.f32.mrb[0].mxu0
    %4571 = vmatprep.mubr.f32.mxu0 0.0
    %4572 = vmatmul.mubr.f32.gmra.mrb[0].mxu0 %v4475
    %v4573 = vpop.f32.mrb[0].mxu0
    %v4574 = vadd.f32 0.0, %v4573
    %v4575 = vpop.f32.mrb[0].mxu0
    %4576 = vmatprep.mubr.f32.mxu0 0.0
    %4577 = vmatmul.mubr.f32.gmra.mrb[0].mxu0 %v4476
    %v4578 = vpop.f32.mrb[0].mxu0
    %v4579 = vadd.f32 0.0, %v4578
    %v4580 = vpop.f32.mrb[0].mxu0
    %4581 = vmatprep.mubr.f32.mxu0 0.0
    %4582 = vmatmul.mubr.f32.gmra.mrb[0].mxu0 %v4477
    %v4583 = vpop.f32.mrb[0].mxu0
    %v4584 = vadd.f32 0.0, %v4583
    %v4585 = vpop.f32.mrb[0].mxu0
    %4586 = vmatprep.mubr.f32.mxu0 0.0
    %4587 = vmatmul.mubr.f32.gmra.mrb[0].mxu0 %v4478
    %v4588 = vpop.f32.mrb[0].mxu0
    %v4589 = vadd.f32 0.0, %v4588
    %v4590 = vpop.f32.mrb[0].mxu0
    %4591 = vmatprep.mubr.f32.mxu0 0.0
    %4592 = vmatmul.mubr.f32.gmra.mrb[0].mxu0 %v4479
    %v4593 = vpop.f32.mrb[0].mxu0
    %v4594 = vadd.f32 0.0, %v4593
    %v4595 = vpop.f32.mrb[0].mxu0
    %4596 = vmatprep.mubr.f32.mxu0 0.0
    %4597 = vmatmul.mubr.f32.gmra.mrb[0].mxu0 %v4480
    %v4598 = vpop.f32.mrb[0].mxu0
    %v4599 = vadd.f32 0.0, %v4598
    %v4600 = vpop.f32.mrb[0].mxu0
    %4601 = vmatprep.mubr.f32.mxu0 0.0
    %4602 = vmatmul.mubr.f32.gmra.mrb[0].mxu0 %v4481
    %v4603 = vpop.f32.mrb[0].mxu0
    %v4604 = vadd.f32 0.0, %v4603
    %v4605 = vpop.f32.mrb[0].mxu0
    %4606 = vmatprep.mubr.f32.mxu0 0.0
    %4607 = vmatmul.mubr.f32.gmra.mrb[0].mxu0 %v4482
    %v4608 = vpop.f32.mrb[0].mxu0
    %v4609 = vadd.f32 0.0, %v4608
    %v4610 = vpop.f32.mrb[0].mxu0
    %4611 = vmatprep.mubr.f32.mxu0 0.0
    %4612 = vmatmul.mubr.f32.gmra.mrb[0].mxu0 %v4483
    %v4613 = vpop.f32.mrb[0].mxu0
    %v4614 = vadd.f32 0.0, %v4613
    %v4615 = vpop.f32.mrb[0].mxu0
    %4616 = vmatprep.mubr.f32.mxu0 0.0
    %4617 = vmatmul.mubr.f32.gmra.mrb[0].mxu0 %v4484
    %v4618 = vpop.f32.mrb[0].mxu0
    %v4619 = vadd.f32 0.0, %v4618
    %v4620 = vpop.f32.mrb[0].mxu0
    %4621 = vmatprep.mubr.f32.mxu0 0.0
    %4622 = vmatmul.mubr.f32.gmra.mrb[0].mxu0 %v4485
    %v4623 = vpop.f32.mrb[0].mxu0
    %v4624 = vadd.f32 0.0, %v4623
    %v4625 = vpop.f32.mrb[0].mxu0
    %4626 = vmatprep.mubr.f32.mxu0 0.0
    %4627 = vmatmul.mubr.f32.gmra.mrb[0].mxu0 %v4486
    %v4628 = vpop.f32.mrb[0].mxu0
    %v4629 = vadd.f32 0.0, %v4628
    %v4630 = vpop.f32.mrb[0].mxu0
    %4631 = vdwg.mxu0
    %4632 = vmatprep.subr.mxu0 0.0
    %4633 = vmatpush1.xpose.msra.mxu0 %v4554
    %4634 = vmatprep.subr.mxu0 0.0
    %4635 = vmatpush1.xpose.msra.mxu0 %v4559
    %4636 = vmatprep.subr.mxu0 0.0
    %4637 = vmatpush1.xpose.msra.mxu0 %v4564
    %4638 = vmatprep.subr.mxu0 0.0
    %4639 = vmatpush1.xpose.msra.mxu0 %v4569
    %4640 = vmatprep.subr.mxu0 0.0
    %4641 = vmatpush1.xpose.msra.mxu0 %v4574
    %4642 = vmatprep.subr.mxu0 0.0
    %4643 = vmatpush1.xpose.msra.mxu0 %v4579
    %4644 = vmatprep.subr.mxu0 0.0
    %4645 = vmatpush1.xpose.msra.mxu0 %v4584
    %4646 = vmatprep.subr.mxu0 0.0
    %4647 = vmatpush1.xpose.msra.mxu0 %v4589
    %4648 = vmatprep.subr.mxu0 0.0
    %4649 = vmatpush1.xpose.msra.mxu0 %v4594
    %4650 = vmatprep.subr.mxu0 0.0
    %4651 = vmatpush1.xpose.msra.mxu0 %v4599
    %4652 = vmatprep.subr.mxu0 0.0
    %4653 = vmatpush1.xpose.msra.mxu0 %v4604
    %4654 = vmatprep.subr.mxu0 0.0
    %4655 = vmatpush1.xpose.msra.mxu0 %v4609
    %4656 = vmatprep.subr.mxu0 0.0
    %4657 = vmatpush1.xpose.msra.mxu0 %v4614
    %4658 = vmatprep.subr.mxu0 0.0
    %4659 = vmatpush1.xpose.msra.mxu0 %v4619
    %4660 = vmatprep.subr.mxu0 0.0
    %4661 = vmatpush1.xpose.msra.mxu0 %v4624
    %4662 = vmatprep.subr.mxu0 0.0
    %4663 = vmatpush1.xpose.msra.mxu0 %v4629
    %4664 = vmatprep.subr.mxu0 0.0
    %4665 = vmatpush1.xpose.msra.mxu0 0.0
    %4666 = vmatprep.subr.mxu0 0.0
    %4667 = vmatpush1.xpose.msra.mxu0 0.0
    %4668 = vmatprep.subr.mxu0 0.0
    %4669 = vmatpush1.xpose.msra.mxu0 0.0
    %4670 = vmatprep.subr.mxu0 0.0
    %4671 = vmatpush1.xpose.msra.mxu0 0.0
    %4672 = vmatprep.subr.mxu0 0.0
    %4673 = vmatpush1.xpose.msra.mxu0 0.0
    %4674 = vmatprep.subr.mxu0 0.0
    %4675 = vmatpush1.xpose.msra.mxu0 0.0
    %4676 = vmatprep.subr.mxu0 0.0
    %4677 = vmatpush1.xpose.msra.mxu0 0.0
    %4678 = vmatprep.subr.mxu0 0.0
    %4679 = vmatpush1.xpose.msra.mxu0 0.0
    %4680 = vmatprep.subr.mxu0 0.0
    %4681 = vmatpush1.xpose.msra.mxu0 0.0
    %4682 = vmatprep.subr.mxu0 0.0
    %4683 = vmatpush1.xpose.msra.mxu0 0.0
    %4684 = vmatprep.subr.mxu0 0.0
    %4685 = vmatpush1.xpose.msra.mxu0 0.0
    %4686 = vmatprep.subr.mxu0 0.0
    %4687 = vmatpush1.xpose.msra.mxu0 0.0
    %4688 = vmatprep.subr.mxu0 0.0
    %4689 = vmatpush1.xpose.msra.mxu0 0.0
    %4690 = vmatprep.subr.mxu0 0.0
    %4691 = vmatpush1.xpose.msra.mxu0 0.0
    %4692 = vmatprep.subr.mxu0 0.0
    %4693 = vmatpush1.xpose.msra.mxu0 0.0
    %4694 = vmatprep.subr.mxu0 0.0
    %4695 = vmatpush1.xpose.msra.mxu0 0.0
    %4696 = vmatprep.mubr.f32.mxu0 0.0
    %4697 = vmatmul.mubr.f32.gmra.mrb[0].mxu0 %v4554
    %v4698 = vpop.f32.mrb[0].mxu0
    %v4699 = vadd.f32 0.0, %v4698
    %v4700 = vpop.f32.mrb[0].mxu0
    %4701 = vmatprep.mubr.f32.mxu0 0.0
    %4702 = vmatmul.mubr.f32.gmra.mrb[0].mxu0 %v4559
    %v4703 = vpop.f32.mrb[0].mxu0
    %v4704 = vadd.f32 0.0, %v4703
    %v4705 = vpop.f32.mrb[0].mxu0
    %4706 = vmatprep.mubr.f32.mxu0 0.0
    %4707 = vmatmul.mubr.f32.gmra.mrb[0].mxu0 %v4564
    %v4708 = vpop.f32.mrb[0].mxu0
    %v4709 = vadd.f32 0.0, %v4708
    %v4710 = vpop.f32.mrb[0].mxu0
    %4711 = vmatprep.mubr.f32.mxu0 0.0
    %4712 = vmatmul.mubr.f32.gmra.mrb[0].mxu0 %v4569
    %v4713 = vpop.f32.mrb[0].mxu0
    %v4714 = vadd.f32 0.0, %v4713
    %v4715 = vpop.f32.mrb[0].mxu0
    %4716 = vmatprep.mubr.f32.mxu0 0.0
    %4717 = vmatmul.mubr.f32.gmra.mrb[0].mxu0 %v4574
    %v4718 = vpop.f32.mrb[0].mxu0
    %v4719 = vadd.f32 0.0, %v4718
    %v4720 = vpop.f32.mrb[0].mxu0
    %4721 = vmatprep.mubr.f32.mxu0 0.0
    %4722 = vmatmul.mubr.f32.gmra.mrb[0].mxu0 %v4579
    %v4723 = vpop.f32.mrb[0].mxu0
    %v4724 = vadd.f32 0.0, %v4723
    %v4725 = vpop.f32.mrb[0].mxu0
    %4726 = vmatprep.mubr.f32.mxu0 0.0
    %4727 = vmatmul.mubr.f32.gmra.mrb[0].mxu0 %v4584
    %v4728 = vpop.f32.mrb[0].mxu0
    %v4729 = vadd.f32 0.0, %v4728
    %v4730 = vpop.f32.mrb[0].mxu0
    %4731 = vmatprep.mubr.f32.mxu0 0.0
    %4732 = vmatmul.mubr.f32.gmra.mrb[0].mxu0 %v4589
    %v4733 = vpop.f32.mrb[0].mxu0
    %v4734 = vadd.f32 0.0, %v4733
    %v4735 = vpop.f32.mrb[0].mxu0
    %4736 = vmatprep.mubr.f32.mxu0 0.0
    %4737 = vmatmul.mubr.f32.gmra.mrb[0].mxu0 %v4594
    %v4738 = vpop.f32.mrb[0].mxu0
    %v4739 = vadd.f32 0.0, %v4738
    %v4740 = vpop.f32.mrb[0].mxu0
    %4741 = vmatprep.mubr.f32.mxu0 0.0
    %4742 = vmatmul.mubr.f32.gmra.mrb[0].mxu0 %v4599
    %v4743 = vpop.f32.mrb[0].mxu0
    %v4744 = vadd.f32 0.0, %v4743
    %v4745 = vpop.f32.mrb[0].mxu0
    %4746 = vmatprep.mubr.f32.mxu0 0.0
    %4747 = vmatmul.mubr.f32.gmra.mrb[0].mxu0 %v4604
    %v4748 = vpop.f32.mrb[0].mxu0
    %v4749 = vadd.f32 0.0, %v4748
    %v4750 = vpop.f32.mrb[0].mxu0
    %4751 = vmatprep.mubr.f32.mxu0 0.0
    %4752 = vmatmul.mubr.f32.gmra.mrb[0].mxu0 %v4609
    %v4753 = vpop.f32.mrb[0].mxu0
    %v4754 = vadd.f32 0.0, %v4753
    %v4755 = vpop.f32.mrb[0].mxu0
    %4756 = vmatprep.mubr.f32.mxu0 0.0
    %4757 = vmatmul.mubr.f32.gmra.mrb[0].mxu0 %v4614
    %v4758 = vpop.f32.mrb[0].mxu0
    %v4759 = vadd.f32 0.0, %v4758
    %v4760 = vpop.f32.mrb[0].mxu0
    %4761 = vmatprep.mubr.f32.mxu0 0.0
    %4762 = vmatmul.mubr.f32.gmra.mrb[0].mxu0 %v4619
    %v4763 = vpop.f32.mrb[0].mxu0
    %v4764 = vadd.f32 0.0, %v4763
    %v4765 = vpop.f32.mrb[0].mxu0
    %4766 = vmatprep.mubr.f32.mxu0 0.0
    %4767 = vmatmul.mubr.f32.gmra.mrb[0].mxu0 %v4624
    %v4768 = vpop.f32.mrb[0].mxu0
    %v4769 = vadd.f32 0.0, %v4768
    %v4770 = vpop.f32.mrb[0].mxu0
    %4771 = vmatprep.mubr.f32.mxu0 0.0
    %4772 = vmatmul.mubr.f32.gmra.mrb[0].mxu0 %v4629
    %v4773 = vpop.f32.mrb[0].mxu0
    %v4774 = vadd.f32 0.0, %v4773
    %v4775 = vpop.f32.mrb[0].mxu0
    %4776 = vdwg.mxu0
    %v4777 = vmul.f32 %v4699, 0.5
    %v4778 = vmul.f32 %v4704, 0.5
    %v4779 = vmul.f32 %v4709, 0.5
    %v4780 = vmul.f32 %v4714, 0.5
    %v4781 = vmul.f32 %v4719, 0.5
    %v4782 = vmul.f32 %v4724, 0.5
    %v4783 = vmul.f32 %v4729, 0.5
    %v4784 = vmul.f32 %v4734, 0.5
    %v4785 = vmul.f32 %v4739, 0.5
    %v4786 = vmul.f32 %v4744, 0.5
    %v4787 = vmul.f32 %v4749, 0.5
    %v4788 = vmul.f32 %v4754, 0.5
    %v4789 = vmul.f32 %v4759, 0.5
    %v4790 = vmul.f32 %v4764, 0.5
    %v4791 = vmul.f32 %v4769, 0.5
    %v4792 = vmul.f32 %v4774, 0.5
    %v4793 = vsub.f32 %v108, %v4777
    %v4794 = vsub.f32 %v109, %v4778
    %v4795 = vsub.f32 %v110, %v4779
    %v4796 = vsub.f32 %v111, %v4780
    %v4797 = vsub.f32 %v112, %v4781
    %v4798 = vsub.f32 %v113, %v4782
    %v4799 = vsub.f32 %v114, %v4783
    %v4800 = vsub.f32 %v115, %v4784
    %v4801 = vsub.f32 %v116, %v4785
    %v4802 = vsub.f32 %v117, %v4786
    %v4803 = vsub.f32 %v118, %v4787
    %v4804 = vsub.f32 %v119, %v4788
    %v4805 = vsub.f32 %v120, %v4789
    %v4806 = vsub.f32 %v121, %v4790
    %v4807 = vsub.f32 %v122, %v4791
    %v4808 = vsub.f32 %v123, %v4792
    %4809 = vmatprep.subr.mxu0 0.0
    %4810 = vmatpush1.msra.mxu0 %v4554
    %4811 = vmatprep.subr.mxu0 0.0
    %4812 = vmatpush1.msra.mxu0 %v4559
    %4813 = vmatprep.subr.mxu0 0.0
    %4814 = vmatpush1.msra.mxu0 %v4564
    %4815 = vmatprep.subr.mxu0 0.0
    %4816 = vmatpush1.msra.mxu0 %v4569
    %4817 = vmatprep.subr.mxu0 0.0
    %4818 = vmatpush1.msra.mxu0 %v4574
    %4819 = vmatprep.subr.mxu0 0.0
    %4820 = vmatpush1.msra.mxu0 %v4579
    %4821 = vmatprep.subr.mxu0 0.0
    %4822 = vmatpush1.msra.mxu0 %v4584
    %4823 = vmatprep.subr.mxu0 0.0
    %4824 = vmatpush1.msra.mxu0 %v4589
    %4825 = vmatprep.subr.mxu0 0.0
    %4826 = vmatpush1.msra.mxu0 %v4594
    %4827 = vmatprep.subr.mxu0 0.0
    %4828 = vmatpush1.msra.mxu0 %v4599
    %4829 = vmatprep.subr.mxu0 0.0
    %4830 = vmatpush1.msra.mxu0 %v4604
    %4831 = vmatprep.subr.mxu0 0.0
    %4832 = vmatpush1.msra.mxu0 %v4609
    %4833 = vmatprep.subr.mxu0 0.0
    %4834 = vmatpush1.msra.mxu0 %v4614
    %4835 = vmatprep.subr.mxu0 0.0
    %4836 = vmatpush1.msra.mxu0 %v4619
    %4837 = vmatprep.subr.mxu0 0.0
    %4838 = vmatpush1.msra.mxu0 %v4624
    %4839 = vmatprep.subr.mxu0 0.0
    %4840 = vmatpush1.msra.mxu0 %v4629
    %4841 = vmatprep.subr.mxu0 0.0
    %4842 = vmatpush1.msra.mxu0 0.0
    %4843 = vmatprep.subr.mxu0 0.0
    %4844 = vmatpush1.msra.mxu0 0.0
    %4845 = vmatprep.subr.mxu0 0.0
    %4846 = vmatpush1.msra.mxu0 0.0
    %4847 = vmatprep.subr.mxu0 0.0
    %4848 = vmatpush1.msra.mxu0 0.0
    %4849 = vmatprep.subr.mxu0 0.0
    %4850 = vmatpush1.msra.mxu0 0.0
    %4851 = vmatprep.subr.mxu0 0.0
    %4852 = vmatpush1.msra.mxu0 0.0
    %4853 = vmatprep.subr.mxu0 0.0
    %4854 = vmatpush1.msra.mxu0 0.0
    %4855 = vmatprep.subr.mxu0 0.0
    %4856 = vmatpush1.msra.mxu0 0.0
    %4857 = vmatprep.subr.mxu0 0.0
    %4858 = vmatpush1.msra.mxu0 0.0
    %4859 = vmatprep.subr.mxu0 0.0
    %4860 = vmatpush1.msra.mxu0 0.0
    %4861 = vmatprep.subr.mxu0 0.0
    %4862 = vmatpush1.msra.mxu0 0.0
    %4863 = vmatprep.subr.mxu0 0.0
    %4864 = vmatpush1.msra.mxu0 0.0
    %4865 = vmatprep.subr.mxu0 0.0
    %4866 = vmatpush1.msra.mxu0 0.0
    %4867 = vmatprep.subr.mxu0 0.0
    %4868 = vmatpush1.msra.mxu0 0.0
    %4869 = vmatprep.subr.mxu0 0.0
    %4870 = vmatpush1.msra.mxu0 0.0
    %4871 = vmatprep.subr.mxu0 0.0
    %4872 = vmatpush1.msra.mxu0 0.0
    %4873 = vmatprep.mubr.f32.mxu0 0.0
    %4874 = vmatmul.mubr.f32.gmra.mrb[0].mxu0 %v4793
    %v4875 = vpop.f32.mrb[0].mxu0
    %v4876 = vadd.f32 0.0, %v4875
    %v4877 = vpop.f32.mrb[0].mxu0
    %4878 = vmatprep.mubr.f32.mxu0 0.0
    %4879 = vmatmul.mubr.f32.gmra.mrb[0].mxu0 %v4794
    %v4880 = vpop.f32.mrb[0].mxu0
    %v4881 = vadd.f32 0.0, %v4880
    %v4882 = vpop.f32.mrb[0].mxu0
    %4883 = vmatprep.mubr.f32.mxu0 0.0
    %4884 = vmatmul.mubr.f32.gmra.mrb[0].mxu0 %v4795
    %v4885 = vpop.f32.mrb[0].mxu0
    %v4886 = vadd.f32 0.0, %v4885
    %v4887 = vpop.f32.mrb[0].mxu0
    %4888 = vmatprep.mubr.f32.mxu0 0.0
    %4889 = vmatmul.mubr.f32.gmra.mrb[0].mxu0 %v4796
    %v4890 = vpop.f32.mrb[0].mxu0
    %v4891 = vadd.f32 0.0, %v4890
    %v4892 = vpop.f32.mrb[0].mxu0
    %4893 = vmatprep.mubr.f32.mxu0 0.0
    %4894 = vmatmul.mubr.f32.gmra.mrb[0].mxu0 %v4797
    %v4895 = vpop.f32.mrb[0].mxu0
    %v4896 = vadd.f32 0.0, %v4895
    %v4897 = vpop.f32.mrb[0].mxu0
    %4898 = vmatprep.mubr.f32.mxu0 0.0
    %4899 = vmatmul.mubr.f32.gmra.mrb[0].mxu0 %v4798
    %v4900 = vpop.f32.mrb[0].mxu0
    %v4901 = vadd.f32 0.0, %v4900
    %v4902 = vpop.f32.mrb[0].mxu0
    %4903 = vmatprep.mubr.f32.mxu0 0.0
    %4904 = vmatmul.mubr.f32.gmra.mrb[0].mxu0 %v4799
    %v4905 = vpop.f32.mrb[0].mxu0
    %v4906 = vadd.f32 0.0, %v4905
    %v4907 = vpop.f32.mrb[0].mxu0
    %4908 = vmatprep.mubr.f32.mxu0 0.0
    %4909 = vmatmul.mubr.f32.gmra.mrb[0].mxu0 %v4800
    %v4910 = vpop.f32.mrb[0].mxu0
    %v4911 = vadd.f32 0.0, %v4910
    %v4912 = vpop.f32.mrb[0].mxu0
    %4913 = vmatprep.mubr.f32.mxu0 0.0
    %4914 = vmatmul.mubr.f32.gmra.mrb[0].mxu0 %v4801
    %v4915 = vpop.f32.mrb[0].mxu0
    %v4916 = vadd.f32 0.0, %v4915
    %v4917 = vpop.f32.mrb[0].mxu0
    %4918 = vmatprep.mubr.f32.mxu0 0.0
    %4919 = vmatmul.mubr.f32.gmra.mrb[0].mxu0 %v4802
    %v4920 = vpop.f32.mrb[0].mxu0
    %v4921 = vadd.f32 0.0, %v4920
    %v4922 = vpop.f32.mrb[0].mxu0
    %4923 = vmatprep.mubr.f32.mxu0 0.0
    %4924 = vmatmul.mubr.f32.gmra.mrb[0].mxu0 %v4803
    %v4925 = vpop.f32.mrb[0].mxu0
    %v4926 = vadd.f32 0.0, %v4925
    %v4927 = vpop.f32.mrb[0].mxu0
    %4928 = vmatprep.mubr.f32.mxu0 0.0
    %4929 = vmatmul.mubr.f32.gmra.mrb[0].mxu0 %v4804
    %v4930 = vpop.f32.mrb[0].mxu0
    %v4931 = vadd.f32 0.0, %v4930
    %v4932 = vpop.f32.mrb[0].mxu0
    %4933 = vmatprep.mubr.f32.mxu0 0.0
    %4934 = vmatmul.mubr.f32.gmra.mrb[0].mxu0 %v4805
    %v4935 = vpop.f32.mrb[0].mxu0
    %v4936 = vadd.f32 0.0, %v4935
    %v4937 = vpop.f32.mrb[0].mxu0
    %4938 = vmatprep.mubr.f32.mxu0 0.0
    %4939 = vmatmul.mubr.f32.gmra.mrb[0].mxu0 %v4806
    %v4940 = vpop.f32.mrb[0].mxu0
    %v4941 = vadd.f32 0.0, %v4940
    %v4942 = vpop.f32.mrb[0].mxu0
    %4943 = vmatprep.mubr.f32.mxu0 0.0
    %4944 = vmatmul.mubr.f32.gmra.mrb[0].mxu0 %v4807
    %v4945 = vpop.f32.mrb[0].mxu0
    %v4946 = vadd.f32 0.0, %v4945
    %v4947 = vpop.f32.mrb[0].mxu0
    %4948 = vmatprep.mubr.f32.mxu0 0.0
    %4949 = vmatmul.mubr.f32.gmra.mrb[0].mxu0 %v4808
    %v4950 = vpop.f32.mrb[0].mxu0
    %v4951 = vadd.f32 0.0, %v4950
    %v4952 = vpop.f32.mrb[0].mxu0
    %4953 = vdwg.mxu0
    %4954 = vmatprep.subr.mxu0 0.0
    %4955 = vmatpush1.xpose.msra.mxu0 %v4876
    %4956 = vmatprep.subr.mxu0 0.0
    %4957 = vmatpush1.xpose.msra.mxu0 %v4881
    %4958 = vmatprep.subr.mxu0 0.0
    %4959 = vmatpush1.xpose.msra.mxu0 %v4886
    %4960 = vmatprep.subr.mxu0 0.0
    %4961 = vmatpush1.xpose.msra.mxu0 %v4891
    %4962 = vmatprep.subr.mxu0 0.0
    %4963 = vmatpush1.xpose.msra.mxu0 %v4896
    %4964 = vmatprep.subr.mxu0 0.0
    %4965 = vmatpush1.xpose.msra.mxu0 %v4901
    %4966 = vmatprep.subr.mxu0 0.0
    %4967 = vmatpush1.xpose.msra.mxu0 %v4906
    %4968 = vmatprep.subr.mxu0 0.0
    %4969 = vmatpush1.xpose.msra.mxu0 %v4911
    %4970 = vmatprep.subr.mxu0 0.0
    %4971 = vmatpush1.xpose.msra.mxu0 %v4916
    %4972 = vmatprep.subr.mxu0 0.0
    %4973 = vmatpush1.xpose.msra.mxu0 %v4921
    %4974 = vmatprep.subr.mxu0 0.0
    %4975 = vmatpush1.xpose.msra.mxu0 %v4926
    %4976 = vmatprep.subr.mxu0 0.0
    %4977 = vmatpush1.xpose.msra.mxu0 %v4931
    %4978 = vmatprep.subr.mxu0 0.0
    %4979 = vmatpush1.xpose.msra.mxu0 %v4936
    %4980 = vmatprep.subr.mxu0 0.0
    %4981 = vmatpush1.xpose.msra.mxu0 %v4941
    %4982 = vmatprep.subr.mxu0 0.0
    %4983 = vmatpush1.xpose.msra.mxu0 %v4946
    %4984 = vmatprep.subr.mxu0 0.0
    %4985 = vmatpush1.xpose.msra.mxu0 %v4951
    %4986 = vmatprep.subr.mxu0 0.0
    %4987 = vmatpush1.xpose.msra.mxu0 0.0
    %4988 = vmatprep.subr.mxu0 0.0
    %4989 = vmatpush1.xpose.msra.mxu0 0.0
    %4990 = vmatprep.subr.mxu0 0.0
    %4991 = vmatpush1.xpose.msra.mxu0 0.0
    %4992 = vmatprep.subr.mxu0 0.0
    %4993 = vmatpush1.xpose.msra.mxu0 0.0
    %4994 = vmatprep.subr.mxu0 0.0
    %4995 = vmatpush1.xpose.msra.mxu0 0.0
    %4996 = vmatprep.subr.mxu0 0.0
    %4997 = vmatpush1.xpose.msra.mxu0 0.0
    %4998 = vmatprep.subr.mxu0 0.0
    %4999 = vmatpush1.xpose.msra.mxu0 0.0
    %5000 = vmatprep.subr.mxu0 0.0
    %5001 = vmatpush1.xpose.msra.mxu0 0.0
    %5002 = vmatprep.subr.mxu0 0.0
    %5003 = vmatpush1.xpose.msra.mxu0 0.0
    %5004 = vmatprep.subr.mxu0 0.0
    %5005 = vmatpush1.xpose.msra.mxu0 0.0
    %5006 = vmatprep.subr.mxu0 0.0
    %5007 = vmatpush1.xpose.msra.mxu0 0.0
    %5008 = vmatprep.subr.mxu0 0.0
    %5009 = vmatpush1.xpose.msra.mxu0 0.0
    %5010 = vmatprep.subr.mxu0 0.0
    %5011 = vmatpush1.xpose.msra.mxu0 0.0
    %5012 = vmatprep.subr.mxu0 0.0
    %5013 = vmatpush1.xpose.msra.mxu0 0.0
    %5014 = vmatprep.subr.mxu0 0.0
    %5015 = vmatpush1.xpose.msra.mxu0 0.0
    %5016 = vmatprep.subr.mxu0 0.0
    %5017 = vmatpush1.xpose.msra.mxu0 0.0
    %5018 = vmatprep.mubr.f32.mxu0 0.0
    %5019 = vmatmul.mubr.f32.gmra.mrb[0].mxu0 %v4876
    %v5020 = vpop.f32.mrb[0].mxu0
    %v5021 = vadd.f32 0.0, %v5020
    %v5022 = vpop.f32.mrb[0].mxu0
    %5023 = vmatprep.mubr.f32.mxu0 0.0
    %5024 = vmatmul.mubr.f32.gmra.mrb[0].mxu0 %v4881
    %v5025 = vpop.f32.mrb[0].mxu0
    %v5026 = vadd.f32 0.0, %v5025
    %v5027 = vpop.f32.mrb[0].mxu0
    %5028 = vmatprep.mubr.f32.mxu0 0.0
    %5029 = vmatmul.mubr.f32.gmra.mrb[0].mxu0 %v4886
    %v5030 = vpop.f32.mrb[0].mxu0
    %v5031 = vadd.f32 0.0, %v5030
    %v5032 = vpop.f32.mrb[0].mxu0
    %5033 = vmatprep.mubr.f32.mxu0 0.0
    %5034 = vmatmul.mubr.f32.gmra.mrb[0].mxu0 %v4891
    %v5035 = vpop.f32.mrb[0].mxu0
    %v5036 = vadd.f32 0.0, %v5035
    %v5037 = vpop.f32.mrb[0].mxu0
    %5038 = vmatprep.mubr.f32.mxu0 0.0
    %5039 = vmatmul.mubr.f32.gmra.mrb[0].mxu0 %v4896
    %v5040 = vpop.f32.mrb[0].mxu0
    %v5041 = vadd.f32 0.0, %v5040
    %v5042 = vpop.f32.mrb[0].mxu0
    %5043 = vmatprep.mubr.f32.mxu0 0.0
    %5044 = vmatmul.mubr.f32.gmra.mrb[0].mxu0 %v4901
    %v5045 = vpop.f32.mrb[0].mxu0
    %v5046 = vadd.f32 0.0, %v5045
    %v5047 = vpop.f32.mrb[0].mxu0
    %5048 = vmatprep.mubr.f32.mxu0 0.0
    %5049 = vmatmul.mubr.f32.gmra.mrb[0].mxu0 %v4906
    %v5050 = vpop.f32.mrb[0].mxu0
    %v5051 = vadd.f32 0.0, %v5050
    %v5052 = vpop.f32.mrb[0].mxu0
    %5053 = vmatprep.mubr.f32.mxu0 0.0
    %5054 = vmatmul.mubr.f32.gmra.mrb[0].mxu0 %v4911
    %v5055 = vpop.f32.mrb[0].mxu0
    %v5056 = vadd.f32 0.0, %v5055
    %v5057 = vpop.f32.mrb[0].mxu0
    %5058 = vmatprep.mubr.f32.mxu0 0.0
    %5059 = vmatmul.mubr.f32.gmra.mrb[0].mxu0 %v4916
    %v5060 = vpop.f32.mrb[0].mxu0
    %v5061 = vadd.f32 0.0, %v5060
    %v5062 = vpop.f32.mrb[0].mxu0
    %5063 = vmatprep.mubr.f32.mxu0 0.0
    %5064 = vmatmul.mubr.f32.gmra.mrb[0].mxu0 %v4921
    %v5065 = vpop.f32.mrb[0].mxu0
    %v5066 = vadd.f32 0.0, %v5065
    %v5067 = vpop.f32.mrb[0].mxu0
    %5068 = vmatprep.mubr.f32.mxu0 0.0
    %5069 = vmatmul.mubr.f32.gmra.mrb[0].mxu0 %v4926
    %v5070 = vpop.f32.mrb[0].mxu0
    %v5071 = vadd.f32 0.0, %v5070
    %v5072 = vpop.f32.mrb[0].mxu0
    %5073 = vmatprep.mubr.f32.mxu0 0.0
    %5074 = vmatmul.mubr.f32.gmra.mrb[0].mxu0 %v4931
    %v5075 = vpop.f32.mrb[0].mxu0
    %v5076 = vadd.f32 0.0, %v5075
    %v5077 = vpop.f32.mrb[0].mxu0
    %5078 = vmatprep.mubr.f32.mxu0 0.0
    %5079 = vmatmul.mubr.f32.gmra.mrb[0].mxu0 %v4936
    %v5080 = vpop.f32.mrb[0].mxu0
    %v5081 = vadd.f32 0.0, %v5080
    %v5082 = vpop.f32.mrb[0].mxu0
    %5083 = vmatprep.mubr.f32.mxu0 0.0
    %5084 = vmatmul.mubr.f32.gmra.mrb[0].mxu0 %v4941
    %v5085 = vpop.f32.mrb[0].mxu0
    %v5086 = vadd.f32 0.0, %v5085
    %v5087 = vpop.f32.mrb[0].mxu0
    %5088 = vmatprep.mubr.f32.mxu0 0.0
    %5089 = vmatmul.mubr.f32.gmra.mrb[0].mxu0 %v4946
    %v5090 = vpop.f32.mrb[0].mxu0
    %v5091 = vadd.f32 0.0, %v5090
    %v5092 = vpop.f32.mrb[0].mxu0
    %5093 = vmatprep.mubr.f32.mxu0 0.0
    %5094 = vmatmul.mubr.f32.gmra.mrb[0].mxu0 %v4951
    %v5095 = vpop.f32.mrb[0].mxu0
    %v5096 = vadd.f32 0.0, %v5095
    %v5097 = vpop.f32.mrb[0].mxu0
    %5098 = vdwg.mxu0
    %v5099 = vmul.f32 %v5021, 0.5
    %v5100 = vmul.f32 %v5026, 0.5
    %v5101 = vmul.f32 %v5031, 0.5
    %v5102 = vmul.f32 %v5036, 0.5
    %v5103 = vmul.f32 %v5041, 0.5
    %v5104 = vmul.f32 %v5046, 0.5
    %v5105 = vmul.f32 %v5051, 0.5
    %v5106 = vmul.f32 %v5056, 0.5
    %v5107 = vmul.f32 %v5061, 0.5
    %v5108 = vmul.f32 %v5066, 0.5
    %v5109 = vmul.f32 %v5071, 0.5
    %v5110 = vmul.f32 %v5076, 0.5
    %v5111 = vmul.f32 %v5081, 0.5
    %v5112 = vmul.f32 %v5086, 0.5
    %v5113 = vmul.f32 %v5091, 0.5
    %v5114 = vmul.f32 %v5096, 0.5
    %v5115 = vsub.f32 %v108, %v5099
    %v5116 = vsub.f32 %v109, %v5100
    %v5117 = vsub.f32 %v110, %v5101
    %v5118 = vsub.f32 %v111, %v5102
    %v5119 = vsub.f32 %v112, %v5103
    %v5120 = vsub.f32 %v113, %v5104
    %v5121 = vsub.f32 %v114, %v5105
    %v5122 = vsub.f32 %v115, %v5106
    %v5123 = vsub.f32 %v116, %v5107
    %v5124 = vsub.f32 %v117, %v5108
    %v5125 = vsub.f32 %v118, %v5109
    %v5126 = vsub.f32 %v119, %v5110
    %v5127 = vsub.f32 %v120, %v5111
    %v5128 = vsub.f32 %v121, %v5112
    %v5129 = vsub.f32 %v122, %v5113
    %v5130 = vsub.f32 %v123, %v5114
    %5131 = vmatprep.subr.mxu0 0.0
    %5132 = vmatpush1.msra.mxu0 %v4876
    %5133 = vmatprep.subr.mxu0 0.0
    %5134 = vmatpush1.msra.mxu0 %v4881
    %5135 = vmatprep.subr.mxu0 0.0
    %5136 = vmatpush1.msra.mxu0 %v4886
    %5137 = vmatprep.subr.mxu0 0.0
    %5138 = vmatpush1.msra.mxu0 %v4891
    %5139 = vmatprep.subr.mxu0 0.0
    %5140 = vmatpush1.msra.mxu0 %v4896
    %5141 = vmatprep.subr.mxu0 0.0
    %5142 = vmatpush1.msra.mxu0 %v4901
    %5143 = vmatprep.subr.mxu0 0.0
    %5144 = vmatpush1.msra.mxu0 %v4906
    %5145 = vmatprep.subr.mxu0 0.0
    %5146 = vmatpush1.msra.mxu0 %v4911
    %5147 = vmatprep.subr.mxu0 0.0
    %5148 = vmatpush1.msra.mxu0 %v4916
    %5149 = vmatprep.subr.mxu0 0.0
    %5150 = vmatpush1.msra.mxu0 %v4921
    %5151 = vmatprep.subr.mxu0 0.0
    %5152 = vmatpush1.msra.mxu0 %v4926
    %5153 = vmatprep.subr.mxu0 0.0
    %5154 = vmatpush1.msra.mxu0 %v4931
    %5155 = vmatprep.subr.mxu0 0.0
    %5156 = vmatpush1.msra.mxu0 %v4936
    %5157 = vmatprep.subr.mxu0 0.0
    %5158 = vmatpush1.msra.mxu0 %v4941
    %5159 = vmatprep.subr.mxu0 0.0
    %5160 = vmatpush1.msra.mxu0 %v4946
    %5161 = vmatprep.subr.mxu0 0.0
    %5162 = vmatpush1.msra.mxu0 %v4951
    %5163 = vmatprep.subr.mxu0 0.0
    %5164 = vmatpush1.msra.mxu0 0.0
    %5165 = vmatprep.subr.mxu0 0.0
    %5166 = vmatpush1.msra.mxu0 0.0
    %5167 = vmatprep.subr.mxu0 0.0
    %5168 = vmatpush1.msra.mxu0 0.0
    %5169 = vmatprep.subr.mxu0 0.0
    %5170 = vmatpush1.msra.mxu0 0.0
    %5171 = vmatprep.subr.mxu0 0.0
    %5172 = vmatpush1.msra.mxu0 0.0
    %5173 = vmatprep.subr.mxu0 0.0
    %5174 = vmatpush1.msra.mxu0 0.0
    %5175 = vmatprep.subr.mxu0 0.0
    %5176 = vmatpush1.msra.mxu0 0.0
    %5177 = vmatprep.subr.mxu0 0.0
    %5178 = vmatpush1.msra.mxu0 0.0
    %5179 = vmatprep.subr.mxu0 0.0
    %5180 = vmatpush1.msra.mxu0 0.0
    %5181 = vmatprep.subr.mxu0 0.0
    %5182 = vmatpush1.msra.mxu0 0.0
    %5183 = vmatprep.subr.mxu0 0.0
    %5184 = vmatpush1.msra.mxu0 0.0
    %5185 = vmatprep.subr.mxu0 0.0
    %5186 = vmatpush1.msra.mxu0 0.0
    %5187 = vmatprep.subr.mxu0 0.0
    %5188 = vmatpush1.msra.mxu0 0.0
    %5189 = vmatprep.subr.mxu0 0.0
    %5190 = vmatpush1.msra.mxu0 0.0
    %5191 = vmatprep.subr.mxu0 0.0
    %5192 = vmatpush1.msra.mxu0 0.0
    %5193 = vmatprep.subr.mxu0 0.0
    %5194 = vmatpush1.msra.mxu0 0.0
    %5195 = vmatprep.mubr.f32.mxu0 0.0
    %5196 = vmatmul.mubr.f32.gmra.mrb[0].mxu0 %v5115
    %v5197 = vpop.f32.mrb[0].mxu0
    %v5198 = vadd.f32 0.0, %v5197
    %v5199 = vpop.f32.mrb[0].mxu0
    %5200 = vmatprep.mubr.f32.mxu0 0.0
    %5201 = vmatmul.mubr.f32.gmra.mrb[0].mxu0 %v5116
    %v5202 = vpop.f32.mrb[0].mxu0
    %v5203 = vadd.f32 0.0, %v5202
    %v5204 = vpop.f32.mrb[0].mxu0
    %5205 = vmatprep.mubr.f32.mxu0 0.0
    %5206 = vmatmul.mubr.f32.gmra.mrb[0].mxu0 %v5117
    %v5207 = vpop.f32.mrb[0].mxu0
    %v5208 = vadd.f32 0.0, %v5207
    %v5209 = vpop.f32.mrb[0].mxu0
    %5210 = vmatprep.mubr.f32.mxu0 0.0
    %5211 = vmatmul.mubr.f32.gmra.mrb[0].mxu0 %v5118
    %v5212 = vpop.f32.mrb[0].mxu0
    %v5213 = vadd.f32 0.0, %v5212
    %v5214 = vpop.f32.mrb[0].mxu0
    %5215 = vmatprep.mubr.f32.mxu0 0.0
    %5216 = vmatmul.mubr.f32.gmra.mrb[0].mxu0 %v5119
    %v5217 = vpop.f32.mrb[0].mxu0
    %v5218 = vadd.f32 0.0, %v5217
    %v5219 = vpop.f32.mrb[0].mxu0
    %5220 = vmatprep.mubr.f32.mxu0 0.0
    %5221 = vmatmul.mubr.f32.gmra.mrb[0].mxu0 %v5120
    %v5222 = vpop.f32.mrb[0].mxu0
    %v5223 = vadd.f32 0.0, %v5222
    %v5224 = vpop.f32.mrb[0].mxu0
    %5225 = vmatprep.mubr.f32.mxu0 0.0
    %5226 = vmatmul.mubr.f32.gmra.mrb[0].mxu0 %v5121
    %v5227 = vpop.f32.mrb[0].mxu0
    %v5228 = vadd.f32 0.0, %v5227
    %v5229 = vpop.f32.mrb[0].mxu0
    %5230 = vmatprep.mubr.f32.mxu0 0.0
    %5231 = vmatmul.mubr.f32.gmra.mrb[0].mxu0 %v5122
    %v5232 = vpop.f32.mrb[0].mxu0
    %v5233 = vadd.f32 0.0, %v5232
    %v5234 = vpop.f32.mrb[0].mxu0
    %5235 = vmatprep.mubr.f32.mxu0 0.0
    %5236 = vmatmul.mubr.f32.gmra.mrb[0].mxu0 %v5123
    %v5237 = vpop.f32.mrb[0].mxu0
    %v5238 = vadd.f32 0.0, %v5237
    %v5239 = vpop.f32.mrb[0].mxu0
    %5240 = vmatprep.mubr.f32.mxu0 0.0
    %5241 = vmatmul.mubr.f32.gmra.mrb[0].mxu0 %v5124
    %v5242 = vpop.f32.mrb[0].mxu0
    %v5243 = vadd.f32 0.0, %v5242
    %v5244 = vpop.f32.mrb[0].mxu0
    %5245 = vmatprep.mubr.f32.mxu0 0.0
    %5246 = vmatmul.mubr.f32.gmra.mrb[0].mxu0 %v5125
    %v5247 = vpop.f32.mrb[0].mxu0
    %v5248 = vadd.f32 0.0, %v5247
    %v5249 = vpop.f32.mrb[0].mxu0
    %5250 = vmatprep.mubr.f32.mxu0 0.0
    %5251 = vmatmul.mubr.f32.gmra.mrb[0].mxu0 %v5126
    %v5252 = vpop.f32.mrb[0].mxu0
    %v5253 = vadd.f32 0.0, %v5252
    %v5254 = vpop.f32.mrb[0].mxu0
    %5255 = vmatprep.mubr.f32.mxu0 0.0
    %5256 = vmatmul.mubr.f32.gmra.mrb[0].mxu0 %v5127
    %v5257 = vpop.f32.mrb[0].mxu0
    %v5258 = vadd.f32 0.0, %v5257
    %v5259 = vpop.f32.mrb[0].mxu0
    %5260 = vmatprep.mubr.f32.mxu0 0.0
    %5261 = vmatmul.mubr.f32.gmra.mrb[0].mxu0 %v5128
    %v5262 = vpop.f32.mrb[0].mxu0
    %v5263 = vadd.f32 0.0, %v5262
    %v5264 = vpop.f32.mrb[0].mxu0
    %5265 = vmatprep.mubr.f32.mxu0 0.0
    %5266 = vmatmul.mubr.f32.gmra.mrb[0].mxu0 %v5129
    %v5267 = vpop.f32.mrb[0].mxu0
    %v5268 = vadd.f32 0.0, %v5267
    %v5269 = vpop.f32.mrb[0].mxu0
    %5270 = vmatprep.mubr.f32.mxu0 0.0
    %5271 = vmatmul.mubr.f32.gmra.mrb[0].mxu0 %v5130
    %v5272 = vpop.f32.mrb[0].mxu0
    %v5273 = vadd.f32 0.0, %v5272
    %v5274 = vpop.f32.mrb[0].mxu0
    %5275 = vdwg.mxu0
    %5276 = vmatprep.subr.mxu0 0.0
    %5277 = vmatpush1.xpose.msra.mxu0 %v5198
    %5278 = vmatprep.subr.mxu0 0.0
    %5279 = vmatpush1.xpose.msra.mxu0 %v5203
    %5280 = vmatprep.subr.mxu0 0.0
    %5281 = vmatpush1.xpose.msra.mxu0 %v5208
    %5282 = vmatprep.subr.mxu0 0.0
    %5283 = vmatpush1.xpose.msra.mxu0 %v5213
    %5284 = vmatprep.subr.mxu0 0.0
    %5285 = vmatpush1.xpose.msra.mxu0 %v5218
    %5286 = vmatprep.subr.mxu0 0.0
    %5287 = vmatpush1.xpose.msra.mxu0 %v5223
    %5288 = vmatprep.subr.mxu0 0.0
    %5289 = vmatpush1.xpose.msra.mxu0 %v5228
    %5290 = vmatprep.subr.mxu0 0.0
    %5291 = vmatpush1.xpose.msra.mxu0 %v5233
    %5292 = vmatprep.subr.mxu0 0.0
    %5293 = vmatpush1.xpose.msra.mxu0 %v5238
    %5294 = vmatprep.subr.mxu0 0.0
    %5295 = vmatpush1.xpose.msra.mxu0 %v5243
    %5296 = vmatprep.subr.mxu0 0.0
    %5297 = vmatpush1.xpose.msra.mxu0 %v5248
    %5298 = vmatprep.subr.mxu0 0.0
    %5299 = vmatpush1.xpose.msra.mxu0 %v5253
    %5300 = vmatprep.subr.mxu0 0.0
    %5301 = vmatpush1.xpose.msra.mxu0 %v5258
    %5302 = vmatprep.subr.mxu0 0.0
    %5303 = vmatpush1.xpose.msra.mxu0 %v5263
    %5304 = vmatprep.subr.mxu0 0.0
    %5305 = vmatpush1.xpose.msra.mxu0 %v5268
    %5306 = vmatprep.subr.mxu0 0.0
    %5307 = vmatpush1.xpose.msra.mxu0 %v5273
    %5308 = vmatprep.subr.mxu0 0.0
    %5309 = vmatpush1.xpose.msra.mxu0 0.0
    %5310 = vmatprep.subr.mxu0 0.0
    %5311 = vmatpush1.xpose.msra.mxu0 0.0
    %5312 = vmatprep.subr.mxu0 0.0
    %5313 = vmatpush1.xpose.msra.mxu0 0.0
    %5314 = vmatprep.subr.mxu0 0.0
    %5315 = vmatpush1.xpose.msra.mxu0 0.0
    %5316 = vmatprep.subr.mxu0 0.0
    %5317 = vmatpush1.xpose.msra.mxu0 0.0
    %5318 = vmatprep.subr.mxu0 0.0
    %5319 = vmatpush1.xpose.msra.mxu0 0.0
    %5320 = vmatprep.subr.mxu0 0.0
    %5321 = vmatpush1.xpose.msra.mxu0 0.0
    %5322 = vmatprep.subr.mxu0 0.0
    %5323 = vmatpush1.xpose.msra.mxu0 0.0
    %5324 = vmatprep.subr.mxu0 0.0
    %5325 = vmatpush1.xpose.msra.mxu0 0.0
    %5326 = vmatprep.subr.mxu0 0.0
    %5327 = vmatpush1.xpose.msra.mxu0 0.0
    %5328 = vmatprep.subr.mxu0 0.0
    %5329 = vmatpush1.xpose.msra.mxu0 0.0
    %5330 = vmatprep.subr.mxu0 0.0
    %5331 = vmatpush1.xpose.msra.mxu0 0.0
    %5332 = vmatprep.subr.mxu0 0.0
    %5333 = vmatpush1.xpose.msra.mxu0 0.0
    %5334 = vmatprep.subr.mxu0 0.0
    %5335 = vmatpush1.xpose.msra.mxu0 0.0
    %5336 = vmatprep.subr.mxu0 0.0
    %5337 = vmatpush1.xpose.msra.mxu0 0.0
    %5338 = vmatprep.subr.mxu0 0.0
    %5339 = vmatpush1.xpose.msra.mxu0 0.0
    %5340 = vmatprep.mubr.f32.mxu0 0.0
    %5341 = vmatmul.mubr.f32.gmra.mrb[0].mxu0 %v5198
    %v5342 = vpop.f32.mrb[0].mxu0
    %v5343 = vadd.f32 0.0, %v5342
    %v5344 = vpop.f32.mrb[0].mxu0
    %5345 = vmatprep.mubr.f32.mxu0 0.0
    %5346 = vmatmul.mubr.f32.gmra.mrb[0].mxu0 %v5203
    %v5347 = vpop.f32.mrb[0].mxu0
    %v5348 = vadd.f32 0.0, %v5347
    %v5349 = vpop.f32.mrb[0].mxu0
    %5350 = vmatprep.mubr.f32.mxu0 0.0
    %5351 = vmatmul.mubr.f32.gmra.mrb[0].mxu0 %v5208
    %v5352 = vpop.f32.mrb[0].mxu0
    %v5353 = vadd.f32 0.0, %v5352
    %v5354 = vpop.f32.mrb[0].mxu0
    %5355 = vmatprep.mubr.f32.mxu0 0.0
    %5356 = vmatmul.mubr.f32.gmra.mrb[0].mxu0 %v5213
    %v5357 = vpop.f32.mrb[0].mxu0
    %v5358 = vadd.f32 0.0, %v5357
    %v5359 = vpop.f32.mrb[0].mxu0
    %5360 = vmatprep.mubr.f32.mxu0 0.0
    %5361 = vmatmul.mubr.f32.gmra.mrb[0].mxu0 %v5218
    %v5362 = vpop.f32.mrb[0].mxu0
    %v5363 = vadd.f32 0.0, %v5362
    %v5364 = vpop.f32.mrb[0].mxu0
    %5365 = vmatprep.mubr.f32.mxu0 0.0
    %5366 = vmatmul.mubr.f32.gmra.mrb[0].mxu0 %v5223
    %v5367 = vpop.f32.mrb[0].mxu0
    %v5368 = vadd.f32 0.0, %v5367
    %v5369 = vpop.f32.mrb[0].mxu0
    %5370 = vmatprep.mubr.f32.mxu0 0.0
    %5371 = vmatmul.mubr.f32.gmra.mrb[0].mxu0 %v5228
    %v5372 = vpop.f32.mrb[0].mxu0
    %v5373 = vadd.f32 0.0, %v5372
    %v5374 = vpop.f32.mrb[0].mxu0
    %5375 = vmatprep.mubr.f32.mxu0 0.0
    %5376 = vmatmul.mubr.f32.gmra.mrb[0].mxu0 %v5233
    %v5377 = vpop.f32.mrb[0].mxu0
    %v5378 = vadd.f32 0.0, %v5377
    %v5379 = vpop.f32.mrb[0].mxu0
    %5380 = vmatprep.mubr.f32.mxu0 0.0
    %5381 = vmatmul.mubr.f32.gmra.mrb[0].mxu0 %v5238
    %v5382 = vpop.f32.mrb[0].mxu0
    %v5383 = vadd.f32 0.0, %v5382
    %v5384 = vpop.f32.mrb[0].mxu0
    %5385 = vmatprep.mubr.f32.mxu0 0.0
    %5386 = vmatmul.mubr.f32.gmra.mrb[0].mxu0 %v5243
    %v5387 = vpop.f32.mrb[0].mxu0
    %v5388 = vadd.f32 0.0, %v5387
    %v5389 = vpop.f32.mrb[0].mxu0
    %5390 = vmatprep.mubr.f32.mxu0 0.0
    %5391 = vmatmul.mubr.f32.gmra.mrb[0].mxu0 %v5248
    %v5392 = vpop.f32.mrb[0].mxu0
    %v5393 = vadd.f32 0.0, %v5392
    %v5394 = vpop.f32.mrb[0].mxu0
    %5395 = vmatprep.mubr.f32.mxu0 0.0
    %5396 = vmatmul.mubr.f32.gmra.mrb[0].mxu0 %v5253
    %v5397 = vpop.f32.mrb[0].mxu0
    %v5398 = vadd.f32 0.0, %v5397
    %v5399 = vpop.f32.mrb[0].mxu0
    %5400 = vmatprep.mubr.f32.mxu0 0.0
    %5401 = vmatmul.mubr.f32.gmra.mrb[0].mxu0 %v5258
    %v5402 = vpop.f32.mrb[0].mxu0
    %v5403 = vadd.f32 0.0, %v5402
    %v5404 = vpop.f32.mrb[0].mxu0
    %5405 = vmatprep.mubr.f32.mxu0 0.0
    %5406 = vmatmul.mubr.f32.gmra.mrb[0].mxu0 %v5263
    %v5407 = vpop.f32.mrb[0].mxu0
    %v5408 = vadd.f32 0.0, %v5407
    %v5409 = vpop.f32.mrb[0].mxu0
    %5410 = vmatprep.mubr.f32.mxu0 0.0
    %5411 = vmatmul.mubr.f32.gmra.mrb[0].mxu0 %v5268
    %v5412 = vpop.f32.mrb[0].mxu0
    %v5413 = vadd.f32 0.0, %v5412
    %v5414 = vpop.f32.mrb[0].mxu0
    %5415 = vmatprep.mubr.f32.mxu0 0.0
    %5416 = vmatmul.mubr.f32.gmra.mrb[0].mxu0 %v5273
    %v5417 = vpop.f32.mrb[0].mxu0
    %v5418 = vadd.f32 0.0, %v5417
    %v5419 = vpop.f32.mrb[0].mxu0
    %5420 = vdwg.mxu0
    %v5421 = vmul.f32 %v5343, 0.5
    %v5422 = vmul.f32 %v5348, 0.5
    %v5423 = vmul.f32 %v5353, 0.5
    %v5424 = vmul.f32 %v5358, 0.5
    %v5425 = vmul.f32 %v5363, 0.5
    %v5426 = vmul.f32 %v5368, 0.5
    %v5427 = vmul.f32 %v5373, 0.5
    %v5428 = vmul.f32 %v5378, 0.5
    %v5429 = vmul.f32 %v5383, 0.5
    %v5430 = vmul.f32 %v5388, 0.5
    %v5431 = vmul.f32 %v5393, 0.5
    %v5432 = vmul.f32 %v5398, 0.5
    %v5433 = vmul.f32 %v5403, 0.5
    %v5434 = vmul.f32 %v5408, 0.5
    %v5435 = vmul.f32 %v5413, 0.5
    %v5436 = vmul.f32 %v5418, 0.5
    %v5437 = vsub.f32 %v108, %v5421
    %v5438 = vsub.f32 %v109, %v5422
    %v5439 = vsub.f32 %v110, %v5423
    %v5440 = vsub.f32 %v111, %v5424
    %v5441 = vsub.f32 %v112, %v5425
    %v5442 = vsub.f32 %v113, %v5426
    %v5443 = vsub.f32 %v114, %v5427
    %v5444 = vsub.f32 %v115, %v5428
    %v5445 = vsub.f32 %v116, %v5429
    %v5446 = vsub.f32 %v117, %v5430
    %v5447 = vsub.f32 %v118, %v5431
    %v5448 = vsub.f32 %v119, %v5432
    %v5449 = vsub.f32 %v120, %v5433
    %v5450 = vsub.f32 %v121, %v5434
    %v5451 = vsub.f32 %v122, %v5435
    %v5452 = vsub.f32 %v123, %v5436
    %5453 = vmatprep.subr.mxu0 0.0
    %5454 = vmatpush1.msra.mxu0 %v5198
    %5455 = vmatprep.subr.mxu0 0.0
    %5456 = vmatpush1.msra.mxu0 %v5203
    %5457 = vmatprep.subr.mxu0 0.0
    %5458 = vmatpush1.msra.mxu0 %v5208
    %5459 = vmatprep.subr.mxu0 0.0
    %5460 = vmatpush1.msra.mxu0 %v5213
    %5461 = vmatprep.subr.mxu0 0.0
    %5462 = vmatpush1.msra.mxu0 %v5218
    %5463 = vmatprep.subr.mxu0 0.0
    %5464 = vmatpush1.msra.mxu0 %v5223
    %5465 = vmatprep.subr.mxu0 0.0
    %5466 = vmatpush1.msra.mxu0 %v5228
    %5467 = vmatprep.subr.mxu0 0.0
    %5468 = vmatpush1.msra.mxu0 %v5233
    %5469 = vmatprep.subr.mxu0 0.0
    %5470 = vmatpush1.msra.mxu0 %v5238
    %5471 = vmatprep.subr.mxu0 0.0
    %5472 = vmatpush1.msra.mxu0 %v5243
    %5473 = vmatprep.subr.mxu0 0.0
    %5474 = vmatpush1.msra.mxu0 %v5248
    %5475 = vmatprep.subr.mxu0 0.0
    %5476 = vmatpush1.msra.mxu0 %v5253
    %5477 = vmatprep.subr.mxu0 0.0
    %5478 = vmatpush1.msra.mxu0 %v5258
    %5479 = vmatprep.subr.mxu0 0.0
    %5480 = vmatpush1.msra.mxu0 %v5263
    %5481 = vmatprep.subr.mxu0 0.0
    %5482 = vmatpush1.msra.mxu0 %v5268
    %5483 = vmatprep.subr.mxu0 0.0
    %5484 = vmatpush1.msra.mxu0 %v5273
    %5485 = vmatprep.subr.mxu0 0.0
    %5486 = vmatpush1.msra.mxu0 0.0
    %5487 = vmatprep.subr.mxu0 0.0
    %5488 = vmatpush1.msra.mxu0 0.0
    %5489 = vmatprep.subr.mxu0 0.0
    %5490 = vmatpush1.msra.mxu0 0.0
    %5491 = vmatprep.subr.mxu0 0.0
    %5492 = vmatpush1.msra.mxu0 0.0
    %5493 = vmatprep.subr.mxu0 0.0
    %5494 = vmatpush1.msra.mxu0 0.0
    %5495 = vmatprep.subr.mxu0 0.0
    %5496 = vmatpush1.msra.mxu0 0.0
    %5497 = vmatprep.subr.mxu0 0.0
    %5498 = vmatpush1.msra.mxu0 0.0
    %5499 = vmatprep.subr.mxu0 0.0
    %5500 = vmatpush1.msra.mxu0 0.0
    %5501 = vmatprep.subr.mxu0 0.0
    %5502 = vmatpush1.msra.mxu0 0.0
    %5503 = vmatprep.subr.mxu0 0.0
    %5504 = vmatpush1.msra.mxu0 0.0
    %5505 = vmatprep.subr.mxu0 0.0
    %5506 = vmatpush1.msra.mxu0 0.0
    %5507 = vmatprep.subr.mxu0 0.0
    %5508 = vmatpush1.msra.mxu0 0.0
    %5509 = vmatprep.subr.mxu0 0.0
    %5510 = vmatpush1.msra.mxu0 0.0
    %5511 = vmatprep.subr.mxu0 0.0
    %5512 = vmatpush1.msra.mxu0 0.0
    %5513 = vmatprep.subr.mxu0 0.0
    %5514 = vmatpush1.msra.mxu0 0.0
    %5515 = vmatprep.subr.mxu0 0.0
    %5516 = vmatpush1.msra.mxu0 0.0
    %5517 = vmatprep.mubr.f32.mxu0 0.0
    %5518 = vmatmul.mubr.f32.gmra.mrb[0].mxu0 %v5437
    %v5519 = vpop.f32.mrb[0].mxu0
    %v5520 = vadd.f32 0.0, %v5519
    %v5521 = vpop.f32.mrb[0].mxu0
    %5522 = vmatprep.mubr.f32.mxu0 0.0
    %5523 = vmatmul.mubr.f32.gmra.mrb[0].mxu0 %v5438
    %v5524 = vpop.f32.mrb[0].mxu0
    %v5525 = vadd.f32 0.0, %v5524
    %v5526 = vpop.f32.mrb[0].mxu0
    %5527 = vmatprep.mubr.f32.mxu0 0.0
    %5528 = vmatmul.mubr.f32.gmra.mrb[0].mxu0 %v5439
    %v5529 = vpop.f32.mrb[0].mxu0
    %v5530 = vadd.f32 0.0, %v5529
    %v5531 = vpop.f32.mrb[0].mxu0
    %5532 = vmatprep.mubr.f32.mxu0 0.0
    %5533 = vmatmul.mubr.f32.gmra.mrb[0].mxu0 %v5440
    %v5534 = vpop.f32.mrb[0].mxu0
    %v5535 = vadd.f32 0.0, %v5534
    %v5536 = vpop.f32.mrb[0].mxu0
    %5537 = vmatprep.mubr.f32.mxu0 0.0
    %5538 = vmatmul.mubr.f32.gmra.mrb[0].mxu0 %v5441
    %v5539 = vpop.f32.mrb[0].mxu0
    %v5540 = vadd.f32 0.0, %v5539
    %v5541 = vpop.f32.mrb[0].mxu0
    %5542 = vmatprep.mubr.f32.mxu0 0.0
    %5543 = vmatmul.mubr.f32.gmra.mrb[0].mxu0 %v5442
    %v5544 = vpop.f32.mrb[0].mxu0
    %v5545 = vadd.f32 0.0, %v5544
    %v5546 = vpop.f32.mrb[0].mxu0
    %5547 = vmatprep.mubr.f32.mxu0 0.0
    %5548 = vmatmul.mubr.f32.gmra.mrb[0].mxu0 %v5443
    %v5549 = vpop.f32.mrb[0].mxu0
    %v5550 = vadd.f32 0.0, %v5549
    %v5551 = vpop.f32.mrb[0].mxu0
    %5552 = vmatprep.mubr.f32.mxu0 0.0
    %5553 = vmatmul.mubr.f32.gmra.mrb[0].mxu0 %v5444
    %v5554 = vpop.f32.mrb[0].mxu0
    %v5555 = vadd.f32 0.0, %v5554
    %v5556 = vpop.f32.mrb[0].mxu0
    %5557 = vmatprep.mubr.f32.mxu0 0.0
    %5558 = vmatmul.mubr.f32.gmra.mrb[0].mxu0 %v5445
    %v5559 = vpop.f32.mrb[0].mxu0
    %v5560 = vadd.f32 0.0, %v5559
    %v5561 = vpop.f32.mrb[0].mxu0
    %5562 = vmatprep.mubr.f32.mxu0 0.0
    %5563 = vmatmul.mubr.f32.gmra.mrb[0].mxu0 %v5446
    %v5564 = vpop.f32.mrb[0].mxu0
    %v5565 = vadd.f32 0.0, %v5564
    %v5566 = vpop.f32.mrb[0].mxu0
    %5567 = vmatprep.mubr.f32.mxu0 0.0
    %5568 = vmatmul.mubr.f32.gmra.mrb[0].mxu0 %v5447
    %v5569 = vpop.f32.mrb[0].mxu0
    %v5570 = vadd.f32 0.0, %v5569
    %v5571 = vpop.f32.mrb[0].mxu0
    %5572 = vmatprep.mubr.f32.mxu0 0.0
    %5573 = vmatmul.mubr.f32.gmra.mrb[0].mxu0 %v5448
    %v5574 = vpop.f32.mrb[0].mxu0
    %v5575 = vadd.f32 0.0, %v5574
    %v5576 = vpop.f32.mrb[0].mxu0
    %5577 = vmatprep.mubr.f32.mxu0 0.0
    %5578 = vmatmul.mubr.f32.gmra.mrb[0].mxu0 %v5449
    %v5579 = vpop.f32.mrb[0].mxu0
    %v5580 = vadd.f32 0.0, %v5579
    %v5581 = vpop.f32.mrb[0].mxu0
    %5582 = vmatprep.mubr.f32.mxu0 0.0
    %5583 = vmatmul.mubr.f32.gmra.mrb[0].mxu0 %v5450
    %v5584 = vpop.f32.mrb[0].mxu0
    %v5585 = vadd.f32 0.0, %v5584
    %v5586 = vpop.f32.mrb[0].mxu0
    %5587 = vmatprep.mubr.f32.mxu0 0.0
    %5588 = vmatmul.mubr.f32.gmra.mrb[0].mxu0 %v5451
    %v5589 = vpop.f32.mrb[0].mxu0
    %v5590 = vadd.f32 0.0, %v5589
    %v5591 = vpop.f32.mrb[0].mxu0
    %5592 = vmatprep.mubr.f32.mxu0 0.0
    %5593 = vmatmul.mubr.f32.gmra.mrb[0].mxu0 %v5452
    %v5594 = vpop.f32.mrb[0].mxu0
    %v5595 = vadd.f32 0.0, %v5594
    %v5596 = vpop.f32.mrb[0].mxu0
    %5597 = vdwg.mxu0
    %5598 = vmatprep.subr.mxu0 0.0
    %5599 = vmatpush1.xpose.msra.mxu0 %v5520
    %5600 = vmatprep.subr.mxu0 0.0
    %5601 = vmatpush1.xpose.msra.mxu0 %v5525
    %5602 = vmatprep.subr.mxu0 0.0
    %5603 = vmatpush1.xpose.msra.mxu0 %v5530
    %5604 = vmatprep.subr.mxu0 0.0
    %5605 = vmatpush1.xpose.msra.mxu0 %v5535
    %5606 = vmatprep.subr.mxu0 0.0
    %5607 = vmatpush1.xpose.msra.mxu0 %v5540
    %5608 = vmatprep.subr.mxu0 0.0
    %5609 = vmatpush1.xpose.msra.mxu0 %v5545
    %5610 = vmatprep.subr.mxu0 0.0
    %5611 = vmatpush1.xpose.msra.mxu0 %v5550
    %5612 = vmatprep.subr.mxu0 0.0
    %5613 = vmatpush1.xpose.msra.mxu0 %v5555
    %5614 = vmatprep.subr.mxu0 0.0
    %5615 = vmatpush1.xpose.msra.mxu0 %v5560
    %5616 = vmatprep.subr.mxu0 0.0
    %5617 = vmatpush1.xpose.msra.mxu0 %v5565
    %5618 = vmatprep.subr.mxu0 0.0
    %5619 = vmatpush1.xpose.msra.mxu0 %v5570
    %5620 = vmatprep.subr.mxu0 0.0
    %5621 = vmatpush1.xpose.msra.mxu0 %v5575
    %5622 = vmatprep.subr.mxu0 0.0
    %5623 = vmatpush1.xpose.msra.mxu0 %v5580
    %5624 = vmatprep.subr.mxu0 0.0
    %5625 = vmatpush1.xpose.msra.mxu0 %v5585
    %5626 = vmatprep.subr.mxu0 0.0
    %5627 = vmatpush1.xpose.msra.mxu0 %v5590
    %5628 = vmatprep.subr.mxu0 0.0
    %5629 = vmatpush1.xpose.msra.mxu0 %v5595
    %5630 = vmatprep.subr.mxu0 0.0
    %5631 = vmatpush1.xpose.msra.mxu0 0.0
    %5632 = vmatprep.subr.mxu0 0.0
    %5633 = vmatpush1.xpose.msra.mxu0 0.0
    %5634 = vmatprep.subr.mxu0 0.0
    %5635 = vmatpush1.xpose.msra.mxu0 0.0
    %5636 = vmatprep.subr.mxu0 0.0
    %5637 = vmatpush1.xpose.msra.mxu0 0.0
    %5638 = vmatprep.subr.mxu0 0.0
    %5639 = vmatpush1.xpose.msra.mxu0 0.0
    %5640 = vmatprep.subr.mxu0 0.0
    %5641 = vmatpush1.xpose.msra.mxu0 0.0
    %5642 = vmatprep.subr.mxu0 0.0
    %5643 = vmatpush1.xpose.msra.mxu0 0.0
    %5644 = vmatprep.subr.mxu0 0.0
    %5645 = vmatpush1.xpose.msra.mxu0 0.0
    %5646 = vmatprep.subr.mxu0 0.0
    %5647 = vmatpush1.xpose.msra.mxu0 0.0
    %5648 = vmatprep.subr.mxu0 0.0
    %5649 = vmatpush1.xpose.msra.mxu0 0.0
    %5650 = vmatprep.subr.mxu0 0.0
    %5651 = vmatpush1.xpose.msra.mxu0 0.0
    %5652 = vmatprep.subr.mxu0 0.0
    %5653 = vmatpush1.xpose.msra.mxu0 0.0
    %5654 = vmatprep.subr.mxu0 0.0
    %5655 = vmatpush1.xpose.msra.mxu0 0.0
    %5656 = vmatprep.subr.mxu0 0.0
    %5657 = vmatpush1.xpose.msra.mxu0 0.0
    %5658 = vmatprep.subr.mxu0 0.0
    %5659 = vmatpush1.xpose.msra.mxu0 0.0
    %5660 = vmatprep.subr.mxu0 0.0
    %5661 = vmatpush1.xpose.msra.mxu0 0.0
    %5662 = vmatprep.mubr.f32.mxu0 0.0
    %5663 = vmatmul.mubr.f32.gmra.mrb[0].mxu0 %v5520
    %v5664 = vpop.f32.mrb[0].mxu0
    %v5665 = vadd.f32 0.0, %v5664
    %v5666 = vpop.f32.mrb[0].mxu0
    %5667 = vmatprep.mubr.f32.mxu0 0.0
    %5668 = vmatmul.mubr.f32.gmra.mrb[0].mxu0 %v5525
    %v5669 = vpop.f32.mrb[0].mxu0
    %v5670 = vadd.f32 0.0, %v5669
    %v5671 = vpop.f32.mrb[0].mxu0
    %5672 = vmatprep.mubr.f32.mxu0 0.0
    %5673 = vmatmul.mubr.f32.gmra.mrb[0].mxu0 %v5530
    %v5674 = vpop.f32.mrb[0].mxu0
    %v5675 = vadd.f32 0.0, %v5674
    %v5676 = vpop.f32.mrb[0].mxu0
    %5677 = vmatprep.mubr.f32.mxu0 0.0
    %5678 = vmatmul.mubr.f32.gmra.mrb[0].mxu0 %v5535
    %v5679 = vpop.f32.mrb[0].mxu0
    %v5680 = vadd.f32 0.0, %v5679
    %v5681 = vpop.f32.mrb[0].mxu0
    %5682 = vmatprep.mubr.f32.mxu0 0.0
    %5683 = vmatmul.mubr.f32.gmra.mrb[0].mxu0 %v5540
    %v5684 = vpop.f32.mrb[0].mxu0
    %v5685 = vadd.f32 0.0, %v5684
    %v5686 = vpop.f32.mrb[0].mxu0
    %5687 = vmatprep.mubr.f32.mxu0 0.0
    %5688 = vmatmul.mubr.f32.gmra.mrb[0].mxu0 %v5545
    %v5689 = vpop.f32.mrb[0].mxu0
    %v5690 = vadd.f32 0.0, %v5689
    %v5691 = vpop.f32.mrb[0].mxu0
    %5692 = vmatprep.mubr.f32.mxu0 0.0
    %5693 = vmatmul.mubr.f32.gmra.mrb[0].mxu0 %v5550
    %v5694 = vpop.f32.mrb[0].mxu0
    %v5695 = vadd.f32 0.0, %v5694
    %v5696 = vpop.f32.mrb[0].mxu0
    %5697 = vmatprep.mubr.f32.mxu0 0.0
    %5698 = vmatmul.mubr.f32.gmra.mrb[0].mxu0 %v5555
    %v5699 = vpop.f32.mrb[0].mxu0
    %v5700 = vadd.f32 0.0, %v5699
    %v5701 = vpop.f32.mrb[0].mxu0
    %5702 = vmatprep.mubr.f32.mxu0 0.0
    %5703 = vmatmul.mubr.f32.gmra.mrb[0].mxu0 %v5560
    %v5704 = vpop.f32.mrb[0].mxu0
    %v5705 = vadd.f32 0.0, %v5704
    %v5706 = vpop.f32.mrb[0].mxu0
    %5707 = vmatprep.mubr.f32.mxu0 0.0
    %5708 = vmatmul.mubr.f32.gmra.mrb[0].mxu0 %v5565
    %v5709 = vpop.f32.mrb[0].mxu0
    %v5710 = vadd.f32 0.0, %v5709
    %v5711 = vpop.f32.mrb[0].mxu0
    %5712 = vmatprep.mubr.f32.mxu0 0.0
    %5713 = vmatmul.mubr.f32.gmra.mrb[0].mxu0 %v5570
    %v5714 = vpop.f32.mrb[0].mxu0
    %v5715 = vadd.f32 0.0, %v5714
    %v5716 = vpop.f32.mrb[0].mxu0
    %5717 = vmatprep.mubr.f32.mxu0 0.0
    %5718 = vmatmul.mubr.f32.gmra.mrb[0].mxu0 %v5575
    %v5719 = vpop.f32.mrb[0].mxu0
    %v5720 = vadd.f32 0.0, %v5719
    %v5721 = vpop.f32.mrb[0].mxu0
    %5722 = vmatprep.mubr.f32.mxu0 0.0
    %5723 = vmatmul.mubr.f32.gmra.mrb[0].mxu0 %v5580
    %v5724 = vpop.f32.mrb[0].mxu0
    %v5725 = vadd.f32 0.0, %v5724
    %v5726 = vpop.f32.mrb[0].mxu0
    %5727 = vmatprep.mubr.f32.mxu0 0.0
    %5728 = vmatmul.mubr.f32.gmra.mrb[0].mxu0 %v5585
    %v5729 = vpop.f32.mrb[0].mxu0
    %v5730 = vadd.f32 0.0, %v5729
    %v5731 = vpop.f32.mrb[0].mxu0
    %5732 = vmatprep.mubr.f32.mxu0 0.0
    %5733 = vmatmul.mubr.f32.gmra.mrb[0].mxu0 %v5590
    %v5734 = vpop.f32.mrb[0].mxu0
    %v5735 = vadd.f32 0.0, %v5734
    %v5736 = vpop.f32.mrb[0].mxu0
    %5737 = vmatprep.mubr.f32.mxu0 0.0
    %5738 = vmatmul.mubr.f32.gmra.mrb[0].mxu0 %v5595
    %v5739 = vpop.f32.mrb[0].mxu0
    %v5740 = vadd.f32 0.0, %v5739
    %v5741 = vpop.f32.mrb[0].mxu0
    %5742 = vdwg.mxu0
    %v5743 = vmul.f32 %v5665, 0.5
    %v5744 = vmul.f32 %v5670, 0.5
    %v5745 = vmul.f32 %v5675, 0.5
    %v5746 = vmul.f32 %v5680, 0.5
    %v5747 = vmul.f32 %v5685, 0.5
    %v5748 = vmul.f32 %v5690, 0.5
    %v5749 = vmul.f32 %v5695, 0.5
    %v5750 = vmul.f32 %v5700, 0.5
    %v5751 = vmul.f32 %v5705, 0.5
    %v5752 = vmul.f32 %v5710, 0.5
    %v5753 = vmul.f32 %v5715, 0.5
    %v5754 = vmul.f32 %v5720, 0.5
    %v5755 = vmul.f32 %v5725, 0.5
    %v5756 = vmul.f32 %v5730, 0.5
    %v5757 = vmul.f32 %v5735, 0.5
    %v5758 = vmul.f32 %v5740, 0.5
    %v5759 = vsub.f32 %v108, %v5743
    %v5760 = vsub.f32 %v109, %v5744
    %v5761 = vsub.f32 %v110, %v5745
    %v5762 = vsub.f32 %v111, %v5746
    %v5763 = vsub.f32 %v112, %v5747
    %v5764 = vsub.f32 %v113, %v5748
    %v5765 = vsub.f32 %v114, %v5749
    %v5766 = vsub.f32 %v115, %v5750
    %v5767 = vsub.f32 %v116, %v5751
    %v5768 = vsub.f32 %v117, %v5752
    %v5769 = vsub.f32 %v118, %v5753
    %v5770 = vsub.f32 %v119, %v5754
    %v5771 = vsub.f32 %v120, %v5755
    %v5772 = vsub.f32 %v121, %v5756
    %v5773 = vsub.f32 %v122, %v5757
    %v5774 = vsub.f32 %v123, %v5758
    %5775 = vmatprep.subr.mxu0 0.0
    %5776 = vmatpush1.msra.mxu0 %v5520
    %5777 = vmatprep.subr.mxu0 0.0
    %5778 = vmatpush1.msra.mxu0 %v5525
    %5779 = vmatprep.subr.mxu0 0.0
    %5780 = vmatpush1.msra.mxu0 %v5530
    %5781 = vmatprep.subr.mxu0 0.0
    %5782 = vmatpush1.msra.mxu0 %v5535
    %5783 = vmatprep.subr.mxu0 0.0
    %5784 = vmatpush1.msra.mxu0 %v5540
    %5785 = vmatprep.subr.mxu0 0.0
    %5786 = vmatpush1.msra.mxu0 %v5545
    %5787 = vmatprep.subr.mxu0 0.0
    %5788 = vmatpush1.msra.mxu0 %v5550
    %5789 = vmatprep.subr.mxu0 0.0
    %5790 = vmatpush1.msra.mxu0 %v5555
    %5791 = vmatprep.subr.mxu0 0.0
    %5792 = vmatpush1.msra.mxu0 %v5560
    %5793 = vmatprep.subr.mxu0 0.0
    %5794 = vmatpush1.msra.mxu0 %v5565
    %5795 = vmatprep.subr.mxu0 0.0
    %5796 = vmatpush1.msra.mxu0 %v5570
    %5797 = vmatprep.subr.mxu0 0.0
    %5798 = vmatpush1.msra.mxu0 %v5575
    %5799 = vmatprep.subr.mxu0 0.0
    %5800 = vmatpush1.msra.mxu0 %v5580
    %5801 = vmatprep.subr.mxu0 0.0
    %5802 = vmatpush1.msra.mxu0 %v5585
    %5803 = vmatprep.subr.mxu0 0.0
    %5804 = vmatpush1.msra.mxu0 %v5590
    %5805 = vmatprep.subr.mxu0 0.0
    %5806 = vmatpush1.msra.mxu0 %v5595
    %5807 = vmatprep.subr.mxu0 0.0
    %5808 = vmatpush1.msra.mxu0 0.0
    %5809 = vmatprep.subr.mxu0 0.0
    %5810 = vmatpush1.msra.mxu0 0.0
    %5811 = vmatprep.subr.mxu0 0.0
    %5812 = vmatpush1.msra.mxu0 0.0
    %5813 = vmatprep.subr.mxu0 0.0
    %5814 = vmatpush1.msra.mxu0 0.0
    %5815 = vmatprep.subr.mxu0 0.0
    %5816 = vmatpush1.msra.mxu0 0.0
    %5817 = vmatprep.subr.mxu0 0.0
    %5818 = vmatpush1.msra.mxu0 0.0
    %5819 = vmatprep.subr.mxu0 0.0
    %5820 = vmatpush1.msra.mxu0 0.0
    %5821 = vmatprep.subr.mxu0 0.0
    %5822 = vmatpush1.msra.mxu0 0.0
    %5823 = vmatprep.subr.mxu0 0.0
    %5824 = vmatpush1.msra.mxu0 0.0
    %5825 = vmatprep.subr.mxu0 0.0
    %5826 = vmatpush1.msra.mxu0 0.0
    %5827 = vmatprep.subr.mxu0 0.0
    %5828 = vmatpush1.msra.mxu0 0.0
    %5829 = vmatprep.subr.mxu0 0.0
    %5830 = vmatpush1.msra.mxu0 0.0
    %5831 = vmatprep.subr.mxu0 0.0
    %5832 = vmatpush1.msra.mxu0 0.0
    %5833 = vmatprep.subr.mxu0 0.0
    %5834 = vmatpush1.msra.mxu0 0.0
    %5835 = vmatprep.subr.mxu0 0.0
    %5836 = vmatpush1.msra.mxu0 0.0
    %5837 = vmatprep.subr.mxu0 0.0
    %5838 = vmatpush1.msra.mxu0 0.0
    %5839 = vmatprep.mubr.f32.mxu0 0.0
    %5840 = vmatmul.mubr.f32.gmra.mrb[0].mxu0 %v5759
    %v5841 = vpop.f32.mrb[0].mxu0
    %v5842 = vadd.f32 0.0, %v5841
    %v5843 = vpop.f32.mrb[0].mxu0
    %5844 = vmatprep.mubr.f32.mxu0 0.0
    %5845 = vmatmul.mubr.f32.gmra.mrb[0].mxu0 %v5760
    %v5846 = vpop.f32.mrb[0].mxu0
    %v5847 = vadd.f32 0.0, %v5846
    %v5848 = vpop.f32.mrb[0].mxu0
    %5849 = vmatprep.mubr.f32.mxu0 0.0
    %5850 = vmatmul.mubr.f32.gmra.mrb[0].mxu0 %v5761
    %v5851 = vpop.f32.mrb[0].mxu0
    %v5852 = vadd.f32 0.0, %v5851
    %v5853 = vpop.f32.mrb[0].mxu0
    %5854 = vmatprep.mubr.f32.mxu0 0.0
    %5855 = vmatmul.mubr.f32.gmra.mrb[0].mxu0 %v5762
    %v5856 = vpop.f32.mrb[0].mxu0
    %v5857 = vadd.f32 0.0, %v5856
    %v5858 = vpop.f32.mrb[0].mxu0
    %5859 = vmatprep.mubr.f32.mxu0 0.0
    %5860 = vmatmul.mubr.f32.gmra.mrb[0].mxu0 %v5763
    %v5861 = vpop.f32.mrb[0].mxu0
    %v5862 = vadd.f32 0.0, %v5861
    %v5863 = vpop.f32.mrb[0].mxu0
    %5864 = vmatprep.mubr.f32.mxu0 0.0
    %5865 = vmatmul.mubr.f32.gmra.mrb[0].mxu0 %v5764
    %v5866 = vpop.f32.mrb[0].mxu0
    %v5867 = vadd.f32 0.0, %v5866
    %v5868 = vpop.f32.mrb[0].mxu0
    %5869 = vmatprep.mubr.f32.mxu0 0.0
    %5870 = vmatmul.mubr.f32.gmra.mrb[0].mxu0 %v5765
    %v5871 = vpop.f32.mrb[0].mxu0
    %v5872 = vadd.f32 0.0, %v5871
    %v5873 = vpop.f32.mrb[0].mxu0
    %5874 = vmatprep.mubr.f32.mxu0 0.0
    %5875 = vmatmul.mubr.f32.gmra.mrb[0].mxu0 %v5766
    %v5876 = vpop.f32.mrb[0].mxu0
    %v5877 = vadd.f32 0.0, %v5876
    %v5878 = vpop.f32.mrb[0].mxu0
    %5879 = vmatprep.mubr.f32.mxu0 0.0
    %5880 = vmatmul.mubr.f32.gmra.mrb[0].mxu0 %v5767
    %v5881 = vpop.f32.mrb[0].mxu0
    %v5882 = vadd.f32 0.0, %v5881
    %v5883 = vpop.f32.mrb[0].mxu0
    %5884 = vmatprep.mubr.f32.mxu0 0.0
    %5885 = vmatmul.mubr.f32.gmra.mrb[0].mxu0 %v5768
    %v5886 = vpop.f32.mrb[0].mxu0
    %v5887 = vadd.f32 0.0, %v5886
    %v5888 = vpop.f32.mrb[0].mxu0
    %5889 = vmatprep.mubr.f32.mxu0 0.0
    %5890 = vmatmul.mubr.f32.gmra.mrb[0].mxu0 %v5769
    %v5891 = vpop.f32.mrb[0].mxu0
    %v5892 = vadd.f32 0.0, %v5891
    %v5893 = vpop.f32.mrb[0].mxu0
    %5894 = vmatprep.mubr.f32.mxu0 0.0
    %5895 = vmatmul.mubr.f32.gmra.mrb[0].mxu0 %v5770
    %v5896 = vpop.f32.mrb[0].mxu0
    %v5897 = vadd.f32 0.0, %v5896
    %v5898 = vpop.f32.mrb[0].mxu0
    %5899 = vmatprep.mubr.f32.mxu0 0.0
    %5900 = vmatmul.mubr.f32.gmra.mrb[0].mxu0 %v5771
    %v5901 = vpop.f32.mrb[0].mxu0
    %v5902 = vadd.f32 0.0, %v5901
    %v5903 = vpop.f32.mrb[0].mxu0
    %5904 = vmatprep.mubr.f32.mxu0 0.0
    %5905 = vmatmul.mubr.f32.gmra.mrb[0].mxu0 %v5772
    %v5906 = vpop.f32.mrb[0].mxu0
    %v5907 = vadd.f32 0.0, %v5906
    %v5908 = vpop.f32.mrb[0].mxu0
    %5909 = vmatprep.mubr.f32.mxu0 0.0
    %5910 = vmatmul.mubr.f32.gmra.mrb[0].mxu0 %v5773
    %v5911 = vpop.f32.mrb[0].mxu0
    %v5912 = vadd.f32 0.0, %v5911
    %v5913 = vpop.f32.mrb[0].mxu0
    %5914 = vmatprep.mubr.f32.mxu0 0.0
    %5915 = vmatmul.mubr.f32.gmra.mrb[0].mxu0 %v5774
    %v5916 = vpop.f32.mrb[0].mxu0
    %v5917 = vadd.f32 0.0, %v5916
    %v5918 = vpop.f32.mrb[0].mxu0
    %5919 = vdwg.mxu0
    %5920 = vmatprep.subr.mxu0 0.0
    %5921 = vmatpush1.xpose.msra.mxu0 %v5842
    %5922 = vmatprep.subr.mxu0 0.0
    %5923 = vmatpush1.xpose.msra.mxu0 %v5847
    %5924 = vmatprep.subr.mxu0 0.0
    %5925 = vmatpush1.xpose.msra.mxu0 %v5852
    %5926 = vmatprep.subr.mxu0 0.0
    %5927 = vmatpush1.xpose.msra.mxu0 %v5857
    %5928 = vmatprep.subr.mxu0 0.0
    %5929 = vmatpush1.xpose.msra.mxu0 %v5862
    %5930 = vmatprep.subr.mxu0 0.0
    %5931 = vmatpush1.xpose.msra.mxu0 %v5867
    %5932 = vmatprep.subr.mxu0 0.0
    %5933 = vmatpush1.xpose.msra.mxu0 %v5872
    %5934 = vmatprep.subr.mxu0 0.0
    %5935 = vmatpush1.xpose.msra.mxu0 %v5877
    %5936 = vmatprep.subr.mxu0 0.0
    %5937 = vmatpush1.xpose.msra.mxu0 %v5882
    %5938 = vmatprep.subr.mxu0 0.0
    %5939 = vmatpush1.xpose.msra.mxu0 %v5887
    %5940 = vmatprep.subr.mxu0 0.0
    %5941 = vmatpush1.xpose.msra.mxu0 %v5892
    %5942 = vmatprep.subr.mxu0 0.0
    %5943 = vmatpush1.xpose.msra.mxu0 %v5897
    %5944 = vmatprep.subr.mxu0 0.0
    %5945 = vmatpush1.xpose.msra.mxu0 %v5902
    %5946 = vmatprep.subr.mxu0 0.0
    %5947 = vmatpush1.xpose.msra.mxu0 %v5907
    %5948 = vmatprep.subr.mxu0 0.0
    %5949 = vmatpush1.xpose.msra.mxu0 %v5912
    %5950 = vmatprep.subr.mxu0 0.0
    %5951 = vmatpush1.xpose.msra.mxu0 %v5917
    %5952 = vmatprep.subr.mxu0 0.0
    %5953 = vmatpush1.xpose.msra.mxu0 0.0
    %5954 = vmatprep.subr.mxu0 0.0
    %5955 = vmatpush1.xpose.msra.mxu0 0.0
    %5956 = vmatprep.subr.mxu0 0.0
    %5957 = vmatpush1.xpose.msra.mxu0 0.0
    %5958 = vmatprep.subr.mxu0 0.0
    %5959 = vmatpush1.xpose.msra.mxu0 0.0
    %5960 = vmatprep.subr.mxu0 0.0
    %5961 = vmatpush1.xpose.msra.mxu0 0.0
    %5962 = vmatprep.subr.mxu0 0.0
    %5963 = vmatpush1.xpose.msra.mxu0 0.0
    %5964 = vmatprep.subr.mxu0 0.0
    %5965 = vmatpush1.xpose.msra.mxu0 0.0
    %5966 = vmatprep.subr.mxu0 0.0
    %5967 = vmatpush1.xpose.msra.mxu0 0.0
    %5968 = vmatprep.subr.mxu0 0.0
    %5969 = vmatpush1.xpose.msra.mxu0 0.0
    %5970 = vmatprep.subr.mxu0 0.0
    %5971 = vmatpush1.xpose.msra.mxu0 0.0
    %5972 = vmatprep.subr.mxu0 0.0
    %5973 = vmatpush1.xpose.msra.mxu0 0.0
    %5974 = vmatprep.subr.mxu0 0.0
    %5975 = vmatpush1.xpose.msra.mxu0 0.0
    %5976 = vmatprep.subr.mxu0 0.0
    %5977 = vmatpush1.xpose.msra.mxu0 0.0
    %5978 = vmatprep.subr.mxu0 0.0
    %5979 = vmatpush1.xpose.msra.mxu0 0.0
    %5980 = vmatprep.subr.mxu0 0.0
    %5981 = vmatpush1.xpose.msra.mxu0 0.0
    %5982 = vmatprep.subr.mxu0 0.0
    %5983 = vmatpush1.xpose.msra.mxu0 0.0
    %5984 = vmatprep.mubr.f32.mxu0 0.0
    %5985 = vmatmul.mubr.f32.gmra.mrb[0].mxu0 %v5842
    %v5986 = vpop.f32.mrb[0].mxu0
    %v5987 = vadd.f32 0.0, %v5986
    %v5988 = vpop.f32.mrb[0].mxu0
    %5989 = vmatprep.mubr.f32.mxu0 0.0
    %5990 = vmatmul.mubr.f32.gmra.mrb[0].mxu0 %v5847
    %v5991 = vpop.f32.mrb[0].mxu0
    %v5992 = vadd.f32 0.0, %v5991
    %v5993 = vpop.f32.mrb[0].mxu0
    %5994 = vmatprep.mubr.f32.mxu0 0.0
    %5995 = vmatmul.mubr.f32.gmra.mrb[0].mxu0 %v5852
    %v5996 = vpop.f32.mrb[0].mxu0
    %v5997 = vadd.f32 0.0, %v5996
    %v5998 = vpop.f32.mrb[0].mxu0
    %5999 = vmatprep.mubr.f32.mxu0 0.0
    %6000 = vmatmul.mubr.f32.gmra.mrb[0].mxu0 %v5857
    %v6001 = vpop.f32.mrb[0].mxu0
    %v6002 = vadd.f32 0.0, %v6001
    %v6003 = vpop.f32.mrb[0].mxu0
    %6004 = vmatprep.mubr.f32.mxu0 0.0
    %6005 = vmatmul.mubr.f32.gmra.mrb[0].mxu0 %v5862
    %v6006 = vpop.f32.mrb[0].mxu0
    %v6007 = vadd.f32 0.0, %v6006
    %v6008 = vpop.f32.mrb[0].mxu0
    %6009 = vmatprep.mubr.f32.mxu0 0.0
    %6010 = vmatmul.mubr.f32.gmra.mrb[0].mxu0 %v5867
    %v6011 = vpop.f32.mrb[0].mxu0
    %v6012 = vadd.f32 0.0, %v6011
    %v6013 = vpop.f32.mrb[0].mxu0
    %6014 = vmatprep.mubr.f32.mxu0 0.0
    %6015 = vmatmul.mubr.f32.gmra.mrb[0].mxu0 %v5872
    %v6016 = vpop.f32.mrb[0].mxu0
    %v6017 = vadd.f32 0.0, %v6016
    %v6018 = vpop.f32.mrb[0].mxu0
    %6019 = vmatprep.mubr.f32.mxu0 0.0
    %6020 = vmatmul.mubr.f32.gmra.mrb[0].mxu0 %v5877
    %v6021 = vpop.f32.mrb[0].mxu0
    %v6022 = vadd.f32 0.0, %v6021
    %v6023 = vpop.f32.mrb[0].mxu0
    %6024 = vmatprep.mubr.f32.mxu0 0.0
    %6025 = vmatmul.mubr.f32.gmra.mrb[0].mxu0 %v5882
    %v6026 = vpop.f32.mrb[0].mxu0
    %v6027 = vadd.f32 0.0, %v6026
    %v6028 = vpop.f32.mrb[0].mxu0
    %6029 = vmatprep.mubr.f32.mxu0 0.0
    %6030 = vmatmul.mubr.f32.gmra.mrb[0].mxu0 %v5887
    %v6031 = vpop.f32.mrb[0].mxu0
    %v6032 = vadd.f32 0.0, %v6031
    %v6033 = vpop.f32.mrb[0].mxu0
    %6034 = vmatprep.mubr.f32.mxu0 0.0
    %6035 = vmatmul.mubr.f32.gmra.mrb[0].mxu0 %v5892
    %v6036 = vpop.f32.mrb[0].mxu0
    %v6037 = vadd.f32 0.0, %v6036
    %v6038 = vpop.f32.mrb[0].mxu0
    %6039 = vmatprep.mubr.f32.mxu0 0.0
    %6040 = vmatmul.mubr.f32.gmra.mrb[0].mxu0 %v5897
    %v6041 = vpop.f32.mrb[0].mxu0
    %v6042 = vadd.f32 0.0, %v6041
    %v6043 = vpop.f32.mrb[0].mxu0
    %6044 = vmatprep.mubr.f32.mxu0 0.0
    %6045 = vmatmul.mubr.f32.gmra.mrb[0].mxu0 %v5902
    %v6046 = vpop.f32.mrb[0].mxu0
    %v6047 = vadd.f32 0.0, %v6046
    %v6048 = vpop.f32.mrb[0].mxu0
    %6049 = vmatprep.mubr.f32.mxu0 0.0
    %6050 = vmatmul.mubr.f32.gmra.mrb[0].mxu0 %v5907
    %v6051 = vpop.f32.mrb[0].mxu0
    %v6052 = vadd.f32 0.0, %v6051
    %v6053 = vpop.f32.mrb[0].mxu0
    %6054 = vmatprep.mubr.f32.mxu0 0.0
    %6055 = vmatmul.mubr.f32.gmra.mrb[0].mxu0 %v5912
    %v6056 = vpop.f32.mrb[0].mxu0
    %v6057 = vadd.f32 0.0, %v6056
    %v6058 = vpop.f32.mrb[0].mxu0
    %6059 = vmatprep.mubr.f32.mxu0 0.0
    %6060 = vmatmul.mubr.f32.gmra.mrb[0].mxu0 %v5917
    %v6061 = vpop.f32.mrb[0].mxu0
    %v6062 = vadd.f32 0.0, %v6061
    %v6063 = vpop.f32.mrb[0].mxu0
    %6064 = vdwg.mxu0
    %v6065 = vmul.f32 %v5987, 0.5
    %v6066 = vmul.f32 %v5992, 0.5
    %v6067 = vmul.f32 %v5997, 0.5
    %v6068 = vmul.f32 %v6002, 0.5
    %v6069 = vmul.f32 %v6007, 0.5
    %v6070 = vmul.f32 %v6012, 0.5
    %v6071 = vmul.f32 %v6017, 0.5
    %v6072 = vmul.f32 %v6022, 0.5
    %v6073 = vmul.f32 %v6027, 0.5
    %v6074 = vmul.f32 %v6032, 0.5
    %v6075 = vmul.f32 %v6037, 0.5
    %v6076 = vmul.f32 %v6042, 0.5
    %v6077 = vmul.f32 %v6047, 0.5
    %v6078 = vmul.f32 %v6052, 0.5
    %v6079 = vmul.f32 %v6057, 0.5
    %v6080 = vmul.f32 %v6062, 0.5
    %v6081 = vsub.f32 %v108, %v6065
    %v6082 = vsub.f32 %v109, %v6066
    %v6083 = vsub.f32 %v110, %v6067
    %v6084 = vsub.f32 %v111, %v6068
    %v6085 = vsub.f32 %v112, %v6069
    %v6086 = vsub.f32 %v113, %v6070
    %v6087 = vsub.f32 %v114, %v6071
    %v6088 = vsub.f32 %v115, %v6072
    %v6089 = vsub.f32 %v116, %v6073
    %v6090 = vsub.f32 %v117, %v6074
    %v6091 = vsub.f32 %v118, %v6075
    %v6092 = vsub.f32 %v119, %v6076
    %v6093 = vsub.f32 %v120, %v6077
    %v6094 = vsub.f32 %v121, %v6078
    %v6095 = vsub.f32 %v122, %v6079
    %v6096 = vsub.f32 %v123, %v6080
    %6097 = vmatprep.subr.mxu0 0.0
    %6098 = vmatpush1.msra.mxu0 %v5842
    %6099 = vmatprep.subr.mxu0 0.0
    %6100 = vmatpush1.msra.mxu0 %v5847
    %6101 = vmatprep.subr.mxu0 0.0
    %6102 = vmatpush1.msra.mxu0 %v5852
    %6103 = vmatprep.subr.mxu0 0.0
    %6104 = vmatpush1.msra.mxu0 %v5857
    %6105 = vmatprep.subr.mxu0 0.0
    %6106 = vmatpush1.msra.mxu0 %v5862
    %6107 = vmatprep.subr.mxu0 0.0
    %6108 = vmatpush1.msra.mxu0 %v5867
    %6109 = vmatprep.subr.mxu0 0.0
    %6110 = vmatpush1.msra.mxu0 %v5872
    %6111 = vmatprep.subr.mxu0 0.0
    %6112 = vmatpush1.msra.mxu0 %v5877
    %6113 = vmatprep.subr.mxu0 0.0
    %6114 = vmatpush1.msra.mxu0 %v5882
    %6115 = vmatprep.subr.mxu0 0.0
    %6116 = vmatpush1.msra.mxu0 %v5887
    %6117 = vmatprep.subr.mxu0 0.0
    %6118 = vmatpush1.msra.mxu0 %v5892
    %6119 = vmatprep.subr.mxu0 0.0
    %6120 = vmatpush1.msra.mxu0 %v5897
    %6121 = vmatprep.subr.mxu0 0.0
    %6122 = vmatpush1.msra.mxu0 %v5902
    %6123 = vmatprep.subr.mxu0 0.0
    %6124 = vmatpush1.msra.mxu0 %v5907
    %6125 = vmatprep.subr.mxu0 0.0
    %6126 = vmatpush1.msra.mxu0 %v5912
    %6127 = vmatprep.subr.mxu0 0.0
    %6128 = vmatpush1.msra.mxu0 %v5917
    %6129 = vmatprep.subr.mxu0 0.0
    %6130 = vmatpush1.msra.mxu0 0.0
    %6131 = vmatprep.subr.mxu0 0.0
    %6132 = vmatpush1.msra.mxu0 0.0
    %6133 = vmatprep.subr.mxu0 0.0
    %6134 = vmatpush1.msra.mxu0 0.0
    %6135 = vmatprep.subr.mxu0 0.0
    %6136 = vmatpush1.msra.mxu0 0.0
    %6137 = vmatprep.subr.mxu0 0.0
    %6138 = vmatpush1.msra.mxu0 0.0
    %6139 = vmatprep.subr.mxu0 0.0
    %6140 = vmatpush1.msra.mxu0 0.0
    %6141 = vmatprep.subr.mxu0 0.0
    %6142 = vmatpush1.msra.mxu0 0.0
    %6143 = vmatprep.subr.mxu0 0.0
    %6144 = vmatpush1.msra.mxu0 0.0
    %6145 = vmatprep.subr.mxu0 0.0
    %6146 = vmatpush1.msra.mxu0 0.0
    %6147 = vmatprep.subr.mxu0 0.0
    %6148 = vmatpush1.msra.mxu0 0.0
    %6149 = vmatprep.subr.mxu0 0.0
    %6150 = vmatpush1.msra.mxu0 0.0
    %6151 = vmatprep.subr.mxu0 0.0
    %6152 = vmatpush1.msra.mxu0 0.0
    %6153 = vmatprep.subr.mxu0 0.0
    %6154 = vmatpush1.msra.mxu0 0.0
    %6155 = vmatprep.subr.mxu0 0.0
    %6156 = vmatpush1.msra.mxu0 0.0
    %6157 = vmatprep.subr.mxu0 0.0
    %6158 = vmatpush1.msra.mxu0 0.0
    %6159 = vmatprep.subr.mxu0 0.0
    %6160 = vmatpush1.msra.mxu0 0.0
    %6161 = vmatprep.mubr.f32.mxu0 0.0
    %6162 = vmatmul.mubr.f32.gmra.mrb[0].mxu0 %v6081
    %v6163 = vpop.f32.mrb[0].mxu0
    %v6164 = vadd.f32 0.0, %v6163
    %v6165 = vpop.f32.mrb[0].mxu0
    %6166 = vmatprep.mubr.f32.mxu0 0.0
    %6167 = vmatmul.mubr.f32.gmra.mrb[0].mxu0 %v6082
    %v6168 = vpop.f32.mrb[0].mxu0
    %v6169 = vadd.f32 0.0, %v6168
    %v6170 = vpop.f32.mrb[0].mxu0
    %6171 = vmatprep.mubr.f32.mxu0 0.0
    %6172 = vmatmul.mubr.f32.gmra.mrb[0].mxu0 %v6083
    %v6173 = vpop.f32.mrb[0].mxu0
    %v6174 = vadd.f32 0.0, %v6173
    %v6175 = vpop.f32.mrb[0].mxu0
    %6176 = vmatprep.mubr.f32.mxu0 0.0
    %6177 = vmatmul.mubr.f32.gmra.mrb[0].mxu0 %v6084
    %v6178 = vpop.f32.mrb[0].mxu0
    %v6179 = vadd.f32 0.0, %v6178
    %v6180 = vpop.f32.mrb[0].mxu0
    %6181 = vmatprep.mubr.f32.mxu0 0.0
    %6182 = vmatmul.mubr.f32.gmra.mrb[0].mxu0 %v6085
    %v6183 = vpop.f32.mrb[0].mxu0
    %v6184 = vadd.f32 0.0, %v6183
    %v6185 = vpop.f32.mrb[0].mxu0
    %6186 = vmatprep.mubr.f32.mxu0 0.0
    %6187 = vmatmul.mubr.f32.gmra.mrb[0].mxu0 %v6086
    %v6188 = vpop.f32.mrb[0].mxu0
    %v6189 = vadd.f32 0.0, %v6188
    %v6190 = vpop.f32.mrb[0].mxu0
    %6191 = vmatprep.mubr.f32.mxu0 0.0
    %6192 = vmatmul.mubr.f32.gmra.mrb[0].mxu0 %v6087
    %v6193 = vpop.f32.mrb[0].mxu0
    %v6194 = vadd.f32 0.0, %v6193
    %v6195 = vpop.f32.mrb[0].mxu0
    %6196 = vmatprep.mubr.f32.mxu0 0.0
    %6197 = vmatmul.mubr.f32.gmra.mrb[0].mxu0 %v6088
    %v6198 = vpop.f32.mrb[0].mxu0
    %v6199 = vadd.f32 0.0, %v6198
    %v6200 = vpop.f32.mrb[0].mxu0
    %6201 = vmatprep.mubr.f32.mxu0 0.0
    %6202 = vmatmul.mubr.f32.gmra.mrb[0].mxu0 %v6089
    %v6203 = vpop.f32.mrb[0].mxu0
    %v6204 = vadd.f32 0.0, %v6203
    %v6205 = vpop.f32.mrb[0].mxu0
    %6206 = vmatprep.mubr.f32.mxu0 0.0
    %6207 = vmatmul.mubr.f32.gmra.mrb[0].mxu0 %v6090
    %v6208 = vpop.f32.mrb[0].mxu0
    %v6209 = vadd.f32 0.0, %v6208
    %v6210 = vpop.f32.mrb[0].mxu0
    %6211 = vmatprep.mubr.f32.mxu0 0.0
    %6212 = vmatmul.mubr.f32.gmra.mrb[0].mxu0 %v6091
    %v6213 = vpop.f32.mrb[0].mxu0
    %v6214 = vadd.f32 0.0, %v6213
    %v6215 = vpop.f32.mrb[0].mxu0
    %6216 = vmatprep.mubr.f32.mxu0 0.0
    %6217 = vmatmul.mubr.f32.gmra.mrb[0].mxu0 %v6092
    %v6218 = vpop.f32.mrb[0].mxu0
    %v6219 = vadd.f32 0.0, %v6218
    %v6220 = vpop.f32.mrb[0].mxu0
    %6221 = vmatprep.mubr.f32.mxu0 0.0
    %6222 = vmatmul.mubr.f32.gmra.mrb[0].mxu0 %v6093
    %v6223 = vpop.f32.mrb[0].mxu0
    %v6224 = vadd.f32 0.0, %v6223
    %v6225 = vpop.f32.mrb[0].mxu0
    %6226 = vmatprep.mubr.f32.mxu0 0.0
    %6227 = vmatmul.mubr.f32.gmra.mrb[0].mxu0 %v6094
    %v6228 = vpop.f32.mrb[0].mxu0
    %v6229 = vadd.f32 0.0, %v6228
    %v6230 = vpop.f32.mrb[0].mxu0
    %6231 = vmatprep.mubr.f32.mxu0 0.0
    %6232 = vmatmul.mubr.f32.gmra.mrb[0].mxu0 %v6095
    %v6233 = vpop.f32.mrb[0].mxu0
    %v6234 = vadd.f32 0.0, %v6233
    %v6235 = vpop.f32.mrb[0].mxu0
    %6236 = vmatprep.mubr.f32.mxu0 0.0
    %6237 = vmatmul.mubr.f32.gmra.mrb[0].mxu0 %v6096
    %v6238 = vpop.f32.mrb[0].mxu0
    %v6239 = vadd.f32 0.0, %v6238
    %v6240 = vpop.f32.mrb[0].mxu0
    %6241 = vdwg.mxu0
    %6242 = vmatprep.subr.mxu0 0.0
    %6243 = vmatpush1.xpose.msra.mxu0 %v6164
    %6244 = vmatprep.subr.mxu0 0.0
    %6245 = vmatpush1.xpose.msra.mxu0 %v6169
    %6246 = vmatprep.subr.mxu0 0.0
    %6247 = vmatpush1.xpose.msra.mxu0 %v6174
    %6248 = vmatprep.subr.mxu0 0.0
    %6249 = vmatpush1.xpose.msra.mxu0 %v6179
    %6250 = vmatprep.subr.mxu0 0.0
    %6251 = vmatpush1.xpose.msra.mxu0 %v6184
    %6252 = vmatprep.subr.mxu0 0.0
    %6253 = vmatpush1.xpose.msra.mxu0 %v6189
    %6254 = vmatprep.subr.mxu0 0.0
    %6255 = vmatpush1.xpose.msra.mxu0 %v6194
    %6256 = vmatprep.subr.mxu0 0.0
    %6257 = vmatpush1.xpose.msra.mxu0 %v6199
    %6258 = vmatprep.subr.mxu0 0.0
    %6259 = vmatpush1.xpose.msra.mxu0 %v6204
    %6260 = vmatprep.subr.mxu0 0.0
    %6261 = vmatpush1.xpose.msra.mxu0 %v6209
    %6262 = vmatprep.subr.mxu0 0.0
    %6263 = vmatpush1.xpose.msra.mxu0 %v6214
    %6264 = vmatprep.subr.mxu0 0.0
    %6265 = vmatpush1.xpose.msra.mxu0 %v6219
    %6266 = vmatprep.subr.mxu0 0.0
    %6267 = vmatpush1.xpose.msra.mxu0 %v6224
    %6268 = vmatprep.subr.mxu0 0.0
    %6269 = vmatpush1.xpose.msra.mxu0 %v6229
    %6270 = vmatprep.subr.mxu0 0.0
    %6271 = vmatpush1.xpose.msra.mxu0 %v6234
    %6272 = vmatprep.subr.mxu0 0.0
    %6273 = vmatpush1.xpose.msra.mxu0 %v6239
    %6274 = vmatprep.subr.mxu0 0.0
    %6275 = vmatpush1.xpose.msra.mxu0 0.0
    %6276 = vmatprep.subr.mxu0 0.0
    %6277 = vmatpush1.xpose.msra.mxu0 0.0
    %6278 = vmatprep.subr.mxu0 0.0
    %6279 = vmatpush1.xpose.msra.mxu0 0.0
    %6280 = vmatprep.subr.mxu0 0.0
    %6281 = vmatpush1.xpose.msra.mxu0 0.0
    %6282 = vmatprep.subr.mxu0 0.0
    %6283 = vmatpush1.xpose.msra.mxu0 0.0
    %6284 = vmatprep.subr.mxu0 0.0
    %6285 = vmatpush1.xpose.msra.mxu0 0.0
    %6286 = vmatprep.subr.mxu0 0.0
    %6287 = vmatpush1.xpose.msra.mxu0 0.0
    %6288 = vmatprep.subr.mxu0 0.0
    %6289 = vmatpush1.xpose.msra.mxu0 0.0
    %6290 = vmatprep.subr.mxu0 0.0
    %6291 = vmatpush1.xpose.msra.mxu0 0.0
    %6292 = vmatprep.subr.mxu0 0.0
    %6293 = vmatpush1.xpose.msra.mxu0 0.0
    %6294 = vmatprep.subr.mxu0 0.0
    %6295 = vmatpush1.xpose.msra.mxu0 0.0
    %6296 = vmatprep.subr.mxu0 0.0
    %6297 = vmatpush1.xpose.msra.mxu0 0.0
    %6298 = vmatprep.subr.mxu0 0.0
    %6299 = vmatpush1.xpose.msra.mxu0 0.0
    %6300 = vmatprep.subr.mxu0 0.0
    %6301 = vmatpush1.xpose.msra.mxu0 0.0
    %6302 = vmatprep.subr.mxu0 0.0
    %6303 = vmatpush1.xpose.msra.mxu0 0.0
    %6304 = vmatprep.subr.mxu0 0.0
    %6305 = vmatpush1.xpose.msra.mxu0 0.0
    %6306 = vmatprep.mubr.f32.mxu0 0.0
    %6307 = vmatmul.mubr.f32.gmra.mrb[0].mxu0 %v6164
    %v6308 = vpop.f32.mrb[0].mxu0
    %v6309 = vadd.f32 0.0, %v6308
    %v6310 = vpop.f32.mrb[0].mxu0
    %6311 = vmatprep.mubr.f32.mxu0 0.0
    %6312 = vmatmul.mubr.f32.gmra.mrb[0].mxu0 %v6169
    %v6313 = vpop.f32.mrb[0].mxu0
    %v6314 = vadd.f32 0.0, %v6313
    %v6315 = vpop.f32.mrb[0].mxu0
    %6316 = vmatprep.mubr.f32.mxu0 0.0
    %6317 = vmatmul.mubr.f32.gmra.mrb[0].mxu0 %v6174
    %v6318 = vpop.f32.mrb[0].mxu0
    %v6319 = vadd.f32 0.0, %v6318
    %v6320 = vpop.f32.mrb[0].mxu0
    %6321 = vmatprep.mubr.f32.mxu0 0.0
    %6322 = vmatmul.mubr.f32.gmra.mrb[0].mxu0 %v6179
    %v6323 = vpop.f32.mrb[0].mxu0
    %v6324 = vadd.f32 0.0, %v6323
    %v6325 = vpop.f32.mrb[0].mxu0
    %6326 = vmatprep.mubr.f32.mxu0 0.0
    %6327 = vmatmul.mubr.f32.gmra.mrb[0].mxu0 %v6184
    %v6328 = vpop.f32.mrb[0].mxu0
    %v6329 = vadd.f32 0.0, %v6328
    %v6330 = vpop.f32.mrb[0].mxu0
    %6331 = vmatprep.mubr.f32.mxu0 0.0
    %6332 = vmatmul.mubr.f32.gmra.mrb[0].mxu0 %v6189
    %v6333 = vpop.f32.mrb[0].mxu0
    %v6334 = vadd.f32 0.0, %v6333
    %v6335 = vpop.f32.mrb[0].mxu0
    %6336 = vmatprep.mubr.f32.mxu0 0.0
    %6337 = vmatmul.mubr.f32.gmra.mrb[0].mxu0 %v6194
    %v6338 = vpop.f32.mrb[0].mxu0
    %v6339 = vadd.f32 0.0, %v6338
    %v6340 = vpop.f32.mrb[0].mxu0
    %6341 = vmatprep.mubr.f32.mxu0 0.0
    %6342 = vmatmul.mubr.f32.gmra.mrb[0].mxu0 %v6199
    %v6343 = vpop.f32.mrb[0].mxu0
    %v6344 = vadd.f32 0.0, %v6343
    %v6345 = vpop.f32.mrb[0].mxu0
    %6346 = vmatprep.mubr.f32.mxu0 0.0
    %6347 = vmatmul.mubr.f32.gmra.mrb[0].mxu0 %v6204
    %v6348 = vpop.f32.mrb[0].mxu0
    %v6349 = vadd.f32 0.0, %v6348
    %v6350 = vpop.f32.mrb[0].mxu0
    %6351 = vmatprep.mubr.f32.mxu0 0.0
    %6352 = vmatmul.mubr.f32.gmra.mrb[0].mxu0 %v6209
    %v6353 = vpop.f32.mrb[0].mxu0
    %v6354 = vadd.f32 0.0, %v6353
    %v6355 = vpop.f32.mrb[0].mxu0
    %6356 = vmatprep.mubr.f32.mxu0 0.0
    %6357 = vmatmul.mubr.f32.gmra.mrb[0].mxu0 %v6214
    %v6358 = vpop.f32.mrb[0].mxu0
    %v6359 = vadd.f32 0.0, %v6358
    %v6360 = vpop.f32.mrb[0].mxu0
    %6361 = vmatprep.mubr.f32.mxu0 0.0
    %6362 = vmatmul.mubr.f32.gmra.mrb[0].mxu0 %v6219
    %v6363 = vpop.f32.mrb[0].mxu0
    %v6364 = vadd.f32 0.0, %v6363
    %v6365 = vpop.f32.mrb[0].mxu0
    %6366 = vmatprep.mubr.f32.mxu0 0.0
    %6367 = vmatmul.mubr.f32.gmra.mrb[0].mxu0 %v6224
    %v6368 = vpop.f32.mrb[0].mxu0
    %v6369 = vadd.f32 0.0, %v6368
    %v6370 = vpop.f32.mrb[0].mxu0
    %6371 = vmatprep.mubr.f32.mxu0 0.0
    %6372 = vmatmul.mubr.f32.gmra.mrb[0].mxu0 %v6229
    %v6373 = vpop.f32.mrb[0].mxu0
    %v6374 = vadd.f32 0.0, %v6373
    %v6375 = vpop.f32.mrb[0].mxu0
    %6376 = vmatprep.mubr.f32.mxu0 0.0
    %6377 = vmatmul.mubr.f32.gmra.mrb[0].mxu0 %v6234
    %v6378 = vpop.f32.mrb[0].mxu0
    %v6379 = vadd.f32 0.0, %v6378
    %v6380 = vpop.f32.mrb[0].mxu0
    %6381 = vmatprep.mubr.f32.mxu0 0.0
    %6382 = vmatmul.mubr.f32.gmra.mrb[0].mxu0 %v6239
    %v6383 = vpop.f32.mrb[0].mxu0
    %v6384 = vadd.f32 0.0, %v6383
    %v6385 = vpop.f32.mrb[0].mxu0
    %6386 = vdwg.mxu0
    %v6387 = vmul.f32 %v6309, 0.5
    %v6388 = vmul.f32 %v6314, 0.5
    %v6389 = vmul.f32 %v6319, 0.5
    %v6390 = vmul.f32 %v6324, 0.5
    %v6391 = vmul.f32 %v6329, 0.5
    %v6392 = vmul.f32 %v6334, 0.5
    %v6393 = vmul.f32 %v6339, 0.5
    %v6394 = vmul.f32 %v6344, 0.5
    %v6395 = vmul.f32 %v6349, 0.5
    %v6396 = vmul.f32 %v6354, 0.5
    %v6397 = vmul.f32 %v6359, 0.5
    %v6398 = vmul.f32 %v6364, 0.5
    %v6399 = vmul.f32 %v6369, 0.5
    %v6400 = vmul.f32 %v6374, 0.5
    %v6401 = vmul.f32 %v6379, 0.5
    %v6402 = vmul.f32 %v6384, 0.5
    %v6403 = vsub.f32 %v108, %v6387
    %v6404 = vsub.f32 %v109, %v6388
    %v6405 = vsub.f32 %v110, %v6389
    %v6406 = vsub.f32 %v111, %v6390
    %v6407 = vsub.f32 %v112, %v6391
    %v6408 = vsub.f32 %v113, %v6392
    %v6409 = vsub.f32 %v114, %v6393
    %v6410 = vsub.f32 %v115, %v6394
    %v6411 = vsub.f32 %v116, %v6395
    %v6412 = vsub.f32 %v117, %v6396
    %v6413 = vsub.f32 %v118, %v6397
    %v6414 = vsub.f32 %v119, %v6398
    %v6415 = vsub.f32 %v120, %v6399
    %v6416 = vsub.f32 %v121, %v6400
    %v6417 = vsub.f32 %v122, %v6401
    %v6418 = vsub.f32 %v123, %v6402
    %6419 = vmatprep.subr.mxu0 0.0
    %6420 = vmatpush1.msra.mxu0 %v6164
    %6421 = vmatprep.subr.mxu0 0.0
    %6422 = vmatpush1.msra.mxu0 %v6169
    %6423 = vmatprep.subr.mxu0 0.0
    %6424 = vmatpush1.msra.mxu0 %v6174
    %6425 = vmatprep.subr.mxu0 0.0
    %6426 = vmatpush1.msra.mxu0 %v6179
    %6427 = vmatprep.subr.mxu0 0.0
    %6428 = vmatpush1.msra.mxu0 %v6184
    %6429 = vmatprep.subr.mxu0 0.0
    %6430 = vmatpush1.msra.mxu0 %v6189
    %6431 = vmatprep.subr.mxu0 0.0
    %6432 = vmatpush1.msra.mxu0 %v6194
    %6433 = vmatprep.subr.mxu0 0.0
    %6434 = vmatpush1.msra.mxu0 %v6199
    %6435 = vmatprep.subr.mxu0 0.0
    %6436 = vmatpush1.msra.mxu0 %v6204
    %6437 = vmatprep.subr.mxu0 0.0
    %6438 = vmatpush1.msra.mxu0 %v6209
    %6439 = vmatprep.subr.mxu0 0.0
    %6440 = vmatpush1.msra.mxu0 %v6214
    %6441 = vmatprep.subr.mxu0 0.0
    %6442 = vmatpush1.msra.mxu0 %v6219
    %6443 = vmatprep.subr.mxu0 0.0
    %6444 = vmatpush1.msra.mxu0 %v6224
    %6445 = vmatprep.subr.mxu0 0.0
    %6446 = vmatpush1.msra.mxu0 %v6229
    %6447 = vmatprep.subr.mxu0 0.0
    %6448 = vmatpush1.msra.mxu0 %v6234
    %6449 = vmatprep.subr.mxu0 0.0
    %6450 = vmatpush1.msra.mxu0 %v6239
    %6451 = vmatprep.subr.mxu0 0.0
    %6452 = vmatpush1.msra.mxu0 0.0
    %6453 = vmatprep.subr.mxu0 0.0
    %6454 = vmatpush1.msra.mxu0 0.0
    %6455 = vmatprep.subr.mxu0 0.0
    %6456 = vmatpush1.msra.mxu0 0.0
    %6457 = vmatprep.subr.mxu0 0.0
    %6458 = vmatpush1.msra.mxu0 0.0
    %6459 = vmatprep.subr.mxu0 0.0
    %6460 = vmatpush1.msra.mxu0 0.0
    %6461 = vmatprep.subr.mxu0 0.0
    %6462 = vmatpush1.msra.mxu0 0.0
    %6463 = vmatprep.subr.mxu0 0.0
    %6464 = vmatpush1.msra.mxu0 0.0
    %6465 = vmatprep.subr.mxu0 0.0
    %6466 = vmatpush1.msra.mxu0 0.0
    %6467 = vmatprep.subr.mxu0 0.0
    %6468 = vmatpush1.msra.mxu0 0.0
    %6469 = vmatprep.subr.mxu0 0.0
    %6470 = vmatpush1.msra.mxu0 0.0
    %6471 = vmatprep.subr.mxu0 0.0
    %6472 = vmatpush1.msra.mxu0 0.0
    %6473 = vmatprep.subr.mxu0 0.0
    %6474 = vmatpush1.msra.mxu0 0.0
    %6475 = vmatprep.subr.mxu0 0.0
    %6476 = vmatpush1.msra.mxu0 0.0
    %6477 = vmatprep.subr.mxu0 0.0
    %6478 = vmatpush1.msra.mxu0 0.0
    %6479 = vmatprep.subr.mxu0 0.0
    %6480 = vmatpush1.msra.mxu0 0.0
    %6481 = vmatprep.subr.mxu0 0.0
    %6482 = vmatpush1.msra.mxu0 0.0
    %6483 = vmatprep.mubr.f32.mxu0 0.0
    %6484 = vmatmul.mubr.f32.gmra.mrb[0].mxu0 %v6403
    %v6485 = vpop.f32.mrb[0].mxu0
    %v6486 = vadd.f32 0.0, %v6485
    %v6487 = vpop.f32.mrb[0].mxu0
    %6488 = vmatprep.mubr.f32.mxu0 0.0
    %6489 = vmatmul.mubr.f32.gmra.mrb[0].mxu0 %v6404
    %v6490 = vpop.f32.mrb[0].mxu0
    %v6491 = vadd.f32 0.0, %v6490
    %v6492 = vpop.f32.mrb[0].mxu0
    %6493 = vmatprep.mubr.f32.mxu0 0.0
    %6494 = vmatmul.mubr.f32.gmra.mrb[0].mxu0 %v6405
    %v6495 = vpop.f32.mrb[0].mxu0
    %v6496 = vadd.f32 0.0, %v6495
    %v6497 = vpop.f32.mrb[0].mxu0
    %6498 = vmatprep.mubr.f32.mxu0 0.0
    %6499 = vmatmul.mubr.f32.gmra.mrb[0].mxu0 %v6406
    %v6500 = vpop.f32.mrb[0].mxu0
    %v6501 = vadd.f32 0.0, %v6500
    %v6502 = vpop.f32.mrb[0].mxu0
    %6503 = vmatprep.mubr.f32.mxu0 0.0
    %6504 = vmatmul.mubr.f32.gmra.mrb[0].mxu0 %v6407
    %v6505 = vpop.f32.mrb[0].mxu0
    %v6506 = vadd.f32 0.0, %v6505
    %v6507 = vpop.f32.mrb[0].mxu0
    %6508 = vmatprep.mubr.f32.mxu0 0.0
    %6509 = vmatmul.mubr.f32.gmra.mrb[0].mxu0 %v6408
    %v6510 = vpop.f32.mrb[0].mxu0
    %v6511 = vadd.f32 0.0, %v6510
    %v6512 = vpop.f32.mrb[0].mxu0
    %6513 = vmatprep.mubr.f32.mxu0 0.0
    %6514 = vmatmul.mubr.f32.gmra.mrb[0].mxu0 %v6409
    %v6515 = vpop.f32.mrb[0].mxu0
    %v6516 = vadd.f32 0.0, %v6515
    %v6517 = vpop.f32.mrb[0].mxu0
    %6518 = vmatprep.mubr.f32.mxu0 0.0
    %6519 = vmatmul.mubr.f32.gmra.mrb[0].mxu0 %v6410
    %v6520 = vpop.f32.mrb[0].mxu0
    %v6521 = vadd.f32 0.0, %v6520
    %v6522 = vpop.f32.mrb[0].mxu0
    %6523 = vmatprep.mubr.f32.mxu0 0.0
    %6524 = vmatmul.mubr.f32.gmra.mrb[0].mxu0 %v6411
    %v6525 = vpop.f32.mrb[0].mxu0
    %v6526 = vadd.f32 0.0, %v6525
    %v6527 = vpop.f32.mrb[0].mxu0
    %6528 = vmatprep.mubr.f32.mxu0 0.0
    %6529 = vmatmul.mubr.f32.gmra.mrb[0].mxu0 %v6412
    %v6530 = vpop.f32.mrb[0].mxu0
    %v6531 = vadd.f32 0.0, %v6530
    %v6532 = vpop.f32.mrb[0].mxu0
    %6533 = vmatprep.mubr.f32.mxu0 0.0
    %6534 = vmatmul.mubr.f32.gmra.mrb[0].mxu0 %v6413
    %v6535 = vpop.f32.mrb[0].mxu0
    %v6536 = vadd.f32 0.0, %v6535
    %v6537 = vpop.f32.mrb[0].mxu0
    %6538 = vmatprep.mubr.f32.mxu0 0.0
    %6539 = vmatmul.mubr.f32.gmra.mrb[0].mxu0 %v6414
    %v6540 = vpop.f32.mrb[0].mxu0
    %v6541 = vadd.f32 0.0, %v6540
    %v6542 = vpop.f32.mrb[0].mxu0
    %6543 = vmatprep.mubr.f32.mxu0 0.0
    %6544 = vmatmul.mubr.f32.gmra.mrb[0].mxu0 %v6415
    %v6545 = vpop.f32.mrb[0].mxu0
    %v6546 = vadd.f32 0.0, %v6545
    %v6547 = vpop.f32.mrb[0].mxu0
    %6548 = vmatprep.mubr.f32.mxu0 0.0
    %6549 = vmatmul.mubr.f32.gmra.mrb[0].mxu0 %v6416
    %v6550 = vpop.f32.mrb[0].mxu0
    %v6551 = vadd.f32 0.0, %v6550
    %v6552 = vpop.f32.mrb[0].mxu0
    %6553 = vmatprep.mubr.f32.mxu0 0.0
    %6554 = vmatmul.mubr.f32.gmra.mrb[0].mxu0 %v6417
    %v6555 = vpop.f32.mrb[0].mxu0
    %v6556 = vadd.f32 0.0, %v6555
    %v6557 = vpop.f32.mrb[0].mxu0
    %6558 = vmatprep.mubr.f32.mxu0 0.0
    %6559 = vmatmul.mubr.f32.gmra.mrb[0].mxu0 %v6418
    %v6560 = vpop.f32.mrb[0].mxu0
    %v6561 = vadd.f32 0.0, %v6560
    %v6562 = vpop.f32.mrb[0].mxu0
    %6563 = vdwg.mxu0
    %v6564 = vld [vmem:[#allocation2] sm:$0xff]
    %v6565 = vld [vmem:[%s2] sm:$0x1]
    %v6567 = vlaneseq
    %v6568 = vshrl.u32 %v6567, 7
    %v6569 = vsub.s32 0, %v6568
    %v6570 = vrot.slane %v6565, %v6569
    %6572 = vmatprep.subr.mxu0 0.0
    %6573 = vmatpush1.xpose.msra.mxu0 %v6486
    %6574 = vmatprep.subr.mxu0 0.0
    %6575 = vmatpush1.xpose.msra.mxu0 %v6491
    %6576 = vmatprep.subr.mxu0 0.0
    %6577 = vmatpush1.xpose.msra.mxu0 %v6496
    %6578 = vmatprep.subr.mxu0 0.0
    %6579 = vmatpush1.xpose.msra.mxu0 %v6501
    %6580 = vmatprep.subr.mxu0 0.0
    %6581 = vmatpush1.xpose.msra.mxu0 %v6506
    %6582 = vmatprep.subr.mxu0 0.0
    %6583 = vmatpush1.xpose.msra.mxu0 %v6511
    %6584 = vmatprep.subr.mxu0 0.0
    %6585 = vmatpush1.xpose.msra.mxu0 %v6516
    %6586 = vmatprep.subr.mxu0 0.0
    %6587 = vmatpush1.xpose.msra.mxu0 %v6521
    %6588 = vmatprep.subr.mxu0 0.0
    %6589 = vmatpush1.xpose.msra.mxu0 %v6526
    %6590 = vmatprep.subr.mxu0 0.0
    %6591 = vmatpush1.xpose.msra.mxu0 %v6531
    %6592 = vmatprep.subr.mxu0 0.0
    %6593 = vmatpush1.xpose.msra.mxu0 %v6536
    %6594 = vmatprep.subr.mxu0 0.0
    %6595 = vmatpush1.xpose.msra.mxu0 %v6541
    %6596 = vmatprep.subr.mxu0 0.0
    %6597 = vmatpush1.xpose.msra.mxu0 %v6546
    %6598 = vmatprep.subr.mxu0 0.0
    %6599 = vmatpush1.xpose.msra.mxu0 %v6551
    %6600 = vmatprep.subr.mxu0 0.0
    %6601 = vmatpush1.xpose.msra.mxu0 %v6556
    %6602 = vmatprep.subr.mxu0 0.0
    %6603 = vmatpush1.xpose.msra.mxu0 %v6561
    %6604 = vmatprep.subr.mxu0 0.0
    %6605 = vmatpush1.xpose.msra.mxu0 0.0
    %6606 = vmatprep.subr.mxu0 0.0
    %6607 = vmatpush1.xpose.msra.mxu0 0.0
    %6608 = vmatprep.subr.mxu0 0.0
    %6609 = vmatpush1.xpose.msra.mxu0 0.0
    %6610 = vmatprep.subr.mxu0 0.0
    %6611 = vmatpush1.xpose.msra.mxu0 0.0
    %6612 = vmatprep.subr.mxu0 0.0
    %6613 = vmatpush1.xpose.msra.mxu0 0.0
    %6614 = vmatprep.subr.mxu0 0.0
    %6615 = vmatpush1.xpose.msra.mxu0 0.0
    %6616 = vmatprep.subr.mxu0 0.0
    %6617 = vmatpush1.xpose.msra.mxu0 0.0
    %6618 = vmatprep.subr.mxu0 0.0
    %6619 = vmatpush1.xpose.msra.mxu0 0.0
    %6620 = vmatprep.subr.mxu0 0.0
    %6621 = vmatpush1.xpose.msra.mxu0 0.0
    %6622 = vmatprep.subr.mxu0 0.0
    %6623 = vmatpush1.xpose.msra.mxu0 0.0
    %6624 = vmatprep.subr.mxu0 0.0
    %6625 = vmatpush1.xpose.msra.mxu0 0.0
    %6626 = vmatprep.subr.mxu0 0.0
    %6627 = vmatpush1.xpose.msra.mxu0 0.0
    %6628 = vmatprep.subr.mxu0 0.0
    %6629 = vmatpush1.xpose.msra.mxu0 0.0
    %6630 = vmatprep.subr.mxu0 0.0
    %6631 = vmatpush1.xpose.msra.mxu0 0.0
    %6632 = vmatprep.subr.mxu0 0.0
    %6633 = vmatpush1.xpose.msra.mxu0 0.0
    %6634 = vmatprep.subr.mxu0 0.0
    %6635 = vmatpush1.xpose.msra.mxu0 0.0
    %6636 = vmatprep.mubr.f32.mxu0 0.0
    %6637 = vmatmul.mubr.f32.gmra.mrb[0].mxu0 %v6564
    %v6638 = vpop.f32.mrb[0].mxu0
    %v6639 = vadd.f32 %v6570, %v6638
    %v6640 = vpop.f32.mrb[0].mxu0
    %6641 = vdwg.mxu0
    %6642 = vst [vmem:[#allocation7] sm:$0xff] %v6639
    // Predicated region
    $region22: #{tpu_custom_call.1} parent=1 // pred_check
      _
    $region23: #{tpu_custom_call.1} parent=1 // pred_check_branch
      %6644 = sbr.rel (0) target = $region25
    $region24: #{tpu_custom_call.1} parent=1 // pred_region
      %s6646 = ssub.s32 128, 128
      %6647 = vsyncadd [#allocation4], %s6646
      %s6649 = sshll.u32 [#allocation7], 4
      %s6650 = int_to_ptr.vmem [resolvable:$true] %s6649
      %6652 = dma.vmem_to_hbm [thread:$0]  %s6650, 128, %s3, [#allocation4]
    $region25: #{tpu_custom_call.1} parent=1 // pred_fallthru
      _
    // Predicated region
    $region26: #{tpu_custom_call.1} parent=1 // pred_check
      _
    $region27: #{tpu_custom_call.1} parent=1 // pred_check_branch
      %6654 = sbr.rel (0) target = $region29
    $region28: #{tpu_custom_call.1} parent=1 // pred_region
      %6655 = dma.done [#allocation4], 128
    $region29: #{tpu_custom_call.1} parent=1 // pred_fallthru
      _
    %6656 = vsyncpa [#allocation3], 1
    %6657 = vsyncpa [#allocation6], 1
    %6658 = vsyncpa [#allocation4], 1

</llo_original>
